<compile_context>
chip_gen: v7x
topology: tpu7x:2x2x1
jax: 0.10.0
libtpu: 0.0.40
codegen_flags: <defaults>
</compile_context>

<pallas_src>
import numpy as np
import jax
import jax.numpy as jnp
from jax.experimental import pallas as pl
from jax.experimental.pallas import tpu as pltpu


def _align_corners_interp_matrix(out_size: int, in_size: int) -> np.ndarray:
    """Matrix M so that out = M @ in is 1-D linear interpolation, align_corners=True."""
    m = np.zeros((out_size, in_size), np.float32)
    if in_size == 1 or out_size == 1:
        m[:, 0] = 1.0
        return m
    scale = (in_size - 1) / (out_size - 1)
    for o in range(out_size):
        src = o * scale
        i0 = min(int(np.floor(src)), in_size - 1)
        i1 = min(i0 + 1, in_size - 1)
        f = float(np.clip(src - i0, 0.0, 1.0))
        m[o, i0] += 1.0 - f
        m[o, i1] += f
    return m


# ------------- Kernel A: fused bilinear 2x upsample + F.pad + channel concat ----------

def _up_concat_kernel(x1_ref, x2_ref, mwT_ref, mhT_ref, o_ref):
    # x1_ref: (1, C1, H, W)   x2_ref: (1, C2, Ho2, Wo2)
    # mwT_ref: (W, Wo1)       mhT_ref: (H, Ho1)
    # o_ref:  (1, C2+C1, Ho2, Wo2)  ==  cat([x2, F.pad(upsample2x(x1))], dim=channel)
    _, C1, H, W = x1_ref.shape
    _, C2, Ho2, Wo2 = x2_ref.shape
    Wo1 = mwT_ref.shape[1]
    Ho1 = mhT_ref.shape[1]

    x1 = x1_ref[0]                                                   # (C1, H, W)
    # W-pass: one MXU matmul over all channels/rows at once.
    a = jnp.dot(x1.reshape(C1 * H, W), mwT_ref[...],
                preferred_element_type=jnp.float32).reshape(C1, H, Wo1)
    # H-pass: one MXU matmul (bring H into the contraction position first).
    a = jnp.swapaxes(a, 1, 2)                                        # (C1, Wo1, H)
    u = jnp.dot(a.reshape(C1 * Wo1, H), mhT_ref[...],
                preferred_element_type=jnp.float32).reshape(C1, Wo1, Ho1)
    u = jnp.swapaxes(u, 1, 2)                                        # (C1, Ho1, Wo1)

    py0 = (Ho2 - Ho1) // 2
    px0 = (Wo2 - Wo1) // 2
    if (Ho2 != Ho1) or (Wo2 != Wo1):      # zero background only needed when F.pad is non-trivial
        o_ref[...] = jnp.zeros_like(o_ref)
    o_ref[0, 0:C2, :, :] = x2_ref[0].astype(o_ref.dtype)             # x2 first (torch.cat order)
    o_ref[0, C2:C2 + C1, py0:py0 + Ho1, px0:px0 + Wo1] = u.astype(o_ref.dtype)


def upsample_pad_concat(x1, x2):
    """Fused: bilinear(align_corners=True) 2x upsample of x1, F.pad to x2's spatial size,
    torch.cat([x2, x1], dim=1).  NCHW in / NCHW out."""
    N, C1, H, W = x1.shape
    _, C2, Ho2, Wo2 = x2.shape
    Ho1, Wo1 = 2 * H, 2 * W
    mwT = jnp.asarray(_align_corners_interp_matrix(Wo1, W).T)        # (W, Wo1)
    mhT = jnp.asarray(_align_corners_interp_matrix(Ho1, H).T)        # (H, Ho1)
    return pl.pallas_call(
        _up_concat_kernel,
        out_shape=jax.ShapeDtypeStruct((N, C1 + C2, Ho2, Wo2), jnp.float32),
        grid=(N,),
        in_specs=[
            pl.BlockSpec((1, C1, H, W), lambda n: (n, 0, 0, 0)),
            pl.BlockSpec((1, C2, Ho2, Wo2), lambda n: (n, 0, 0, 0)),
            pl.BlockSpec((W, Wo1), lambda n: (0, 0)),
            pl.BlockSpec((H, Ho1), lambda n: (0, 0)),
        ],
        out_specs=pl.BlockSpec((1, C1 + C2, Ho2, Wo2), lambda n: (n, 0, 0, 0)),
        compiler_params=pltpu.CompilerParams(dimension_semantics=("parallel",)),
    )(x1, x2, mwT, mhT)


# ---------------- Kernel B: conv1 (9 accumulating matmuls) + partial BN stats ----------

def _conv1_kernel(xp_ref, w_ref, yp_ref, s_ref, ss_ref):
    # xp_ref: (1, H+2, W+2, Cin)  zero-padded NHWC input tile
    # w_ref : (9, Cin, Cmid)      3x3 weights, index kh*3+kw
    # yp_ref: (1, H+2, W+2, Cmid) conv output (pre-BN) with zero halo -> conv2 input
    # s_ref/ss_ref: (1, 1, Cmid)  per-block channel sum / sum-of-squares (global BN stats)
    _, Hp, Wp, Cin = xp_ref.shape
    H, W = Hp - 2, Wp - 2
    Cmid = w_ref.shape[-1]
    xp = xp_ref[0]
    acc = jnp.zeros((H * W, Cmid), jnp.float32)
    for kh in range(3):
        for kw in range(3):
            tap = jax.lax.slice(xp, (kh, kw, 0), (kh + H, kw + W, Cin)).reshape(H * W, Cin)
            acc = acc + jnp.dot(tap, w_ref[kh * 3 + kw],
                                preferred_element_type=jnp.float32)
    # Conv bias omitted: exactly cancelled by the training-mode BatchNorm that follows.
    s_ref[0] = jnp.sum(acc, axis=0, keepdims=True)
    ss_ref[0] = jnp.sum(acc * acc, axis=0, keepdims=True)
    yp_ref[...] = jnp.zeros_like(yp_ref)
    yp_ref[0, 1:H + 1, 1:W + 1, :] = acc.reshape(H, W, Cmid).astype(yp_ref.dtype)


# ------------- Kernel C: fused BN1+ReLU prologue + conv2 + partial BN stats ------------

def _conv2_kernel(yp_ref, scale_ref, shift_ref, w_ref, y_ref, s_ref, ss_ref):
    # yp_ref: (1, H+2, W+2, Cmid)  conv1 output (pre-BN), zero halo
    # scale_ref/shift_ref: (1, Cmid)  folded BN1 scale / shift
    # w_ref : (9, Cmid, Cout)
    # y_ref : (1, H, W, Cout)      conv2 output (pre-BN)
    # s_ref/ss_ref: (1, 1, Cout)
    _, Hp, Wp, Cmid = yp_ref.shape
    H, W = Hp - 2, Wp - 2
    Cout = w_ref.shape[-1]
    y1 = yp_ref[0].astype(jnp.float32)
    # Fused BN1 + ReLU (f32 VPU math), then re-zero the conv halo (the BN shift would
    # otherwise leak into the zero padding).
    act = jnp.maximum(y1 * scale_ref[...] + shift_ref[...], 0.0)
    row = jax.lax.broadcasted_iota(jnp.int32, (Hp, Wp, Cmid), 0)
    col = jax.lax.broadcasted_iota(jnp.int32, (Hp, Wp, Cmid), 1)
    halo = (row == 0) | (row == Hp - 1) | (col == 0) | (col == Wp - 1)
    act = jnp.where(halo, 0.0, act)
    acc = jnp.zeros((H * W, Cout), jnp.float32)
    for kh in range(3):
        for kw in range(3):
            tap = jax.lax.slice(act, (kh, kw, 0), (kh + H, kw + W, Cmid)).reshape(H * W, Cmid)
            acc = acc + jnp.dot(tap, w_ref[kh * 3 + kw],
                                preferred_element_type=jnp.float32)
    s_ref[0] = jnp.sum(acc, axis=0, keepdims=True)
    ss_ref[0] = jnp.sum(acc * acc, axis=0, keepdims=True)
    y_ref[0] = acc.reshape(H, W, Cout).astype(y_ref.dtype)


# ---------------- Kernel D: BN2-apply + ReLU, lane-dense NCHW output -------------------

def _bn_relu_to_nchw_kernel(y_ref, scale_ref, shift_ref, o_ref):
    # y_ref: (1, H, W, C)   scale/shift: (1, C)   o_ref: (1, C, H*W)  (lane-dense NCHW slab)
    _, H, W, C = y_ref.shape
    t = jnp.maximum(y_ref[0] * scale_ref[...] + shift_ref[...], 0.0)
    o_ref[0] = t.reshape(H * W, C).T.astype(o_ref.dtype)


# --------------------------------------- Up --------------------------------------------

def _bn_fold(psum, psumsq, gamma, beta, count, eps):
    """Fold global (biased) batch statistics into per-channel scale / shift."""
    mean = jnp.sum(psum, axis=0) / count                              # (1, C)
    var = jnp.sum(psumsq, axis=0) / count - mean * mean
    var = jnp.maximum(var, 0.0)    # guard E[y^2] - E[y]^2 cancellation
    scale = gamma.reshape(1, -1) * jax.lax.rsqrt(var + eps)
    shift = beta.reshape(1, -1) - mean * scale
    return scale, shift


def up_forward(x1, x2, params, eps=1e-5):
    """Up.forward.  x1: (N, C1, H, W), x2: (N, C2, 2H, 2W), NCHW (as PyTorch)."""
    N = x1.shape[0]
    _, C2, H, W = x2.shape
    C1 = x1.shape[1]
    Cin = C1 + C2
    Cmid = params["w1"].shape[-1]
    Cout = params["w2"].shape[-1]
    Hp, Wp = H + 2, W + 2

    # Fused upsample + pad + concat (NCHW).
    xcat = upsample_pad_concat(x1, x2)                                # (N, Cin, H, W)

    # Conv halo + channels-last relayout for the im2col matmuls (one fused XLA copy).
    # TODO(synk): fold this relayout into the Pallas pipeline.
    xp = jnp.pad(xcat, ((0, 0), (0, 0), (1, 1), (1, 1)))
    xp = jnp.transpose(xp, (0, 2, 3, 1))                              # (N, H+2, W+2, Cin)

    w1 = params["w1"].reshape(9, Cin, Cmid)
    cost1 = pl.CostEstimate(
        flops=2 * N * H * W * 9 * Cin * Cmid, transcendentals=0,
        bytes_accessed=4 * (N * Hp * Wp * (Cin + Cmid) + 9 * Cin * Cmid))
    y1p, s1, ss1 = pl.pallas_call(
        _conv1_kernel,
        out_shape=(
            jax.ShapeDtypeStruct((N, Hp, Wp, Cmid), jnp.float32),
            jax.ShapeDtypeStruct((N, 1, Cmid), jnp.float32),
            jax.ShapeDtypeStruct((N, 1, Cmid), jnp.float32),
        ),
        grid=(N,),
        in_specs=[
            pl.BlockSpec((1, Hp, Wp, Cin), lambda n: (n, 0, 0, 0)),
            pl.BlockSpec((9, Cin, Cmid), lambda n: (0, 0, 0)),
        ],
        out_specs=(
            pl.BlockSpec((1, Hp, Wp, Cmid), lambda n: (n, 0, 0, 0)),
            pl.BlockSpec((1, 1, Cmid), lambda n: (n, 0, 0)),
            pl.BlockSpec((1, 1, Cmid), lambda n: (n, 0, 0)),
        ),
        compiler_params=pltpu.CompilerParams(
            dimension_semantics=("parallel",),
            vmem_limit_bytes=48 * 1024 * 1024),
        cost_estimate=cost1,
    )(xp, w1)

    count = float(N * H * W)
    scale1, shift1 = _bn_fold(s1, ss1, params["g1"], params["bt1"], count, eps)

    w2 = params["w2"].reshape(9, Cmid, Cout)
    cost2 = pl.CostEstimate(
        flops=2 * N * H * W * 9 * Cmid * Cout, transcendentals=0,
        bytes_accessed=4 * (N * Hp * Wp * Cmid + N * H * W * Cout + 9 * Cmid * Cout))
    y2, s2, ss2 = pl.pallas_call(
        _conv2_kernel,
        out_shape=(
            jax.ShapeDtypeStruct((N, H, W, Cout), jnp.float32),
            jax.ShapeDtypeStruct((N, 1, Cout), jnp.float32),
            jax.ShapeDtypeStruct((N, 1, Cout), jnp.float32),
        ),
        grid=(N,),
        in_specs=[
            pl.BlockSpec((1, Hp, Wp, Cmid), lambda n: (n, 0, 0, 0)),
            pl.BlockSpec((1, Cmid), lambda n: (0, 0)),
            pl.BlockSpec((1, Cmid), lambda n: (0, 0)),
            pl.BlockSpec((9, Cmid, Cout), lambda n: (0, 0, 0)),
        ],
        out_specs=(
            pl.BlockSpec((1, H, W, Cout), lambda n: (n, 0, 0, 0)),
            pl.BlockSpec((1, 1, Cout), lambda n: (n, 0, 0)),
            pl.BlockSpec((1, 1, Cout), lambda n: (n, 0, 0)),
        ),
        compiler_params=pltpu.CompilerParams(
            dimension_semantics=("parallel",),
            vmem_limit_bytes=48 * 1024 * 1024),
        cost_estimate=cost2,
    )(y1p, scale1, shift1, w2)

    scale2, shift2 = _bn_fold(s2, ss2, params["g2"], params["bt2"], count, eps)

    out = pl.pallas_call(
        _bn_relu_to_nchw_kernel,
        out_shape=jax.ShapeDtypeStruct((N, Cout, H * W), jnp.float32),
        grid=(N,),
        in_specs=[
            pl.BlockSpec((1, H, W, Cout), lambda n: (n, 0, 0, 0)),
            pl.BlockSpec((1, Cout), lambda n: (0, 0)),
            pl.BlockSpec((1, Cout), lambda n: (0, 0)),
        ],
        out_specs=pl.BlockSpec((1, Cout, H * W), lambda n: (n, 0, 0)),
        compiler_params=pltpu.CompilerParams(dimension_semantics=("parallel",)),
    )(y2, scale2, shift2)
    return out.reshape(N, Cout, H, W)                                 # free bitcast


# ------------------------------ pure-JAX reference -------------------------------------

def _ref_conv_bn_relu(x, w, b, gamma, beta, eps=1e-5):
    y = jax.lax.conv_general_dilated(
        x, w, window_strides=(1, 1), padding=((1, 1), (1, 1)),
        dimension_numbers=("NCHW", "HWIO", "NCHW"),
        precision=jax.lax.Precision.HIGHEST)
    y = y + b.reshape(1, -1, 1, 1)
    mean = jnp.mean(y, axis=(0, 2, 3), keepdims=True)
    var = jnp.mean((y - mean) ** 2, axis=(0, 2, 3), keepdims=True)
    y = (y - mean) * jax.lax.rsqrt(var + eps)
    y = y * gamma.reshape(1, -1, 1, 1) + beta.reshape(1, -1, 1, 1)
    return jnp.maximum(y, 0.0)


def _ref_up(x1, x2, params):
    N, C, H, W = x1.shape
    mh = jnp.asarray(_align_corners_interp_matrix(2 * H, H))
    mw = jnp.asarray(_align_corners_interp_matrix(2 * W, W))
    x1u = jnp.einsum("oh,nchw->ncow", mh, x1)
    x1u = jnp.einsum("pw,ncow->ncop", mw, x1u)
    diffY = x2.shape[2] - x1u.shape[2]
    diffX = x2.shape[3] - x1u.shape[3]
    x1p = jnp.pad(x1u, ((0, 0), (0, 0),
                        (diffY // 2, diffY - diffY // 2),
                        (diffX // 2, diffX - diffX // 2)))
    x = jnp.concatenate([x2, x1p], axis=1)
    h = _ref_conv_bn_relu(x, params["w1"], params["b1"], params["g1"], params["bt1"])
    return _ref_conv_bn_relu(h, params["w2"], params["b2"], params["g2"], params["bt2"])


# --------------------------------- params ----------------------------------------------

def init_params(key, in_channels, out_channels):
    mid = in_channels // 2
    ks = jax.random.split(key, 8)

    def conv_w(k, cin, cout):
        return (jax.random.normal(k, (3, 3, cin, cout), jnp.float32)
                / np.sqrt(9.0 * cin))

    return {
        "w1": conv_w(ks[0], in_channels, mid),
        "b1": 0.1 * jax.random.normal(ks[1], (mid,), jnp.float32),    # used by ref only
        "g1": 1.0 + 0.1 * jax.random.normal(ks[2], (mid,), jnp.float32),
        "bt1": 0.1 * jax.random.normal(ks[3], (mid,), jnp.float32),
        "w2": conv_w(ks[4], mid, out_channels),
        "b2": 0.1 * jax.random.normal(ks[5], (out_channels,), jnp.float32),  # ref only
        "g2": 1.0 + 0.1 * jax.random.normal(ks[6], (out_channels,), jnp.float32),
        "bt2": 0.1 * jax.random.normal(ks[7], (out_channels,), jnp.float32),
    }


if __name__ == "__main__":
    key = jax.random.PRNGKey(0)
    k_x1, k_x2, k_p = jax.random.split(key, 3)

    # Up(in_channels=8, out_channels=4, bilinear=True): x1 and x2 each carry
    # in_channels//2 = 4 channels; x2 has twice the spatial resolution of x1.
    N, H, W = 2, 8, 8
    C1, C2 = 4, 4
    in_channels, out_channels = C1 + C2, 4

    x1 = jax.random.normal(k_x1, (N, C1, H, W), jnp.float32)
    x2 = jax.random.normal(k_x2, (N, C2, 2 * H, 2 * W), jnp.float32)
    params = init_params(k_p, in_channels, out_channels)

    out = jax.jit(up_forward)(x1, x2, params)
    out = jax.block_until_ready(out)
    assert out.shape == (N, out_channels, 2 * H, 2 * W)

    ref = _ref_up(x1, x2, params)
    np.testing.assert_allclose(np.asarray(out), np.asarray(ref), rtol=2e-2, atol=2e-2)
    print("KERNEL_OK")
</pallas_src>

<mosaic_0001>
module attributes {stable_mosaic.version = 11 : i64} {
  func.func @_up_concat_kernel(%arg0: i32, %arg1: memref<1x4x8x8xf32, #tpu.memory_space<vmem>>, %arg2: memref<1x4x16x16xf32, #tpu.memory_space<vmem>>, %arg3: memref<8x16xf32, #tpu.memory_space<vmem>>, %arg4: memref<8x16xf32, #tpu.memory_space<vmem>>, %arg5: memref<1x8x16x16xf32, #tpu.memory_space<vmem>>) attributes {dimension_semantics = [#tpu.dimension_semantics<parallel>], iteration_bounds = array<i64: 2>, scalar_prefetch = 0 : i64, scratch_operands = 0 : i64, tpu.core_type = #tpu.core_type<tc>, window_params = [{transform_indices = @transform_0, window_bounds = array<i64: 1, 4, 8, 8>}, {transform_indices = @transform_1, window_bounds = array<i64: 1, 4, 16, 16>}, {pipeline_mode = #tpu.pipeline_mode<synchronous>, transform_indices = @transform_2, window_bounds = array<i64: 8, 16>}, {pipeline_mode = #tpu.pipeline_mode<synchronous>, transform_indices = @transform_3, window_bounds = array<i64: 8, 16>}, {transform_indices = @transform_4, window_bounds = array<i64: 1, 8, 16, 16>}]} {
    %c0 = arith.constant 0 : index
    %c0_0 = arith.constant 0 : index
    %c0_1 = arith.constant 0 : index
    %c0_2 = arith.constant 0 : index
    %0 = vector.load %arg1[%c0, %c0_0, %c0_1, %c0_2] : memref<1x4x8x8xf32, #tpu.memory_space<vmem>>, vector<1x4x8x8xf32>
    %1 = vector.shape_cast %0 : vector<1x4x8x8xf32> to vector<4x8x8xf32>
    %2 = vector.shape_cast %1 : vector<4x8x8xf32> to vector<32x8xf32>
    %c0_3 = arith.constant 0 : index
    %c0_4 = arith.constant 0 : index
    %3 = vector.load %arg3[%c0_3, %c0_4] : memref<8x16xf32, #tpu.memory_space<vmem>>, vector<8x16xf32>
    %cst = arith.constant dense<0.000000e+00> : vector<32x16xf32>
    %4 = tpu.matmul %2, %3, %cst {dimension_numbers = #tpu.dot_dimension_numbers<[1], [0], [0], [1], [0, 0, 1, 1], [], []>} : vector<32x8xf32>, vector<8x16xf32>, vector<32x16xf32> -> vector<32x16xf32>
    %5 = vector.shape_cast %4 : vector<32x16xf32> to vector<4x8x16xf32>
    %6 = tpu.transpose %5, [0, 2, 1] : vector<4x8x16xf32> -> vector<4x16x8xf32>
    %7 = vector.shape_cast %6 : vector<4x16x8xf32> to vector<64x8xf32>
    %c0_5 = arith.constant 0 : index
    %c0_6 = arith.constant 0 : index
    %8 = vector.load %arg4[%c0_5, %c0_6] : memref<8x16xf32, #tpu.memory_space<vmem>>, vector<8x16xf32>
    %cst_7 = arith.constant dense<0.000000e+00> : vector<64x16xf32>
    %9 = tpu.matmul %7, %8, %cst_7 {dimension_numbers = #tpu.dot_dimension_numbers<[1], [0], [0], [1], [0, 0, 1, 1], [], []>} : vector<64x8xf32>, vector<8x16xf32>, vector<64x16xf32> -> vector<64x16xf32>
    %10 = vector.shape_cast %9 : vector<64x16xf32> to vector<4x16x16xf32>
    %11 = tpu.transpose %10, [0, 2, 1] : vector<4x16x16xf32> -> vector<4x16x16xf32>
    %c0_8 = arith.constant 0 : index
    %c0_9 = arith.constant 0 : index
    %c0_10 = arith.constant 0 : index
    %c0_11 = arith.constant 0 : index
    %12 = vector.load %arg2[%c0_8, %c0_9, %c0_10, %c0_11] : memref<1x4x16x16xf32, #tpu.memory_space<vmem>>, vector<1x4x16x16xf32>
    %13 = vector.shape_cast %12 : vector<1x4x16x16xf32> to vector<4x16x16xf32>
    %c0_12 = arith.constant 0 : index
    %c0_13 = arith.constant 0 : index
    %c0_14 = arith.constant 0 : index
    %c0_15 = arith.constant 0 : index
    %14 = vector.load %arg5[%c0_12, %c0_13, %c0_14, %c0_15] : memref<1x8x16x16xf32, #tpu.memory_space<vmem>>, vector<1x4x16x16xf32>
    %15 = vector.shape_cast %14 : vector<1x4x16x16xf32> to vector<4x16x16xf32>
    %16 = vector.shape_cast %13 : vector<4x16x16xf32> to vector<1x4x16x16xf32>
    tpu.vector_store %arg5[%c0_12, %c0_13, %c0_14, %c0_15], %16 {strides = array<i32>} : memref<1x8x16x16xf32, #tpu.memory_space<vmem>>, vector<1x4x16x16xf32>,
    %c0_16 = arith.constant 0 : index
    %c4 = arith.constant 4 : index
    %c0_17 = arith.constant 0 : index
    %c0_18 = arith.constant 0 : index
    %17 = vector.load %arg5[%c0_16, %c4, %c0_17, %c0_18] : memref<1x8x16x16xf32, #tpu.memory_space<vmem>>, vector<1x4x16x16xf32>
    %18 = vector.shape_cast %17 : vector<1x4x16x16xf32> to vector<4x16x16xf32>
    %19 = vector.shape_cast %11 : vector<4x16x16xf32> to vector<1x4x16x16xf32>
    tpu.vector_store %arg5[%c0_16, %c4, %c0_17, %c0_18], %19 {strides = array<i32>} : memref<1x8x16x16xf32, #tpu.memory_space<vmem>>, vector<1x4x16x16xf32>,
    return
  }
  func.func @transform_0(%arg0: i32) -> (i32, i32, i32, i32) {
    %c0_i32 = arith.constant 0 : i32
    %c0_i32_0 = arith.constant 0 : i32
    %c0_i32_1 = arith.constant 0 : i32
    %c0_i32_2 = arith.constant 0 : i32
    return %arg0, %c0_i32, %c0_i32_0, %c0_i32_1 : i32, i32, i32, i32
  }
  func.func @transform_1(%arg0: i32) -> (i32, i32, i32, i32) {
    %c0_i32 = arith.constant 0 : i32
    %c0_i32_0 = arith.constant 0 : i32
    %c0_i32_1 = arith.constant 0 : i32
    %c0_i32_2 = arith.constant 0 : i32
    return %arg0, %c0_i32, %c0_i32_0, %c0_i32_1 : i32, i32, i32, i32
  }
  func.func @transform_2(%arg0: i32) -> (i32, i32) {
    %c0_i32 = arith.constant 0 : i32
    %c0_i32_0 = arith.constant 0 : i32
    %c0_i32_1 = arith.constant 0 : i32
    return %c0_i32, %c0_i32_0 : i32, i32
  }
  func.func @transform_3(%arg0: i32) -> (i32, i32) {
    %c0_i32 = arith.constant 0 : i32
    %c0_i32_0 = arith.constant 0 : i32
    %c0_i32_1 = arith.constant 0 : i32
    return %c0_i32, %c0_i32_0 : i32, i32
  }
  func.func @transform_4(%arg0: i32) -> (i32, i32, i32, i32) {
    %c0_i32 = arith.constant 0 : i32
    %c0_i32_0 = arith.constant 0 : i32
    %c0_i32_1 = arith.constant 0 : i32
    %c0_i32_2 = arith.constant 0 : i32
    return %arg0, %c0_i32, %c0_i32_0, %c0_i32_1 : i32, i32, i32, i32
  }
}

module attributes {stable_mosaic.version = 11 : i64} {
  func.func @_conv2_kernel(%arg0: i32, %arg1: memref<1x18x18x4xf32, #tpu.memory_space<vmem>>, %arg2: memref<1x4xf32, #tpu.memory_space<vmem>>, %arg3: memref<1x4xf32, #tpu.memory_space<vmem>>, %arg4: memref<9x4x4xf32, #tpu.memory_space<vmem>>, %arg5: memref<1x16x16x4xf32, #tpu.memory_space<vmem>>, %arg6: memref<1x1x4xf32, #tpu.memory_space<vmem>>, %arg7: memref<1x1x4xf32, #tpu.memory_space<vmem>>) attributes {dimension_semantics = [#tpu.dimension_semantics<parallel>], iteration_bounds = array<i64: 2>, scalar_prefetch = 0 : i64, scratch_operands = 0 : i64, tpu.core_type = #tpu.core_type<tc>, window_params = [{transform_indices = @transform_0, window_bounds = array<i64: 1, 18, 18, 4>}, {pipeline_mode = #tpu.pipeline_mode<synchronous>, transform_indices = @transform_1, window_bounds = array<i64: 1, 4>}, {pipeline_mode = #tpu.pipeline_mode<synchronous>, transform_indices = @transform_2, window_bounds = array<i64: 1, 4>}, {pipeline_mode = #tpu.pipeline_mode<synchronous>, transform_indices = @transform_3, window_bounds = array<i64: 9, 4, 4>}, {transform_indices = @transform_4, window_bounds = array<i64: 1, 16, 16, 4>}, {transform_indices = @transform_5, window_bounds = array<i64: 1, 1, 4>}, {transform_indices = @transform_6, window_bounds = array<i64: 1, 1, 4>}]} {
    %c0 = arith.constant 0 : index
    %c0_0 = arith.constant 0 : index
    %c0_1 = arith.constant 0 : index
    %c0_2 = arith.constant 0 : index
    %0 = vector.load %arg1[%c0, %c0_0, %c0_1, %c0_2] : memref<1x18x18x4xf32, #tpu.memory_space<vmem>>, vector<1x18x18x4xf32>
    %1 = vector.shape_cast %0 : vector<1x18x18x4xf32> to vector<18x18x4xf32>
    %c0_3 = arith.constant 0 : index
    %c0_4 = arith.constant 0 : index
    %2 = vector.load %arg2[%c0_3, %c0_4] : memref<1x4xf32, #tpu.memory_space<vmem>>, vector<1x4xf32>
    %3 = vector.shape_cast %2 : vector<1x4xf32> to vector<1x1x4xf32>
    %4 = vector.broadcast %3 : vector<1x1x4xf32> to vector<18x18x4xf32>
    %5 = arith.mulf %1, %4 : vector<18x18x4xf32>
    %c0_5 = arith.constant 0 : index
    %c0_6 = arith.constant 0 : index
    %6 = vector.load %arg3[%c0_5, %c0_6] : memref<1x4xf32, #tpu.memory_space<vmem>>, vector<1x4xf32>
    %7 = vector.shape_cast %6 : vector<1x4xf32> to vector<1x1x4xf32>
    %8 = vector.broadcast %7 : vector<1x1x4xf32> to vector<18x18x4xf32>
    %9 = arith.addf %5, %8 : vector<18x18x4xf32>
    %cst = arith.constant 0.000000e+00 : f32
    %10 = vector.broadcast %cst : f32 to vector<18x18x4xf32>
    %11 = arith.maximumf %9, %10 : vector<18x18x4xf32>
    %12 = tpu.iota {dimensions = array<i32: 0>} : vector<18x18x4xi32>
    %13 = tpu.iota {dimensions = array<i32: 1>} : vector<18x18x4xi32>
    %c0_i32 = arith.constant 0 : i32
    %14 = vector.broadcast %c0_i32 : i32 to vector<18x18x4xi32>
    %15 = arith.cmpi eq, %12, %14 : vector<18x18x4xi32>
    %c17_i32 = arith.constant 17 : i32
    %16 = vector.broadcast %c17_i32 : i32 to vector<18x18x4xi32>
    %17 = arith.cmpi eq, %12, %16 : vector<18x18x4xi32>
    %18 = arith.ori %15, %17 : vector<18x18x4xi1>
    %c0_i32_7 = arith.constant 0 : i32
    %19 = vector.broadcast %c0_i32_7 : i32 to vector<18x18x4xi32>
    %20 = arith.cmpi eq, %13, %19 : vector<18x18x4xi32>
    %21 = arith.ori %18, %20 : vector<18x18x4xi1>
    %c17_i32_8 = arith.constant 17 : i32
    %22 = vector.broadcast %c17_i32_8 : i32 to vector<18x18x4xi32>
    %23 = arith.cmpi eq, %13, %22 : vector<18x18x4xi32>
    %24 = arith.ori %21, %23 : vector<18x18x4xi1>
    %cst_9 = arith.constant 0.000000e+00 : f32
    %25 = vector.broadcast %cst_9 : f32 to vector<18x18x4xf32>
    %26 = arith.select %24, %25, %11 : vector<18x18x4xi1>, vector<18x18x4xf32>
    %cst_10 = arith.constant 0.000000e+00 : f32
    %27 = vector.broadcast %cst_10 : f32 to vector<256x4xf32>
    %28 = vector.extract_strided_slice %26 {offsets = [0, 0, 0], sizes = [16, 16, 4], strides = [1, 1, 1]} : vector<18x18x4xf32> to vector<16x16x4xf32>
    %29 = vector.shape_cast %28 : vector<16x16x4xf32> to vector<256x4xf32>
    %c0_11 = arith.constant 0 : index
    %c0_12 = arith.constant 0 : index
    %c0_13 = arith.constant 0 : index
    %30 = vector.load %arg4[%c0_11, %c0_12, %c0_13] : memref<9x4x4xf32, #tpu.memory_space<vmem>>, vector<1x4x4xf32>
    %31 = vector.shape_cast %30 : vector<1x4x4xf32> to vector<4x4xf32>
    %cst_14 = arith.constant dense<0.000000e+00> : vector<256x4xf32>
    %32 = tpu.matmul %29, %31, %cst_14 {dimension_numbers = #tpu.dot_dimension_numbers<[1], [0], [0], [1], [0, 0, 1, 1], [], []>} : vector<256x4xf32>, vector<4x4xf32>, vector<256x4xf32> -> vector<256x4xf32>
    %33 = arith.addf %27, %32 : vector<256x4xf32>
    %34 = vector.extract_strided_slice %26 {offsets = [0, 1, 0], sizes = [16, 16, 4], strides = [1, 1, 1]} : vector<18x18x4xf32> to vector<16x16x4xf32>
    %35 = vector.shape_cast %34 : vector<16x16x4xf32> to vector<256x4xf32>
    %c1 = arith.constant 1 : index
    %c0_15 = arith.constant 0 : index
    %c0_16 = arith.constant 0 : index
    %36 = vector.load %arg4[%c1, %c0_15, %c0_16] : memref<9x4x4xf32, #tpu.memory_space<vmem>>, vector<1x4x4xf32>
    %37 = vector.shape_cast %36 : vector<1x4x4xf32> to vector<4x4xf32>
    %cst_17 = arith.constant dense<0.000000e+00> : vector<256x4xf32>
    %38 = tpu.matmul %35, %37, %cst_17 {dimension_numbers = #tpu.dot_dimension_numbers<[1], [0], [0], [1], [0, 0, 1, 1], [], []>} : vector<256x4xf32>, vector<4x4xf32>, vector<256x4xf32> -> vector<256x4xf32>
    %39 = arith.addf %33, %38 : vector<256x4xf32>
    %40 = vector.extract_strided_slice %26 {offsets = [0, 2, 0], sizes = [16, 16, 4], strides = [1, 1, 1]} : vector<18x18x4xf32> to vector<16x16x4xf32>
    %41 = vector.shape_cast %40 : vector<16x16x4xf32> to vector<256x4xf32>
    %c2 = arith.constant 2 : index
    %c0_18 = arith.constant 0 : index
    %c0_19 = arith.constant 0 : index
    %42 = vector.load %arg4[%c2, %c0_18, %c0_19] : memref<9x4x4xf32, #tpu.memory_space<vmem>>, vector<1x4x4xf32>
    %43 = vector.shape_cast %42 : vector<1x4x4xf32> to vector<4x4xf32>
    %cst_20 = arith.constant dense<0.000000e+00> : vector<256x4xf32>
    %44 = tpu.matmul %41, %43, %cst_20 {dimension_numbers = #tpu.dot_dimension_numbers<[1], [0], [0], [1], [0, 0, 1, 1], [], []>} : vector<256x4xf32>, vector<4x4xf32>, vector<256x4xf32> -> vector<256x4xf32>
    %45 = arith.addf %39, %44 : vector<256x4xf32>
    %46 = vector.extract_strided_slice %26 {offsets = [1, 0, 0], sizes = [16, 16, 4], strides = [1, 1, 1]} : vector<18x18x4xf32> to vector<16x16x4xf32>
    %47 = vector.shape_cast %46 : vector<16x16x4xf32> to vector<256x4xf32>
    %c3 = arith.constant 3 : index
    %c0_21 = arith.constant 0 : index
    %c0_22 = arith.constant 0 : index
    %48 = vector.load %arg4[%c3, %c0_21, %c0_22] : memref<9x4x4xf32, #tpu.memory_space<vmem>>, vector<1x4x4xf32>
    %49 = vector.shape_cast %48 : vector<1x4x4xf32> to vector<4x4xf32>
    %cst_23 = arith.constant dense<0.000000e+00> : vector<256x4xf32>
    %50 = tpu.matmul %47, %49, %cst_23 {dimension_numbers = #tpu.dot_dimension_numbers<[1], [0], [0], [1], [0, 0, 1, 1], [], []>} : vector<256x4xf32>, vector<4x4xf32>, vector<256x4xf32> -> vector<256x4xf32>
    %51 = arith.addf %45, %50 : vector<256x4xf32>
    %52 = vector.extract_strided_slice %26 {offsets = [1, 1, 0], sizes = [16, 16, 4], strides = [1, 1, 1]} : vector<18x18x4xf32> to vector<16x16x4xf32>
    %53 = vector.shape_cast %52 : vector<16x16x4xf32> to vector<256x4xf32>
    %c4 = arith.constant 4 : index
    %c0_24 = arith.constant 0 : index
    %c0_25 = arith.constant 0 : index
    %54 = vector.load %arg4[%c4, %c0_24, %c0_25] : memref<9x4x4xf32, #tpu.memory_space<vmem>>, vector<1x4x4xf32>
    %55 = vector.shape_cast %54 : vector<1x4x4xf32> to vector<4x4xf32>
    %cst_26 = arith.constant dense<0.000000e+00> : vector<256x4xf32>
    %56 = tpu.matmul %53, %55, %cst_26 {dimension_numbers = #tpu.dot_dimension_numbers<[1], [0], [0], [1], [0, 0, 1, 1], [], []>} : vector<256x4xf32>, vector<4x4xf32>, vector<256x4xf32> -> vector<256x4xf32>
    %57 = arith.addf %51, %56 : vector<256x4xf32>
    %58 = vector.extract_strided_slice %26 {offsets = [1, 2, 0], sizes = [16, 16, 4], strides = [1, 1, 1]} : vector<18x18x4xf32> to vector<16x16x4xf32>
    %59 = vector.shape_cast %58 : vector<16x16x4xf32> to vector<256x4xf32>
    %c5 = arith.constant 5 : index
    %c0_27 = arith.constant 0 : index
    %c0_28 = arith.constant 0 : index
    %60 = vector.load %arg4[%c5, %c0_27, %c0_28] : memref<9x4x4xf32, #tpu.memory_space<vmem>>, vector<1x4x4xf32>
    %61 = vector.shape_cast %60 : vector<1x4x4xf32> to vector<4x4xf32>
    %cst_29 = arith.constant dense<0.000000e+00> : vector<256x4xf32>
    %62 = tpu.matmul %59, %61, %cst_29 {dimension_numbers = #tpu.dot_dimension_numbers<[1], [0], [0], [1], [0, 0, 1, 1], [], []>} : vector<256x4xf32>, vector<4x4xf32>, vector<256x4xf32> -> vector<256x4xf32>
    %63 = arith.addf %57, %62 : vector<256x4xf32>
    %64 = vector.extract_strided_slice %26 {offsets = [2, 0, 0], sizes = [16, 16, 4], strides = [1, 1, 1]} : vector<18x18x4xf32> to vector<16x16x4xf32>
    %65 = vector.shape_cast %64 : vector<16x16x4xf32> to vector<256x4xf32>
    %c6 = arith.constant 6 : index
    %c0_30 = arith.constant 0 : index
    %c0_31 = arith.constant 0 : index
    %66 = vector.load %arg4[%c6, %c0_30, %c0_31] : memref<9x4x4xf32, #tpu.memory_space<vmem>>, vector<1x4x4xf32>
    %67 = vector.shape_cast %66 : vector<1x4x4xf32> to vector<4x4xf32>
    %cst_32 = arith.constant dense<0.000000e+00> : vector<256x4xf32>
    %68 = tpu.matmul %65, %67, %cst_32 {dimension_numbers = #tpu.dot_dimension_numbers<[1], [0], [0], [1], [0, 0, 1, 1], [], []>} : vector<256x4xf32>, vector<4x4xf32>, vector<256x4xf32> -> vector<256x4xf32>
    %69 = arith.addf %63, %68 : vector<256x4xf32>
    %70 = vector.extract_strided_slice %26 {offsets = [2, 1, 0], sizes = [16, 16, 4], strides = [1, 1, 1]} : vector<18x18x4xf32> to vector<16x16x4xf32>
    %71 = vector.shape_cast %70 : vector<16x16x4xf32> to vector<256x4xf32>
    %c7 = arith.constant 7 : index
    %c0_33 = arith.constant 0 : index
    %c0_34 = arith.constant 0 : index
    %72 = vector.load %arg4[%c7, %c0_33, %c0_34] : memref<9x4x4xf32, #tpu.memory_space<vmem>>, vector<1x4x4xf32>
    %73 = vector.shape_cast %72 : vector<1x4x4xf32> to vector<4x4xf32>
    %cst_35 = arith.constant dense<0.000000e+00> : vector<256x4xf32>
    %74 = tpu.matmul %71, %73, %cst_35 {dimension_numbers = #tpu.dot_dimension_numbers<[1], [0], [0], [1], [0, 0, 1, 1], [], []>} : vector<256x4xf32>, vector<4x4xf32>, vector<256x4xf32> -> vector<256x4xf32>
    %75 = arith.addf %69, %74 : vector<256x4xf32>
    %76 = vector.extract_strided_slice %26 {offsets = [2, 2, 0], sizes = [16, 16, 4], strides = [1, 1, 1]} : vector<18x18x4xf32> to vector<16x16x4xf32>
    %77 = vector.shape_cast %76 : vector<16x16x4xf32> to vector<256x4xf32>
    %c8 = arith.constant 8 : index
    %c0_36 = arith.constant 0 : index
    %c0_37 = arith.constant 0 : index
    %78 = vector.load %arg4[%c8, %c0_36, %c0_37] : memref<9x4x4xf32, #tpu.memory_space<vmem>>, vector<1x4x4xf32>
    %79 = vector.shape_cast %78 : vector<1x4x4xf32> to vector<4x4xf32>
    %cst_38 = arith.constant dense<0.000000e+00> : vector<256x4xf32>
    %80 = tpu.matmul %77, %79, %cst_38 {dimension_numbers = #tpu.dot_dimension_numbers<[1], [0], [0], [1], [0, 0, 1, 1], [], []>} : vector<256x4xf32>, vector<4x4xf32>, vector<256x4xf32> -> vector<256x4xf32>
    %81 = arith.addf %75, %80 : vector<256x4xf32>
    %cst_39 = arith.constant dense<0.000000e+00> : vector<4xf32>
    %82 = vector.multi_reduction <add>, %81, %cst_39 [0] : vector<256x4xf32> to vector<4xf32>
    %83 = vector.shape_cast %82 : vector<4xf32> to vector<1x4xf32>
    %c0_40 = arith.constant 0 : index
    %c0_41 = arith.constant 0 : index
    %c0_42 = arith.constant 0 : index
    %84 = vector.load %arg6[%c0_40, %c0_41, %c0_42] : memref<1x1x4xf32, #tpu.memory_space<vmem>>, vector<1x1x4xf32>
    %85 = vector.shape_cast %84 : vector<1x1x4xf32> to vector<1x4xf32>
    %86 = vector.shape_cast %83 : vector<1x4xf32> to vector<1x1x4xf32>
    tpu.vector_store %arg6[%c0_40, %c0_41, %c0_42], %86 {strides = array<i32>} : memref<1x1x4xf32, #tpu.memory_space<vmem>>, vector<1x1x4xf32>,
    %87 = arith.mulf %81, %81 : vector<256x4xf32>
    %cst_43 = arith.constant dense<0.000000e+00> : vector<4xf32>
    %88 = vector.multi_reduction <add>, %87, %cst_43 [0] : vector<256x4xf32> to vector<4xf32>
    %89 = vector.shape_cast %88 : vector<4xf32> to vector<1x4xf32>
    %c0_44 = arith.constant 0 : index
    %c0_45 = arith.constant 0 : index
    %c0_46 = arith.constant 0 : index
    %90 = vector.load %arg7[%c0_44, %c0_45, %c0_46] : memref<1x1x4xf32, #tpu.memory_space<vmem>>, vector<1x1x4xf32>
    %91 = vector.shape_cast %90 : vector<1x1x4xf32> to vector<1x4xf32>
    %92 = vector.shape_cast %89 : vector<1x4xf32> to vector<1x1x4xf32>
    tpu.vector_store %arg7[%c0_44, %c0_45, %c0_46], %92 {strides = array<i32>} : memref<1x1x4xf32, #tpu.memory_space<vmem>>, vector<1x1x4xf32>,
    %93 = vector.shape_cast %81 : vector<256x4xf32> to vector<16x16x4xf32>
    %c0_47 = arith.constant 0 : index
    %c0_48 = arith.constant 0 : index
    %c0_49 = arith.constant 0 : index
    %c0_50 = arith.constant 0 : index
    %94 = vector.load %arg5[%c0_47, %c0_48, %c0_49, %c0_50] : memref<1x16x16x4xf32, #tpu.memory_space<vmem>>, vector<1x16x16x4xf32>
    %95 = vector.shape_cast %94 : vector<1x16x16x4xf32> to vector<16x16x4xf32>
    %96 = vector.shape_cast %93 : vector<16x16x4xf32> to vector<1x16x16x4xf32>
    tpu.vector_store %arg5[%c0_47, %c0_48, %c0_49, %c0_50], %96 {strides = array<i32>} : memref<1x16x16x4xf32, #tpu.memory_space<vmem>>, vector<1x16x16x4xf32>,
    return
  }
  func.func @transform_0(%arg0: i32) -> (i32, i32, i32, i32) {
    %c0_i32 = arith.constant 0 : i32
    %c0_i32_0 = arith.constant 0 : i32
    %c0_i32_1 = arith.constant 0 : i32
    %c0_i32_2 = arith.constant 0 : i32
    return %arg0, %c0_i32, %c0_i32_0, %c0_i32_1 : i32, i32, i32, i32
  }
  func.func @transform_1(%arg0: i32) -> (i32, i32) {
    %c0_i32 = arith.constant 0 : i32
    %c0_i32_0 = arith.constant 0 : i32
    %c0_i32_1 = arith.constant 0 : i32
    return %c0_i32, %c0_i32_0 : i32, i32
  }
  func.func @transform_2(%arg0: i32) -> (i32, i32) {
    %c0_i32 = arith.constant 0 : i32
    %c0_i32_0 = arith.constant 0 : i32
    %c0_i32_1 = arith.constant 0 : i32
    return %c0_i32, %c0_i32_0 : i32, i32
  }
  func.func @transform_3(%arg0: i32) -> (i32, i32, i32) {
    %c0_i32 = arith.constant 0 : i32
    %c0_i32_0 = arith.constant 0 : i32
    %c0_i32_1 = arith.constant 0 : i32
    %c0_i32_2 = arith.constant 0 : i32
    return %c0_i32, %c0_i32_0, %c0_i32_1 : i32, i32, i32
  }
  func.func @transform_4(%arg0: i32) -> (i32, i32, i32, i32) {
    %c0_i32 = arith.constant 0 : i32
    %c0_i32_0 = arith.constant 0 : i32
    %c0_i32_1 = arith.constant 0 : i32
    %c0_i32_2 = arith.constant 0 : i32
    return %arg0, %c0_i32, %c0_i32_0, %c0_i32_1 : i32, i32, i32, i32
  }
  func.func @transform_5(%arg0: i32) -> (i32, i32, i32) {
    %c0_i32 = arith.constant 0 : i32
    %c0_i32_0 = arith.constant 0 : i32
    %c0_i32_1 = arith.constant 0 : i32
    return %arg0, %c0_i32, %c0_i32_0 : i32, i32, i32
  }
  func.func @transform_6(%arg0: i32) -> (i32, i32, i32) {
    %c0_i32 = arith.constant 0 : i32
    %c0_i32_0 = arith.constant 0 : i32
    %c0_i32_1 = arith.constant 0 : i32
    return %arg0, %c0_i32, %c0_i32_0 : i32, i32, i32
  }
}

module attributes {stable_mosaic.version = 11 : i64} {
  func.func @_bn_relu_to_nchw_kernel(%arg0: i32, %arg1: memref<1x16x16x4xf32, #tpu.memory_space<vmem>>, %arg2: memref<1x4xf32, #tpu.memory_space<vmem>>, %arg3: memref<1x4xf32, #tpu.memory_space<vmem>>, %arg4: memref<1x4x256xf32, #tpu.memory_space<vmem>>) attributes {dimension_semantics = [#tpu.dimension_semantics<parallel>], iteration_bounds = array<i64: 2>, scalar_prefetch = 0 : i64, scratch_operands = 0 : i64, tpu.core_type = #tpu.core_type<tc>, window_params = [{transform_indices = @transform_0, window_bounds = array<i64: 1, 16, 16, 4>}, {pipeline_mode = #tpu.pipeline_mode<synchronous>, transform_indices = @transform_1, window_bounds = array<i64: 1, 4>}, {pipeline_mode = #tpu.pipeline_mode<synchronous>, transform_indices = @transform_2, window_bounds = array<i64: 1, 4>}, {transform_indices = @transform_3, window_bounds = array<i64: 1, 4, 256>}]} {
    %c0 = arith.constant 0 : index
    %c0_0 = arith.constant 0 : index
    %c0_1 = arith.constant 0 : index
    %c0_2 = arith.constant 0 : index
    %0 = vector.load %arg1[%c0, %c0_0, %c0_1, %c0_2] : memref<1x16x16x4xf32, #tpu.memory_space<vmem>>, vector<1x16x16x4xf32>
    %1 = vector.shape_cast %0 : vector<1x16x16x4xf32> to vector<16x16x4xf32>
    %c0_3 = arith.constant 0 : index
    %c0_4 = arith.constant 0 : index
    %2 = vector.load %arg2[%c0_3, %c0_4] : memref<1x4xf32, #tpu.memory_space<vmem>>, vector<1x4xf32>
    %3 = vector.shape_cast %2 : vector<1x4xf32> to vector<1x1x4xf32>
    %4 = vector.broadcast %3 : vector<1x1x4xf32> to vector<16x16x4xf32>
    %5 = arith.mulf %1, %4 : vector<16x16x4xf32>
    %c0_5 = arith.constant 0 : index
    %c0_6 = arith.constant 0 : index
    %6 = vector.load %arg3[%c0_5, %c0_6] : memref<1x4xf32, #tpu.memory_space<vmem>>, vector<1x4xf32>
    %7 = vector.shape_cast %6 : vector<1x4xf32> to vector<1x1x4xf32>
    %8 = vector.broadcast %7 : vector<1x1x4xf32> to vector<16x16x4xf32>
    %9 = arith.addf %5, %8 : vector<16x16x4xf32>
    %cst = arith.constant 0.000000e+00 : f32
    %10 = vector.broadcast %cst : f32 to vector<16x16x4xf32>
    %11 = arith.maximumf %9, %10 : vector<16x16x4xf32>
    %12 = vector.shape_cast %11 : vector<16x16x4xf32> to vector<256x4xf32>
    %13 = tpu.transpose %12, [1, 0] : vector<256x4xf32> -> vector<4x256xf32>
    %c0_7 = arith.constant 0 : index
    %c0_8 = arith.constant 0 : index
    %c0_9 = arith.constant 0 : index
    %14 = vector.load %arg4[%c0_7, %c0_8, %c0_9] : memref<1x4x256xf32, #tpu.memory_space<vmem>>, vector<1x4x256xf32>
    %15 = vector.shape_cast %14 : vector<1x4x256xf32> to vector<4x256xf32>
    %16 = vector.shape_cast %13 : vector<4x256xf32> to vector<1x4x256xf32>
    tpu.vector_store %arg4[%c0_7, %c0_8, %c0_9], %16 {strides = array<i32>} : memref<1x4x256xf32, #tpu.memory_space<vmem>>, vector<1x4x256xf32>,
    return
  }
  func.func @transform_0(%arg0: i32) -> (i32, i32, i32, i32) {
    %c0_i32 = arith.constant 0 : i32
    %c0_i32_0 = arith.constant 0 : i32
    %c0_i32_1 = arith.constant 0 : i32
    %c0_i32_2 = arith.constant 0 : i32
    return %arg0, %c0_i32, %c0_i32_0, %c0_i32_1 : i32, i32, i32, i32
  }
  func.func @transform_1(%arg0: i32) -> (i32, i32) {
    %c0_i32 = arith.constant 0 : i32
    %c0_i32_0 = arith.constant 0 : i32
    %c0_i32_1 = arith.constant 0 : i32
    return %c0_i32, %c0_i32_0 : i32, i32
  }
  func.func @transform_2(%arg0: i32) -> (i32, i32) {
    %c0_i32 = arith.constant 0 : i32
    %c0_i32_0 = arith.constant 0 : i32
    %c0_i32_1 = arith.constant 0 : i32
    return %c0_i32, %c0_i32_0 : i32, i32
  }
  func.func @transform_3(%arg0: i32) -> (i32, i32, i32) {
    %c0_i32 = arith.constant 0 : i32
    %c0_i32_0 = arith.constant 0 : i32
    %c0_i32_1 = arith.constant 0 : i32
    return %arg0, %c0_i32, %c0_i32_0 : i32, i32, i32
  }
}

module attributes {stable_mosaic.version = 11 : i64} {
  func.func @_conv1_kernel(%arg0: i32, %arg1: memref<1x18x18x8xf32, #tpu.memory_space<vmem>>, %arg2: memref<9x8x4xf32, #tpu.memory_space<vmem>>, %arg3: memref<1x18x18x4xf32, #tpu.memory_space<vmem>>, %arg4: memref<1x1x4xf32, #tpu.memory_space<vmem>>, %arg5: memref<1x1x4xf32, #tpu.memory_space<vmem>>) attributes {dimension_semantics = [#tpu.dimension_semantics<parallel>], iteration_bounds = array<i64: 2>, scalar_prefetch = 0 : i64, scratch_operands = 0 : i64, tpu.core_type = #tpu.core_type<tc>, window_params = [{transform_indices = @transform_0, window_bounds = array<i64: 1, 18, 18, 8>}, {pipeline_mode = #tpu.pipeline_mode<synchronous>, transform_indices = @transform_1, window_bounds = array<i64: 9, 8, 4>}, {transform_indices = @transform_2, window_bounds = array<i64: 1, 18, 18, 4>}, {transform_indices = @transform_3, window_bounds = array<i64: 1, 1, 4>}, {transform_indices = @transform_4, window_bounds = array<i64: 1, 1, 4>}]} {
    %c0 = arith.constant 0 : index
    %c0_0 = arith.constant 0 : index
    %c0_1 = arith.constant 0 : index
    %c0_2 = arith.constant 0 : index
    %0 = vector.load %arg1[%c0, %c0_0, %c0_1, %c0_2] : memref<1x18x18x8xf32, #tpu.memory_space<vmem>>, vector<1x18x18x8xf32>
    %1 = vector.shape_cast %0 : vector<1x18x18x8xf32> to vector<18x18x8xf32>
    %cst = arith.constant 0.000000e+00 : f32
    %2 = vector.broadcast %cst : f32 to vector<256x4xf32>
    %3 = vector.extract_strided_slice %1 {offsets = [0, 0, 0], sizes = [16, 16, 8], strides = [1, 1, 1]} : vector<18x18x8xf32> to vector<16x16x8xf32>
    %4 = vector.shape_cast %3 : vector<16x16x8xf32> to vector<256x8xf32>
    %c0_3 = arith.constant 0 : index
    %c0_4 = arith.constant 0 : index
    %c0_5 = arith.constant 0 : index
    %5 = vector.load %arg2[%c0_3, %c0_4, %c0_5] : memref<9x8x4xf32, #tpu.memory_space<vmem>>, vector<1x8x4xf32>
    %6 = vector.shape_cast %5 : vector<1x8x4xf32> to vector<8x4xf32>
    %cst_6 = arith.constant dense<0.000000e+00> : vector<256x4xf32>
    %7 = tpu.matmul %4, %6, %cst_6 {dimension_numbers = #tpu.dot_dimension_numbers<[1], [0], [0], [1], [0, 0, 1, 1], [], []>} : vector<256x8xf32>, vector<8x4xf32>, vector<256x4xf32> -> vector<256x4xf32>
    %8 = arith.addf %2, %7 : vector<256x4xf32>
    %9 = vector.extract_strided_slice %1 {offsets = [0, 1, 0], sizes = [16, 16, 8], strides = [1, 1, 1]} : vector<18x18x8xf32> to vector<16x16x8xf32>
    %10 = vector.shape_cast %9 : vector<16x16x8xf32> to vector<256x8xf32>
    %c1 = arith.constant 1 : index
    %c0_7 = arith.constant 0 : index
    %c0_8 = arith.constant 0 : index
    %11 = vector.load %arg2[%c1, %c0_7, %c0_8] : memref<9x8x4xf32, #tpu.memory_space<vmem>>, vector<1x8x4xf32>
    %12 = vector.shape_cast %11 : vector<1x8x4xf32> to vector<8x4xf32>
    %cst_9 = arith.constant dense<0.000000e+00> : vector<256x4xf32>
    %13 = tpu.matmul %10, %12, %cst_9 {dimension_numbers = #tpu.dot_dimension_numbers<[1], [0], [0], [1], [0, 0, 1, 1], [], []>} : vector<256x8xf32>, vector<8x4xf32>, vector<256x4xf32> -> vector<256x4xf32>
    %14 = arith.addf %8, %13 : vector<256x4xf32>
    %15 = vector.extract_strided_slice %1 {offsets = [0, 2, 0], sizes = [16, 16, 8], strides = [1, 1, 1]} : vector<18x18x8xf32> to vector<16x16x8xf32>
    %16 = vector.shape_cast %15 : vector<16x16x8xf32> to vector<256x8xf32>
    %c2 = arith.constant 2 : index
    %c0_10 = arith.constant 0 : index
    %c0_11 = arith.constant 0 : index
    %17 = vector.load %arg2[%c2, %c0_10, %c0_11] : memref<9x8x4xf32, #tpu.memory_space<vmem>>, vector<1x8x4xf32>
    %18 = vector.shape_cast %17 : vector<1x8x4xf32> to vector<8x4xf32>
    %cst_12 = arith.constant dense<0.000000e+00> : vector<256x4xf32>
    %19 = tpu.matmul %16, %18, %cst_12 {dimension_numbers = #tpu.dot_dimension_numbers<[1], [0], [0], [1], [0, 0, 1, 1], [], []>} : vector<256x8xf32>, vector<8x4xf32>, vector<256x4xf32> -> vector<256x4xf32>
    %20 = arith.addf %14, %19 : vector<256x4xf32>
    %21 = vector.extract_strided_slice %1 {offsets = [1, 0, 0], sizes = [16, 16, 8], strides = [1, 1, 1]} : vector<18x18x8xf32> to vector<16x16x8xf32>
    %22 = vector.shape_cast %21 : vector<16x16x8xf32> to vector<256x8xf32>
    %c3 = arith.constant 3 : index
    %c0_13 = arith.constant 0 : index
    %c0_14 = arith.constant 0 : index
    %23 = vector.load %arg2[%c3, %c0_13, %c0_14] : memref<9x8x4xf32, #tpu.memory_space<vmem>>, vector<1x8x4xf32>
    %24 = vector.shape_cast %23 : vector<1x8x4xf32> to vector<8x4xf32>
    %cst_15 = arith.constant dense<0.000000e+00> : vector<256x4xf32>
    %25 = tpu.matmul %22, %24, %cst_15 {dimension_numbers = #tpu.dot_dimension_numbers<[1], [0], [0], [1], [0, 0, 1, 1], [], []>} : vector<256x8xf32>, vector<8x4xf32>, vector<256x4xf32> -> vector<256x4xf32>
    %26 = arith.addf %20, %25 : vector<256x4xf32>
    %27 = vector.extract_strided_slice %1 {offsets = [1, 1, 0], sizes = [16, 16, 8], strides = [1, 1, 1]} : vector<18x18x8xf32> to vector<16x16x8xf32>
    %28 = vector.shape_cast %27 : vector<16x16x8xf32> to vector<256x8xf32>
    %c4 = arith.constant 4 : index
    %c0_16 = arith.constant 0 : index
    %c0_17 = arith.constant 0 : index
    %29 = vector.load %arg2[%c4, %c0_16, %c0_17] : memref<9x8x4xf32, #tpu.memory_space<vmem>>, vector<1x8x4xf32>
    %30 = vector.shape_cast %29 : vector<1x8x4xf32> to vector<8x4xf32>
    %cst_18 = arith.constant dense<0.000000e+00> : vector<256x4xf32>
    %31 = tpu.matmul %28, %30, %cst_18 {dimension_numbers = #tpu.dot_dimension_numbers<[1], [0], [0], [1], [0, 0, 1, 1], [], []>} : vector<256x8xf32>, vector<8x4xf32>, vector<256x4xf32> -> vector<256x4xf32>
    %32 = arith.addf %26, %31 : vector<256x4xf32>
    %33 = vector.extract_strided_slice %1 {offsets = [1, 2, 0], sizes = [16, 16, 8], strides = [1, 1, 1]} : vector<18x18x8xf32> to vector<16x16x8xf32>
    %34 = vector.shape_cast %33 : vector<16x16x8xf32> to vector<256x8xf32>
    %c5 = arith.constant 5 : index
    %c0_19 = arith.constant 0 : index
    %c0_20 = arith.constant 0 : index
    %35 = vector.load %arg2[%c5, %c0_19, %c0_20] : memref<9x8x4xf32, #tpu.memory_space<vmem>>, vector<1x8x4xf32>
    %36 = vector.shape_cast %35 : vector<1x8x4xf32> to vector<8x4xf32>
    %cst_21 = arith.constant dense<0.000000e+00> : vector<256x4xf32>
    %37 = tpu.matmul %34, %36, %cst_21 {dimension_numbers = #tpu.dot_dimension_numbers<[1], [0], [0], [1], [0, 0, 1, 1], [], []>} : vector<256x8xf32>, vector<8x4xf32>, vector<256x4xf32> -> vector<256x4xf32>
    %38 = arith.addf %32, %37 : vector<256x4xf32>
    %39 = vector.extract_strided_slice %1 {offsets = [2, 0, 0], sizes = [16, 16, 8], strides = [1, 1, 1]} : vector<18x18x8xf32> to vector<16x16x8xf32>
    %40 = vector.shape_cast %39 : vector<16x16x8xf32> to vector<256x8xf32>
    %c6 = arith.constant 6 : index
    %c0_22 = arith.constant 0 : index
    %c0_23 = arith.constant 0 : index
    %41 = vector.load %arg2[%c6, %c0_22, %c0_23] : memref<9x8x4xf32, #tpu.memory_space<vmem>>, vector<1x8x4xf32>
    %42 = vector.shape_cast %41 : vector<1x8x4xf32> to vector<8x4xf32>
    %cst_24 = arith.constant dense<0.000000e+00> : vector<256x4xf32>
    %43 = tpu.matmul %40, %42, %cst_24 {dimension_numbers = #tpu.dot_dimension_numbers<[1], [0], [0], [1], [0, 0, 1, 1], [], []>} : vector<256x8xf32>, vector<8x4xf32>, vector<256x4xf32> -> vector<256x4xf32>
    %44 = arith.addf %38, %43 : vector<256x4xf32>
    %45 = vector.extract_strided_slice %1 {offsets = [2, 1, 0], sizes = [16, 16, 8], strides = [1, 1, 1]} : vector<18x18x8xf32> to vector<16x16x8xf32>
    %46 = vector.shape_cast %45 : vector<16x16x8xf32> to vector<256x8xf32>
    %c7 = arith.constant 7 : index
    %c0_25 = arith.constant 0 : index
    %c0_26 = arith.constant 0 : index
    %47 = vector.load %arg2[%c7, %c0_25, %c0_26] : memref<9x8x4xf32, #tpu.memory_space<vmem>>, vector<1x8x4xf32>
    %48 = vector.shape_cast %47 : vector<1x8x4xf32> to vector<8x4xf32>
    %cst_27 = arith.constant dense<0.000000e+00> : vector<256x4xf32>
    %49 = tpu.matmul %46, %48, %cst_27 {dimension_numbers = #tpu.dot_dimension_numbers<[1], [0], [0], [1], [0, 0, 1, 1], [], []>} : vector<256x8xf32>, vector<8x4xf32>, vector<256x4xf32> -> vector<256x4xf32>
    %50 = arith.addf %44, %49 : vector<256x4xf32>
    %51 = vector.extract_strided_slice %1 {offsets = [2, 2, 0], sizes = [16, 16, 8], strides = [1, 1, 1]} : vector<18x18x8xf32> to vector<16x16x8xf32>
    %52 = vector.shape_cast %51 : vector<16x16x8xf32> to vector<256x8xf32>
    %c8 = arith.constant 8 : index
    %c0_28 = arith.constant 0 : index
    %c0_29 = arith.constant 0 : index
    %53 = vector.load %arg2[%c8, %c0_28, %c0_29] : memref<9x8x4xf32, #tpu.memory_space<vmem>>, vector<1x8x4xf32>
    %54 = vector.shape_cast %53 : vector<1x8x4xf32> to vector<8x4xf32>
    %cst_30 = arith.constant dense<0.000000e+00> : vector<256x4xf32>
    %55 = tpu.matmul %52, %54, %cst_30 {dimension_numbers = #tpu.dot_dimension_numbers<[1], [0], [0], [1], [0, 0, 1, 1], [], []>} : vector<256x8xf32>, vector<8x4xf32>, vector<256x4xf32> -> vector<256x4xf32>
    %56 = arith.addf %50, %55 : vector<256x4xf32>
    %cst_31 = arith.constant dense<0.000000e+00> : vector<4xf32>
    %57 = vector.multi_reduction <add>, %56, %cst_31 [0] : vector<256x4xf32> to vector<4xf32>
    %58 = vector.shape_cast %57 : vector<4xf32> to vector<1x4xf32>
    %c0_32 = arith.constant 0 : index
    %c0_33 = arith.constant 0 : index
    %c0_34 = arith.constant 0 : index
    %59 = vector.load %arg4[%c0_32, %c0_33, %c0_34] : memref<1x1x4xf32, #tpu.memory_space<vmem>>, vector<1x1x4xf32>
    %60 = vector.shape_cast %59 : vector<1x1x4xf32> to vector<1x4xf32>
    %61 = vector.shape_cast %58 : vector<1x4xf32> to vector<1x1x4xf32>
    tpu.vector_store %arg4[%c0_32, %c0_33, %c0_34], %61 {strides = array<i32>} : memref<1x1x4xf32, #tpu.memory_space<vmem>>, vector<1x1x4xf32>,
    %62 = arith.mulf %56, %56 : vector<256x4xf32>
    %cst_35 = arith.constant dense<0.000000e+00> : vector<4xf32>
    %63 = vector.multi_reduction <add>, %62, %cst_35 [0] : vector<256x4xf32> to vector<4xf32>
    %64 = vector.shape_cast %63 : vector<4xf32> to vector<1x4xf32>
    %c0_36 = arith.constant 0 : index
    %c0_37 = arith.constant 0 : index
    %c0_38 = arith.constant 0 : index
    %65 = vector.load %arg5[%c0_36, %c0_37, %c0_38] : memref<1x1x4xf32, #tpu.memory_space<vmem>>, vector<1x1x4xf32>
    %66 = vector.shape_cast %65 : vector<1x1x4xf32> to vector<1x4xf32>
    %67 = vector.shape_cast %64 : vector<1x4xf32> to vector<1x1x4xf32>
    tpu.vector_store %arg5[%c0_36, %c0_37, %c0_38], %67 {strides = array<i32>} : memref<1x1x4xf32, #tpu.memory_space<vmem>>, vector<1x1x4xf32>,
    %cst_39 = arith.constant 0.000000e+00 : f32
    %68 = vector.broadcast %cst_39 : f32 to vector<1x18x18x4xf32>
    %c0_40 = arith.constant 0 : index
    %c0_41 = arith.constant 0 : index
    %c0_42 = arith.constant 0 : index
    %c0_43 = arith.constant 0 : index
    %69 = vector.load %arg3[%c0_40, %c0_41, %c0_42, %c0_43] : memref<1x18x18x4xf32, #tpu.memory_space<vmem>>, vector<1x18x18x4xf32>
    tpu.vector_store %arg3[%c0_40, %c0_41, %c0_42, %c0_43], %68 {strides = array<i32>} : memref<1x18x18x4xf32, #tpu.memory_space<vmem>>, vector<1x18x18x4xf32>,
    %70 = vector.shape_cast %56 : vector<256x4xf32> to vector<16x16x4xf32>
    %c0_44 = arith.constant 0 : index
    %c1_45 = arith.constant 1 : index
    %c1_46 = arith.constant 1 : index
    %c0_47 = arith.constant 0 : index
    %71 = vector.load %arg3[%c0_44, %c1_45, %c1_46, %c0_47] : memref<1x18x18x4xf32, #tpu.memory_space<vmem>>, vector<1x16x16x4xf32>
    %72 = vector.shape_cast %71 : vector<1x16x16x4xf32> to vector<16x16x4xf32>
    %73 = vector.shape_cast %70 : vector<16x16x4xf32> to vector<1x16x16x4xf32>
    tpu.vector_store %arg3[%c0_44, %c1_45, %c1_46, %c0_47], %73 {strides = array<i32>} : memref<1x18x18x4xf32, #tpu.memory_space<vmem>>, vector<1x16x16x4xf32>,
    return
  }
  func.func @transform_0(%arg0: i32) -> (i32, i32, i32, i32) {
    %c0_i32 = arith.constant 0 : i32
    %c0_i32_0 = arith.constant 0 : i32
    %c0_i32_1 = arith.constant 0 : i32
    %c0_i32_2 = arith.constant 0 : i32
    return %arg0, %c0_i32, %c0_i32_0, %c0_i32_1 : i32, i32, i32, i32
  }
  func.func @transform_1(%arg0: i32) -> (i32, i32, i32) {
    %c0_i32 = arith.constant 0 : i32
    %c0_i32_0 = arith.constant 0 : i32
    %c0_i32_1 = arith.constant 0 : i32
    %c0_i32_2 = arith.constant 0 : i32
    return %c0_i32, %c0_i32_0, %c0_i32_1 : i32, i32, i32
  }
  func.func @transform_2(%arg0: i32) -> (i32, i32, i32, i32) {
    %c0_i32 = arith.constant 0 : i32
    %c0_i32_0 = arith.constant 0 : i32
    %c0_i32_1 = arith.constant 0 : i32
    %c0_i32_2 = arith.constant 0 : i32
    return %arg0, %c0_i32, %c0_i32_0, %c0_i32_1 : i32, i32, i32, i32
  }
  func.func @transform_3(%arg0: i32) -> (i32, i32, i32) {
    %c0_i32 = arith.constant 0 : i32
    %c0_i32_0 = arith.constant 0 : i32
    %c0_i32_1 = arith.constant 0 : i32
    return %arg0, %c0_i32, %c0_i32_0 : i32, i32, i32
  }
  func.func @transform_4(%arg0: i32) -> (i32, i32, i32) {
    %c0_i32 = arith.constant 0 : i32
    %c0_i32_0 = arith.constant 0 : i32
    %c0_i32_1 = arith.constant 0 : i32
    return %arg0, %c0_i32, %c0_i32_0 : i32, i32, i32
  }
}

</mosaic_0001>

<llo_original>
// kernel: up_forward.7
$region0: #{up_forward.7}
  #allocation0 [shape = 'u32[]', space=smem, size = 0x4, offset = 0x4, fixed_abs, tag = 'smem constant byte address 0x4 - core index']
  #allocation1 [shape = 'u32[144,128]{1,0:T(1,128)}', space=vmem, size = 0x12000, scoped, tag = 'internal scratch']
  %s0 = inlined_call_operand.vmem [shape: f32[2,16,16,4], index: 0, kind: input, shape index: {}]
  %s1 = inlined_call_operand.vmem [shape: f32[1,4], index: 1, kind: input, shape index: {}]
  %s2 = inlined_call_operand.vmem [shape: f32[1,4], index: 2, kind: input, shape index: {}]
  %s3 = inlined_call_operand.vmem [shape: f32[2,4,256], index: 3, kind: output, shape index: {}]
  %s4 = sld [smem:[#allocation0]]
  $region45: #{up_forward.7} parent=0
    _
  %s6 = ssub.s32 1, %s4
  %s7 = scalar_select 0, %s6, %s4
  loop: start=0, step=1, limit=4
  $region2: #{up_forward.7} parent=0 // loop_pre_header
    _
  $region3: #{up_forward.7} parent=0 // loop_header
    %s9 = sphi 0, %s13
    %p10 = scmp.ge.s32.totalorder %s9, 4
    %s19 = sphi 0, %s21
    %s22 = sphi 0, %s19
    %s23 = sphi 0, %s22
    %s39 = sphi 0, %s23
    %s43 = sphi 0, %s43
    %s45 = sphi 0, %s43
    %s46 = sphi 0, %s45
    %s60 = sphi 0, %s46
    %s64 = sphi 0, %s64
    %s66 = sphi 0, %s64
    %s67 = sphi 0, %s66
    %s81 = sphi 0, %s67
    %s87 = sphi 0, %s89
    %s90 = sphi 0, %s87
    %s91 = sphi 0, %s90
    %s107 = sphi 0, %s91
  $region4: #{up_forward.7} parent=0 // loop_header_branch
    %12 = sbr.rel (%p10) target = $region8
  $region5: #{up_forward.7} parent=0 // loop_body
    %s14 = ssub.s32 %s9, 1
    %s15 = ssub.s32 %s9, 2
    %s16 = sadd.s32 %s9, 1
    %s17 = ssub.s32 %s9, %s16
    %p18 = scmp.eq.s32.totalorder %s17, 0
    %s20 = sadd.s32 %s19, 1
    %s21 = scalar_select %p18, %s19, %s20
    %p24 = pneg %p18
    %p25 = scmp.eq.s32.totalorder %s9, 1
    %p26 = por %p24, %p25
    %p27 = scmp.ne.s32.totalorder %s19, %s22
    %p28 = scmp.eq.s32.totalorder %s9, 0
    %p29 = por %p27, %p28
    %p30 = scmp.ne.s32.totalorder %s19, %s22
    %p31 = scmp.eq.s32.totalorder %s14, 1
    %p32 = por %p30, %p31
    %p33 = scmp.ne.s32.totalorder %s22, %s23
    %p34 = scmp.eq.s32.totalorder %s14, 0
    %p35 = por %p33, %p34
    %p36 = scmp.ne.s32.totalorder %s22, %s23
    %p37 = scmp.eq.s32.totalorder %s15, 1
    %p38 = por %p36, %p37
    %p40 = scmp.ne.s32.totalorder %s23, %s39
    %p41 = scmp.eq.s32.totalorder %s15, 0
    %p42 = por %p40, %p41
    %s44 = sadd.s32 %s43, 1
    %p47 = scmp.eq.s32.totalorder %s9, 1
    %p48 = scmp.ne.s32.totalorder %s43, %s45
    %p49 = scmp.eq.s32.totalorder %s9, 0
    %p50 = por %p48, %p49
    %p51 = scmp.ne.s32.totalorder %s43, %s45
    %p52 = scmp.eq.s32.totalorder %s14, 1
    %p53 = por %p51, %p52
    %p54 = scmp.ne.s32.totalorder %s45, %s46
    %p55 = scmp.eq.s32.totalorder %s14, 0
    %p56 = por %p54, %p55
    %p57 = scmp.ne.s32.totalorder %s45, %s46
    %p58 = scmp.eq.s32.totalorder %s15, 1
    %p59 = por %p57, %p58
    %p61 = scmp.ne.s32.totalorder %s46, %s60
    %p62 = scmp.eq.s32.totalorder %s15, 0
    %p63 = por %p61, %p62
    %s65 = sadd.s32 %s64, 1
    %p68 = scmp.eq.s32.totalorder %s9, 1
    %p69 = scmp.ne.s32.totalorder %s64, %s66
    %p70 = scmp.eq.s32.totalorder %s9, 0
    %p71 = por %p69, %p70
    %p72 = scmp.ne.s32.totalorder %s64, %s66
    %p73 = scmp.eq.s32.totalorder %s14, 1
    %p74 = por %p72, %p73
    %p75 = scmp.ne.s32.totalorder %s66, %s67
    %p76 = scmp.eq.s32.totalorder %s14, 0
    %p77 = por %p75, %p76
    %p78 = scmp.ne.s32.totalorder %s66, %s67
    %p79 = scmp.eq.s32.totalorder %s15, 1
    %p80 = por %p78, %p79
    %p82 = scmp.ne.s32.totalorder %s67, %s81
    %p83 = scmp.eq.s32.totalorder %s15, 0
    %p84 = por %p82, %p83
    %s85 = ssub.s32 %s9, %s16
    %p86 = scmp.eq.s32.totalorder %s85, 0
    %s88 = sadd.s32 %s87, 1
    %s89 = scalar_select %p86, %s87, %s88
    %p92 = pneg %p86
    %p93 = scmp.eq.s32.totalorder %s9, 1
    %p94 = por %p92, %p93
    %p95 = scmp.ne.s32.totalorder %s87, %s90
    %p96 = scmp.eq.s32.totalorder %s9, 0
    %p97 = por %p95, %p96
    %p98 = scmp.ne.s32.totalorder %s87, %s90
    %p99 = scmp.eq.s32.totalorder %s14, 1
    %p100 = por %p98, %p99
    %p101 = scmp.ne.s32.totalorder %s90, %s91
    %p102 = scmp.eq.s32.totalorder %s14, 0
    %p103 = por %p101, %p102
    %p104 = scmp.ne.s32.totalorder %s90, %s91
    %p105 = scmp.eq.s32.totalorder %s15, 1
    %p106 = por %p104, %p105
    %p108 = scmp.ne.s32.totalorder %s91, %s107
    %p109 = scmp.eq.s32.totalorder %s15, 0
    %p110 = por %p108, %p109
    %p111 = scmp.le.s32.totalorder 1, %s9
    %p112 = scmp.lt.s32.totalorder %s9, 3
    %p113 = pnand %p111, %p112
    %p114 = pneg %p113
    // Predicated region
    $region9: #{up_forward.7} parent=5 // pred_check
      _
    $region10: #{up_forward.7} parent=5 // pred_check_branch
      %116 = sbr.rel (%p113) target = $region12
    $region11: #{up_forward.7} parent=5 // pred_region
      %s117 = ssub.s32 %s9, 1
      // Predicated region
      $region13: #{up_forward.7} parent=11 // pred_check
        %p118 = pneg %p56
      $region14: #{up_forward.7} parent=11 // pred_check_branch
        %120 = sbr.rel (%p118) target = $region16
      $region15: #{up_forward.7} parent=11 // pred_region
        _
      $region16: #{up_forward.7} parent=11 // pred_fallthru
        _
      // Predicated region
      $region17: #{up_forward.7} parent=11 // pred_check
        %p121 = pneg %p77
      $region18: #{up_forward.7} parent=11 // pred_check_branch
        %123 = sbr.rel (%p121) target = $region20
      $region19: #{up_forward.7} parent=11 // pred_region
        _
      $region20: #{up_forward.7} parent=11 // pred_fallthru
        _
    $region12: #{up_forward.7} parent=5 // pred_fallthru
      _
    %p124 = scmp.lt.s32.totalorder %s9, 2
    // Predicated region
    $region21: #{up_forward.7} parent=5 // pred_check
      %p125 = pneg %p124
    $region22: #{up_forward.7} parent=5 // pred_check_branch
      %127 = sbr.rel (%p125) target = $region24
    $region23: #{up_forward.7} parent=5 // pred_region
      // Predicated region
      $region25: #{up_forward.7} parent=23 // pred_check
        %p128 = pneg %p29
      $region26: #{up_forward.7} parent=23 // pred_check_branch
        %130 = sbr.rel (%p128) target = $region28
      $region27: #{up_forward.7} parent=23 // pred_region
        %p131 = scmp.lt.s32.totalorder %s9, 1
        %s132 = scalar_select %p131, %s9, 1
        %s133 = smul.addr %s132, 32
        %s134 = smul.addr %s133, 8
        %s135 = scalar_lea.vmem %s0, %s134
      $region28: #{up_forward.7} parent=23 // pred_fallthru
        _
    $region24: #{up_forward.7} parent=5 // pred_fallthru
      _
    %p136 = scmp.le.s32.totalorder 1, %s9
    %p137 = scmp.lt.s32.totalorder %s9, 3
    %p138 = pnand %p136, %p137
    %p139 = pneg %p138
    // Predicated region
    $region29: #{up_forward.7} parent=5 // pred_check
      _
    $region30: #{up_forward.7} parent=5 // pred_check_branch
      %141 = sbr.rel (%p138) target = $region32
    $region31: #{up_forward.7} parent=5 // pred_region
      %s142 = ssub.s32 %s9, 1
      %p143 = scmp.lt.s32.totalorder %s14, 1
      %s144 = scalar_select %p143, %s14, 1
      %s145 = smul.addr %s144, 32
      %s146 = smul.addr %s145, 8
      %s147 = scalar_lea.vmem %s0, %s146
      %p148 = pneg %p35
      %p149 = pneg %p32
      %p150 = pneg %p56
      %p151 = pneg %p53
      %p152 = pneg %p77
      %p153 = pneg %p74
      %p154 = pneg %p103
      %p155 = pneg %p100
      %p156 = scmp.lt.s32.totalorder %s14, 1
      %s157 = scalar_select %p156, %s14, 1
      %s158 = smul.addr %s157, 2
      %s159 = smul.addr %s158, 4
      %s160 = scalar_lea.vmem %s3, %s159
      %p161 = scmp.lt.s32.totalorder %s14, 1
      %s162 = scalar_select %p161, %s14, 1
      %s163 = smul.addr %s162, 32
      %s164 = smul.addr %s163, 8
      %s165 = scalar_lea.vmem %s0, %s164
      %p166 = scmp.lt.s32.totalorder %s14, 1
      %s167 = scalar_select %p166, %s14, 1
      %s168 = smul.addr %s167, 2
      %s169 = smul.addr %s168, 4
      %s170 = scalar_lea.vmem %s3, %s169
      %v171 = vld [vmem:[%s165] sm:$0xff]
      %v172 = vld [vmem:[%s165 + $0x8] sm:$0xff]
      %v173 = vld [vmem:[%s165 + $0x10] sm:$0xff]
      %v174 = vld [vmem:[%s165 + $0x18] sm:$0xff]
      %v175 = vld [vmem:[%s165 + $0x20] sm:$0xff]
      %v176 = vld [vmem:[%s165 + $0x28] sm:$0xff]
      %v177 = vld [vmem:[%s165 + $0x30] sm:$0xff]
      %v178 = vld [vmem:[%s165 + $0x38] sm:$0xff]
      %v179 = vld [vmem:[%s165 + $0x40] sm:$0xff]
      %v180 = vld [vmem:[%s165 + $0x48] sm:$0xff]
      %v181 = vld [vmem:[%s165 + $0x50] sm:$0xff]
      %v182 = vld [vmem:[%s165 + $0x58] sm:$0xff]
      %v183 = vld [vmem:[%s165 + $0x60] sm:$0xff]
      %v184 = vld [vmem:[%s165 + $0x68] sm:$0xff]
      %v185 = vld [vmem:[%s165 + $0x70] sm:$0xff]
      %v186 = vld [vmem:[%s165 + $0x78] sm:$0xff]
      %v187 = vld [vmem:[%s165 + $0x80] sm:$0xff]
      %v188 = vld [vmem:[%s165 + $0x88] sm:$0xff]
      %v189 = vld [vmem:[%s165 + $0x90] sm:$0xff]
      %v190 = vld [vmem:[%s165 + $0x98] sm:$0xff]
      %v191 = vld [vmem:[%s165 + $0xa0] sm:$0xff]
      %v192 = vld [vmem:[%s165 + $0xa8] sm:$0xff]
      %v193 = vld [vmem:[%s165 + $0xb0] sm:$0xff]
      %v194 = vld [vmem:[%s165 + $0xb8] sm:$0xff]
      %v195 = vld [vmem:[%s165 + $0xc0] sm:$0xff]
      %v196 = vld [vmem:[%s165 + $0xc8] sm:$0xff]
      %v197 = vld [vmem:[%s165 + $0xd0] sm:$0xff]
      %v198 = vld [vmem:[%s165 + $0xd8] sm:$0xff]
      %v199 = vld [vmem:[%s165 + $0xe0] sm:$0xff]
      %v200 = vld [vmem:[%s165 + $0xe8] sm:$0xff]
      %v201 = vld [vmem:[%s165 + $0xf0] sm:$0xff]
      %v202 = vld [vmem:[%s165 + $0xf8] sm:$0xff]
      %v203 = vld [vmem:[%s1] sm:$0x1]
      %v205 = vlaneseq
      %v206 = vshrl.u32 %v205, 7
      %v207 = vsub.s32 0, %v206
      %v208 = vrot.slane %v203, %v207
      %v210 = vmul.f32 %v171, %v208
      %v211 = vmul.f32 %v172, %v208
      %v212 = vmul.f32 %v173, %v208
      %v213 = vmul.f32 %v174, %v208
      %v214 = vmul.f32 %v175, %v208
      %v215 = vmul.f32 %v176, %v208
      %v216 = vmul.f32 %v177, %v208
      %v217 = vmul.f32 %v178, %v208
      %v218 = vmul.f32 %v179, %v208
      %v219 = vmul.f32 %v180, %v208
      %v220 = vmul.f32 %v181, %v208
      %v221 = vmul.f32 %v182, %v208
      %v222 = vmul.f32 %v183, %v208
      %v223 = vmul.f32 %v184, %v208
      %v224 = vmul.f32 %v185, %v208
      %v225 = vmul.f32 %v186, %v208
      %v226 = vmul.f32 %v187, %v208
      %v227 = vmul.f32 %v188, %v208
      %v228 = vmul.f32 %v189, %v208
      %v229 = vmul.f32 %v190, %v208
      %v230 = vmul.f32 %v191, %v208
      %v231 = vmul.f32 %v192, %v208
      %v232 = vmul.f32 %v193, %v208
      %v233 = vmul.f32 %v194, %v208
      %v234 = vmul.f32 %v195, %v208
      %v235 = vmul.f32 %v196, %v208
      %v236 = vmul.f32 %v197, %v208
      %v237 = vmul.f32 %v198, %v208
      %v238 = vmul.f32 %v199, %v208
      %v239 = vmul.f32 %v200, %v208
      %v240 = vmul.f32 %v201, %v208
      %v241 = vmul.f32 %v202, %v208
      %v242 = vld [vmem:[%s2] sm:$0x1]
      %v244 = vlaneseq
      %v245 = vshrl.u32 %v244, 7
      %v246 = vsub.s32 0, %v245
      %v247 = vrot.slane %v242, %v246
      %v249 = vadd.f32 %v210, %v247
      %v250 = vadd.f32 %v211, %v247
      %v251 = vadd.f32 %v212, %v247
      %v252 = vadd.f32 %v213, %v247
      %v253 = vadd.f32 %v214, %v247
      %v254 = vadd.f32 %v215, %v247
      %v255 = vadd.f32 %v216, %v247
      %v256 = vadd.f32 %v217, %v247
      %v257 = vadd.f32 %v218, %v247
      %v258 = vadd.f32 %v219, %v247
      %v259 = vadd.f32 %v220, %v247
      %v260 = vadd.f32 %v221, %v247
      %v261 = vadd.f32 %v222, %v247
      %v262 = vadd.f32 %v223, %v247
      %v263 = vadd.f32 %v224, %v247
      %v264 = vadd.f32 %v225, %v247
      %v265 = vadd.f32 %v226, %v247
      %v266 = vadd.f32 %v227, %v247
      %v267 = vadd.f32 %v228, %v247
      %v268 = vadd.f32 %v229, %v247
      %v269 = vadd.f32 %v230, %v247
      %v270 = vadd.f32 %v231, %v247
      %v271 = vadd.f32 %v232, %v247
      %v272 = vadd.f32 %v233, %v247
      %v273 = vadd.f32 %v234, %v247
      %v274 = vadd.f32 %v235, %v247
      %v275 = vadd.f32 %v236, %v247
      %v276 = vadd.f32 %v237, %v247
      %v277 = vadd.f32 %v238, %v247
      %v278 = vadd.f32 %v239, %v247
      %v279 = vadd.f32 %v240, %v247
      %v280 = vadd.f32 %v241, %v247
      %v281 = vmax.f32 %v249, 0.0
      %v282 = vmax.f32 %v250, 0.0
      %v283 = vmax.f32 %v251, 0.0
      %v284 = vmax.f32 %v252, 0.0
      %v285 = vmax.f32 %v253, 0.0
      %v286 = vmax.f32 %v254, 0.0
      %v287 = vmax.f32 %v255, 0.0
      %v288 = vmax.f32 %v256, 0.0
      %v289 = vmax.f32 %v257, 0.0
      %v290 = vmax.f32 %v258, 0.0
      %v291 = vmax.f32 %v259, 0.0
      %v292 = vmax.f32 %v260, 0.0
      %v293 = vmax.f32 %v261, 0.0
      %v294 = vmax.f32 %v262, 0.0
      %v295 = vmax.f32 %v263, 0.0
      %v296 = vmax.f32 %v264, 0.0
      %v297 = vmax.f32 %v265, 0.0
      %v298 = vmax.f32 %v266, 0.0
      %v299 = vmax.f32 %v267, 0.0
      %v300 = vmax.f32 %v268, 0.0
      %v301 = vmax.f32 %v269, 0.0
      %v302 = vmax.f32 %v270, 0.0
      %v303 = vmax.f32 %v271, 0.0
      %v304 = vmax.f32 %v272, 0.0
      %v305 = vmax.f32 %v273, 0.0
      %v306 = vmax.f32 %v274, 0.0
      %v307 = vmax.f32 %v275, 0.0
      %v308 = vmax.f32 %v276, 0.0
      %v309 = vmax.f32 %v277, 0.0
      %v310 = vmax.f32 %v278, 0.0
      %v311 = vmax.f32 %v279, 0.0
      %v312 = vmax.f32 %v280, 0.0
      %313 = vxpose.xlu0.b32.start [1/16] %v281, 128
      %314 = vxpose.xlu0.b32.cont [2/16] %v282, 128
      %315 = vxpose.xlu0.b32.cont [3/16] %v283, 128
      %316 = vxpose.xlu0.b32.cont [4/16] %v284, 128
      %317 = vxpose.xlu0.b32.cont [5/16] %v285, 128
      %318 = vxpose.xlu0.b32.cont [6/16] %v286, 128
      %319 = vxpose.xlu0.b32.cont [7/16] %v287, 128
      %320 = vxpose.xlu0.b32.cont [8/16] %v288, 128
      %321 = vxpose.xlu0.b32.cont [9/16] %v289, 128
      %322 = vxpose.xlu0.b32.cont [10/16] %v290, 128
      %323 = vxpose.xlu0.b32.cont [11/16] %v291, 128
      %324 = vxpose.xlu0.b32.cont [12/16] %v292, 128
      %325 = vxpose.xlu0.b32.cont [13/16] %v293, 128
      %326 = vxpose.xlu0.b32.cont [14/16] %v294, 128
      %327 = vxpose.xlu0.b32.cont [15/16] %v295, 128
      %328 = vxpose.xlu0.b32.end [16/16] %v296, 128
      %v329 = vpop.trf.xlu0
      %v330 = vpop.trf.xlu0
      %v331 = vpop.trf.xlu0
      %v332 = vpop.trf.xlu0
      %v333 = vpop.trf.xlu0
      %v334 = vpop.trf.xlu0
      %v335 = vpop.trf.xlu0
      %v336 = vpop.trf.xlu0
      %v337 = vpop.trf.xlu0
      %v338 = vpop.trf.xlu0
      %v339 = vpop.trf.xlu0
      %v340 = vpop.trf.xlu0
      %v341 = vpop.trf.xlu0
      %v342 = vpop.trf.xlu0
      %v343 = vpop.trf.xlu0
      %v344 = vpop.trf.xlu0
      %345 = vxpose.xlu0.b32.start [1/16] %v297, 128
      %346 = vxpose.xlu0.b32.cont [2/16] %v298, 128
      %347 = vxpose.xlu0.b32.cont [3/16] %v299, 128
      %348 = vxpose.xlu0.b32.cont [4/16] %v300, 128
      %349 = vxpose.xlu0.b32.cont [5/16] %v301, 128
      %350 = vxpose.xlu0.b32.cont [6/16] %v302, 128
      %351 = vxpose.xlu0.b32.cont [7/16] %v303, 128
      %352 = vxpose.xlu0.b32.cont [8/16] %v304, 128
      %353 = vxpose.xlu0.b32.cont [9/16] %v305, 128
      %354 = vxpose.xlu0.b32.cont [10/16] %v306, 128
      %355 = vxpose.xlu0.b32.cont [11/16] %v307, 128
      %356 = vxpose.xlu0.b32.cont [12/16] %v308, 128
      %357 = vxpose.xlu0.b32.cont [13/16] %v309, 128
      %358 = vxpose.xlu0.b32.cont [14/16] %v310, 128
      %359 = vxpose.xlu0.b32.cont [15/16] %v311, 128
      %360 = vxpose.xlu0.b32.end [16/16] %v312, 128
      %v361 = vpop.trf.xlu0
      %v362 = vpop.trf.xlu0
      %v363 = vpop.trf.xlu0
      %v364 = vpop.trf.xlu0
      %v365 = vpop.trf.xlu0
      %v366 = vpop.trf.xlu0
      %v367 = vpop.trf.xlu0
      %v368 = vpop.trf.xlu0
      %v369 = vpop.trf.xlu0
      %v370 = vpop.trf.xlu0
      %v371 = vpop.trf.xlu0
      %v372 = vpop.trf.xlu0
      %v373 = vpop.trf.xlu0
      %v374 = vpop.trf.xlu0
      %v375 = vpop.trf.xlu0
      %v376 = vpop.trf.xlu0
      %v379 = vcombine.low %v329, %v361
      %381 = vst [vmem:[%s170] sm:$0xff] %v379
      %p382 = scmp.lt.s32.totalorder %s14, 1
      %s383 = scalar_select %p382, %s14, 1
      %s384 = smul.addr %s383, 2
      %s385 = smul.addr %s384, 4
      %s386 = scalar_lea.vmem %s3, %s385
      // Predicated region
      $region33: #{up_forward.7} parent=31 // pred_check
        %p387 = pneg %p100
      $region34: #{up_forward.7} parent=31 // pred_check_branch
        %389 = sbr.rel (%p387) target = $region36
      $region35: #{up_forward.7} parent=31 // pred_region
        _
      $region36: #{up_forward.7} parent=31 // pred_fallthru
        _
    $region32: #{up_forward.7} parent=5 // pred_fallthru
      _
    %p390 = scmp.le.s32.totalorder 2, %s9
    // Predicated region
    $region37: #{up_forward.7} parent=5 // pred_check
      %p391 = pneg %p390
    $region38: #{up_forward.7} parent=5 // pred_check_branch
      %393 = sbr.rel (%p391) target = $region40
    $region39: #{up_forward.7} parent=5 // pred_region
      %s394 = ssub.s32 %s9, 2
      // Predicated region
      $region41: #{up_forward.7} parent=39 // pred_check
        %p395 = pneg %p106
      $region42: #{up_forward.7} parent=39 // pred_check_branch
        %397 = sbr.rel (%p395) target = $region44
      $region43: #{up_forward.7} parent=39 // pred_region
        %p398 = scmp.lt.s32.totalorder %s15, 1
        %s399 = scalar_select %p398, %s15, 1
        %s400 = smul.addr %s399, 2
        %s401 = smul.addr %s400, 4
        %s402 = scalar_lea.vmem %s3, %s401
      $region44: #{up_forward.7} parent=39 // pred_fallthru
        _
    $region40: #{up_forward.7} parent=5 // pred_fallthru
      _
  $region6: #{up_forward.7} parent=0 // loop_footer
    %s13 = sadd.s32 1, %s9
  $region7: #{up_forward.7} parent=0 // loop_footer_branch
    %8 = sbr.rel target = $region3
  $region8: #{up_forward.7} parent=0 // loop_exit
    _

// kernel: up_forward.4
$region0: #{up_forward.4}
  #allocation0 [shape = 'u32[]', space=smem, size = 0x4, offset = 0x4, fixed_abs, tag = 'smem constant byte address 0x4 - core index']
  #allocation1 [shape = 'u32[144,128]{1,0:T(1,128)}', space=vmem, size = 0x12000, scoped, tag = 'internal scratch']
  %s0 = inlined_call_operand.vmem [shape: f32[2,4,8,8], index: 0, kind: input, shape index: {}]
  %s1 = inlined_call_operand.hbm [shape: f32[2,4,16,16], index: 1, kind: input, shape index: {}]
  %s2 = inlined_call_operand.vmem [shape: f32[8,16], index: 2, kind: input, shape index: {}, may-alias: {2,3}]
  %s3 = inlined_call_operand.vmem [shape: f32[8,16], index: 3, kind: input, shape index: {}, may-alias: {2,3}]
  %s4 = inlined_call_operand.vmem [shape: f32[2,8,16,16], index: 4, kind: output, shape index: {}]
  %s5 = sld [smem:[#allocation0]]
  $region53: #{up_forward.4} parent=0
    _
  %s7 = ssub.s32 1, %s5
  %s8 = scalar_select 0, %s7, %s5
  $region1: #{up_forward.4} parent=0
    #allocation2 [shape = 'u8[65536]{0}', space=vmem, size = 0x10000, scoped, tag = 'input window, operand 1']
    #allocation3 [shape = 's32[2]{0}', space=sflag, size = 0x8, scoped, tag = 'scoped memory for up_forward.4']
    %9 = vsyncpa [#allocation3], 0
    %s10 = scalar_lea.sflag [#allocation3], 1
    %11 = vsyncpa %s10, 0
    loop: start=0, step=1, limit=4
    $region2: #{up_forward.4} parent=1 // loop_pre_header
      _
    $region3: #{up_forward.4} parent=1 // loop_header
      %s13 = sphi 0, %s17
      %p14 = scmp.ge.s32.totalorder %s13, 4
      %s23 = sphi 0, %s25
      %s26 = sphi 0, %s23
      %s27 = sphi 0, %s26
      %s43 = sphi 0, %s27
      %s49 = sphi 0, %s51
      %s52 = sphi 0, %s49
      %s53 = sphi 0, %s52
      %s69 = sphi 0, %s53
      %s73 = sphi 0, %s73
      %s75 = sphi 0, %s73
      %s76 = sphi 0, %s75
      %s90 = sphi 0, %s76
      %s94 = sphi 0, %s94
      %s96 = sphi 0, %s94
      %s97 = sphi 0, %s96
      %s111 = sphi 0, %s97
      %s117 = sphi 0, %s119
      %s120 = sphi 0, %s117
      %s121 = sphi 0, %s120
      %s137 = sphi 0, %s121
    $region4: #{up_forward.4} parent=1 // loop_header_branch
      %16 = sbr.rel (%p14) target = $region8
    $region5: #{up_forward.4} parent=1 // loop_body
      %s18 = ssub.s32 %s13, 1
      %s19 = ssub.s32 %s13, 2
      %s20 = sadd.s32 %s13, 1
      %s21 = ssub.s32 %s13, %s20
      %p22 = scmp.eq.s32.totalorder %s21, 0
      %s24 = sadd.s32 %s23, 1
      %s25 = scalar_select %p22, %s23, %s24
      %p28 = pneg %p22
      %p29 = scmp.eq.s32.totalorder %s13, 1
      %p30 = por %p28, %p29
      %p31 = scmp.ne.s32.totalorder %s23, %s26
      %p32 = scmp.eq.s32.totalorder %s13, 0
      %p33 = por %p31, %p32
      %p34 = scmp.ne.s32.totalorder %s23, %s26
      %p35 = scmp.eq.s32.totalorder %s18, 1
      %p36 = por %p34, %p35
      %p37 = scmp.ne.s32.totalorder %s26, %s27
      %p38 = scmp.eq.s32.totalorder %s18, 0
      %p39 = por %p37, %p38
      %p40 = scmp.ne.s32.totalorder %s26, %s27
      %p41 = scmp.eq.s32.totalorder %s19, 1
      %p42 = por %p40, %p41
      %p44 = scmp.ne.s32.totalorder %s27, %s43
      %p45 = scmp.eq.s32.totalorder %s19, 0
      %p46 = por %p44, %p45
      %s47 = ssub.s32 %s13, %s20
      %p48 = scmp.eq.s32.totalorder %s47, 0
      %s50 = sadd.s32 %s49, 1
      %s51 = scalar_select %p48, %s49, %s50
      %p54 = pneg %p48
      %p55 = scmp.eq.s32.totalorder %s13, 1
      %p56 = por %p54, %p55
      %p57 = scmp.ne.s32.totalorder %s49, %s52
      %p58 = scmp.eq.s32.totalorder %s13, 0
      %p59 = por %p57, %p58
      %p60 = scmp.ne.s32.totalorder %s49, %s52
      %p61 = scmp.eq.s32.totalorder %s18, 1
      %p62 = por %p60, %p61
      %p63 = scmp.ne.s32.totalorder %s52, %s53
      %p64 = scmp.eq.s32.totalorder %s18, 0
      %p65 = por %p63, %p64
      %p66 = scmp.ne.s32.totalorder %s52, %s53
      %p67 = scmp.eq.s32.totalorder %s19, 1
      %p68 = por %p66, %p67
      %p70 = scmp.ne.s32.totalorder %s53, %s69
      %p71 = scmp.eq.s32.totalorder %s19, 0
      %p72 = por %p70, %p71
      %s74 = sadd.s32 %s73, 1
      %p77 = scmp.eq.s32.totalorder %s13, 1
      %p78 = scmp.ne.s32.totalorder %s73, %s75
      %p79 = scmp.eq.s32.totalorder %s13, 0
      %p80 = por %p78, %p79
      %p81 = scmp.ne.s32.totalorder %s73, %s75
      %p82 = scmp.eq.s32.totalorder %s18, 1
      %p83 = por %p81, %p82
      %p84 = scmp.ne.s32.totalorder %s75, %s76
      %p85 = scmp.eq.s32.totalorder %s18, 0
      %p86 = por %p84, %p85
      %p87 = scmp.ne.s32.totalorder %s75, %s76
      %p88 = scmp.eq.s32.totalorder %s19, 1
      %p89 = por %p87, %p88
      %p91 = scmp.ne.s32.totalorder %s76, %s90
      %p92 = scmp.eq.s32.totalorder %s19, 0
      %p93 = por %p91, %p92
      %s95 = sadd.s32 %s94, 1
      %p98 = scmp.eq.s32.totalorder %s13, 1
      %p99 = scmp.ne.s32.totalorder %s94, %s96
      %p100 = scmp.eq.s32.totalorder %s13, 0
      %p101 = por %p99, %p100
      %p102 = scmp.ne.s32.totalorder %s94, %s96
      %p103 = scmp.eq.s32.totalorder %s18, 1
      %p104 = por %p102, %p103
      %p105 = scmp.ne.s32.totalorder %s96, %s97
      %p106 = scmp.eq.s32.totalorder %s18, 0
      %p107 = por %p105, %p106
      %p108 = scmp.ne.s32.totalorder %s96, %s97
      %p109 = scmp.eq.s32.totalorder %s19, 1
      %p110 = por %p108, %p109
      %p112 = scmp.ne.s32.totalorder %s97, %s111
      %p113 = scmp.eq.s32.totalorder %s19, 0
      %p114 = por %p112, %p113
      %s115 = ssub.s32 %s13, %s20
      %p116 = scmp.eq.s32.totalorder %s115, 0
      %s118 = sadd.s32 %s117, 1
      %s119 = scalar_select %p116, %s117, %s118
      %p122 = pneg %p116
      %p123 = scmp.eq.s32.totalorder %s13, 1
      %p124 = por %p122, %p123
      %p125 = scmp.ne.s32.totalorder %s117, %s120
      %p126 = scmp.eq.s32.totalorder %s13, 0
      %p127 = por %p125, %p126
      %p128 = scmp.ne.s32.totalorder %s117, %s120
      %p129 = scmp.eq.s32.totalorder %s18, 1
      %p130 = por %p128, %p129
      %p131 = scmp.ne.s32.totalorder %s120, %s121
      %p132 = scmp.eq.s32.totalorder %s18, 0
      %p133 = por %p131, %p132
      %p134 = scmp.ne.s32.totalorder %s120, %s121
      %p135 = scmp.eq.s32.totalorder %s19, 1
      %p136 = por %p134, %p135
      %p138 = scmp.ne.s32.totalorder %s121, %s137
      %p139 = scmp.eq.s32.totalorder %s19, 0
      %p140 = por %p138, %p139
      %p141 = scmp.le.s32.totalorder 1, %s13
      %p142 = scmp.lt.s32.totalorder %s13, 3
      %p143 = pnand %p141, %p142
      %p144 = pneg %p143
      // Predicated region
      $region9: #{up_forward.4} parent=5 // pred_check
        _
      $region10: #{up_forward.4} parent=5 // pred_check_branch
        %146 = sbr.rel (%p143) target = $region12
      $region11: #{up_forward.4} parent=5 // pred_region
        %s147 = ssub.s32 %s13, 1
        // Predicated region
        $region13: #{up_forward.4} parent=11 // pred_check
          %p148 = pneg %p86
        $region14: #{up_forward.4} parent=11 // pred_check_branch
          %150 = sbr.rel (%p148) target = $region16
        $region15: #{up_forward.4} parent=11 // pred_region
          _
        $region16: #{up_forward.4} parent=11 // pred_fallthru
          _
        // Predicated region
        $region17: #{up_forward.4} parent=11 // pred_check
          %p151 = pneg %p107
        $region18: #{up_forward.4} parent=11 // pred_check_branch
          %153 = sbr.rel (%p151) target = $region20
        $region19: #{up_forward.4} parent=11 // pred_region
          _
        $region20: #{up_forward.4} parent=11 // pred_fallthru
          _
      $region12: #{up_forward.4} parent=5 // pred_fallthru
        _
      %p154 = scmp.lt.s32.totalorder %s13, 2
      // Predicated region
      $region21: #{up_forward.4} parent=5 // pred_check
        %p155 = pneg %p154
      $region22: #{up_forward.4} parent=5 // pred_check_branch
        %157 = sbr.rel (%p155) target = $region24
      $region23: #{up_forward.4} parent=5 // pred_region
        // Predicated region
        $region25: #{up_forward.4} parent=23 // pred_check
          %p158 = pneg %p33
        $region26: #{up_forward.4} parent=23 // pred_check_branch
          %160 = sbr.rel (%p158) target = $region28
        $region27: #{up_forward.4} parent=23 // pred_region
          %p161 = scmp.lt.s32.totalorder %s13, 1
          %s162 = scalar_select %p161, %s13, 1
          %s163 = smul.addr %s162, 4
          %s164 = smul.addr %s163, 8
          %s165 = scalar_lea.vmem %s0, %s164
        $region28: #{up_forward.4} parent=23 // pred_fallthru
          _
        // Predicated region
        $region29: #{up_forward.4} parent=23 // pred_check
          %p166 = pneg %p59
        $region30: #{up_forward.4} parent=23 // pred_check_branch
          %168 = sbr.rel (%p166) target = $region32
        $region31: #{up_forward.4} parent=23 // pred_region
          %s169 = sand.u32 %s49, 1
          %s170 = scalar_lea.sflag [#allocation3], %s169
          %s171 = sand.u32 %s49, 1
          %s172 = smul.addr %s171, 64
          %s173 = scalar_lea.vmem [#allocation2], %s172
          %s175 = ssub.s32 1024, 1024
          %176 = vsyncadd %s170, %s175
          %s177 = smul.addr %s13, 8
          %s178 = smul.addr %s177, 128
          %s179 = scalar_lea.hbm %s1, %s178
          %s180 = sshll.u32 %s173, 4
          %s181 = int_to_ptr.vmem [resolvable:$true] %s180
          %186 = dma.hbm_to_vmem [thread:$0]  %s179, 1024, %s181, %s170, 128, 128, 8
        $region32: #{up_forward.4} parent=23 // pred_fallthru
          _
      $region24: #{up_forward.4} parent=5 // pred_fallthru
        _
      %p187 = scmp.le.s32.totalorder 1, %s13
      %p188 = scmp.lt.s32.totalorder %s13, 3
      %p189 = pnand %p187, %p188
      %p190 = pneg %p189
      // Predicated region
      $region33: #{up_forward.4} parent=5 // pred_check
        _
      $region34: #{up_forward.4} parent=5 // pred_check_branch
        %192 = sbr.rel (%p189) target = $region36
      $region35: #{up_forward.4} parent=5 // pred_region
        %s193 = ssub.s32 %s13, 1
        %s194 = sand.u32 %s52, 1
        %s195 = scalar_lea.sflag [#allocation3], %s194
        %s196 = sand.u32 %s52, 1
        %s197 = smul.addr %s196, 64
        %s198 = scalar_lea.vmem [#allocation2], %s197
        // Predicated region
        $region37: #{up_forward.4} parent=35 // pred_check
          %p199 = pneg %p65
        $region38: #{up_forward.4} parent=35 // pred_check_branch
          %201 = sbr.rel (%p199) target = $region40
        $region39: #{up_forward.4} parent=35 // pred_region
          %202 = dma.done %s195, 1024
        $region40: #{up_forward.4} parent=35 // pred_fallthru
          _
        %p203 = scmp.lt.s32.totalorder %s18, 1
        %s204 = scalar_select %p203, %s18, 1
        %s205 = smul.addr %s204, 4
        %s206 = smul.addr %s205, 8
        %s207 = scalar_lea.vmem %s0, %s206
        %p208 = pneg %p39
        %p209 = pneg %p36
        %s210 = sand.u32 %s52, 1
        %s211 = scalar_lea.sflag [#allocation3], %s210
        %s212 = sand.u32 %s52, 1
        %s213 = smul.addr %s212, 64
        %s214 = scalar_lea.vmem [#allocation2], %s213
        %p215 = pneg %p65
        %p216 = pneg %p62
        %p217 = pneg %p86
        %p218 = pneg %p83
        %p219 = pneg %p107
        %p220 = pneg %p104
        %p221 = pneg %p133
        %p222 = pneg %p130
        %p223 = scmp.lt.s32.totalorder %s18, 1
        %s224 = scalar_select %p223, %s18, 1
        %s225 = smul.addr %s224, 16
        %s226 = smul.addr %s225, 8
        %s227 = scalar_lea.vmem %s4, %s226
        %p228 = scmp.lt.s32.totalorder %s18, 1
        %s229 = scalar_select %p228, %s18, 1
        %s230 = smul.addr %s229, 4
        %s231 = smul.addr %s230, 8
        %s232 = scalar_lea.vmem %s0, %s231
        %p233 = scmp.lt.s32.totalorder %s18, 1
        %s234 = scalar_select %p233, %s18, 1
        %s235 = smul.addr %s234, 16
        %s236 = smul.addr %s235, 8
        %s237 = scalar_lea.vmem %s4, %s236
        %v238 = vld [vmem:[%s232] sm:$0xff]
        %v239 = vld [vmem:[%s232 + $0x8] sm:$0xff]
        %v240 = vld [vmem:[%s232 + $0x10] sm:$0xff]
        %v241 = vld [vmem:[%s232 + $0x18] sm:$0xff]
        %v242 = vld [vmem:[%s2] sm:$0xff]
        %vm243 = vcmask 64512
        %v245 = vsel %vm243, %v238, 0
        %v248 = vsel %vm243, %v239, 0
        %v251 = vsel %vm243, %v240, 0
        %v254 = vsel %vm243, %v241, 0
        %256 = vmatprep.subr.mxu0 0.0
        %257 = vmatpush1.msra.mxu0 %v242
        %258 = vmatprep.subr.mxu0 0.0
        %259 = vmatpush1.msra.mxu0 0.0
        %260 = vmatprep.subr.mxu0 0.0
        %261 = vmatpush1.msra.mxu0 0.0
        %262 = vmatprep.subr.mxu0 0.0
        %263 = vmatpush1.msra.mxu0 0.0
        %264 = vmatprep.subr.mxu0 0.0
        %265 = vmatpush1.msra.mxu0 0.0
        %266 = vmatprep.subr.mxu0 0.0
        %267 = vmatpush1.msra.mxu0 0.0
        %268 = vmatprep.subr.mxu0 0.0
        %269 = vmatpush1.msra.mxu0 0.0
        %270 = vmatprep.subr.mxu0 0.0
        %271 = vmatpush1.msra.mxu0 0.0
        %272 = vmatprep.subr.mxu0 0.0
        %273 = vmatpush1.msra.mxu0 0.0
        %274 = vmatprep.subr.mxu0 0.0
        %275 = vmatpush1.msra.mxu0 0.0
        %276 = vmatprep.subr.mxu0 0.0
        %277 = vmatpush1.msra.mxu0 0.0
        %278 = vmatprep.subr.mxu0 0.0
        %279 = vmatpush1.msra.mxu0 0.0
        %280 = vmatprep.subr.mxu0 0.0
        %281 = vmatpush1.msra.mxu0 0.0
        %282 = vmatprep.subr.mxu0 0.0
        %283 = vmatpush1.msra.mxu0 0.0
        %284 = vmatprep.subr.mxu0 0.0
        %285 = vmatpush1.msra.mxu0 0.0
        %286 = vmatprep.subr.mxu0 0.0
        %287 = vmatpush1.msra.mxu0 0.0
        %288 = vmatprep.subr.mxu0 0.0
        %289 = vmatpush1.msra.mxu0 0.0
        %290 = vmatprep.subr.mxu0 0.0
        %291 = vmatpush1.msra.mxu0 0.0
        %292 = vmatprep.subr.mxu0 0.0
        %293 = vmatpush1.msra.mxu0 0.0
        %294 = vmatprep.subr.mxu0 0.0
        %295 = vmatpush1.msra.mxu0 0.0
        %296 = vmatprep.subr.mxu0 0.0
        %297 = vmatpush1.msra.mxu0 0.0
        %298 = vmatprep.subr.mxu0 0.0
        %299 = vmatpush1.msra.mxu0 0.0
        %300 = vmatprep.subr.mxu0 0.0
        %301 = vmatpush1.msra.mxu0 0.0
        %302 = vmatprep.subr.mxu0 0.0
        %303 = vmatpush1.msra.mxu0 0.0
        %304 = vmatprep.subr.mxu0 0.0
        %305 = vmatpush1.msra.mxu0 0.0
        %306 = vmatprep.subr.mxu0 0.0
        %307 = vmatpush1.msra.mxu0 0.0
        %308 = vmatprep.subr.mxu0 0.0
        %309 = vmatpush1.msra.mxu0 0.0
        %310 = vmatprep.subr.mxu0 0.0
        %311 = vmatpush1.msra.mxu0 0.0
        %312 = vmatprep.subr.mxu0 0.0
        %313 = vmatpush1.msra.mxu0 0.0
        %314 = vmatprep.subr.mxu0 0.0
        %315 = vmatpush1.msra.mxu0 0.0
        %316 = vmatprep.subr.mxu0 0.0
        %317 = vmatpush1.msra.mxu0 0.0
        %318 = vmatprep.subr.mxu0 0.0
        %319 = vmatpush1.msra.mxu0 0.0
        %320 = vmatprep.mubr.f32.mxu0 0.0
        %321 = vmatmul.mubr.f32.gmra.mrb[0].mxu0 %v245
        %v322 = vpop.f32.mrb[0].mxu0
        %v323 = vadd.f32 0.0, %v322
        %v324 = vpop.f32.mrb[0].mxu0
        %325 = vmatprep.mubr.f32.mxu0 0.0
        %326 = vmatmul.mubr.f32.gmra.mrb[0].mxu0 %v248
        %v327 = vpop.f32.mrb[0].mxu0
        %v328 = vadd.f32 0.0, %v327
        %v329 = vpop.f32.mrb[0].mxu0
        %330 = vmatprep.mubr.f32.mxu0 0.0
        %331 = vmatmul.mubr.f32.gmra.mrb[0].mxu0 %v251
        %v332 = vpop.f32.mrb[0].mxu0
        %v333 = vadd.f32 0.0, %v332
        %v334 = vpop.f32.mrb[0].mxu0
        %335 = vmatprep.mubr.f32.mxu0 0.0
        %336 = vmatmul.mubr.f32.gmra.mrb[0].mxu0 %v254
        %v337 = vpop.f32.mrb[0].mxu0
        %v338 = vadd.f32 0.0, %v337
        %v339 = vpop.f32.mrb[0].mxu0
        %340 = vdwg.mxu0
        %341 = vxpose.xlu0.b32.start [1/16] %v323, 128
        %342 = vxpose.xlu0.b32.cont [2/16] 0.0, 128
        %343 = vxpose.xlu0.b32.cont [3/16] 0.0, 128
        %344 = vxpose.xlu0.b32.cont [4/16] 0.0, 128
        %345 = vxpose.xlu0.b32.cont [5/16] 0.0, 128
        %346 = vxpose.xlu0.b32.cont [6/16] 0.0, 128
        %347 = vxpose.xlu0.b32.cont [7/16] 0.0, 128
        %348 = vxpose.xlu0.b32.cont [8/16] 0.0, 128
        %349 = vxpose.xlu0.b32.cont [9/16] 0.0, 128
        %350 = vxpose.xlu0.b32.cont [10/16] 0.0, 128
        %351 = vxpose.xlu0.b32.cont [11/16] 0.0, 128
        %352 = vxpose.xlu0.b32.cont [12/16] 0.0, 128
        %353 = vxpose.xlu0.b32.cont [13/16] 0.0, 128
        %354 = vxpose.xlu0.b32.cont [14/16] 0.0, 128
        %355 = vxpose.xlu0.b32.cont [15/16] 0.0, 128
        %356 = vxpose.xlu0.b32.end [16/16] 0.0, 128
        %v357 = vpop.trf.xlu0
        %v358 = vpop.trf.xlu0
        %v359 = vpop.trf.xlu0
        %v360 = vpop.trf.xlu0
        %v361 = vpop.trf.xlu0
        %v362 = vpop.trf.xlu0
        %v363 = vpop.trf.xlu0
        %v364 = vpop.trf.xlu0
        %v365 = vpop.trf.xlu0
        %v366 = vpop.trf.xlu0
        %v367 = vpop.trf.xlu0
        %v368 = vpop.trf.xlu0
        %v369 = vpop.trf.xlu0
        %v370 = vpop.trf.xlu0
        %v371 = vpop.trf.xlu0
        %v372 = vpop.trf.xlu0
        %373 = vxpose.xlu0.b32.start [1/16] %v328, 128
        %374 = vxpose.xlu0.b32.cont [2/16] 0.0, 128
        %375 = vxpose.xlu0.b32.cont [3/16] 0.0, 128
        %376 = vxpose.xlu0.b32.cont [4/16] 0.0, 128
        %377 = vxpose.xlu0.b32.cont [5/16] 0.0, 128
        %378 = vxpose.xlu0.b32.cont [6/16] 0.0, 128
        %379 = vxpose.xlu0.b32.cont [7/16] 0.0, 128
        %380 = vxpose.xlu0.b32.cont [8/16] 0.0, 128
        %381 = vxpose.xlu0.b32.cont [9/16] 0.0, 128
        %382 = vxpose.xlu0.b32.cont [10/16] 0.0, 128
        %383 = vxpose.xlu0.b32.cont [11/16] 0.0, 128
        %384 = vxpose.xlu0.b32.cont [12/16] 0.0, 128
        %385 = vxpose.xlu0.b32.cont [13/16] 0.0, 128
        %386 = vxpose.xlu0.b32.cont [14/16] 0.0, 128
        %387 = vxpose.xlu0.b32.cont [15/16] 0.0, 128
        %388 = vxpose.xlu0.b32.end [16/16] 0.0, 128
        %v389 = vpop.trf.xlu0
        %v390 = vpop.trf.xlu0
        %v391 = vpop.trf.xlu0
        %v392 = vpop.trf.xlu0
        %v393 = vpop.trf.xlu0
        %v394 = vpop.trf.xlu0
        %v395 = vpop.trf.xlu0
        %v396 = vpop.trf.xlu0
        %v397 = vpop.trf.xlu0
        %v398 = vpop.trf.xlu0
        %v399 = vpop.trf.xlu0
        %v400 = vpop.trf.xlu0
        %v401 = vpop.trf.xlu0
        %v402 = vpop.trf.xlu0
        %v403 = vpop.trf.xlu0
        %v404 = vpop.trf.xlu0
        %405 = vxpose.xlu0.b32.start [1/16] %v333, 128
        %406 = vxpose.xlu0.b32.cont [2/16] 0.0, 128
        %407 = vxpose.xlu0.b32.cont [3/16] 0.0, 128
        %408 = vxpose.xlu0.b32.cont [4/16] 0.0, 128
        %409 = vxpose.xlu0.b32.cont [5/16] 0.0, 128
        %410 = vxpose.xlu0.b32.cont [6/16] 0.0, 128
        %411 = vxpose.xlu0.b32.cont [7/16] 0.0, 128
        %412 = vxpose.xlu0.b32.cont [8/16] 0.0, 128
        %413 = vxpose.xlu0.b32.cont [9/16] 0.0, 128
        %414 = vxpose.xlu0.b32.cont [10/16] 0.0, 128
        %415 = vxpose.xlu0.b32.cont [11/16] 0.0, 128
        %416 = vxpose.xlu0.b32.cont [12/16] 0.0, 128
        %417 = vxpose.xlu0.b32.cont [13/16] 0.0, 128
        %418 = vxpose.xlu0.b32.cont [14/16] 0.0, 128
        %419 = vxpose.xlu0.b32.cont [15/16] 0.0, 128
        %420 = vxpose.xlu0.b32.end [16/16] 0.0, 128
        %v421 = vpop.trf.xlu0
        %v422 = vpop.trf.xlu0
        %v423 = vpop.trf.xlu0
        %v424 = vpop.trf.xlu0
        %v425 = vpop.trf.xlu0
        %v426 = vpop.trf.xlu0
        %v427 = vpop.trf.xlu0
        %v428 = vpop.trf.xlu0
        %v429 = vpop.trf.xlu0
        %v430 = vpop.trf.xlu0
        %v431 = vpop.trf.xlu0
        %v432 = vpop.trf.xlu0
        %v433 = vpop.trf.xlu0
        %v434 = vpop.trf.xlu0
        %v435 = vpop.trf.xlu0
        %v436 = vpop.trf.xlu0
        %437 = vxpose.xlu0.b32.start [1/16] %v338, 128
        %438 = vxpose.xlu0.b32.cont [2/16] 0.0, 128
        %439 = vxpose.xlu0.b32.cont [3/16] 0.0, 128
        %440 = vxpose.xlu0.b32.cont [4/16] 0.0, 128
        %441 = vxpose.xlu0.b32.cont [5/16] 0.0, 128
        %442 = vxpose.xlu0.b32.cont [6/16] 0.0, 128
        %443 = vxpose.xlu0.b32.cont [7/16] 0.0, 128
        %444 = vxpose.xlu0.b32.cont [8/16] 0.0, 128
        %445 = vxpose.xlu0.b32.cont [9/16] 0.0, 128
        %446 = vxpose.xlu0.b32.cont [10/16] 0.0, 128
        %447 = vxpose.xlu0.b32.cont [11/16] 0.0, 128
        %448 = vxpose.xlu0.b32.cont [12/16] 0.0, 128
        %449 = vxpose.xlu0.b32.cont [13/16] 0.0, 128
        %450 = vxpose.xlu0.b32.cont [14/16] 0.0, 128
        %451 = vxpose.xlu0.b32.cont [15/16] 0.0, 128
        %452 = vxpose.xlu0.b32.end [16/16] 0.0, 128
        %v453 = vpop.trf.xlu0
        %v454 = vpop.trf.xlu0
        %v455 = vpop.trf.xlu0
        %v456 = vpop.trf.xlu0
        %v457 = vpop.trf.xlu0
        %v458 = vpop.trf.xlu0
        %v459 = vpop.trf.xlu0
        %v460 = vpop.trf.xlu0
        %v461 = vpop.trf.xlu0
        %v462 = vpop.trf.xlu0
        %v463 = vpop.trf.xlu0
        %v464 = vpop.trf.xlu0
        %v465 = vpop.trf.xlu0
        %v466 = vpop.trf.xlu0
        %v467 = vpop.trf.xlu0
        %v468 = vpop.trf.xlu0
        %v469 = vld [vmem:[%s3] sm:$0xff]
        %v471 = vsel %vm243, %v357, 0
        %v474 = vsel %vm243, %v358, 0
        %v477 = vsel %vm243, %v389, 0
        %v480 = vsel %vm243, %v390, 0
        %v483 = vsel %vm243, %v421, 0
        %v486 = vsel %vm243, %v422, 0
        %v489 = vsel %vm243, %v453, 0
        %v492 = vsel %vm243, %v454, 0
        %494 = vmatprep.subr.mxu0 0.0
        %495 = vmatpush1.msra.mxu0 %v469
        %496 = vmatprep.subr.mxu0 0.0
        %497 = vmatpush1.msra.mxu0 0.0
        %498 = vmatprep.subr.mxu0 0.0
        %499 = vmatpush1.msra.mxu0 0.0
        %500 = vmatprep.subr.mxu0 0.0
        %501 = vmatpush1.msra.mxu0 0.0
        %502 = vmatprep.subr.mxu0 0.0
        %503 = vmatpush1.msra.mxu0 0.0
        %504 = vmatprep.subr.mxu0 0.0
        %505 = vmatpush1.msra.mxu0 0.0
        %506 = vmatprep.subr.mxu0 0.0
        %507 = vmatpush1.msra.mxu0 0.0
        %508 = vmatprep.subr.mxu0 0.0
        %509 = vmatpush1.msra.mxu0 0.0
        %510 = vmatprep.subr.mxu0 0.0
        %511 = vmatpush1.msra.mxu0 0.0
        %512 = vmatprep.subr.mxu0 0.0
        %513 = vmatpush1.msra.mxu0 0.0
        %514 = vmatprep.subr.mxu0 0.0
        %515 = vmatpush1.msra.mxu0 0.0
        %516 = vmatprep.subr.mxu0 0.0
        %517 = vmatpush1.msra.mxu0 0.0
        %518 = vmatprep.subr.mxu0 0.0
        %519 = vmatpush1.msra.mxu0 0.0
        %520 = vmatprep.subr.mxu0 0.0
        %521 = vmatpush1.msra.mxu0 0.0
        %522 = vmatprep.subr.mxu0 0.0
        %523 = vmatpush1.msra.mxu0 0.0
        %524 = vmatprep.subr.mxu0 0.0
        %525 = vmatpush1.msra.mxu0 0.0
        %526 = vmatprep.subr.mxu0 0.0
        %527 = vmatpush1.msra.mxu0 0.0
        %528 = vmatprep.subr.mxu0 0.0
        %529 = vmatpush1.msra.mxu0 0.0
        %530 = vmatprep.subr.mxu0 0.0
        %531 = vmatpush1.msra.mxu0 0.0
        %532 = vmatprep.subr.mxu0 0.0
        %533 = vmatpush1.msra.mxu0 0.0
        %534 = vmatprep.subr.mxu0 0.0
        %535 = vmatpush1.msra.mxu0 0.0
        %536 = vmatprep.subr.mxu0 0.0
        %537 = vmatpush1.msra.mxu0 0.0
        %538 = vmatprep.subr.mxu0 0.0
        %539 = vmatpush1.msra.mxu0 0.0
        %540 = vmatprep.subr.mxu0 0.0
        %541 = vmatpush1.msra.mxu0 0.0
        %542 = vmatprep.subr.mxu0 0.0
        %543 = vmatpush1.msra.mxu0 0.0
        %544 = vmatprep.subr.mxu0 0.0
        %545 = vmatpush1.msra.mxu0 0.0
        %546 = vmatprep.subr.mxu0 0.0
        %547 = vmatpush1.msra.mxu0 0.0
        %548 = vmatprep.subr.mxu0 0.0
        %549 = vmatpush1.msra.mxu0 0.0
        %550 = vmatprep.subr.mxu0 0.0
        %551 = vmatpush1.msra.mxu0 0.0
        %552 = vmatprep.subr.mxu0 0.0
        %553 = vmatpush1.msra.mxu0 0.0
        %554 = vmatprep.subr.mxu0 0.0
        %555 = vmatpush1.msra.mxu0 0.0
        %556 = vmatprep.subr.mxu0 0.0
        %557 = vmatpush1.msra.mxu0 0.0
        %558 = vmatprep.mubr.f32.mxu0 0.0
        %559 = vmatmul.mubr.f32.gmra.mrb[0].mxu0 %v471
        %v560 = vpop.f32.mrb[0].mxu0
        %v561 = vadd.f32 0.0, %v560
        %v562 = vpop.f32.mrb[0].mxu0
        %563 = vmatprep.mubr.f32.mxu0 0.0
        %564 = vmatmul.mubr.f32.gmra.mrb[0].mxu0 %v474
        %v565 = vpop.f32.mrb[0].mxu0
        %v566 = vadd.f32 0.0, %v565
        %v567 = vpop.f32.mrb[0].mxu0
        %568 = vmatprep.mubr.f32.mxu0 0.0
        %569 = vmatmul.mubr.f32.gmra.mrb[0].mxu0 %v477
        %v570 = vpop.f32.mrb[0].mxu0
        %v571 = vadd.f32 0.0, %v570
        %v572 = vpop.f32.mrb[0].mxu0
        %573 = vmatprep.mubr.f32.mxu0 0.0
        %574 = vmatmul.mubr.f32.gmra.mrb[0].mxu0 %v480
        %v575 = vpop.f32.mrb[0].mxu0
        %v576 = vadd.f32 0.0, %v575
        %v577 = vpop.f32.mrb[0].mxu0
        %578 = vmatprep.mubr.f32.mxu0 0.0
        %579 = vmatmul.mubr.f32.gmra.mrb[0].mxu0 %v483
        %v580 = vpop.f32.mrb[0].mxu0
        %v581 = vadd.f32 0.0, %v580
        %v582 = vpop.f32.mrb[0].mxu0
        %583 = vmatprep.mubr.f32.mxu0 0.0
        %584 = vmatmul.mubr.f32.gmra.mrb[0].mxu0 %v486
        %v585 = vpop.f32.mrb[0].mxu0
        %v586 = vadd.f32 0.0, %v585
        %v587 = vpop.f32.mrb[0].mxu0
        %588 = vmatprep.mubr.f32.mxu0 0.0
        %589 = vmatmul.mubr.f32.gmra.mrb[0].mxu0 %v489
        %v590 = vpop.f32.mrb[0].mxu0
        %v591 = vadd.f32 0.0, %v590
        %v592 = vpop.f32.mrb[0].mxu0
        %593 = vmatprep.mubr.f32.mxu0 0.0
        %594 = vmatmul.mubr.f32.gmra.mrb[0].mxu0 %v492
        %v595 = vpop.f32.mrb[0].mxu0
        %v596 = vadd.f32 0.0, %v595
        %v597 = vpop.f32.mrb[0].mxu0
        %598 = vdwg.mxu0
        %599 = vxpose.xlu0.b32.start [1/16] %v561, 128
        %600 = vxpose.xlu0.b32.cont [2/16] %v566, 128
        %601 = vxpose.xlu0.b32.cont [3/16] 0.0, 128
        %602 = vxpose.xlu0.b32.cont [4/16] 0.0, 128
        %603 = vxpose.xlu0.b32.cont [5/16] 0.0, 128
        %604 = vxpose.xlu0.b32.cont [6/16] 0.0, 128
        %605 = vxpose.xlu0.b32.cont [7/16] 0.0, 128
        %606 = vxpose.xlu0.b32.cont [8/16] 0.0, 128
        %607 = vxpose.xlu0.b32.cont [9/16] 0.0, 128
        %608 = vxpose.xlu0.b32.cont [10/16] 0.0, 128
        %609 = vxpose.xlu0.b32.cont [11/16] 0.0, 128
        %610 = vxpose.xlu0.b32.cont [12/16] 0.0, 128
        %611 = vxpose.xlu0.b32.cont [13/16] 0.0, 128
        %612 = vxpose.xlu0.b32.cont [14/16] 0.0, 128
        %613 = vxpose.xlu0.b32.cont [15/16] 0.0, 128
        %614 = vxpose.xlu0.b32.end [16/16] 0.0, 128
        %v615 = vpop.trf.xlu0
        %v616 = vpop.trf.xlu0
        %v617 = vpop.trf.xlu0
        %v618 = vpop.trf.xlu0
        %v619 = vpop.trf.xlu0
        %v620 = vpop.trf.xlu0
        %v621 = vpop.trf.xlu0
        %v622 = vpop.trf.xlu0
        %v623 = vpop.trf.xlu0
        %v624 = vpop.trf.xlu0
        %v625 = vpop.trf.xlu0
        %v626 = vpop.trf.xlu0
        %v627 = vpop.trf.xlu0
        %v628 = vpop.trf.xlu0
        %v629 = vpop.trf.xlu0
        %v630 = vpop.trf.xlu0
        %631 = vxpose.xlu0.b32.start [1/16] %v571, 128
        %632 = vxpose.xlu0.b32.cont [2/16] %v576, 128
        %633 = vxpose.xlu0.b32.cont [3/16] 0.0, 128
        %634 = vxpose.xlu0.b32.cont [4/16] 0.0, 128
        %635 = vxpose.xlu0.b32.cont [5/16] 0.0, 128
        %636 = vxpose.xlu0.b32.cont [6/16] 0.0, 128
        %637 = vxpose.xlu0.b32.cont [7/16] 0.0, 128
        %638 = vxpose.xlu0.b32.cont [8/16] 0.0, 128
        %639 = vxpose.xlu0.b32.cont [9/16] 0.0, 128
        %640 = vxpose.xlu0.b32.cont [10/16] 0.0, 128
        %641 = vxpose.xlu0.b32.cont [11/16] 0.0, 128
        %642 = vxpose.xlu0.b32.cont [12/16] 0.0, 128
        %643 = vxpose.xlu0.b32.cont [13/16] 0.0, 128
        %644 = vxpose.xlu0.b32.cont [14/16] 0.0, 128
        %645 = vxpose.xlu0.b32.cont [15/16] 0.0, 128
        %646 = vxpose.xlu0.b32.end [16/16] 0.0, 128
        %v647 = vpop.trf.xlu0
        %v648 = vpop.trf.xlu0
        %v649 = vpop.trf.xlu0
        %v650 = vpop.trf.xlu0
        %v651 = vpop.trf.xlu0
        %v652 = vpop.trf.xlu0
        %v653 = vpop.trf.xlu0
        %v654 = vpop.trf.xlu0
        %v655 = vpop.trf.xlu0
        %v656 = vpop.trf.xlu0
        %v657 = vpop.trf.xlu0
        %v658 = vpop.trf.xlu0
        %v659 = vpop.trf.xlu0
        %v660 = vpop.trf.xlu0
        %v661 = vpop.trf.xlu0
        %v662 = vpop.trf.xlu0
        %663 = vxpose.xlu0.b32.start [1/16] %v581, 128
        %664 = vxpose.xlu0.b32.cont [2/16] %v586, 128
        %665 = vxpose.xlu0.b32.cont [3/16] 0.0, 128
        %666 = vxpose.xlu0.b32.cont [4/16] 0.0, 128
        %667 = vxpose.xlu0.b32.cont [5/16] 0.0, 128
        %668 = vxpose.xlu0.b32.cont [6/16] 0.0, 128
        %669 = vxpose.xlu0.b32.cont [7/16] 0.0, 128
        %670 = vxpose.xlu0.b32.cont [8/16] 0.0, 128
        %671 = vxpose.xlu0.b32.cont [9/16] 0.0, 128
        %672 = vxpose.xlu0.b32.cont [10/16] 0.0, 128
        %673 = vxpose.xlu0.b32.cont [11/16] 0.0, 128
        %674 = vxpose.xlu0.b32.cont [12/16] 0.0, 128
        %675 = vxpose.xlu0.b32.cont [13/16] 0.0, 128
        %676 = vxpose.xlu0.b32.cont [14/16] 0.0, 128
        %677 = vxpose.xlu0.b32.cont [15/16] 0.0, 128
        %678 = vxpose.xlu0.b32.end [16/16] 0.0, 128
        %v679 = vpop.trf.xlu0
        %v680 = vpop.trf.xlu0
        %v681 = vpop.trf.xlu0
        %v682 = vpop.trf.xlu0
        %v683 = vpop.trf.xlu0
        %v684 = vpop.trf.xlu0
        %v685 = vpop.trf.xlu0
        %v686 = vpop.trf.xlu0
        %v687 = vpop.trf.xlu0
        %v688 = vpop.trf.xlu0
        %v689 = vpop.trf.xlu0
        %v690 = vpop.trf.xlu0
        %v691 = vpop.trf.xlu0
        %v692 = vpop.trf.xlu0
        %v693 = vpop.trf.xlu0
        %v694 = vpop.trf.xlu0
        %695 = vxpose.xlu0.b32.start [1/16] %v591, 128
        %696 = vxpose.xlu0.b32.cont [2/16] %v596, 128
        %697 = vxpose.xlu0.b32.cont [3/16] 0.0, 128
        %698 = vxpose.xlu0.b32.cont [4/16] 0.0, 128
        %699 = vxpose.xlu0.b32.cont [5/16] 0.0, 128
        %700 = vxpose.xlu0.b32.cont [6/16] 0.0, 128
        %701 = vxpose.xlu0.b32.cont [7/16] 0.0, 128
        %702 = vxpose.xlu0.b32.cont [8/16] 0.0, 128
        %703 = vxpose.xlu0.b32.cont [9/16] 0.0, 128
        %704 = vxpose.xlu0.b32.cont [10/16] 0.0, 128
        %705 = vxpose.xlu0.b32.cont [11/16] 0.0, 128
        %706 = vxpose.xlu0.b32.cont [12/16] 0.0, 128
        %707 = vxpose.xlu0.b32.cont [13/16] 0.0, 128
        %708 = vxpose.xlu0.b32.cont [14/16] 0.0, 128
        %709 = vxpose.xlu0.b32.cont [15/16] 0.0, 128
        %710 = vxpose.xlu0.b32.end [16/16] 0.0, 128
        %v711 = vpop.trf.xlu0
        %v712 = vpop.trf.xlu0
        %v713 = vpop.trf.xlu0
        %v714 = vpop.trf.xlu0
        %v715 = vpop.trf.xlu0
        %v716 = vpop.trf.xlu0
        %v717 = vpop.trf.xlu0
        %v718 = vpop.trf.xlu0
        %v719 = vpop.trf.xlu0
        %v720 = vpop.trf.xlu0
        %v721 = vpop.trf.xlu0
        %v722 = vpop.trf.xlu0
        %v723 = vpop.trf.xlu0
        %v724 = vpop.trf.xlu0
        %v725 = vpop.trf.xlu0
        %v726 = vpop.trf.xlu0
        %v727 = vld [vmem:[%s198] sm:$0xff]
        %v728 = vld [vmem:[%s198 + $0x8] sm:$0xff]
        %v729 = vld [vmem:[%s198 + $0x10] sm:$0xff]
        %v730 = vld [vmem:[%s198 + $0x18] sm:$0xff]
        %v731 = vld [vmem:[%s198 + $0x20] sm:$0xff]
        %v732 = vld [vmem:[%s198 + $0x28] sm:$0xff]
        %v733 = vld [vmem:[%s198 + $0x30] sm:$0xff]
        %v734 = vld [vmem:[%s198 + $0x38] sm:$0xff]
        %vm735 = vcmask 130048
        %736 = vst.msk [vmem:[%s237] sm:$0xff] %vm735, %v727
        %737 = vst.msk [vmem:[%s237 + $0x8] sm:$0xff] %vm735, %v728
        %738 = vst.msk [vmem:[%s237 + $0x10] sm:$0xff] %vm735, %v729
        %739 = vst.msk [vmem:[%s237 + $0x18] sm:$0xff] %vm735, %v730
        %740 = vst.msk [vmem:[%s237 + $0x20] sm:$0xff] %vm735, %v731
        %741 = vst.msk [vmem:[%s237 + $0x28] sm:$0xff] %vm735, %v732
        %742 = vst.msk [vmem:[%s237 + $0x30] sm:$0xff] %vm735, %v733
        %743 = vst.msk [vmem:[%s237 + $0x38] sm:$0xff] %vm735, %v734
        %s744 = scalar_lea.vmem %s237, 64
        %745 = vst.msk [vmem:[%s744] sm:$0xff] %vm735, %v615
        %746 = vst.msk [vmem:[%s744 + $0x8] sm:$0xff] %vm735, %v616
        %747 = vst.msk [vmem:[%s744 + $0x10] sm:$0xff] %vm735, %v647
        %748 = vst.msk [vmem:[%s744 + $0x18] sm:$0xff] %vm735, %v648
        %749 = vst.msk [vmem:[%s744 + $0x20] sm:$0xff] %vm735, %v679
        %750 = vst.msk [vmem:[%s744 + $0x28] sm:$0xff] %vm735, %v680
        %751 = vst.msk [vmem:[%s744 + $0x30] sm:$0xff] %vm735, %v711
        %752 = vst.msk [vmem:[%s744 + $0x38] sm:$0xff] %vm735, %v712
        %p753 = scmp.lt.s32.totalorder %s18, 1
        %s754 = scalar_select %p753, %s18, 1
        %s755 = smul.addr %s754, 16
        %s756 = smul.addr %s755, 8
        %s757 = scalar_lea.vmem %s4, %s756
        // Predicated region
        $region41: #{up_forward.4} parent=35 // pred_check
          %p758 = pneg %p130
        $region42: #{up_forward.4} parent=35 // pred_check_branch
          %760 = sbr.rel (%p758) target = $region44
        $region43: #{up_forward.4} parent=35 // pred_region
          _
        $region44: #{up_forward.4} parent=35 // pred_fallthru
          _
      $region36: #{up_forward.4} parent=5 // pred_fallthru
        _
      %p761 = scmp.le.s32.totalorder 2, %s13
      // Predicated region
      $region45: #{up_forward.4} parent=5 // pred_check
        %p762 = pneg %p761
      $region46: #{up_forward.4} parent=5 // pred_check_branch
        %764 = sbr.rel (%p762) target = $region48
      $region47: #{up_forward.4} parent=5 // pred_region
        %s765 = ssub.s32 %s13, 2
        // Predicated region
        $region49: #{up_forward.4} parent=47 // pred_check
          %p766 = pneg %p136
        $region50: #{up_forward.4} parent=47 // pred_check_branch
          %768 = sbr.rel (%p766) target = $region52
        $region51: #{up_forward.4} parent=47 // pred_region
          %p769 = scmp.lt.s32.totalorder %s19, 1
          %s770 = scalar_select %p769, %s19, 1
          %s771 = smul.addr %s770, 16
          %s772 = smul.addr %s771, 8
          %s773 = scalar_lea.vmem %s4, %s772
        $region52: #{up_forward.4} parent=47 // pred_fallthru
          _
      $region48: #{up_forward.4} parent=5 // pred_fallthru
        _
    $region6: #{up_forward.4} parent=1 // loop_footer
      %s17 = sadd.s32 1, %s13
    $region7: #{up_forward.4} parent=1 // loop_footer_branch
      %12 = sbr.rel target = $region3
    $region8: #{up_forward.4} parent=1 // loop_exit
      _
    %774 = vsyncpa [#allocation3], 1
    %s775 = scalar_lea.sflag [#allocation3], 1
    %776 = vsyncpa %s775, 1

// kernel: up_forward.6
$region0: #{up_forward.6}
  #allocation0 [shape = 'u32[]', space=smem, size = 0x4, offset = 0x4, fixed_abs, tag = 'smem constant byte address 0x4 - core index']
  #allocation1 [shape = 'u32[144,128]{1,0:T(1,128)}', space=vmem, size = 0x12000, scoped, tag = 'internal scratch']
  %s0 = inlined_call_operand.vmem [shape: f32[2,18,18,4], index: 0, kind: input, shape index: {}]
  %s1 = inlined_call_operand.vmem [shape: f32[1,4], index: 1, kind: input, shape index: {}]
  %s2 = inlined_call_operand.vmem [shape: f32[1,4], index: 2, kind: input, shape index: {}]
  %s3 = inlined_call_operand.vmem [shape: f32[9,4,4], index: 3, kind: input, shape index: {}]
  %s4 = inlined_call_operand.vmem [shape: f32[2,16,16,4], index: 4, kind: output, shape index: {0}]
  %s5 = inlined_call_operand.vmem [shape: f32[2,1,4], index: 5, kind: output, shape index: {1}]
  %s6 = inlined_call_operand.vmem [shape: f32[2,1,4], index: 6, kind: output, shape index: {2}]
  %7 = xla_tuple %s4, %s5, %s6
  %s8 = sld [smem:[#allocation0]]
  $region65: #{up_forward.6} parent=0
    _
  %s10 = ssub.s32 1, %s8
  %s11 = scalar_select 0, %s10, %s8
  loop: start=0, step=1, limit=4
  $region2: #{up_forward.6} parent=0 // loop_pre_header
    _
  $region3: #{up_forward.6} parent=0 // loop_header
    %s13 = sphi 0, %s17
    %p14 = scmp.ge.s32.totalorder %s13, 4
    %s23 = sphi 0, %s25
    %s26 = sphi 0, %s23
    %s27 = sphi 0, %s26
    %s43 = sphi 0, %s27
    %s47 = sphi 0, %s47
    %s49 = sphi 0, %s47
    %s50 = sphi 0, %s49
    %s64 = sphi 0, %s50
    %s68 = sphi 0, %s68
    %s70 = sphi 0, %s68
    %s71 = sphi 0, %s70
    %s85 = sphi 0, %s71
    %s89 = sphi 0, %s89
    %s91 = sphi 0, %s89
    %s92 = sphi 0, %s91
    %s106 = sphi 0, %s92
    %s112 = sphi 0, %s114
    %s115 = sphi 0, %s112
    %s116 = sphi 0, %s115
    %s132 = sphi 0, %s116
    %s138 = sphi 0, %s140
    %s141 = sphi 0, %s138
    %s142 = sphi 0, %s141
    %s158 = sphi 0, %s142
    %s164 = sphi 0, %s166
    %s167 = sphi 0, %s164
    %s168 = sphi 0, %s167
    %s184 = sphi 0, %s168
  $region4: #{up_forward.6} parent=0 // loop_header_branch
    %16 = sbr.rel (%p14) target = $region8
  $region5: #{up_forward.6} parent=0 // loop_body
    %s18 = ssub.s32 %s13, 1
    %s19 = ssub.s32 %s13, 2
    %s20 = sadd.s32 %s13, 1
    %s21 = ssub.s32 %s13, %s20
    %p22 = scmp.eq.s32.totalorder %s21, 0
    %s24 = sadd.s32 %s23, 1
    %s25 = scalar_select %p22, %s23, %s24
    %p28 = pneg %p22
    %p29 = scmp.eq.s32.totalorder %s13, 1
    %p30 = por %p28, %p29
    %p31 = scmp.ne.s32.totalorder %s23, %s26
    %p32 = scmp.eq.s32.totalorder %s13, 0
    %p33 = por %p31, %p32
    %p34 = scmp.ne.s32.totalorder %s23, %s26
    %p35 = scmp.eq.s32.totalorder %s18, 1
    %p36 = por %p34, %p35
    %p37 = scmp.ne.s32.totalorder %s26, %s27
    %p38 = scmp.eq.s32.totalorder %s18, 0
    %p39 = por %p37, %p38
    %p40 = scmp.ne.s32.totalorder %s26, %s27
    %p41 = scmp.eq.s32.totalorder %s19, 1
    %p42 = por %p40, %p41
    %p44 = scmp.ne.s32.totalorder %s27, %s43
    %p45 = scmp.eq.s32.totalorder %s19, 0
    %p46 = por %p44, %p45
    %s48 = sadd.s32 %s47, 1
    %p51 = scmp.eq.s32.totalorder %s13, 1
    %p52 = scmp.ne.s32.totalorder %s47, %s49
    %p53 = scmp.eq.s32.totalorder %s13, 0
    %p54 = por %p52, %p53
    %p55 = scmp.ne.s32.totalorder %s47, %s49
    %p56 = scmp.eq.s32.totalorder %s18, 1
    %p57 = por %p55, %p56
    %p58 = scmp.ne.s32.totalorder %s49, %s50
    %p59 = scmp.eq.s32.totalorder %s18, 0
    %p60 = por %p58, %p59
    %p61 = scmp.ne.s32.totalorder %s49, %s50
    %p62 = scmp.eq.s32.totalorder %s19, 1
    %p63 = por %p61, %p62
    %p65 = scmp.ne.s32.totalorder %s50, %s64
    %p66 = scmp.eq.s32.totalorder %s19, 0
    %p67 = por %p65, %p66
    %s69 = sadd.s32 %s68, 1
    %p72 = scmp.eq.s32.totalorder %s13, 1
    %p73 = scmp.ne.s32.totalorder %s68, %s70
    %p74 = scmp.eq.s32.totalorder %s13, 0
    %p75 = por %p73, %p74
    %p76 = scmp.ne.s32.totalorder %s68, %s70
    %p77 = scmp.eq.s32.totalorder %s18, 1
    %p78 = por %p76, %p77
    %p79 = scmp.ne.s32.totalorder %s70, %s71
    %p80 = scmp.eq.s32.totalorder %s18, 0
    %p81 = por %p79, %p80
    %p82 = scmp.ne.s32.totalorder %s70, %s71
    %p83 = scmp.eq.s32.totalorder %s19, 1
    %p84 = por %p82, %p83
    %p86 = scmp.ne.s32.totalorder %s71, %s85
    %p87 = scmp.eq.s32.totalorder %s19, 0
    %p88 = por %p86, %p87
    %s90 = sadd.s32 %s89, 1
    %p93 = scmp.eq.s32.totalorder %s13, 1
    %p94 = scmp.ne.s32.totalorder %s89, %s91
    %p95 = scmp.eq.s32.totalorder %s13, 0
    %p96 = por %p94, %p95
    %p97 = scmp.ne.s32.totalorder %s89, %s91
    %p98 = scmp.eq.s32.totalorder %s18, 1
    %p99 = por %p97, %p98
    %p100 = scmp.ne.s32.totalorder %s91, %s92
    %p101 = scmp.eq.s32.totalorder %s18, 0
    %p102 = por %p100, %p101
    %p103 = scmp.ne.s32.totalorder %s91, %s92
    %p104 = scmp.eq.s32.totalorder %s19, 1
    %p105 = por %p103, %p104
    %p107 = scmp.ne.s32.totalorder %s92, %s106
    %p108 = scmp.eq.s32.totalorder %s19, 0
    %p109 = por %p107, %p108
    %s110 = ssub.s32 %s13, %s20
    %p111 = scmp.eq.s32.totalorder %s110, 0
    %s113 = sadd.s32 %s112, 1
    %s114 = scalar_select %p111, %s112, %s113
    %p117 = pneg %p111
    %p118 = scmp.eq.s32.totalorder %s13, 1
    %p119 = por %p117, %p118
    %p120 = scmp.ne.s32.totalorder %s112, %s115
    %p121 = scmp.eq.s32.totalorder %s13, 0
    %p122 = por %p120, %p121
    %p123 = scmp.ne.s32.totalorder %s112, %s115
    %p124 = scmp.eq.s32.totalorder %s18, 1
    %p125 = por %p123, %p124
    %p126 = scmp.ne.s32.totalorder %s115, %s116
    %p127 = scmp.eq.s32.totalorder %s18, 0
    %p128 = por %p126, %p127
    %p129 = scmp.ne.s32.totalorder %s115, %s116
    %p130 = scmp.eq.s32.totalorder %s19, 1
    %p131 = por %p129, %p130
    %p133 = scmp.ne.s32.totalorder %s116, %s132
    %p134 = scmp.eq.s32.totalorder %s19, 0
    %p135 = por %p133, %p134
    %s136 = ssub.s32 %s13, %s20
    %p137 = scmp.eq.s32.totalorder %s136, 0
    %s139 = sadd.s32 %s138, 1
    %s140 = scalar_select %p137, %s138, %s139
    %p143 = pneg %p137
    %p144 = scmp.eq.s32.totalorder %s13, 1
    %p145 = por %p143, %p144
    %p146 = scmp.ne.s32.totalorder %s138, %s141
    %p147 = scmp.eq.s32.totalorder %s13, 0
    %p148 = por %p146, %p147
    %p149 = scmp.ne.s32.totalorder %s138, %s141
    %p150 = scmp.eq.s32.totalorder %s18, 1
    %p151 = por %p149, %p150
    %p152 = scmp.ne.s32.totalorder %s141, %s142
    %p153 = scmp.eq.s32.totalorder %s18, 0
    %p154 = por %p152, %p153
    %p155 = scmp.ne.s32.totalorder %s141, %s142
    %p156 = scmp.eq.s32.totalorder %s19, 1
    %p157 = por %p155, %p156
    %p159 = scmp.ne.s32.totalorder %s142, %s158
    %p160 = scmp.eq.s32.totalorder %s19, 0
    %p161 = por %p159, %p160
    %s162 = ssub.s32 %s13, %s20
    %p163 = scmp.eq.s32.totalorder %s162, 0
    %s165 = sadd.s32 %s164, 1
    %s166 = scalar_select %p163, %s164, %s165
    %p169 = pneg %p163
    %p170 = scmp.eq.s32.totalorder %s13, 1
    %p171 = por %p169, %p170
    %p172 = scmp.ne.s32.totalorder %s164, %s167
    %p173 = scmp.eq.s32.totalorder %s13, 0
    %p174 = por %p172, %p173
    %p175 = scmp.ne.s32.totalorder %s164, %s167
    %p176 = scmp.eq.s32.totalorder %s18, 1
    %p177 = por %p175, %p176
    %p178 = scmp.ne.s32.totalorder %s167, %s168
    %p179 = scmp.eq.s32.totalorder %s18, 0
    %p180 = por %p178, %p179
    %p181 = scmp.ne.s32.totalorder %s167, %s168
    %p182 = scmp.eq.s32.totalorder %s19, 1
    %p183 = por %p181, %p182
    %p185 = scmp.ne.s32.totalorder %s168, %s184
    %p186 = scmp.eq.s32.totalorder %s19, 0
    %p187 = por %p185, %p186
    %p188 = scmp.le.s32.totalorder 1, %s13
    %p189 = scmp.lt.s32.totalorder %s13, 3
    %p190 = pnand %p188, %p189
    %p191 = pneg %p190
    // Predicated region
    $region9: #{up_forward.6} parent=5 // pred_check
      _
    $region10: #{up_forward.6} parent=5 // pred_check_branch
      %193 = sbr.rel (%p190) target = $region12
    $region11: #{up_forward.6} parent=5 // pred_region
      %s194 = ssub.s32 %s13, 1
      // Predicated region
      $region13: #{up_forward.6} parent=11 // pred_check
        %p195 = pneg %p60
      $region14: #{up_forward.6} parent=11 // pred_check_branch
        %197 = sbr.rel (%p195) target = $region16
      $region15: #{up_forward.6} parent=11 // pred_region
        _
      $region16: #{up_forward.6} parent=11 // pred_fallthru
        _
      // Predicated region
      $region17: #{up_forward.6} parent=11 // pred_check
        %p198 = pneg %p81
      $region18: #{up_forward.6} parent=11 // pred_check_branch
        %200 = sbr.rel (%p198) target = $region20
      $region19: #{up_forward.6} parent=11 // pred_region
        _
      $region20: #{up_forward.6} parent=11 // pred_fallthru
        _
      // Predicated region
      $region21: #{up_forward.6} parent=11 // pred_check
        %p201 = pneg %p102
      $region22: #{up_forward.6} parent=11 // pred_check_branch
        %203 = sbr.rel (%p201) target = $region24
      $region23: #{up_forward.6} parent=11 // pred_region
        _
      $region24: #{up_forward.6} parent=11 // pred_fallthru
        _
    $region12: #{up_forward.6} parent=5 // pred_fallthru
      _
    %p204 = scmp.lt.s32.totalorder %s13, 2
    // Predicated region
    $region25: #{up_forward.6} parent=5 // pred_check
      %p205 = pneg %p204
    $region26: #{up_forward.6} parent=5 // pred_check_branch
      %207 = sbr.rel (%p205) target = $region28
    $region27: #{up_forward.6} parent=5 // pred_region
      // Predicated region
      $region29: #{up_forward.6} parent=27 // pred_check
        %p208 = pneg %p33
      $region30: #{up_forward.6} parent=27 // pred_check_branch
        %210 = sbr.rel (%p208) target = $region32
      $region31: #{up_forward.6} parent=27 // pred_region
        %p211 = scmp.lt.s32.totalorder %s13, 1
        %s212 = scalar_select %p211, %s13, 1
        %s213 = smul.addr %s212, 54
        %s214 = smul.addr %s213, 8
        %s215 = scalar_lea.vmem %s0, %s214
      $region32: #{up_forward.6} parent=27 // pred_fallthru
        _
    $region28: #{up_forward.6} parent=5 // pred_fallthru
      _
    %p216 = scmp.le.s32.totalorder 1, %s13
    %p217 = scmp.lt.s32.totalorder %s13, 3
    %p218 = pnand %p216, %p217
    %p219 = pneg %p218
    // Predicated region
    $region33: #{up_forward.6} parent=5 // pred_check
      _
    $region34: #{up_forward.6} parent=5 // pred_check_branch
      %221 = sbr.rel (%p218) target = $region36
    $region35: #{up_forward.6} parent=5 // pred_region
      %s222 = ssub.s32 %s13, 1
      %p223 = scmp.lt.s32.totalorder %s18, 1
      %s224 = scalar_select %p223, %s18, 1
      %s225 = smul.addr %s224, 54
      %s226 = smul.addr %s225, 8
      %s227 = scalar_lea.vmem %s0, %s226
      %p228 = pneg %p39
      %p229 = pneg %p36
      %p230 = pneg %p60
      %p231 = pneg %p57
      %p232 = pneg %p81
      %p233 = pneg %p78
      %p234 = pneg %p102
      %p235 = pneg %p99
      %p236 = pneg %p128
      %p237 = pneg %p125
      %p238 = scmp.lt.s32.totalorder %s18, 1
      %s239 = scalar_select %p238, %s18, 1
      %s240 = smul.addr %s239, 32
      %s241 = smul.addr %s240, 8
      %s242 = scalar_lea.vmem %s4, %s241
      %p243 = pneg %p154
      %p244 = pneg %p151
      %p245 = scmp.lt.s32.totalorder %s18, 1
      %s246 = scalar_select %p245, %s18, 1
      %s247 = scalar_lea.vmem %s5, %s246
      %p248 = pneg %p180
      %p249 = pneg %p177
      %p250 = scmp.lt.s32.totalorder %s18, 1
      %s251 = scalar_select %p250, %s18, 1
      %s252 = scalar_lea.vmem %s6, %s251
      %p253 = scmp.lt.s32.totalorder %s18, 1
      %s254 = scalar_select %p253, %s18, 1
      %s255 = smul.addr %s254, 54
      %s256 = smul.addr %s255, 8
      %s257 = scalar_lea.vmem %s0, %s256
      %p258 = scmp.lt.s32.totalorder %s18, 1
      %s259 = scalar_select %p258, %s18, 1
      %s260 = smul.addr %s259, 32
      %s261 = smul.addr %s260, 8
      %s262 = scalar_lea.vmem %s4, %s261
      %p263 = scmp.lt.s32.totalorder %s18, 1
      %s264 = scalar_select %p263, %s18, 1
      %s265 = scalar_lea.vmem %s5, %s264
      %p266 = scmp.lt.s32.totalorder %s18, 1
      %s267 = scalar_select %p266, %s18, 1
      %s268 = scalar_lea.vmem %s6, %s267
      %v269 = vld [vmem:[%s257] sm:$0xff]
      %v270 = vld [vmem:[%s257 + $0x8] sm:$0xff]
      %v271 = vld [vmem:[%s257 + $0x10] sm:$0x3]
      %v272 = vld [vmem:[%s257 + $0x18] sm:$0xff]
      %v273 = vld [vmem:[%s257 + $0x20] sm:$0xff]
      %v274 = vld [vmem:[%s257 + $0x28] sm:$0x3]
      %v275 = vld [vmem:[%s257 + $0x30] sm:$0xff]
      %v276 = vld [vmem:[%s257 + $0x38] sm:$0xff]
      %v277 = vld [vmem:[%s257 + $0x40] sm:$0x3]
      %v278 = vld [vmem:[%s257 + $0x48] sm:$0xff]
      %v279 = vld [vmem:[%s257 + $0x50] sm:$0xff]
      %v280 = vld [vmem:[%s257 + $0x58] sm:$0x3]
      %v281 = vld [vmem:[%s257 + $0x60] sm:$0xff]
      %v282 = vld [vmem:[%s257 + $0x68] sm:$0xff]
      %v283 = vld [vmem:[%s257 + $0x70] sm:$0x3]
      %v284 = vld [vmem:[%s257 + $0x78] sm:$0xff]
      %v285 = vld [vmem:[%s257 + $0x80] sm:$0xff]
      %v286 = vld [vmem:[%s257 + $0x88] sm:$0x3]
      %v287 = vld [vmem:[%s257 + $0x90] sm:$0xff]
      %v288 = vld [vmem:[%s257 + $0x98] sm:$0xff]
      %v289 = vld [vmem:[%s257 + $0xa0] sm:$0x3]
      %v290 = vld [vmem:[%s257 + $0xa8] sm:$0xff]
      %v291 = vld [vmem:[%s257 + $0xb0] sm:$0xff]
      %v292 = vld [vmem:[%s257 + $0xb8] sm:$0x3]
      %v293 = vld [vmem:[%s257 + $0xc0] sm:$0xff]
      %v294 = vld [vmem:[%s257 + $0xc8] sm:$0xff]
      %v295 = vld [vmem:[%s257 + $0xd0] sm:$0x3]
      %v296 = vld [vmem:[%s257 + $0xd8] sm:$0xff]
      %v297 = vld [vmem:[%s257 + $0xe0] sm:$0xff]
      %v298 = vld [vmem:[%s257 + $0xe8] sm:$0x3]
      %v299 = vld [vmem:[%s257 + $0xf0] sm:$0xff]
      %v300 = vld [vmem:[%s257 + $0xf8] sm:$0xff]
      %v301 = vld [vmem:[%s257 + $0x100] sm:$0x3]
      %v302 = vld [vmem:[%s257 + $0x108] sm:$0xff]
      %v303 = vld [vmem:[%s257 + $0x110] sm:$0xff]
      %v304 = vld [vmem:[%s257 + $0x118] sm:$0x3]
      %v305 = vld [vmem:[%s257 + $0x120] sm:$0xff]
      %v306 = vld [vmem:[%s257 + $0x128] sm:$0xff]
      %v307 = vld [vmem:[%s257 + $0x130] sm:$0x3]
      %v308 = vld [vmem:[%s257 + $0x138] sm:$0xff]
      %v309 = vld [vmem:[%s257 + $0x140] sm:$0xff]
      %v310 = vld [vmem:[%s257 + $0x148] sm:$0x3]
      %v311 = vld [vmem:[%s257 + $0x150] sm:$0xff]
      %v312 = vld [vmem:[%s257 + $0x158] sm:$0xff]
      %v313 = vld [vmem:[%s257 + $0x160] sm:$0x3]
      %v314 = vld [vmem:[%s257 + $0x168] sm:$0xff]
      %v315 = vld [vmem:[%s257 + $0x170] sm:$0xff]
      %v316 = vld [vmem:[%s257 + $0x178] sm:$0x3]
      %v317 = vld [vmem:[%s257 + $0x180] sm:$0xff]
      %v318 = vld [vmem:[%s257 + $0x188] sm:$0xff]
      %v319 = vld [vmem:[%s257 + $0x190] sm:$0x3]
      %v320 = vld [vmem:[%s257 + $0x198] sm:$0xff]
      %v321 = vld [vmem:[%s257 + $0x1a0] sm:$0xff]
      %v322 = vld [vmem:[%s257 + $0x1a8] sm:$0x3]
      %v323 = vld [vmem:[%s1] sm:$0x1]
      %v325 = vlaneseq
      %v326 = vshrl.u32 %v325, 7
      %v327 = vsub.s32 0, %v326
      %v328 = vrot.slane %v323, %v327
      %v330 = vmul.f32 %v269, %v328
      %v331 = vmul.f32 %v270, %v328
      %v332 = vmul.f32 %v271, %v328
      %v333 = vmul.f32 %v272, %v328
      %v334 = vmul.f32 %v273, %v328
      %v335 = vmul.f32 %v274, %v328
      %v336 = vmul.f32 %v275, %v328
      %v337 = vmul.f32 %v276, %v328
      %v338 = vmul.f32 %v277, %v328
      %v339 = vmul.f32 %v278, %v328
      %v340 = vmul.f32 %v279, %v328
      %v341 = vmul.f32 %v280, %v328
      %v342 = vmul.f32 %v281, %v328
      %v343 = vmul.f32 %v282, %v328
      %v344 = vmul.f32 %v283, %v328
      %v345 = vmul.f32 %v284, %v328
      %v346 = vmul.f32 %v285, %v328
      %v347 = vmul.f32 %v286, %v328
      %v348 = vmul.f32 %v287, %v328
      %v349 = vmul.f32 %v288, %v328
      %v350 = vmul.f32 %v289, %v328
      %v351 = vmul.f32 %v290, %v328
      %v352 = vmul.f32 %v291, %v328
      %v353 = vmul.f32 %v292, %v328
      %v354 = vmul.f32 %v293, %v328
      %v355 = vmul.f32 %v294, %v328
      %v356 = vmul.f32 %v295, %v328
      %v357 = vmul.f32 %v296, %v328
      %v358 = vmul.f32 %v297, %v328
      %v359 = vmul.f32 %v298, %v328
      %v360 = vmul.f32 %v299, %v328
      %v361 = vmul.f32 %v300, %v328
      %v362 = vmul.f32 %v301, %v328
      %v363 = vmul.f32 %v302, %v328
      %v364 = vmul.f32 %v303, %v328
      %v365 = vmul.f32 %v304, %v328
      %v366 = vmul.f32 %v305, %v328
      %v367 = vmul.f32 %v306, %v328
      %v368 = vmul.f32 %v307, %v328
      %v369 = vmul.f32 %v308, %v328
      %v370 = vmul.f32 %v309, %v328
      %v371 = vmul.f32 %v310, %v328
      %v372 = vmul.f32 %v311, %v328
      %v373 = vmul.f32 %v312, %v328
      %v374 = vmul.f32 %v313, %v328
      %v375 = vmul.f32 %v314, %v328
      %v376 = vmul.f32 %v315, %v328
      %v377 = vmul.f32 %v316, %v328
      %v378 = vmul.f32 %v317, %v328
      %v379 = vmul.f32 %v318, %v328
      %v380 = vmul.f32 %v319, %v328
      %v381 = vmul.f32 %v320, %v328
      %v382 = vmul.f32 %v321, %v328
      %v383 = vmul.f32 %v322, %v328
      %v384 = vld [vmem:[%s2] sm:$0x1]
      %v386 = vlaneseq
      %v387 = vshrl.u32 %v386, 7
      %v388 = vsub.s32 0, %v387
      %v389 = vrot.slane %v384, %v388
      %v391 = vadd.f32 %v330, %v389
      %v392 = vadd.f32 %v331, %v389
      %v393 = vadd.f32 %v332, %v389
      %v394 = vadd.f32 %v333, %v389
      %v395 = vadd.f32 %v334, %v389
      %v396 = vadd.f32 %v335, %v389
      %v397 = vadd.f32 %v336, %v389
      %v398 = vadd.f32 %v337, %v389
      %v399 = vadd.f32 %v338, %v389
      %v400 = vadd.f32 %v339, %v389
      %v401 = vadd.f32 %v340, %v389
      %v402 = vadd.f32 %v341, %v389
      %v403 = vadd.f32 %v342, %v389
      %v404 = vadd.f32 %v343, %v389
      %v405 = vadd.f32 %v344, %v389
      %v406 = vadd.f32 %v345, %v389
      %v407 = vadd.f32 %v346, %v389
      %v408 = vadd.f32 %v347, %v389
      %v409 = vadd.f32 %v348, %v389
      %v410 = vadd.f32 %v349, %v389
      %v411 = vadd.f32 %v350, %v389
      %v412 = vadd.f32 %v351, %v389
      %v413 = vadd.f32 %v352, %v389
      %v414 = vadd.f32 %v353, %v389
      %v415 = vadd.f32 %v354, %v389
      %v416 = vadd.f32 %v355, %v389
      %v417 = vadd.f32 %v356, %v389
      %v418 = vadd.f32 %v357, %v389
      %v419 = vadd.f32 %v358, %v389
      %v420 = vadd.f32 %v359, %v389
      %v421 = vadd.f32 %v360, %v389
      %v422 = vadd.f32 %v361, %v389
      %v423 = vadd.f32 %v362, %v389
      %v424 = vadd.f32 %v363, %v389
      %v425 = vadd.f32 %v364, %v389
      %v426 = vadd.f32 %v365, %v389
      %v427 = vadd.f32 %v366, %v389
      %v428 = vadd.f32 %v367, %v389
      %v429 = vadd.f32 %v368, %v389
      %v430 = vadd.f32 %v369, %v389
      %v431 = vadd.f32 %v370, %v389
      %v432 = vadd.f32 %v371, %v389
      %v433 = vadd.f32 %v372, %v389
      %v434 = vadd.f32 %v373, %v389
      %v435 = vadd.f32 %v374, %v389
      %v436 = vadd.f32 %v375, %v389
      %v437 = vadd.f32 %v376, %v389
      %v438 = vadd.f32 %v377, %v389
      %v439 = vadd.f32 %v378, %v389
      %v440 = vadd.f32 %v379, %v389
      %v441 = vadd.f32 %v380, %v389
      %v442 = vadd.f32 %v381, %v389
      %v443 = vadd.f32 %v382, %v389
      %v444 = vadd.f32 %v383, %v389
      %v445 = vmax.f32 %v391, 0.0
      %v446 = vmax.f32 %v392, 0.0
      %v447 = vmax.f32 %v393, 0.0
      %v448 = vmax.f32 %v394, 0.0
      %v449 = vmax.f32 %v395, 0.0
      %v450 = vmax.f32 %v396, 0.0
      %v451 = vmax.f32 %v397, 0.0
      %v452 = vmax.f32 %v398, 0.0
      %v453 = vmax.f32 %v399, 0.0
      %v454 = vmax.f32 %v400, 0.0
      %v455 = vmax.f32 %v401, 0.0
      %v456 = vmax.f32 %v402, 0.0
      %v457 = vmax.f32 %v403, 0.0
      %v458 = vmax.f32 %v404, 0.0
      %v459 = vmax.f32 %v405, 0.0
      %v460 = vmax.f32 %v406, 0.0
      %v461 = vmax.f32 %v407, 0.0
      %v462 = vmax.f32 %v408, 0.0
      %v463 = vmax.f32 %v409, 0.0
      %v464 = vmax.f32 %v410, 0.0
      %v465 = vmax.f32 %v411, 0.0
      %v466 = vmax.f32 %v412, 0.0
      %v467 = vmax.f32 %v413, 0.0
      %v468 = vmax.f32 %v414, 0.0
      %v469 = vmax.f32 %v415, 0.0
      %v470 = vmax.f32 %v416, 0.0
      %v471 = vmax.f32 %v417, 0.0
      %v472 = vmax.f32 %v418, 0.0
      %v473 = vmax.f32 %v419, 0.0
      %v474 = vmax.f32 %v420, 0.0
      %v475 = vmax.f32 %v421, 0.0
      %v476 = vmax.f32 %v422, 0.0
      %v477 = vmax.f32 %v423, 0.0
      %v478 = vmax.f32 %v424, 0.0
      %v479 = vmax.f32 %v425, 0.0
      %v480 = vmax.f32 %v426, 0.0
      %v481 = vmax.f32 %v427, 0.0
      %v482 = vmax.f32 %v428, 0.0
      %v483 = vmax.f32 %v429, 0.0
      %v484 = vmax.f32 %v430, 0.0
      %v485 = vmax.f32 %v431, 0.0
      %v486 = vmax.f32 %v432, 0.0
      %v487 = vmax.f32 %v433, 0.0
      %v488 = vmax.f32 %v434, 0.0
      %v489 = vmax.f32 %v435, 0.0
      %v490 = vmax.f32 %v436, 0.0
      %v491 = vmax.f32 %v437, 0.0
      %v492 = vmax.f32 %v438, 0.0
      %v493 = vmax.f32 %v439, 0.0
      %v494 = vmax.f32 %v440, 0.0
      %v495 = vmax.f32 %v441, 0.0
      %v496 = vmax.f32 %v442, 0.0
      %v497 = vmax.f32 %v443, 0.0
      %v498 = vmax.f32 %v444, 0.0
      %v499 = vlaneseq
      %v500 = vshrl.u32 %v499, 7
      %v501 = vadd.s32 %v500, 8
      %v502 = vadd.s32 %v500, 16
      %vm503 = vcmp.eq.s32.totalorder %v500, 0
      %vm504 = vcmp.eq.s32.totalorder %v501, 0
      %vm505 = vcmp.eq.s32.totalorder %v502, 0
      %vm506 = vmor 1, %vm503
      %vm507 = vmor 1, %vm504
      %vm508 = vmor 1, %vm505
      %vm509 = vmor 0, %vm503
      %vm510 = vmor 0, %vm504
      %vm511 = vmor 0, %vm505
      %vm512 = vcmp.eq.s32.totalorder %v500, 17
      %vm513 = vcmp.eq.s32.totalorder %v501, 17
      %vm514 = vcmp.eq.s32.totalorder %v502, 17
      %vm515 = vmor %vm506, %vm512
      %vm516 = vmor %vm507, %vm513
      %vm517 = vmor %vm508, %vm514
      %vm518 = vmor %vm509, %vm512
      %vm519 = vmor %vm510, %vm513
      %vm520 = vmor %vm511, %vm514
      %v521 = vsel %vm515, 0.0, %v445
      %v522 = vsel %vm516, 0.0, %v446
      %v523 = vsel %vm517, 0.0, %v447
      %v524 = vsel %vm518, 0.0, %v448
      %v525 = vsel %vm519, 0.0, %v449
      %v526 = vsel %vm520, 0.0, %v450
      %v527 = vsel %vm518, 0.0, %v451
      %v528 = vsel %vm519, 0.0, %v452
      %v529 = vsel %vm520, 0.0, %v453
      %v530 = vsel %vm518, 0.0, %v454
      %v531 = vsel %vm519, 0.0, %v455
      %v532 = vsel %vm520, 0.0, %v456
      %v533 = vsel %vm518, 0.0, %v457
      %v534 = vsel %vm519, 0.0, %v458
      %v535 = vsel %vm520, 0.0, %v459
      %v536 = vsel %vm518, 0.0, %v460
      %v537 = vsel %vm519, 0.0, %v461
      %v538 = vsel %vm520, 0.0, %v462
      %v539 = vsel %vm518, 0.0, %v463
      %v540 = vsel %vm519, 0.0, %v464
      %v541 = vsel %vm520, 0.0, %v465
      %v542 = vsel %vm518, 0.0, %v466
      %v543 = vsel %vm519, 0.0, %v467
      %v544 = vsel %vm520, 0.0, %v468
      %v545 = vsel %vm518, 0.0, %v469
      %v546 = vsel %vm519, 0.0, %v470
      %v547 = vsel %vm520, 0.0, %v471
      %v548 = vsel %vm518, 0.0, %v472
      %v549 = vsel %vm519, 0.0, %v473
      %v550 = vsel %vm520, 0.0, %v474
      %v551 = vsel %vm518, 0.0, %v475
      %v552 = vsel %vm519, 0.0, %v476
      %v553 = vsel %vm520, 0.0, %v477
      %v554 = vsel %vm518, 0.0, %v478
      %v555 = vsel %vm519, 0.0, %v479
      %v556 = vsel %vm520, 0.0, %v480
      %v557 = vsel %vm518, 0.0, %v481
      %v558 = vsel %vm519, 0.0, %v482
      %v559 = vsel %vm520, 0.0, %v483
      %v560 = vsel %vm518, 0.0, %v484
      %v561 = vsel %vm519, 0.0, %v485
      %v562 = vsel %vm520, 0.0, %v486
      %v563 = vsel %vm518, 0.0, %v487
      %v564 = vsel %vm519, 0.0, %v488
      %v565 = vsel %vm520, 0.0, %v489
      %v566 = vsel %vm518, 0.0, %v490
      %v567 = vsel %vm519, 0.0, %v491
      %v568 = vsel %vm520, 0.0, %v492
      %v569 = vsel %vm518, 0.0, %v493
      %v570 = vsel %vm519, 0.0, %v494
      %v571 = vsel %vm520, 0.0, %v495
      %v572 = vsel %vm515, 0.0, %v496
      %v573 = vsel %vm516, 0.0, %v497
      %v574 = vsel %vm517, 0.0, %v498
      %v575 = vld [vmem:[%s3] sm:$0xf]
      %vm624 = vcmask 1046528
      %v625 = vrot.slane %v521, 1
      %v626 = vrot.slane %v522, 1
      %v627 = vsel %vm624, %v625, %v626
      %v628 = vrot.slane %v523, 1
      %v629 = vsel %vm624, %v626, %v628
      %v630 = vrot.slane %v524, 1
      %v631 = vrot.slane %v525, 1
      %v632 = vsel %vm624, %v630, %v631
      %v633 = vrot.slane %v526, 1
      %v634 = vsel %vm624, %v631, %v633
      %v635 = vrot.slane %v527, 1
      %v636 = vrot.slane %v528, 1
      %v637 = vsel %vm624, %v635, %v636
      %v638 = vrot.slane %v529, 1
      %v639 = vsel %vm624, %v636, %v638
      %v640 = vrot.slane %v530, 1
      %v641 = vrot.slane %v531, 1
      %v642 = vsel %vm624, %v640, %v641
      %v643 = vrot.slane %v532, 1
      %v644 = vsel %vm624, %v641, %v643
      %v645 = vrot.slane %v533, 1
      %v646 = vrot.slane %v534, 1
      %v647 = vsel %vm624, %v645, %v646
      %v648 = vrot.slane %v535, 1
      %v649 = vsel %vm624, %v646, %v648
      %v650 = vrot.slane %v536, 1
      %v651 = vrot.slane %v537, 1
      %v652 = vsel %vm624, %v650, %v651
      %v653 = vrot.slane %v538, 1
      %v654 = vsel %vm624, %v651, %v653
      %v655 = vrot.slane %v539, 1
      %v656 = vrot.slane %v540, 1
      %v657 = vsel %vm624, %v655, %v656
      %v658 = vrot.slane %v541, 1
      %v659 = vsel %vm624, %v656, %v658
      %v660 = vrot.slane %v542, 1
      %v661 = vrot.slane %v543, 1
      %v662 = vsel %vm624, %v660, %v661
      %v663 = vrot.slane %v544, 1
      %v664 = vsel %vm624, %v661, %v663
      %v665 = vrot.slane %v545, 1
      %v666 = vrot.slane %v546, 1
      %v667 = vsel %vm624, %v665, %v666
      %v668 = vrot.slane %v547, 1
      %v669 = vsel %vm624, %v666, %v668
      %v670 = vrot.slane %v548, 1
      %v671 = vrot.slane %v549, 1
      %v672 = vsel %vm624, %v670, %v671
      %v673 = vrot.slane %v550, 1
      %v674 = vsel %vm624, %v671, %v673
      %v675 = vrot.slane %v551, 1
      %v676 = vrot.slane %v552, 1
      %v677 = vsel %vm624, %v675, %v676
      %v678 = vrot.slane %v553, 1
      %v679 = vsel %vm624, %v676, %v678
      %v680 = vrot.slane %v554, 1
      %v681 = vrot.slane %v555, 1
      %v682 = vsel %vm624, %v680, %v681
      %v683 = vrot.slane %v556, 1
      %v684 = vsel %vm624, %v681, %v683
      %v685 = vrot.slane %v557, 1
      %v686 = vrot.slane %v558, 1
      %v687 = vsel %vm624, %v685, %v686
      %v688 = vrot.slane %v559, 1
      %v689 = vsel %vm624, %v686, %v688
      %v690 = vrot.slane %v560, 1
      %v691 = vrot.slane %v561, 1
      %v692 = vsel %vm624, %v690, %v691
      %v693 = vrot.slane %v562, 1
      %v694 = vsel %vm624, %v691, %v693
      %v695 = vrot.slane %v563, 1
      %v696 = vrot.slane %v564, 1
      %v697 = vsel %vm624, %v695, %v696
      %v698 = vrot.slane %v565, 1
      %v699 = vsel %vm624, %v696, %v698
      %v700 = vrot.slane %v566, 1
      %v701 = vrot.slane %v567, 1
      %v702 = vsel %vm624, %v700, %v701
      %v703 = vrot.slane %v568, 1
      %v704 = vsel %vm624, %v701, %v703
      %s705 = scalar_lea.vmem %s3, 4
      %v706 = vld [vmem:[%s705] sm:$0xf]
      %vm707 = vcmask 31744
      %v708 = vsel %vm707, %v627, 0
      %v710 = vsel %vm707, %v629, 0
      %v712 = vsel %vm707, %v632, 0
      %v714 = vsel %vm707, %v634, 0
      %v716 = vsel %vm707, %v637, 0
      %v718 = vsel %vm707, %v639, 0
      %v720 = vsel %vm707, %v642, 0
      %v722 = vsel %vm707, %v644, 0
      %v724 = vsel %vm707, %v647, 0
      %v726 = vsel %vm707, %v649, 0
      %v728 = vsel %vm707, %v652, 0
      %v730 = vsel %vm707, %v654, 0
      %v732 = vsel %vm707, %v657, 0
      %v734 = vsel %vm707, %v659, 0
      %v736 = vsel %vm707, %v662, 0
      %v738 = vsel %vm707, %v664, 0
      %v740 = vsel %vm707, %v667, 0
      %v742 = vsel %vm707, %v669, 0
      %v744 = vsel %vm707, %v672, 0
      %v746 = vsel %vm707, %v674, 0
      %v748 = vsel %vm707, %v677, 0
      %v750 = vsel %vm707, %v679, 0
      %v752 = vsel %vm707, %v682, 0
      %v754 = vsel %vm707, %v684, 0
      %v756 = vsel %vm707, %v687, 0
      %v758 = vsel %vm707, %v689, 0
      %v760 = vsel %vm707, %v692, 0
      %v762 = vsel %vm707, %v694, 0
      %v764 = vsel %vm707, %v697, 0
      %v766 = vsel %vm707, %v699, 0
      %v768 = vsel %vm707, %v702, 0
      %v770 = vsel %vm707, %v704, 0
      %vm772 = vcmask 1043456
      %v774 = vsel %vm772, %v706, 0
      %776 = vmatprep.subr.mxu0 0.0
      %777 = vmatpush1.msra.mxu0 %v774
      %778 = vmatprep.subr.mxu0 0.0
      %779 = vmatpush1.msra.mxu0 0.0
      %780 = vmatprep.subr.mxu0 0.0
      %781 = vmatpush1.msra.mxu0 0.0
      %782 = vmatprep.subr.mxu0 0.0
      %783 = vmatpush1.msra.mxu0 0.0
      %784 = vmatprep.subr.mxu0 0.0
      %785 = vmatpush1.msra.mxu0 0.0
      %786 = vmatprep.subr.mxu0 0.0
      %787 = vmatpush1.msra.mxu0 0.0
      %788 = vmatprep.subr.mxu0 0.0
      %789 = vmatpush1.msra.mxu0 0.0
      %790 = vmatprep.subr.mxu0 0.0
      %791 = vmatpush1.msra.mxu0 0.0
      %792 = vmatprep.subr.mxu0 0.0
      %793 = vmatpush1.msra.mxu0 0.0
      %794 = vmatprep.subr.mxu0 0.0
      %795 = vmatpush1.msra.mxu0 0.0
      %796 = vmatprep.subr.mxu0 0.0
      %797 = vmatpush1.msra.mxu0 0.0
      %798 = vmatprep.subr.mxu0 0.0
      %799 = vmatpush1.msra.mxu0 0.0
      %800 = vmatprep.subr.mxu0 0.0
      %801 = vmatpush1.msra.mxu0 0.0
      %802 = vmatprep.subr.mxu0 0.0
      %803 = vmatpush1.msra.mxu0 0.0
      %804 = vmatprep.subr.mxu0 0.0
      %805 = vmatpush1.msra.mxu0 0.0
      %806 = vmatprep.subr.mxu0 0.0
      %807 = vmatpush1.msra.mxu0 0.0
      %808 = vmatprep.subr.mxu0 0.0
      %809 = vmatpush1.msra.mxu0 0.0
      %810 = vmatprep.subr.mxu0 0.0
      %811 = vmatpush1.msra.mxu0 0.0
      %812 = vmatprep.subr.mxu0 0.0
      %813 = vmatpush1.msra.mxu0 0.0
      %814 = vmatprep.subr.mxu0 0.0
      %815 = vmatpush1.msra.mxu0 0.0
      %816 = vmatprep.subr.mxu0 0.0
      %817 = vmatpush1.msra.mxu0 0.0
      %818 = vmatprep.subr.mxu0 0.0
      %819 = vmatpush1.msra.mxu0 0.0
      %820 = vmatprep.subr.mxu0 0.0
      %821 = vmatpush1.msra.mxu0 0.0
      %822 = vmatprep.subr.mxu0 0.0
      %823 = vmatpush1.msra.mxu0 0.0
      %824 = vmatprep.subr.mxu0 0.0
      %825 = vmatpush1.msra.mxu0 0.0
      %826 = vmatprep.subr.mxu0 0.0
      %827 = vmatpush1.msra.mxu0 0.0
      %828 = vmatprep.subr.mxu0 0.0
      %829 = vmatpush1.msra.mxu0 0.0
      %830 = vmatprep.subr.mxu0 0.0
      %831 = vmatpush1.msra.mxu0 0.0
      %832 = vmatprep.subr.mxu0 0.0
      %833 = vmatpush1.msra.mxu0 0.0
      %834 = vmatprep.subr.mxu0 0.0
      %835 = vmatpush1.msra.mxu0 0.0
      %836 = vmatprep.subr.mxu0 0.0
      %837 = vmatpush1.msra.mxu0 0.0
      %838 = vmatprep.subr.mxu0 0.0
      %839 = vmatpush1.msra.mxu0 0.0
      %840 = vmatprep.mubr.f32.mxu0 0.0
      %841 = vmatmul.mubr.f32.gmra.mrb[0].mxu0 %v708
      %v842 = vpop.f32.mrb[0].mxu0
      %v843 = vadd.f32 0.0, %v842
      %v844 = vpop.f32.mrb[0].mxu0
      %845 = vmatprep.mubr.f32.mxu0 0.0
      %846 = vmatmul.mubr.f32.gmra.mrb[0].mxu0 %v710
      %v847 = vpop.f32.mrb[0].mxu0
      %v848 = vadd.f32 0.0, %v847
      %v849 = vpop.f32.mrb[0].mxu0
      %850 = vmatprep.mubr.f32.mxu0 0.0
      %851 = vmatmul.mubr.f32.gmra.mrb[0].mxu0 %v712
      %v852 = vpop.f32.mrb[0].mxu0
      %v853 = vadd.f32 0.0, %v852
      %v854 = vpop.f32.mrb[0].mxu0
      %855 = vmatprep.mubr.f32.mxu0 0.0
      %856 = vmatmul.mubr.f32.gmra.mrb[0].mxu0 %v714
      %v857 = vpop.f32.mrb[0].mxu0
      %v858 = vadd.f32 0.0, %v857
      %v859 = vpop.f32.mrb[0].mxu0
      %860 = vmatprep.mubr.f32.mxu0 0.0
      %861 = vmatmul.mubr.f32.gmra.mrb[0].mxu0 %v716
      %v862 = vpop.f32.mrb[0].mxu0
      %v863 = vadd.f32 0.0, %v862
      %v864 = vpop.f32.mrb[0].mxu0
      %865 = vmatprep.mubr.f32.mxu0 0.0
      %866 = vmatmul.mubr.f32.gmra.mrb[0].mxu0 %v718
      %v867 = vpop.f32.mrb[0].mxu0
      %v868 = vadd.f32 0.0, %v867
      %v869 = vpop.f32.mrb[0].mxu0
      %870 = vmatprep.mubr.f32.mxu0 0.0
      %871 = vmatmul.mubr.f32.gmra.mrb[0].mxu0 %v720
      %v872 = vpop.f32.mrb[0].mxu0
      %v873 = vadd.f32 0.0, %v872
      %v874 = vpop.f32.mrb[0].mxu0
      %875 = vmatprep.mubr.f32.mxu0 0.0
      %876 = vmatmul.mubr.f32.gmra.mrb[0].mxu0 %v722
      %v877 = vpop.f32.mrb[0].mxu0
      %v878 = vadd.f32 0.0, %v877
      %v879 = vpop.f32.mrb[0].mxu0
      %880 = vmatprep.mubr.f32.mxu0 0.0
      %881 = vmatmul.mubr.f32.gmra.mrb[0].mxu0 %v724
      %v882 = vpop.f32.mrb[0].mxu0
      %v883 = vadd.f32 0.0, %v882
      %v884 = vpop.f32.mrb[0].mxu0
      %885 = vmatprep.mubr.f32.mxu0 0.0
      %886 = vmatmul.mubr.f32.gmra.mrb[0].mxu0 %v726
      %v887 = vpop.f32.mrb[0].mxu0
      %v888 = vadd.f32 0.0, %v887
      %v889 = vpop.f32.mrb[0].mxu0
      %890 = vmatprep.mubr.f32.mxu0 0.0
      %891 = vmatmul.mubr.f32.gmra.mrb[0].mxu0 %v728
      %v892 = vpop.f32.mrb[0].mxu0
      %v893 = vadd.f32 0.0, %v892
      %v894 = vpop.f32.mrb[0].mxu0
      %895 = vmatprep.mubr.f32.mxu0 0.0
      %896 = vmatmul.mubr.f32.gmra.mrb[0].mxu0 %v730
      %v897 = vpop.f32.mrb[0].mxu0
      %v898 = vadd.f32 0.0, %v897
      %v899 = vpop.f32.mrb[0].mxu0
      %900 = vmatprep.mubr.f32.mxu0 0.0
      %901 = vmatmul.mubr.f32.gmra.mrb[0].mxu0 %v732
      %v902 = vpop.f32.mrb[0].mxu0
      %v903 = vadd.f32 0.0, %v902
      %v904 = vpop.f32.mrb[0].mxu0
      %905 = vmatprep.mubr.f32.mxu0 0.0
      %906 = vmatmul.mubr.f32.gmra.mrb[0].mxu0 %v734
      %v907 = vpop.f32.mrb[0].mxu0
      %v908 = vadd.f32 0.0, %v907
      %v909 = vpop.f32.mrb[0].mxu0
      %910 = vmatprep.mubr.f32.mxu0 0.0
      %911 = vmatmul.mubr.f32.gmra.mrb[0].mxu0 %v736
      %v912 = vpop.f32.mrb[0].mxu0
      %v913 = vadd.f32 0.0, %v912
      %v914 = vpop.f32.mrb[0].mxu0
      %915 = vmatprep.mubr.f32.mxu0 0.0
      %916 = vmatmul.mubr.f32.gmra.mrb[0].mxu0 %v738
      %v917 = vpop.f32.mrb[0].mxu0
      %v918 = vadd.f32 0.0, %v917
      %v919 = vpop.f32.mrb[0].mxu0
      %920 = vmatprep.mubr.f32.mxu0 0.0
      %921 = vmatmul.mubr.f32.gmra.mrb[0].mxu0 %v740
      %v922 = vpop.f32.mrb[0].mxu0
      %v923 = vadd.f32 0.0, %v922
      %v924 = vpop.f32.mrb[0].mxu0
      %925 = vmatprep.mubr.f32.mxu0 0.0
      %926 = vmatmul.mubr.f32.gmra.mrb[0].mxu0 %v742
      %v927 = vpop.f32.mrb[0].mxu0
      %v928 = vadd.f32 0.0, %v927
      %v929 = vpop.f32.mrb[0].mxu0
      %930 = vmatprep.mubr.f32.mxu0 0.0
      %931 = vmatmul.mubr.f32.gmra.mrb[0].mxu0 %v744
      %v932 = vpop.f32.mrb[0].mxu0
      %v933 = vadd.f32 0.0, %v932
      %v934 = vpop.f32.mrb[0].mxu0
      %935 = vmatprep.mubr.f32.mxu0 0.0
      %936 = vmatmul.mubr.f32.gmra.mrb[0].mxu0 %v746
      %v937 = vpop.f32.mrb[0].mxu0
      %v938 = vadd.f32 0.0, %v937
      %v939 = vpop.f32.mrb[0].mxu0
      %940 = vmatprep.mubr.f32.mxu0 0.0
      %941 = vmatmul.mubr.f32.gmra.mrb[0].mxu0 %v748
      %v942 = vpop.f32.mrb[0].mxu0
      %v943 = vadd.f32 0.0, %v942
      %v944 = vpop.f32.mrb[0].mxu0
      %945 = vmatprep.mubr.f32.mxu0 0.0
      %946 = vmatmul.mubr.f32.gmra.mrb[0].mxu0 %v750
      %v947 = vpop.f32.mrb[0].mxu0
      %v948 = vadd.f32 0.0, %v947
      %v949 = vpop.f32.mrb[0].mxu0
      %950 = vmatprep.mubr.f32.mxu0 0.0
      %951 = vmatmul.mubr.f32.gmra.mrb[0].mxu0 %v752
      %v952 = vpop.f32.mrb[0].mxu0
      %v953 = vadd.f32 0.0, %v952
      %v954 = vpop.f32.mrb[0].mxu0
      %955 = vmatprep.mubr.f32.mxu0 0.0
      %956 = vmatmul.mubr.f32.gmra.mrb[0].mxu0 %v754
      %v957 = vpop.f32.mrb[0].mxu0
      %v958 = vadd.f32 0.0, %v957
      %v959 = vpop.f32.mrb[0].mxu0
      %960 = vmatprep.mubr.f32.mxu0 0.0
      %961 = vmatmul.mubr.f32.gmra.mrb[0].mxu0 %v756
      %v962 = vpop.f32.mrb[0].mxu0
      %v963 = vadd.f32 0.0, %v962
      %v964 = vpop.f32.mrb[0].mxu0
      %965 = vmatprep.mubr.f32.mxu0 0.0
      %966 = vmatmul.mubr.f32.gmra.mrb[0].mxu0 %v758
      %v967 = vpop.f32.mrb[0].mxu0
      %v968 = vadd.f32 0.0, %v967
      %v969 = vpop.f32.mrb[0].mxu0
      %970 = vmatprep.mubr.f32.mxu0 0.0
      %971 = vmatmul.mubr.f32.gmra.mrb[0].mxu0 %v760
      %v972 = vpop.f32.mrb[0].mxu0
      %v973 = vadd.f32 0.0, %v972
      %v974 = vpop.f32.mrb[0].mxu0
      %975 = vmatprep.mubr.f32.mxu0 0.0
      %976 = vmatmul.mubr.f32.gmra.mrb[0].mxu0 %v762
      %v977 = vpop.f32.mrb[0].mxu0
      %v978 = vadd.f32 0.0, %v977
      %v979 = vpop.f32.mrb[0].mxu0
      %980 = vmatprep.mubr.f32.mxu0 0.0
      %981 = vmatmul.mubr.f32.gmra.mrb[0].mxu0 %v764
      %v982 = vpop.f32.mrb[0].mxu0
      %v983 = vadd.f32 0.0, %v982
      %v984 = vpop.f32.mrb[0].mxu0
      %985 = vmatprep.mubr.f32.mxu0 0.0
      %986 = vmatmul.mubr.f32.gmra.mrb[0].mxu0 %v766
      %v987 = vpop.f32.mrb[0].mxu0
      %v988 = vadd.f32 0.0, %v987
      %v989 = vpop.f32.mrb[0].mxu0
      %990 = vmatprep.mubr.f32.mxu0 0.0
      %991 = vmatmul.mubr.f32.gmra.mrb[0].mxu0 %v768
      %v992 = vpop.f32.mrb[0].mxu0
      %v993 = vadd.f32 0.0, %v992
      %v994 = vpop.f32.mrb[0].mxu0
      %995 = vmatprep.mubr.f32.mxu0 0.0
      %996 = vmatmul.mubr.f32.gmra.mrb[0].mxu0 %v770
      %v997 = vpop.f32.mrb[0].mxu0
      %v998 = vadd.f32 0.0, %v997
      %v999 = vpop.f32.mrb[0].mxu0
      %1000 = vdwg.mxu0
      %v1001 = vsel %vm707, %v521, 0
      %v1003 = vsel %vm707, %v522, 0
      %v1005 = vsel %vm707, %v524, 0
      %v1007 = vsel %vm707, %v525, 0
      %v1009 = vsel %vm707, %v527, 0
      %v1011 = vsel %vm707, %v528, 0
      %v1013 = vsel %vm707, %v530, 0
      %v1015 = vsel %vm707, %v531, 0
      %v1017 = vsel %vm707, %v533, 0
      %v1019 = vsel %vm707, %v534, 0
      %v1021 = vsel %vm707, %v536, 0
      %v1023 = vsel %vm707, %v537, 0
      %v1025 = vsel %vm707, %v539, 0
      %v1027 = vsel %vm707, %v540, 0
      %v1029 = vsel %vm707, %v542, 0
      %v1031 = vsel %vm707, %v543, 0
      %v1033 = vsel %vm707, %v545, 0
      %v1035 = vsel %vm707, %v546, 0
      %v1037 = vsel %vm707, %v548, 0
      %v1039 = vsel %vm707, %v549, 0
      %v1041 = vsel %vm707, %v551, 0
      %v1043 = vsel %vm707, %v552, 0
      %v1045 = vsel %vm707, %v554, 0
      %v1047 = vsel %vm707, %v555, 0
      %v1049 = vsel %vm707, %v557, 0
      %v1051 = vsel %vm707, %v558, 0
      %v1053 = vsel %vm707, %v560, 0
      %v1055 = vsel %vm707, %v561, 0
      %v1057 = vsel %vm707, %v563, 0
      %v1059 = vsel %vm707, %v564, 0
      %v1061 = vsel %vm707, %v566, 0
      %v1063 = vsel %vm707, %v567, 0
      %v1066 = vsel %vm772, %v575, 0
      %1068 = vmatprep.subr.mxu0 0.0
      %1069 = vmatpush1.msra.mxu0 %v1066
      %1070 = vmatprep.subr.mxu0 0.0
      %1071 = vmatpush1.msra.mxu0 0.0
      %1072 = vmatprep.subr.mxu0 0.0
      %1073 = vmatpush1.msra.mxu0 0.0
      %1074 = vmatprep.subr.mxu0 0.0
      %1075 = vmatpush1.msra.mxu0 0.0
      %1076 = vmatprep.subr.mxu0 0.0
      %1077 = vmatpush1.msra.mxu0 0.0
      %1078 = vmatprep.subr.mxu0 0.0
      %1079 = vmatpush1.msra.mxu0 0.0
      %1080 = vmatprep.subr.mxu0 0.0
      %1081 = vmatpush1.msra.mxu0 0.0
      %1082 = vmatprep.subr.mxu0 0.0
      %1083 = vmatpush1.msra.mxu0 0.0
      %1084 = vmatprep.subr.mxu0 0.0
      %1085 = vmatpush1.msra.mxu0 0.0
      %1086 = vmatprep.subr.mxu0 0.0
      %1087 = vmatpush1.msra.mxu0 0.0
      %1088 = vmatprep.subr.mxu0 0.0
      %1089 = vmatpush1.msra.mxu0 0.0
      %1090 = vmatprep.subr.mxu0 0.0
      %1091 = vmatpush1.msra.mxu0 0.0
      %1092 = vmatprep.subr.mxu0 0.0
      %1093 = vmatpush1.msra.mxu0 0.0
      %1094 = vmatprep.subr.mxu0 0.0
      %1095 = vmatpush1.msra.mxu0 0.0
      %1096 = vmatprep.subr.mxu0 0.0
      %1097 = vmatpush1.msra.mxu0 0.0
      %1098 = vmatprep.subr.mxu0 0.0
      %1099 = vmatpush1.msra.mxu0 0.0
      %1100 = vmatprep.subr.mxu0 0.0
      %1101 = vmatpush1.msra.mxu0 0.0
      %1102 = vmatprep.subr.mxu0 0.0
      %1103 = vmatpush1.msra.mxu0 0.0
      %1104 = vmatprep.subr.mxu0 0.0
      %1105 = vmatpush1.msra.mxu0 0.0
      %1106 = vmatprep.subr.mxu0 0.0
      %1107 = vmatpush1.msra.mxu0 0.0
      %1108 = vmatprep.subr.mxu0 0.0
      %1109 = vmatpush1.msra.mxu0 0.0
      %1110 = vmatprep.subr.mxu0 0.0
      %1111 = vmatpush1.msra.mxu0 0.0
      %1112 = vmatprep.subr.mxu0 0.0
      %1113 = vmatpush1.msra.mxu0 0.0
      %1114 = vmatprep.subr.mxu0 0.0
      %1115 = vmatpush1.msra.mxu0 0.0
      %1116 = vmatprep.subr.mxu0 0.0
      %1117 = vmatpush1.msra.mxu0 0.0
      %1118 = vmatprep.subr.mxu0 0.0
      %1119 = vmatpush1.msra.mxu0 0.0
      %1120 = vmatprep.subr.mxu0 0.0
      %1121 = vmatpush1.msra.mxu0 0.0
      %1122 = vmatprep.subr.mxu0 0.0
      %1123 = vmatpush1.msra.mxu0 0.0
      %1124 = vmatprep.subr.mxu0 0.0
      %1125 = vmatpush1.msra.mxu0 0.0
      %1126 = vmatprep.subr.mxu0 0.0
      %1127 = vmatpush1.msra.mxu0 0.0
      %1128 = vmatprep.subr.mxu0 0.0
      %1129 = vmatpush1.msra.mxu0 0.0
      %1130 = vmatprep.subr.mxu0 0.0
      %1131 = vmatpush1.msra.mxu0 0.0
      %1132 = vmatprep.mubr.f32.mxu0 0.0
      %1133 = vmatmul.mubr.f32.gmra.mrb[0].mxu0 %v1001
      %v1134 = vpop.f32.mrb[0].mxu0
      %v1135 = vadd.f32 %v843, %v1134
      %v1136 = vpop.f32.mrb[0].mxu0
      %1137 = vmatprep.mubr.f32.mxu0 0.0
      %1138 = vmatmul.mubr.f32.gmra.mrb[0].mxu0 %v1003
      %v1139 = vpop.f32.mrb[0].mxu0
      %v1140 = vadd.f32 %v848, %v1139
      %v1141 = vpop.f32.mrb[0].mxu0
      %1142 = vmatprep.mubr.f32.mxu0 0.0
      %1143 = vmatmul.mubr.f32.gmra.mrb[0].mxu0 %v1005
      %v1144 = vpop.f32.mrb[0].mxu0
      %v1145 = vadd.f32 %v853, %v1144
      %v1146 = vpop.f32.mrb[0].mxu0
      %1147 = vmatprep.mubr.f32.mxu0 0.0
      %1148 = vmatmul.mubr.f32.gmra.mrb[0].mxu0 %v1007
      %v1149 = vpop.f32.mrb[0].mxu0
      %v1150 = vadd.f32 %v858, %v1149
      %v1151 = vpop.f32.mrb[0].mxu0
      %1152 = vmatprep.mubr.f32.mxu0 0.0
      %1153 = vmatmul.mubr.f32.gmra.mrb[0].mxu0 %v1009
      %v1154 = vpop.f32.mrb[0].mxu0
      %v1155 = vadd.f32 %v863, %v1154
      %v1156 = vpop.f32.mrb[0].mxu0
      %1157 = vmatprep.mubr.f32.mxu0 0.0
      %1158 = vmatmul.mubr.f32.gmra.mrb[0].mxu0 %v1011
      %v1159 = vpop.f32.mrb[0].mxu0
      %v1160 = vadd.f32 %v868, %v1159
      %v1161 = vpop.f32.mrb[0].mxu0
      %1162 = vmatprep.mubr.f32.mxu0 0.0
      %1163 = vmatmul.mubr.f32.gmra.mrb[0].mxu0 %v1013
      %v1164 = vpop.f32.mrb[0].mxu0
      %v1165 = vadd.f32 %v873, %v1164
      %v1166 = vpop.f32.mrb[0].mxu0
      %1167 = vmatprep.mubr.f32.mxu0 0.0
      %1168 = vmatmul.mubr.f32.gmra.mrb[0].mxu0 %v1015
      %v1169 = vpop.f32.mrb[0].mxu0
      %v1170 = vadd.f32 %v878, %v1169
      %v1171 = vpop.f32.mrb[0].mxu0
      %1172 = vmatprep.mubr.f32.mxu0 0.0
      %1173 = vmatmul.mubr.f32.gmra.mrb[0].mxu0 %v1017
      %v1174 = vpop.f32.mrb[0].mxu0
      %v1175 = vadd.f32 %v883, %v1174
      %v1176 = vpop.f32.mrb[0].mxu0
      %1177 = vmatprep.mubr.f32.mxu0 0.0
      %1178 = vmatmul.mubr.f32.gmra.mrb[0].mxu0 %v1019
      %v1179 = vpop.f32.mrb[0].mxu0
      %v1180 = vadd.f32 %v888, %v1179
      %v1181 = vpop.f32.mrb[0].mxu0
      %1182 = vmatprep.mubr.f32.mxu0 0.0
      %1183 = vmatmul.mubr.f32.gmra.mrb[0].mxu0 %v1021
      %v1184 = vpop.f32.mrb[0].mxu0
      %v1185 = vadd.f32 %v893, %v1184
      %v1186 = vpop.f32.mrb[0].mxu0
      %1187 = vmatprep.mubr.f32.mxu0 0.0
      %1188 = vmatmul.mubr.f32.gmra.mrb[0].mxu0 %v1023
      %v1189 = vpop.f32.mrb[0].mxu0
      %v1190 = vadd.f32 %v898, %v1189
      %v1191 = vpop.f32.mrb[0].mxu0
      %1192 = vmatprep.mubr.f32.mxu0 0.0
      %1193 = vmatmul.mubr.f32.gmra.mrb[0].mxu0 %v1025
      %v1194 = vpop.f32.mrb[0].mxu0
      %v1195 = vadd.f32 %v903, %v1194
      %v1196 = vpop.f32.mrb[0].mxu0
      %1197 = vmatprep.mubr.f32.mxu0 0.0
      %1198 = vmatmul.mubr.f32.gmra.mrb[0].mxu0 %v1027
      %v1199 = vpop.f32.mrb[0].mxu0
      %v1200 = vadd.f32 %v908, %v1199
      %v1201 = vpop.f32.mrb[0].mxu0
      %1202 = vmatprep.mubr.f32.mxu0 0.0
      %1203 = vmatmul.mubr.f32.gmra.mrb[0].mxu0 %v1029
      %v1204 = vpop.f32.mrb[0].mxu0
      %v1205 = vadd.f32 %v913, %v1204
      %v1206 = vpop.f32.mrb[0].mxu0
      %1207 = vmatprep.mubr.f32.mxu0 0.0
      %1208 = vmatmul.mubr.f32.gmra.mrb[0].mxu0 %v1031
      %v1209 = vpop.f32.mrb[0].mxu0
      %v1210 = vadd.f32 %v918, %v1209
      %v1211 = vpop.f32.mrb[0].mxu0
      %1212 = vmatprep.mubr.f32.mxu0 0.0
      %1213 = vmatmul.mubr.f32.gmra.mrb[0].mxu0 %v1033
      %v1214 = vpop.f32.mrb[0].mxu0
      %v1215 = vadd.f32 %v923, %v1214
      %v1216 = vpop.f32.mrb[0].mxu0
      %1217 = vmatprep.mubr.f32.mxu0 0.0
      %1218 = vmatmul.mubr.f32.gmra.mrb[0].mxu0 %v1035
      %v1219 = vpop.f32.mrb[0].mxu0
      %v1220 = vadd.f32 %v928, %v1219
      %v1221 = vpop.f32.mrb[0].mxu0
      %1222 = vmatprep.mubr.f32.mxu0 0.0
      %1223 = vmatmul.mubr.f32.gmra.mrb[0].mxu0 %v1037
      %v1224 = vpop.f32.mrb[0].mxu0
      %v1225 = vadd.f32 %v933, %v1224
      %v1226 = vpop.f32.mrb[0].mxu0
      %1227 = vmatprep.mubr.f32.mxu0 0.0
      %1228 = vmatmul.mubr.f32.gmra.mrb[0].mxu0 %v1039
      %v1229 = vpop.f32.mrb[0].mxu0
      %v1230 = vadd.f32 %v938, %v1229
      %v1231 = vpop.f32.mrb[0].mxu0
      %1232 = vmatprep.mubr.f32.mxu0 0.0
      %1233 = vmatmul.mubr.f32.gmra.mrb[0].mxu0 %v1041
      %v1234 = vpop.f32.mrb[0].mxu0
      %v1235 = vadd.f32 %v943, %v1234
      %v1236 = vpop.f32.mrb[0].mxu0
      %1237 = vmatprep.mubr.f32.mxu0 0.0
      %1238 = vmatmul.mubr.f32.gmra.mrb[0].mxu0 %v1043
      %v1239 = vpop.f32.mrb[0].mxu0
      %v1240 = vadd.f32 %v948, %v1239
      %v1241 = vpop.f32.mrb[0].mxu0
      %1242 = vmatprep.mubr.f32.mxu0 0.0
      %1243 = vmatmul.mubr.f32.gmra.mrb[0].mxu0 %v1045
      %v1244 = vpop.f32.mrb[0].mxu0
      %v1245 = vadd.f32 %v953, %v1244
      %v1246 = vpop.f32.mrb[0].mxu0
      %1247 = vmatprep.mubr.f32.mxu0 0.0
      %1248 = vmatmul.mubr.f32.gmra.mrb[0].mxu0 %v1047
      %v1249 = vpop.f32.mrb[0].mxu0
      %v1250 = vadd.f32 %v958, %v1249
      %v1251 = vpop.f32.mrb[0].mxu0
      %1252 = vmatprep.mubr.f32.mxu0 0.0
      %1253 = vmatmul.mubr.f32.gmra.mrb[0].mxu0 %v1049
      %v1254 = vpop.f32.mrb[0].mxu0
      %v1255 = vadd.f32 %v963, %v1254
      %v1256 = vpop.f32.mrb[0].mxu0
      %1257 = vmatprep.mubr.f32.mxu0 0.0
      %1258 = vmatmul.mubr.f32.gmra.mrb[0].mxu0 %v1051
      %v1259 = vpop.f32.mrb[0].mxu0
      %v1260 = vadd.f32 %v968, %v1259
      %v1261 = vpop.f32.mrb[0].mxu0
      %1262 = vmatprep.mubr.f32.mxu0 0.0
      %1263 = vmatmul.mubr.f32.gmra.mrb[0].mxu0 %v1053
      %v1264 = vpop.f32.mrb[0].mxu0
      %v1265 = vadd.f32 %v973, %v1264
      %v1266 = vpop.f32.mrb[0].mxu0
      %1267 = vmatprep.mubr.f32.mxu0 0.0
      %1268 = vmatmul.mubr.f32.gmra.mrb[0].mxu0 %v1055
      %v1269 = vpop.f32.mrb[0].mxu0
      %v1270 = vadd.f32 %v978, %v1269
      %v1271 = vpop.f32.mrb[0].mxu0
      %1272 = vmatprep.mubr.f32.mxu0 0.0
      %1273 = vmatmul.mubr.f32.gmra.mrb[0].mxu0 %v1057
      %v1274 = vpop.f32.mrb[0].mxu0
      %v1275 = vadd.f32 %v983, %v1274
      %v1276 = vpop.f32.mrb[0].mxu0
      %1277 = vmatprep.mubr.f32.mxu0 0.0
      %1278 = vmatmul.mubr.f32.gmra.mrb[0].mxu0 %v1059
      %v1279 = vpop.f32.mrb[0].mxu0
      %v1280 = vadd.f32 %v988, %v1279
      %v1281 = vpop.f32.mrb[0].mxu0
      %1282 = vmatprep.mubr.f32.mxu0 0.0
      %1283 = vmatmul.mubr.f32.gmra.mrb[0].mxu0 %v1061
      %v1284 = vpop.f32.mrb[0].mxu0
      %v1285 = vadd.f32 %v993, %v1284
      %v1286 = vpop.f32.mrb[0].mxu0
      %1287 = vmatprep.mubr.f32.mxu0 0.0
      %1288 = vmatmul.mubr.f32.gmra.mrb[0].mxu0 %v1063
      %v1289 = vpop.f32.mrb[0].mxu0
      %v1290 = vadd.f32 %v998, %v1289
      %v1291 = vpop.f32.mrb[0].mxu0
      %1292 = vdwg.mxu0
      %vm1293 = vcmask 1045504
      %v1294 = vrot.slane %v521, 2
      %v1295 = vrot.slane %v522, 2
      %v1296 = vsel %vm1293, %v1294, %v1295
      %v1297 = vrot.slane %v523, 2
      %v1298 = vsel %vm1293, %v1295, %v1297
      %v1299 = vrot.slane %v524, 2
      %v1300 = vrot.slane %v525, 2
      %v1301 = vsel %vm1293, %v1299, %v1300
      %v1302 = vrot.slane %v526, 2
      %v1303 = vsel %vm1293, %v1300, %v1302
      %v1304 = vrot.slane %v527, 2
      %v1305 = vrot.slane %v528, 2
      %v1306 = vsel %vm1293, %v1304, %v1305
      %v1307 = vrot.slane %v529, 2
      %v1308 = vsel %vm1293, %v1305, %v1307
      %v1309 = vrot.slane %v530, 2
      %v1310 = vrot.slane %v531, 2
      %v1311 = vsel %vm1293, %v1309, %v1310
      %v1312 = vrot.slane %v532, 2
      %v1313 = vsel %vm1293, %v1310, %v1312
      %v1314 = vrot.slane %v533, 2
      %v1315 = vrot.slane %v534, 2
      %v1316 = vsel %vm1293, %v1314, %v1315
      %v1317 = vrot.slane %v535, 2
      %v1318 = vsel %vm1293, %v1315, %v1317
      %v1319 = vrot.slane %v536, 2
      %v1320 = vrot.slane %v537, 2
      %v1321 = vsel %vm1293, %v1319, %v1320
      %v1322 = vrot.slane %v538, 2
      %v1323 = vsel %vm1293, %v1320, %v1322
      %v1324 = vrot.slane %v539, 2
      %v1325 = vrot.slane %v540, 2
      %v1326 = vsel %vm1293, %v1324, %v1325
      %v1327 = vrot.slane %v541, 2
      %v1328 = vsel %vm1293, %v1325, %v1327
      %v1329 = vrot.slane %v542, 2
      %v1330 = vrot.slane %v543, 2
      %v1331 = vsel %vm1293, %v1329, %v1330
      %v1332 = vrot.slane %v544, 2
      %v1333 = vsel %vm1293, %v1330, %v1332
      %v1334 = vrot.slane %v545, 2
      %v1335 = vrot.slane %v546, 2
      %v1336 = vsel %vm1293, %v1334, %v1335
      %v1337 = vrot.slane %v547, 2
      %v1338 = vsel %vm1293, %v1335, %v1337
      %v1339 = vrot.slane %v548, 2
      %v1340 = vrot.slane %v549, 2
      %v1341 = vsel %vm1293, %v1339, %v1340
      %v1342 = vrot.slane %v550, 2
      %v1343 = vsel %vm1293, %v1340, %v1342
      %v1344 = vrot.slane %v551, 2
      %v1345 = vrot.slane %v552, 2
      %v1346 = vsel %vm1293, %v1344, %v1345
      %v1347 = vrot.slane %v553, 2
      %v1348 = vsel %vm1293, %v1345, %v1347
      %v1349 = vrot.slane %v554, 2
      %v1350 = vrot.slane %v555, 2
      %v1351 = vsel %vm1293, %v1349, %v1350
      %v1352 = vrot.slane %v556, 2
      %v1353 = vsel %vm1293, %v1350, %v1352
      %v1354 = vrot.slane %v557, 2
      %v1355 = vrot.slane %v558, 2
      %v1356 = vsel %vm1293, %v1354, %v1355
      %v1357 = vrot.slane %v559, 2
      %v1358 = vsel %vm1293, %v1355, %v1357
      %v1359 = vrot.slane %v560, 2
      %v1360 = vrot.slane %v561, 2
      %v1361 = vsel %vm1293, %v1359, %v1360
      %v1362 = vrot.slane %v562, 2
      %v1363 = vsel %vm1293, %v1360, %v1362
      %v1364 = vrot.slane %v563, 2
      %v1365 = vrot.slane %v564, 2
      %v1366 = vsel %vm1293, %v1364, %v1365
      %v1367 = vrot.slane %v565, 2
      %v1368 = vsel %vm1293, %v1365, %v1367
      %v1369 = vrot.slane %v566, 2
      %v1370 = vrot.slane %v567, 2
      %v1371 = vsel %vm1293, %v1369, %v1370
      %v1372 = vrot.slane %v568, 2
      %v1373 = vsel %vm1293, %v1370, %v1372
      %s1374 = scalar_lea.vmem %s3, 8
      %v1375 = vld [vmem:[%s1374] sm:$0xf]
      %v1376 = vsel %vm707, %v1296, 0
      %v1378 = vsel %vm707, %v1298, 0
      %v1380 = vsel %vm707, %v1301, 0
      %v1382 = vsel %vm707, %v1303, 0
      %v1384 = vsel %vm707, %v1306, 0
      %v1386 = vsel %vm707, %v1308, 0
      %v1388 = vsel %vm707, %v1311, 0
      %v1390 = vsel %vm707, %v1313, 0
      %v1392 = vsel %vm707, %v1316, 0
      %v1394 = vsel %vm707, %v1318, 0
      %v1396 = vsel %vm707, %v1321, 0
      %v1398 = vsel %vm707, %v1323, 0
      %v1400 = vsel %vm707, %v1326, 0
      %v1402 = vsel %vm707, %v1328, 0
      %v1404 = vsel %vm707, %v1331, 0
      %v1406 = vsel %vm707, %v1333, 0
      %v1408 = vsel %vm707, %v1336, 0
      %v1410 = vsel %vm707, %v1338, 0
      %v1412 = vsel %vm707, %v1341, 0
      %v1414 = vsel %vm707, %v1343, 0
      %v1416 = vsel %vm707, %v1346, 0
      %v1418 = vsel %vm707, %v1348, 0
      %v1420 = vsel %vm707, %v1351, 0
      %v1422 = vsel %vm707, %v1353, 0
      %v1424 = vsel %vm707, %v1356, 0
      %v1426 = vsel %vm707, %v1358, 0
      %v1428 = vsel %vm707, %v1361, 0
      %v1430 = vsel %vm707, %v1363, 0
      %v1432 = vsel %vm707, %v1366, 0
      %v1434 = vsel %vm707, %v1368, 0
      %v1436 = vsel %vm707, %v1371, 0
      %v1438 = vsel %vm707, %v1373, 0
      %v1441 = vsel %vm772, %v1375, 0
      %1443 = vmatprep.subr.mxu0 0.0
      %1444 = vmatpush1.msra.mxu0 %v1441
      %1445 = vmatprep.subr.mxu0 0.0
      %1446 = vmatpush1.msra.mxu0 0.0
      %1447 = vmatprep.subr.mxu0 0.0
      %1448 = vmatpush1.msra.mxu0 0.0
      %1449 = vmatprep.subr.mxu0 0.0
      %1450 = vmatpush1.msra.mxu0 0.0
      %1451 = vmatprep.subr.mxu0 0.0
      %1452 = vmatpush1.msra.mxu0 0.0
      %1453 = vmatprep.subr.mxu0 0.0
      %1454 = vmatpush1.msra.mxu0 0.0
      %1455 = vmatprep.subr.mxu0 0.0
      %1456 = vmatpush1.msra.mxu0 0.0
      %1457 = vmatprep.subr.mxu0 0.0
      %1458 = vmatpush1.msra.mxu0 0.0
      %1459 = vmatprep.subr.mxu0 0.0
      %1460 = vmatpush1.msra.mxu0 0.0
      %1461 = vmatprep.subr.mxu0 0.0
      %1462 = vmatpush1.msra.mxu0 0.0
      %1463 = vmatprep.subr.mxu0 0.0
      %1464 = vmatpush1.msra.mxu0 0.0
      %1465 = vmatprep.subr.mxu0 0.0
      %1466 = vmatpush1.msra.mxu0 0.0
      %1467 = vmatprep.subr.mxu0 0.0
      %1468 = vmatpush1.msra.mxu0 0.0
      %1469 = vmatprep.subr.mxu0 0.0
      %1470 = vmatpush1.msra.mxu0 0.0
      %1471 = vmatprep.subr.mxu0 0.0
      %1472 = vmatpush1.msra.mxu0 0.0
      %1473 = vmatprep.subr.mxu0 0.0
      %1474 = vmatpush1.msra.mxu0 0.0
      %1475 = vmatprep.subr.mxu0 0.0
      %1476 = vmatpush1.msra.mxu0 0.0
      %1477 = vmatprep.subr.mxu0 0.0
      %1478 = vmatpush1.msra.mxu0 0.0
      %1479 = vmatprep.subr.mxu0 0.0
      %1480 = vmatpush1.msra.mxu0 0.0
      %1481 = vmatprep.subr.mxu0 0.0
      %1482 = vmatpush1.msra.mxu0 0.0
      %1483 = vmatprep.subr.mxu0 0.0
      %1484 = vmatpush1.msra.mxu0 0.0
      %1485 = vmatprep.subr.mxu0 0.0
      %1486 = vmatpush1.msra.mxu0 0.0
      %1487 = vmatprep.subr.mxu0 0.0
      %1488 = vmatpush1.msra.mxu0 0.0
      %1489 = vmatprep.subr.mxu0 0.0
      %1490 = vmatpush1.msra.mxu0 0.0
      %1491 = vmatprep.subr.mxu0 0.0
      %1492 = vmatpush1.msra.mxu0 0.0
      %1493 = vmatprep.subr.mxu0 0.0
      %1494 = vmatpush1.msra.mxu0 0.0
      %1495 = vmatprep.subr.mxu0 0.0
      %1496 = vmatpush1.msra.mxu0 0.0
      %1497 = vmatprep.subr.mxu0 0.0
      %1498 = vmatpush1.msra.mxu0 0.0
      %1499 = vmatprep.subr.mxu0 0.0
      %1500 = vmatpush1.msra.mxu0 0.0
      %1501 = vmatprep.subr.mxu0 0.0
      %1502 = vmatpush1.msra.mxu0 0.0
      %1503 = vmatprep.subr.mxu0 0.0
      %1504 = vmatpush1.msra.mxu0 0.0
      %1505 = vmatprep.subr.mxu0 0.0
      %1506 = vmatpush1.msra.mxu0 0.0
      %1507 = vmatprep.mubr.f32.mxu0 0.0
      %1508 = vmatmul.mubr.f32.gmra.mrb[0].mxu0 %v1376
      %v1509 = vpop.f32.mrb[0].mxu0
      %v1510 = vadd.f32 0.0, %v1509
      %v1511 = vpop.f32.mrb[0].mxu0
      %1512 = vmatprep.mubr.f32.mxu0 0.0
      %1513 = vmatmul.mubr.f32.gmra.mrb[0].mxu0 %v1378
      %v1514 = vpop.f32.mrb[0].mxu0
      %v1515 = vadd.f32 0.0, %v1514
      %v1516 = vpop.f32.mrb[0].mxu0
      %1517 = vmatprep.mubr.f32.mxu0 0.0
      %1518 = vmatmul.mubr.f32.gmra.mrb[0].mxu0 %v1380
      %v1519 = vpop.f32.mrb[0].mxu0
      %v1520 = vadd.f32 0.0, %v1519
      %v1521 = vpop.f32.mrb[0].mxu0
      %1522 = vmatprep.mubr.f32.mxu0 0.0
      %1523 = vmatmul.mubr.f32.gmra.mrb[0].mxu0 %v1382
      %v1524 = vpop.f32.mrb[0].mxu0
      %v1525 = vadd.f32 0.0, %v1524
      %v1526 = vpop.f32.mrb[0].mxu0
      %1527 = vmatprep.mubr.f32.mxu0 0.0
      %1528 = vmatmul.mubr.f32.gmra.mrb[0].mxu0 %v1384
      %v1529 = vpop.f32.mrb[0].mxu0
      %v1530 = vadd.f32 0.0, %v1529
      %v1531 = vpop.f32.mrb[0].mxu0
      %1532 = vmatprep.mubr.f32.mxu0 0.0
      %1533 = vmatmul.mubr.f32.gmra.mrb[0].mxu0 %v1386
      %v1534 = vpop.f32.mrb[0].mxu0
      %v1535 = vadd.f32 0.0, %v1534
      %v1536 = vpop.f32.mrb[0].mxu0
      %1537 = vmatprep.mubr.f32.mxu0 0.0
      %1538 = vmatmul.mubr.f32.gmra.mrb[0].mxu0 %v1388
      %v1539 = vpop.f32.mrb[0].mxu0
      %v1540 = vadd.f32 0.0, %v1539
      %v1541 = vpop.f32.mrb[0].mxu0
      %1542 = vmatprep.mubr.f32.mxu0 0.0
      %1543 = vmatmul.mubr.f32.gmra.mrb[0].mxu0 %v1390
      %v1544 = vpop.f32.mrb[0].mxu0
      %v1545 = vadd.f32 0.0, %v1544
      %v1546 = vpop.f32.mrb[0].mxu0
      %1547 = vmatprep.mubr.f32.mxu0 0.0
      %1548 = vmatmul.mubr.f32.gmra.mrb[0].mxu0 %v1392
      %v1549 = vpop.f32.mrb[0].mxu0
      %v1550 = vadd.f32 0.0, %v1549
      %v1551 = vpop.f32.mrb[0].mxu0
      %1552 = vmatprep.mubr.f32.mxu0 0.0
      %1553 = vmatmul.mubr.f32.gmra.mrb[0].mxu0 %v1394
      %v1554 = vpop.f32.mrb[0].mxu0
      %v1555 = vadd.f32 0.0, %v1554
      %v1556 = vpop.f32.mrb[0].mxu0
      %1557 = vmatprep.mubr.f32.mxu0 0.0
      %1558 = vmatmul.mubr.f32.gmra.mrb[0].mxu0 %v1396
      %v1559 = vpop.f32.mrb[0].mxu0
      %v1560 = vadd.f32 0.0, %v1559
      %v1561 = vpop.f32.mrb[0].mxu0
      %1562 = vmatprep.mubr.f32.mxu0 0.0
      %1563 = vmatmul.mubr.f32.gmra.mrb[0].mxu0 %v1398
      %v1564 = vpop.f32.mrb[0].mxu0
      %v1565 = vadd.f32 0.0, %v1564
      %v1566 = vpop.f32.mrb[0].mxu0
      %1567 = vmatprep.mubr.f32.mxu0 0.0
      %1568 = vmatmul.mubr.f32.gmra.mrb[0].mxu0 %v1400
      %v1569 = vpop.f32.mrb[0].mxu0
      %v1570 = vadd.f32 0.0, %v1569
      %v1571 = vpop.f32.mrb[0].mxu0
      %1572 = vmatprep.mubr.f32.mxu0 0.0
      %1573 = vmatmul.mubr.f32.gmra.mrb[0].mxu0 %v1402
      %v1574 = vpop.f32.mrb[0].mxu0
      %v1575 = vadd.f32 0.0, %v1574
      %v1576 = vpop.f32.mrb[0].mxu0
      %1577 = vmatprep.mubr.f32.mxu0 0.0
      %1578 = vmatmul.mubr.f32.gmra.mrb[0].mxu0 %v1404
      %v1579 = vpop.f32.mrb[0].mxu0
      %v1580 = vadd.f32 0.0, %v1579
      %v1581 = vpop.f32.mrb[0].mxu0
      %1582 = vmatprep.mubr.f32.mxu0 0.0
      %1583 = vmatmul.mubr.f32.gmra.mrb[0].mxu0 %v1406
      %v1584 = vpop.f32.mrb[0].mxu0
      %v1585 = vadd.f32 0.0, %v1584
      %v1586 = vpop.f32.mrb[0].mxu0
      %1587 = vmatprep.mubr.f32.mxu0 0.0
      %1588 = vmatmul.mubr.f32.gmra.mrb[0].mxu0 %v1408
      %v1589 = vpop.f32.mrb[0].mxu0
      %v1590 = vadd.f32 0.0, %v1589
      %v1591 = vpop.f32.mrb[0].mxu0
      %1592 = vmatprep.mubr.f32.mxu0 0.0
      %1593 = vmatmul.mubr.f32.gmra.mrb[0].mxu0 %v1410
      %v1594 = vpop.f32.mrb[0].mxu0
      %v1595 = vadd.f32 0.0, %v1594
      %v1596 = vpop.f32.mrb[0].mxu0
      %1597 = vmatprep.mubr.f32.mxu0 0.0
      %1598 = vmatmul.mubr.f32.gmra.mrb[0].mxu0 %v1412
      %v1599 = vpop.f32.mrb[0].mxu0
      %v1600 = vadd.f32 0.0, %v1599
      %v1601 = vpop.f32.mrb[0].mxu0
      %1602 = vmatprep.mubr.f32.mxu0 0.0
      %1603 = vmatmul.mubr.f32.gmra.mrb[0].mxu0 %v1414
      %v1604 = vpop.f32.mrb[0].mxu0
      %v1605 = vadd.f32 0.0, %v1604
      %v1606 = vpop.f32.mrb[0].mxu0
      %1607 = vmatprep.mubr.f32.mxu0 0.0
      %1608 = vmatmul.mubr.f32.gmra.mrb[0].mxu0 %v1416
      %v1609 = vpop.f32.mrb[0].mxu0
      %v1610 = vadd.f32 0.0, %v1609
      %v1611 = vpop.f32.mrb[0].mxu0
      %1612 = vmatprep.mubr.f32.mxu0 0.0
      %1613 = vmatmul.mubr.f32.gmra.mrb[0].mxu0 %v1418
      %v1614 = vpop.f32.mrb[0].mxu0
      %v1615 = vadd.f32 0.0, %v1614
      %v1616 = vpop.f32.mrb[0].mxu0
      %1617 = vmatprep.mubr.f32.mxu0 0.0
      %1618 = vmatmul.mubr.f32.gmra.mrb[0].mxu0 %v1420
      %v1619 = vpop.f32.mrb[0].mxu0
      %v1620 = vadd.f32 0.0, %v1619
      %v1621 = vpop.f32.mrb[0].mxu0
      %1622 = vmatprep.mubr.f32.mxu0 0.0
      %1623 = vmatmul.mubr.f32.gmra.mrb[0].mxu0 %v1422
      %v1624 = vpop.f32.mrb[0].mxu0
      %v1625 = vadd.f32 0.0, %v1624
      %v1626 = vpop.f32.mrb[0].mxu0
      %1627 = vmatprep.mubr.f32.mxu0 0.0
      %1628 = vmatmul.mubr.f32.gmra.mrb[0].mxu0 %v1424
      %v1629 = vpop.f32.mrb[0].mxu0
      %v1630 = vadd.f32 0.0, %v1629
      %v1631 = vpop.f32.mrb[0].mxu0
      %1632 = vmatprep.mubr.f32.mxu0 0.0
      %1633 = vmatmul.mubr.f32.gmra.mrb[0].mxu0 %v1426
      %v1634 = vpop.f32.mrb[0].mxu0
      %v1635 = vadd.f32 0.0, %v1634
      %v1636 = vpop.f32.mrb[0].mxu0
      %1637 = vmatprep.mubr.f32.mxu0 0.0
      %1638 = vmatmul.mubr.f32.gmra.mrb[0].mxu0 %v1428
      %v1639 = vpop.f32.mrb[0].mxu0
      %v1640 = vadd.f32 0.0, %v1639
      %v1641 = vpop.f32.mrb[0].mxu0
      %1642 = vmatprep.mubr.f32.mxu0 0.0
      %1643 = vmatmul.mubr.f32.gmra.mrb[0].mxu0 %v1430
      %v1644 = vpop.f32.mrb[0].mxu0
      %v1645 = vadd.f32 0.0, %v1644
      %v1646 = vpop.f32.mrb[0].mxu0
      %1647 = vmatprep.mubr.f32.mxu0 0.0
      %1648 = vmatmul.mubr.f32.gmra.mrb[0].mxu0 %v1432
      %v1649 = vpop.f32.mrb[0].mxu0
      %v1650 = vadd.f32 0.0, %v1649
      %v1651 = vpop.f32.mrb[0].mxu0
      %1652 = vmatprep.mubr.f32.mxu0 0.0
      %1653 = vmatmul.mubr.f32.gmra.mrb[0].mxu0 %v1434
      %v1654 = vpop.f32.mrb[0].mxu0
      %v1655 = vadd.f32 0.0, %v1654
      %v1656 = vpop.f32.mrb[0].mxu0
      %1657 = vmatprep.mubr.f32.mxu0 0.0
      %1658 = vmatmul.mubr.f32.gmra.mrb[0].mxu0 %v1436
      %v1659 = vpop.f32.mrb[0].mxu0
      %v1660 = vadd.f32 0.0, %v1659
      %v1661 = vpop.f32.mrb[0].mxu0
      %1662 = vmatprep.mubr.f32.mxu0 0.0
      %1663 = vmatmul.mubr.f32.gmra.mrb[0].mxu0 %v1438
      %v1664 = vpop.f32.mrb[0].mxu0
      %v1665 = vadd.f32 0.0, %v1664
      %v1666 = vpop.f32.mrb[0].mxu0
      %1667 = vdwg.mxu0
      %v1668 = vadd.f32 %v1135, %v1510
      %v1669 = vadd.f32 %v1140, %v1515
      %v1670 = vadd.f32 %v1145, %v1520
      %v1671 = vadd.f32 %v1150, %v1525
      %v1672 = vadd.f32 %v1155, %v1530
      %v1673 = vadd.f32 %v1160, %v1535
      %v1674 = vadd.f32 %v1165, %v1540
      %v1675 = vadd.f32 %v1170, %v1545
      %v1676 = vadd.f32 %v1175, %v1550
      %v1677 = vadd.f32 %v1180, %v1555
      %v1678 = vadd.f32 %v1185, %v1560
      %v1679 = vadd.f32 %v1190, %v1565
      %v1680 = vadd.f32 %v1195, %v1570
      %v1681 = vadd.f32 %v1200, %v1575
      %v1682 = vadd.f32 %v1205, %v1580
      %v1683 = vadd.f32 %v1210, %v1585
      %v1684 = vadd.f32 %v1215, %v1590
      %v1685 = vadd.f32 %v1220, %v1595
      %v1686 = vadd.f32 %v1225, %v1600
      %v1687 = vadd.f32 %v1230, %v1605
      %v1688 = vadd.f32 %v1235, %v1610
      %v1689 = vadd.f32 %v1240, %v1615
      %v1690 = vadd.f32 %v1245, %v1620
      %v1691 = vadd.f32 %v1250, %v1625
      %v1692 = vadd.f32 %v1255, %v1630
      %v1693 = vadd.f32 %v1260, %v1635
      %v1694 = vadd.f32 %v1265, %v1640
      %v1695 = vadd.f32 %v1270, %v1645
      %v1696 = vadd.f32 %v1275, %v1650
      %v1697 = vadd.f32 %v1280, %v1655
      %v1698 = vadd.f32 %v1285, %v1660
      %v1699 = vadd.f32 %v1290, %v1665
      %s1700 = scalar_lea.vmem %s3, 12
      %v1701 = vld [vmem:[%s1700] sm:$0xf]
      %v1703 = vsel %vm707, %v569, 0
      %v1706 = vsel %vm707, %v570, 0
      %v1709 = vsel %vm772, %v1701, 0
      %1711 = vmatprep.subr.mxu0 0.0
      %1712 = vmatpush1.msra.mxu0 %v1709
      %1713 = vmatprep.subr.mxu0 0.0
      %1714 = vmatpush1.msra.mxu0 0.0
      %1715 = vmatprep.subr.mxu0 0.0
      %1716 = vmatpush1.msra.mxu0 0.0
      %1717 = vmatprep.subr.mxu0 0.0
      %1718 = vmatpush1.msra.mxu0 0.0
      %1719 = vmatprep.subr.mxu0 0.0
      %1720 = vmatpush1.msra.mxu0 0.0
      %1721 = vmatprep.subr.mxu0 0.0
      %1722 = vmatpush1.msra.mxu0 0.0
      %1723 = vmatprep.subr.mxu0 0.0
      %1724 = vmatpush1.msra.mxu0 0.0
      %1725 = vmatprep.subr.mxu0 0.0
      %1726 = vmatpush1.msra.mxu0 0.0
      %1727 = vmatprep.subr.mxu0 0.0
      %1728 = vmatpush1.msra.mxu0 0.0
      %1729 = vmatprep.subr.mxu0 0.0
      %1730 = vmatpush1.msra.mxu0 0.0
      %1731 = vmatprep.subr.mxu0 0.0
      %1732 = vmatpush1.msra.mxu0 0.0
      %1733 = vmatprep.subr.mxu0 0.0
      %1734 = vmatpush1.msra.mxu0 0.0
      %1735 = vmatprep.subr.mxu0 0.0
      %1736 = vmatpush1.msra.mxu0 0.0
      %1737 = vmatprep.subr.mxu0 0.0
      %1738 = vmatpush1.msra.mxu0 0.0
      %1739 = vmatprep.subr.mxu0 0.0
      %1740 = vmatpush1.msra.mxu0 0.0
      %1741 = vmatprep.subr.mxu0 0.0
      %1742 = vmatpush1.msra.mxu0 0.0
      %1743 = vmatprep.subr.mxu0 0.0
      %1744 = vmatpush1.msra.mxu0 0.0
      %1745 = vmatprep.subr.mxu0 0.0
      %1746 = vmatpush1.msra.mxu0 0.0
      %1747 = vmatprep.subr.mxu0 0.0
      %1748 = vmatpush1.msra.mxu0 0.0
      %1749 = vmatprep.subr.mxu0 0.0
      %1750 = vmatpush1.msra.mxu0 0.0
      %1751 = vmatprep.subr.mxu0 0.0
      %1752 = vmatpush1.msra.mxu0 0.0
      %1753 = vmatprep.subr.mxu0 0.0
      %1754 = vmatpush1.msra.mxu0 0.0
      %1755 = vmatprep.subr.mxu0 0.0
      %1756 = vmatpush1.msra.mxu0 0.0
      %1757 = vmatprep.subr.mxu0 0.0
      %1758 = vmatpush1.msra.mxu0 0.0
      %1759 = vmatprep.subr.mxu0 0.0
      %1760 = vmatpush1.msra.mxu0 0.0
      %1761 = vmatprep.subr.mxu0 0.0
      %1762 = vmatpush1.msra.mxu0 0.0
      %1763 = vmatprep.subr.mxu0 0.0
      %1764 = vmatpush1.msra.mxu0 0.0
      %1765 = vmatprep.subr.mxu0 0.0
      %1766 = vmatpush1.msra.mxu0 0.0
      %1767 = vmatprep.subr.mxu0 0.0
      %1768 = vmatpush1.msra.mxu0 0.0
      %1769 = vmatprep.subr.mxu0 0.0
      %1770 = vmatpush1.msra.mxu0 0.0
      %1771 = vmatprep.subr.mxu0 0.0
      %1772 = vmatpush1.msra.mxu0 0.0
      %1773 = vmatprep.subr.mxu0 0.0
      %1774 = vmatpush1.msra.mxu0 0.0
      %1775 = vmatprep.mubr.f32.mxu0 0.0
      %1776 = vmatmul.mubr.f32.gmra.mrb[0].mxu0 %v1005
      %v1777 = vpop.f32.mrb[0].mxu0
      %v1778 = vadd.f32 0.0, %v1777
      %v1779 = vpop.f32.mrb[0].mxu0
      %1780 = vmatprep.mubr.f32.mxu0 0.0
      %1781 = vmatmul.mubr.f32.gmra.mrb[0].mxu0 %v1007
      %v1782 = vpop.f32.mrb[0].mxu0
      %v1783 = vadd.f32 0.0, %v1782
      %v1784 = vpop.f32.mrb[0].mxu0
      %1785 = vmatprep.mubr.f32.mxu0 0.0
      %1786 = vmatmul.mubr.f32.gmra.mrb[0].mxu0 %v1009
      %v1787 = vpop.f32.mrb[0].mxu0
      %v1788 = vadd.f32 0.0, %v1787
      %v1789 = vpop.f32.mrb[0].mxu0
      %1790 = vmatprep.mubr.f32.mxu0 0.0
      %1791 = vmatmul.mubr.f32.gmra.mrb[0].mxu0 %v1011
      %v1792 = vpop.f32.mrb[0].mxu0
      %v1793 = vadd.f32 0.0, %v1792
      %v1794 = vpop.f32.mrb[0].mxu0
      %1795 = vmatprep.mubr.f32.mxu0 0.0
      %1796 = vmatmul.mubr.f32.gmra.mrb[0].mxu0 %v1013
      %v1797 = vpop.f32.mrb[0].mxu0
      %v1798 = vadd.f32 0.0, %v1797
      %v1799 = vpop.f32.mrb[0].mxu0
      %1800 = vmatprep.mubr.f32.mxu0 0.0
      %1801 = vmatmul.mubr.f32.gmra.mrb[0].mxu0 %v1015
      %v1802 = vpop.f32.mrb[0].mxu0
      %v1803 = vadd.f32 0.0, %v1802
      %v1804 = vpop.f32.mrb[0].mxu0
      %1805 = vmatprep.mubr.f32.mxu0 0.0
      %1806 = vmatmul.mubr.f32.gmra.mrb[0].mxu0 %v1017
      %v1807 = vpop.f32.mrb[0].mxu0
      %v1808 = vadd.f32 0.0, %v1807
      %v1809 = vpop.f32.mrb[0].mxu0
      %1810 = vmatprep.mubr.f32.mxu0 0.0
      %1811 = vmatmul.mubr.f32.gmra.mrb[0].mxu0 %v1019
      %v1812 = vpop.f32.mrb[0].mxu0
      %v1813 = vadd.f32 0.0, %v1812
      %v1814 = vpop.f32.mrb[0].mxu0
      %1815 = vmatprep.mubr.f32.mxu0 0.0
      %1816 = vmatmul.mubr.f32.gmra.mrb[0].mxu0 %v1021
      %v1817 = vpop.f32.mrb[0].mxu0
      %v1818 = vadd.f32 0.0, %v1817
      %v1819 = vpop.f32.mrb[0].mxu0
      %1820 = vmatprep.mubr.f32.mxu0 0.0
      %1821 = vmatmul.mubr.f32.gmra.mrb[0].mxu0 %v1023
      %v1822 = vpop.f32.mrb[0].mxu0
      %v1823 = vadd.f32 0.0, %v1822
      %v1824 = vpop.f32.mrb[0].mxu0
      %1825 = vmatprep.mubr.f32.mxu0 0.0
      %1826 = vmatmul.mubr.f32.gmra.mrb[0].mxu0 %v1025
      %v1827 = vpop.f32.mrb[0].mxu0
      %v1828 = vadd.f32 0.0, %v1827
      %v1829 = vpop.f32.mrb[0].mxu0
      %1830 = vmatprep.mubr.f32.mxu0 0.0
      %1831 = vmatmul.mubr.f32.gmra.mrb[0].mxu0 %v1027
      %v1832 = vpop.f32.mrb[0].mxu0
      %v1833 = vadd.f32 0.0, %v1832
      %v1834 = vpop.f32.mrb[0].mxu0
      %1835 = vmatprep.mubr.f32.mxu0 0.0
      %1836 = vmatmul.mubr.f32.gmra.mrb[0].mxu0 %v1029
      %v1837 = vpop.f32.mrb[0].mxu0
      %v1838 = vadd.f32 0.0, %v1837
      %v1839 = vpop.f32.mrb[0].mxu0
      %1840 = vmatprep.mubr.f32.mxu0 0.0
      %1841 = vmatmul.mubr.f32.gmra.mrb[0].mxu0 %v1031
      %v1842 = vpop.f32.mrb[0].mxu0
      %v1843 = vadd.f32 0.0, %v1842
      %v1844 = vpop.f32.mrb[0].mxu0
      %1845 = vmatprep.mubr.f32.mxu0 0.0
      %1846 = vmatmul.mubr.f32.gmra.mrb[0].mxu0 %v1033
      %v1847 = vpop.f32.mrb[0].mxu0
      %v1848 = vadd.f32 0.0, %v1847
      %v1849 = vpop.f32.mrb[0].mxu0
      %1850 = vmatprep.mubr.f32.mxu0 0.0
      %1851 = vmatmul.mubr.f32.gmra.mrb[0].mxu0 %v1035
      %v1852 = vpop.f32.mrb[0].mxu0
      %v1853 = vadd.f32 0.0, %v1852
      %v1854 = vpop.f32.mrb[0].mxu0
      %1855 = vmatprep.mubr.f32.mxu0 0.0
      %1856 = vmatmul.mubr.f32.gmra.mrb[0].mxu0 %v1037
      %v1857 = vpop.f32.mrb[0].mxu0
      %v1858 = vadd.f32 0.0, %v1857
      %v1859 = vpop.f32.mrb[0].mxu0
      %1860 = vmatprep.mubr.f32.mxu0 0.0
      %1861 = vmatmul.mubr.f32.gmra.mrb[0].mxu0 %v1039
      %v1862 = vpop.f32.mrb[0].mxu0
      %v1863 = vadd.f32 0.0, %v1862
      %v1864 = vpop.f32.mrb[0].mxu0
      %1865 = vmatprep.mubr.f32.mxu0 0.0
      %1866 = vmatmul.mubr.f32.gmra.mrb[0].mxu0 %v1041
      %v1867 = vpop.f32.mrb[0].mxu0
      %v1868 = vadd.f32 0.0, %v1867
      %v1869 = vpop.f32.mrb[0].mxu0
      %1870 = vmatprep.mubr.f32.mxu0 0.0
      %1871 = vmatmul.mubr.f32.gmra.mrb[0].mxu0 %v1043
      %v1872 = vpop.f32.mrb[0].mxu0
      %v1873 = vadd.f32 0.0, %v1872
      %v1874 = vpop.f32.mrb[0].mxu0
      %1875 = vmatprep.mubr.f32.mxu0 0.0
      %1876 = vmatmul.mubr.f32.gmra.mrb[0].mxu0 %v1045
      %v1877 = vpop.f32.mrb[0].mxu0
      %v1878 = vadd.f32 0.0, %v1877
      %v1879 = vpop.f32.mrb[0].mxu0
      %1880 = vmatprep.mubr.f32.mxu0 0.0
      %1881 = vmatmul.mubr.f32.gmra.mrb[0].mxu0 %v1047
      %v1882 = vpop.f32.mrb[0].mxu0
      %v1883 = vadd.f32 0.0, %v1882
      %v1884 = vpop.f32.mrb[0].mxu0
      %1885 = vmatprep.mubr.f32.mxu0 0.0
      %1886 = vmatmul.mubr.f32.gmra.mrb[0].mxu0 %v1049
      %v1887 = vpop.f32.mrb[0].mxu0
      %v1888 = vadd.f32 0.0, %v1887
      %v1889 = vpop.f32.mrb[0].mxu0
      %1890 = vmatprep.mubr.f32.mxu0 0.0
      %1891 = vmatmul.mubr.f32.gmra.mrb[0].mxu0 %v1051
      %v1892 = vpop.f32.mrb[0].mxu0
      %v1893 = vadd.f32 0.0, %v1892
      %v1894 = vpop.f32.mrb[0].mxu0
      %1895 = vmatprep.mubr.f32.mxu0 0.0
      %1896 = vmatmul.mubr.f32.gmra.mrb[0].mxu0 %v1053
      %v1897 = vpop.f32.mrb[0].mxu0
      %v1898 = vadd.f32 0.0, %v1897
      %v1899 = vpop.f32.mrb[0].mxu0
      %1900 = vmatprep.mubr.f32.mxu0 0.0
      %1901 = vmatmul.mubr.f32.gmra.mrb[0].mxu0 %v1055
      %v1902 = vpop.f32.mrb[0].mxu0
      %v1903 = vadd.f32 0.0, %v1902
      %v1904 = vpop.f32.mrb[0].mxu0
      %1905 = vmatprep.mubr.f32.mxu0 0.0
      %1906 = vmatmul.mubr.f32.gmra.mrb[0].mxu0 %v1057
      %v1907 = vpop.f32.mrb[0].mxu0
      %v1908 = vadd.f32 0.0, %v1907
      %v1909 = vpop.f32.mrb[0].mxu0
      %1910 = vmatprep.mubr.f32.mxu0 0.0
      %1911 = vmatmul.mubr.f32.gmra.mrb[0].mxu0 %v1059
      %v1912 = vpop.f32.mrb[0].mxu0
      %v1913 = vadd.f32 0.0, %v1912
      %v1914 = vpop.f32.mrb[0].mxu0
      %1915 = vmatprep.mubr.f32.mxu0 0.0
      %1916 = vmatmul.mubr.f32.gmra.mrb[0].mxu0 %v1061
      %v1917 = vpop.f32.mrb[0].mxu0
      %v1918 = vadd.f32 0.0, %v1917
      %v1919 = vpop.f32.mrb[0].mxu0
      %1920 = vmatprep.mubr.f32.mxu0 0.0
      %1921 = vmatmul.mubr.f32.gmra.mrb[0].mxu0 %v1063
      %v1922 = vpop.f32.mrb[0].mxu0
      %v1923 = vadd.f32 0.0, %v1922
      %v1924 = vpop.f32.mrb[0].mxu0
      %1925 = vmatprep.mubr.f32.mxu0 0.0
      %1926 = vmatmul.mubr.f32.gmra.mrb[0].mxu0 %v1703
      %v1927 = vpop.f32.mrb[0].mxu0
      %v1928 = vadd.f32 0.0, %v1927
      %v1929 = vpop.f32.mrb[0].mxu0
      %1930 = vmatprep.mubr.f32.mxu0 0.0
      %1931 = vmatmul.mubr.f32.gmra.mrb[0].mxu0 %v1706
      %v1932 = vpop.f32.mrb[0].mxu0
      %v1933 = vadd.f32 0.0, %v1932
      %v1934 = vpop.f32.mrb[0].mxu0
      %1935 = vdwg.mxu0
      %v1936 = vadd.f32 %v1668, %v1778
      %v1937 = vadd.f32 %v1669, %v1783
      %v1938 = vadd.f32 %v1670, %v1788
      %v1939 = vadd.f32 %v1671, %v1793
      %v1940 = vadd.f32 %v1672, %v1798
      %v1941 = vadd.f32 %v1673, %v1803
      %v1942 = vadd.f32 %v1674, %v1808
      %v1943 = vadd.f32 %v1675, %v1813
      %v1944 = vadd.f32 %v1676, %v1818
      %v1945 = vadd.f32 %v1677, %v1823
      %v1946 = vadd.f32 %v1678, %v1828
      %v1947 = vadd.f32 %v1679, %v1833
      %v1948 = vadd.f32 %v1680, %v1838
      %v1949 = vadd.f32 %v1681, %v1843
      %v1950 = vadd.f32 %v1682, %v1848
      %v1951 = vadd.f32 %v1683, %v1853
      %v1952 = vadd.f32 %v1684, %v1858
      %v1953 = vadd.f32 %v1685, %v1863
      %v1954 = vadd.f32 %v1686, %v1868
      %v1955 = vadd.f32 %v1687, %v1873
      %v1956 = vadd.f32 %v1688, %v1878
      %v1957 = vadd.f32 %v1689, %v1883
      %v1958 = vadd.f32 %v1690, %v1888
      %v1959 = vadd.f32 %v1691, %v1893
      %v1960 = vadd.f32 %v1692, %v1898
      %v1961 = vadd.f32 %v1693, %v1903
      %v1962 = vadd.f32 %v1694, %v1908
      %v1963 = vadd.f32 %v1695, %v1913
      %v1964 = vadd.f32 %v1696, %v1918
      %v1965 = vadd.f32 %v1697, %v1923
      %v1966 = vadd.f32 %v1698, %v1928
      %v1967 = vadd.f32 %v1699, %v1933
      %v1969 = vrot.slane %v569, 1
      %v1970 = vrot.slane %v570, 1
      %v1971 = vsel %vm624, %v1969, %v1970
      %v1972 = vrot.slane %v571, 1
      %v1973 = vsel %vm624, %v1970, %v1972
      %s1974 = scalar_lea.vmem %s3, 16
      %v1975 = vld [vmem:[%s1974] sm:$0xf]
      %v1976 = vsel %vm707, %v1971, 0
      %v1978 = vsel %vm707, %v1973, 0
      %v1981 = vsel %vm772, %v1975, 0
      %1983 = vmatprep.subr.mxu0 0.0
      %1984 = vmatpush1.msra.mxu0 %v1981
      %1985 = vmatprep.subr.mxu0 0.0
      %1986 = vmatpush1.msra.mxu0 0.0
      %1987 = vmatprep.subr.mxu0 0.0
      %1988 = vmatpush1.msra.mxu0 0.0
      %1989 = vmatprep.subr.mxu0 0.0
      %1990 = vmatpush1.msra.mxu0 0.0
      %1991 = vmatprep.subr.mxu0 0.0
      %1992 = vmatpush1.msra.mxu0 0.0
      %1993 = vmatprep.subr.mxu0 0.0
      %1994 = vmatpush1.msra.mxu0 0.0
      %1995 = vmatprep.subr.mxu0 0.0
      %1996 = vmatpush1.msra.mxu0 0.0
      %1997 = vmatprep.subr.mxu0 0.0
      %1998 = vmatpush1.msra.mxu0 0.0
      %1999 = vmatprep.subr.mxu0 0.0
      %2000 = vmatpush1.msra.mxu0 0.0
      %2001 = vmatprep.subr.mxu0 0.0
      %2002 = vmatpush1.msra.mxu0 0.0
      %2003 = vmatprep.subr.mxu0 0.0
      %2004 = vmatpush1.msra.mxu0 0.0
      %2005 = vmatprep.subr.mxu0 0.0
      %2006 = vmatpush1.msra.mxu0 0.0
      %2007 = vmatprep.subr.mxu0 0.0
      %2008 = vmatpush1.msra.mxu0 0.0
      %2009 = vmatprep.subr.mxu0 0.0
      %2010 = vmatpush1.msra.mxu0 0.0
      %2011 = vmatprep.subr.mxu0 0.0
      %2012 = vmatpush1.msra.mxu0 0.0
      %2013 = vmatprep.subr.mxu0 0.0
      %2014 = vmatpush1.msra.mxu0 0.0
      %2015 = vmatprep.subr.mxu0 0.0
      %2016 = vmatpush1.msra.mxu0 0.0
      %2017 = vmatprep.subr.mxu0 0.0
      %2018 = vmatpush1.msra.mxu0 0.0
      %2019 = vmatprep.subr.mxu0 0.0
      %2020 = vmatpush1.msra.mxu0 0.0
      %2021 = vmatprep.subr.mxu0 0.0
      %2022 = vmatpush1.msra.mxu0 0.0
      %2023 = vmatprep.subr.mxu0 0.0
      %2024 = vmatpush1.msra.mxu0 0.0
      %2025 = vmatprep.subr.mxu0 0.0
      %2026 = vmatpush1.msra.mxu0 0.0
      %2027 = vmatprep.subr.mxu0 0.0
      %2028 = vmatpush1.msra.mxu0 0.0
      %2029 = vmatprep.subr.mxu0 0.0
      %2030 = vmatpush1.msra.mxu0 0.0
      %2031 = vmatprep.subr.mxu0 0.0
      %2032 = vmatpush1.msra.mxu0 0.0
      %2033 = vmatprep.subr.mxu0 0.0
      %2034 = vmatpush1.msra.mxu0 0.0
      %2035 = vmatprep.subr.mxu0 0.0
      %2036 = vmatpush1.msra.mxu0 0.0
      %2037 = vmatprep.subr.mxu0 0.0
      %2038 = vmatpush1.msra.mxu0 0.0
      %2039 = vmatprep.subr.mxu0 0.0
      %2040 = vmatpush1.msra.mxu0 0.0
      %2041 = vmatprep.subr.mxu0 0.0
      %2042 = vmatpush1.msra.mxu0 0.0
      %2043 = vmatprep.subr.mxu0 0.0
      %2044 = vmatpush1.msra.mxu0 0.0
      %2045 = vmatprep.subr.mxu0 0.0
      %2046 = vmatpush1.msra.mxu0 0.0
      %2047 = vmatprep.mubr.f32.mxu0 0.0
      %2048 = vmatmul.mubr.f32.gmra.mrb[0].mxu0 %v712
      %v2049 = vpop.f32.mrb[0].mxu0
      %v2050 = vadd.f32 0.0, %v2049
      %v2051 = vpop.f32.mrb[0].mxu0
      %2052 = vmatprep.mubr.f32.mxu0 0.0
      %2053 = vmatmul.mubr.f32.gmra.mrb[0].mxu0 %v714
      %v2054 = vpop.f32.mrb[0].mxu0
      %v2055 = vadd.f32 0.0, %v2054
      %v2056 = vpop.f32.mrb[0].mxu0
      %2057 = vmatprep.mubr.f32.mxu0 0.0
      %2058 = vmatmul.mubr.f32.gmra.mrb[0].mxu0 %v716
      %v2059 = vpop.f32.mrb[0].mxu0
      %v2060 = vadd.f32 0.0, %v2059
      %v2061 = vpop.f32.mrb[0].mxu0
      %2062 = vmatprep.mubr.f32.mxu0 0.0
      %2063 = vmatmul.mubr.f32.gmra.mrb[0].mxu0 %v718
      %v2064 = vpop.f32.mrb[0].mxu0
      %v2065 = vadd.f32 0.0, %v2064
      %v2066 = vpop.f32.mrb[0].mxu0
      %2067 = vmatprep.mubr.f32.mxu0 0.0
      %2068 = vmatmul.mubr.f32.gmra.mrb[0].mxu0 %v720
      %v2069 = vpop.f32.mrb[0].mxu0
      %v2070 = vadd.f32 0.0, %v2069
      %v2071 = vpop.f32.mrb[0].mxu0
      %2072 = vmatprep.mubr.f32.mxu0 0.0
      %2073 = vmatmul.mubr.f32.gmra.mrb[0].mxu0 %v722
      %v2074 = vpop.f32.mrb[0].mxu0
      %v2075 = vadd.f32 0.0, %v2074
      %v2076 = vpop.f32.mrb[0].mxu0
      %2077 = vmatprep.mubr.f32.mxu0 0.0
      %2078 = vmatmul.mubr.f32.gmra.mrb[0].mxu0 %v724
      %v2079 = vpop.f32.mrb[0].mxu0
      %v2080 = vadd.f32 0.0, %v2079
      %v2081 = vpop.f32.mrb[0].mxu0
      %2082 = vmatprep.mubr.f32.mxu0 0.0
      %2083 = vmatmul.mubr.f32.gmra.mrb[0].mxu0 %v726
      %v2084 = vpop.f32.mrb[0].mxu0
      %v2085 = vadd.f32 0.0, %v2084
      %v2086 = vpop.f32.mrb[0].mxu0
      %2087 = vmatprep.mubr.f32.mxu0 0.0
      %2088 = vmatmul.mubr.f32.gmra.mrb[0].mxu0 %v728
      %v2089 = vpop.f32.mrb[0].mxu0
      %v2090 = vadd.f32 0.0, %v2089
      %v2091 = vpop.f32.mrb[0].mxu0
      %2092 = vmatprep.mubr.f32.mxu0 0.0
      %2093 = vmatmul.mubr.f32.gmra.mrb[0].mxu0 %v730
      %v2094 = vpop.f32.mrb[0].mxu0
      %v2095 = vadd.f32 0.0, %v2094
      %v2096 = vpop.f32.mrb[0].mxu0
      %2097 = vmatprep.mubr.f32.mxu0 0.0
      %2098 = vmatmul.mubr.f32.gmra.mrb[0].mxu0 %v732
      %v2099 = vpop.f32.mrb[0].mxu0
      %v2100 = vadd.f32 0.0, %v2099
      %v2101 = vpop.f32.mrb[0].mxu0
      %2102 = vmatprep.mubr.f32.mxu0 0.0
      %2103 = vmatmul.mubr.f32.gmra.mrb[0].mxu0 %v734
      %v2104 = vpop.f32.mrb[0].mxu0
      %v2105 = vadd.f32 0.0, %v2104
      %v2106 = vpop.f32.mrb[0].mxu0
      %2107 = vmatprep.mubr.f32.mxu0 0.0
      %2108 = vmatmul.mubr.f32.gmra.mrb[0].mxu0 %v736
      %v2109 = vpop.f32.mrb[0].mxu0
      %v2110 = vadd.f32 0.0, %v2109
      %v2111 = vpop.f32.mrb[0].mxu0
      %2112 = vmatprep.mubr.f32.mxu0 0.0
      %2113 = vmatmul.mubr.f32.gmra.mrb[0].mxu0 %v738
      %v2114 = vpop.f32.mrb[0].mxu0
      %v2115 = vadd.f32 0.0, %v2114
      %v2116 = vpop.f32.mrb[0].mxu0
      %2117 = vmatprep.mubr.f32.mxu0 0.0
      %2118 = vmatmul.mubr.f32.gmra.mrb[0].mxu0 %v740
      %v2119 = vpop.f32.mrb[0].mxu0
      %v2120 = vadd.f32 0.0, %v2119
      %v2121 = vpop.f32.mrb[0].mxu0
      %2122 = vmatprep.mubr.f32.mxu0 0.0
      %2123 = vmatmul.mubr.f32.gmra.mrb[0].mxu0 %v742
      %v2124 = vpop.f32.mrb[0].mxu0
      %v2125 = vadd.f32 0.0, %v2124
      %v2126 = vpop.f32.mrb[0].mxu0
      %2127 = vmatprep.mubr.f32.mxu0 0.0
      %2128 = vmatmul.mubr.f32.gmra.mrb[0].mxu0 %v744
      %v2129 = vpop.f32.mrb[0].mxu0
      %v2130 = vadd.f32 0.0, %v2129
      %v2131 = vpop.f32.mrb[0].mxu0
      %2132 = vmatprep.mubr.f32.mxu0 0.0
      %2133 = vmatmul.mubr.f32.gmra.mrb[0].mxu0 %v746
      %v2134 = vpop.f32.mrb[0].mxu0
      %v2135 = vadd.f32 0.0, %v2134
      %v2136 = vpop.f32.mrb[0].mxu0
      %2137 = vmatprep.mubr.f32.mxu0 0.0
      %2138 = vmatmul.mubr.f32.gmra.mrb[0].mxu0 %v748
      %v2139 = vpop.f32.mrb[0].mxu0
      %v2140 = vadd.f32 0.0, %v2139
      %v2141 = vpop.f32.mrb[0].mxu0
      %2142 = vmatprep.mubr.f32.mxu0 0.0
      %2143 = vmatmul.mubr.f32.gmra.mrb[0].mxu0 %v750
      %v2144 = vpop.f32.mrb[0].mxu0
      %v2145 = vadd.f32 0.0, %v2144
      %v2146 = vpop.f32.mrb[0].mxu0
      %2147 = vmatprep.mubr.f32.mxu0 0.0
      %2148 = vmatmul.mubr.f32.gmra.mrb[0].mxu0 %v752
      %v2149 = vpop.f32.mrb[0].mxu0
      %v2150 = vadd.f32 0.0, %v2149
      %v2151 = vpop.f32.mrb[0].mxu0
      %2152 = vmatprep.mubr.f32.mxu0 0.0
      %2153 = vmatmul.mubr.f32.gmra.mrb[0].mxu0 %v754
      %v2154 = vpop.f32.mrb[0].mxu0
      %v2155 = vadd.f32 0.0, %v2154
      %v2156 = vpop.f32.mrb[0].mxu0
      %2157 = vmatprep.mubr.f32.mxu0 0.0
      %2158 = vmatmul.mubr.f32.gmra.mrb[0].mxu0 %v756
      %v2159 = vpop.f32.mrb[0].mxu0
      %v2160 = vadd.f32 0.0, %v2159
      %v2161 = vpop.f32.mrb[0].mxu0
      %2162 = vmatprep.mubr.f32.mxu0 0.0
      %2163 = vmatmul.mubr.f32.gmra.mrb[0].mxu0 %v758
      %v2164 = vpop.f32.mrb[0].mxu0
      %v2165 = vadd.f32 0.0, %v2164
      %v2166 = vpop.f32.mrb[0].mxu0
      %2167 = vmatprep.mubr.f32.mxu0 0.0
      %2168 = vmatmul.mubr.f32.gmra.mrb[0].mxu0 %v760
      %v2169 = vpop.f32.mrb[0].mxu0
      %v2170 = vadd.f32 0.0, %v2169
      %v2171 = vpop.f32.mrb[0].mxu0
      %2172 = vmatprep.mubr.f32.mxu0 0.0
      %2173 = vmatmul.mubr.f32.gmra.mrb[0].mxu0 %v762
      %v2174 = vpop.f32.mrb[0].mxu0
      %v2175 = vadd.f32 0.0, %v2174
      %v2176 = vpop.f32.mrb[0].mxu0
      %2177 = vmatprep.mubr.f32.mxu0 0.0
      %2178 = vmatmul.mubr.f32.gmra.mrb[0].mxu0 %v764
      %v2179 = vpop.f32.mrb[0].mxu0
      %v2180 = vadd.f32 0.0, %v2179
      %v2181 = vpop.f32.mrb[0].mxu0
      %2182 = vmatprep.mubr.f32.mxu0 0.0
      %2183 = vmatmul.mubr.f32.gmra.mrb[0].mxu0 %v766
      %v2184 = vpop.f32.mrb[0].mxu0
      %v2185 = vadd.f32 0.0, %v2184
      %v2186 = vpop.f32.mrb[0].mxu0
      %2187 = vmatprep.mubr.f32.mxu0 0.0
      %2188 = vmatmul.mubr.f32.gmra.mrb[0].mxu0 %v768
      %v2189 = vpop.f32.mrb[0].mxu0
      %v2190 = vadd.f32 0.0, %v2189
      %v2191 = vpop.f32.mrb[0].mxu0
      %2192 = vmatprep.mubr.f32.mxu0 0.0
      %2193 = vmatmul.mubr.f32.gmra.mrb[0].mxu0 %v770
      %v2194 = vpop.f32.mrb[0].mxu0
      %v2195 = vadd.f32 0.0, %v2194
      %v2196 = vpop.f32.mrb[0].mxu0
      %2197 = vmatprep.mubr.f32.mxu0 0.0
      %2198 = vmatmul.mubr.f32.gmra.mrb[0].mxu0 %v1976
      %v2199 = vpop.f32.mrb[0].mxu0
      %v2200 = vadd.f32 0.0, %v2199
      %v2201 = vpop.f32.mrb[0].mxu0
      %2202 = vmatprep.mubr.f32.mxu0 0.0
      %2203 = vmatmul.mubr.f32.gmra.mrb[0].mxu0 %v1978
      %v2204 = vpop.f32.mrb[0].mxu0
      %v2205 = vadd.f32 0.0, %v2204
      %v2206 = vpop.f32.mrb[0].mxu0
      %2207 = vdwg.mxu0
      %v2208 = vadd.f32 %v1936, %v2050
      %v2209 = vadd.f32 %v1937, %v2055
      %v2210 = vadd.f32 %v1938, %v2060
      %v2211 = vadd.f32 %v1939, %v2065
      %v2212 = vadd.f32 %v1940, %v2070
      %v2213 = vadd.f32 %v1941, %v2075
      %v2214 = vadd.f32 %v1942, %v2080
      %v2215 = vadd.f32 %v1943, %v2085
      %v2216 = vadd.f32 %v1944, %v2090
      %v2217 = vadd.f32 %v1945, %v2095
      %v2218 = vadd.f32 %v1946, %v2100
      %v2219 = vadd.f32 %v1947, %v2105
      %v2220 = vadd.f32 %v1948, %v2110
      %v2221 = vadd.f32 %v1949, %v2115
      %v2222 = vadd.f32 %v1950, %v2120
      %v2223 = vadd.f32 %v1951, %v2125
      %v2224 = vadd.f32 %v1952, %v2130
      %v2225 = vadd.f32 %v1953, %v2135
      %v2226 = vadd.f32 %v1954, %v2140
      %v2227 = vadd.f32 %v1955, %v2145
      %v2228 = vadd.f32 %v1956, %v2150
      %v2229 = vadd.f32 %v1957, %v2155
      %v2230 = vadd.f32 %v1958, %v2160
      %v2231 = vadd.f32 %v1959, %v2165
      %v2232 = vadd.f32 %v1960, %v2170
      %v2233 = vadd.f32 %v1961, %v2175
      %v2234 = vadd.f32 %v1962, %v2180
      %v2235 = vadd.f32 %v1963, %v2185
      %v2236 = vadd.f32 %v1964, %v2190
      %v2237 = vadd.f32 %v1965, %v2195
      %v2238 = vadd.f32 %v1966, %v2200
      %v2239 = vadd.f32 %v1967, %v2205
      %v2240 = vrot.slane %v569, 2
      %v2241 = vrot.slane %v570, 2
      %v2242 = vsel %vm1293, %v2240, %v2241
      %v2243 = vrot.slane %v571, 2
      %v2244 = vsel %vm1293, %v2241, %v2243
      %s2245 = scalar_lea.vmem %s3, 20
      %v2246 = vld [vmem:[%s2245] sm:$0xf]
      %v2247 = vsel %vm707, %v2242, 0
      %v2249 = vsel %vm707, %v2244, 0
      %v2252 = vsel %vm772, %v2246, 0
      %2254 = vmatprep.subr.mxu0 0.0
      %2255 = vmatpush1.msra.mxu0 %v2252
      %2256 = vmatprep.subr.mxu0 0.0
      %2257 = vmatpush1.msra.mxu0 0.0
      %2258 = vmatprep.subr.mxu0 0.0
      %2259 = vmatpush1.msra.mxu0 0.0
      %2260 = vmatprep.subr.mxu0 0.0
      %2261 = vmatpush1.msra.mxu0 0.0
      %2262 = vmatprep.subr.mxu0 0.0
      %2263 = vmatpush1.msra.mxu0 0.0
      %2264 = vmatprep.subr.mxu0 0.0
      %2265 = vmatpush1.msra.mxu0 0.0
      %2266 = vmatprep.subr.mxu0 0.0
      %2267 = vmatpush1.msra.mxu0 0.0
      %2268 = vmatprep.subr.mxu0 0.0
      %2269 = vmatpush1.msra.mxu0 0.0
      %2270 = vmatprep.subr.mxu0 0.0
      %2271 = vmatpush1.msra.mxu0 0.0
      %2272 = vmatprep.subr.mxu0 0.0
      %2273 = vmatpush1.msra.mxu0 0.0
      %2274 = vmatprep.subr.mxu0 0.0
      %2275 = vmatpush1.msra.mxu0 0.0
      %2276 = vmatprep.subr.mxu0 0.0
      %2277 = vmatpush1.msra.mxu0 0.0
      %2278 = vmatprep.subr.mxu0 0.0
      %2279 = vmatpush1.msra.mxu0 0.0
      %2280 = vmatprep.subr.mxu0 0.0
      %2281 = vmatpush1.msra.mxu0 0.0
      %2282 = vmatprep.subr.mxu0 0.0
      %2283 = vmatpush1.msra.mxu0 0.0
      %2284 = vmatprep.subr.mxu0 0.0
      %2285 = vmatpush1.msra.mxu0 0.0
      %2286 = vmatprep.subr.mxu0 0.0
      %2287 = vmatpush1.msra.mxu0 0.0
      %2288 = vmatprep.subr.mxu0 0.0
      %2289 = vmatpush1.msra.mxu0 0.0
      %2290 = vmatprep.subr.mxu0 0.0
      %2291 = vmatpush1.msra.mxu0 0.0
      %2292 = vmatprep.subr.mxu0 0.0
      %2293 = vmatpush1.msra.mxu0 0.0
      %2294 = vmatprep.subr.mxu0 0.0
      %2295 = vmatpush1.msra.mxu0 0.0
      %2296 = vmatprep.subr.mxu0 0.0
      %2297 = vmatpush1.msra.mxu0 0.0
      %2298 = vmatprep.subr.mxu0 0.0
      %2299 = vmatpush1.msra.mxu0 0.0
      %2300 = vmatprep.subr.mxu0 0.0
      %2301 = vmatpush1.msra.mxu0 0.0
      %2302 = vmatprep.subr.mxu0 0.0
      %2303 = vmatpush1.msra.mxu0 0.0
      %2304 = vmatprep.subr.mxu0 0.0
      %2305 = vmatpush1.msra.mxu0 0.0
      %2306 = vmatprep.subr.mxu0 0.0
      %2307 = vmatpush1.msra.mxu0 0.0
      %2308 = vmatprep.subr.mxu0 0.0
      %2309 = vmatpush1.msra.mxu0 0.0
      %2310 = vmatprep.subr.mxu0 0.0
      %2311 = vmatpush1.msra.mxu0 0.0
      %2312 = vmatprep.subr.mxu0 0.0
      %2313 = vmatpush1.msra.mxu0 0.0
      %2314 = vmatprep.subr.mxu0 0.0
      %2315 = vmatpush1.msra.mxu0 0.0
      %2316 = vmatprep.subr.mxu0 0.0
      %2317 = vmatpush1.msra.mxu0 0.0
      %2318 = vmatprep.mubr.f32.mxu0 0.0
      %2319 = vmatmul.mubr.f32.gmra.mrb[0].mxu0 %v1380
      %v2320 = vpop.f32.mrb[0].mxu0
      %v2321 = vadd.f32 0.0, %v2320
      %v2322 = vpop.f32.mrb[0].mxu0
      %2323 = vmatprep.mubr.f32.mxu0 0.0
      %2324 = vmatmul.mubr.f32.gmra.mrb[0].mxu0 %v1382
      %v2325 = vpop.f32.mrb[0].mxu0
      %v2326 = vadd.f32 0.0, %v2325
      %v2327 = vpop.f32.mrb[0].mxu0
      %2328 = vmatprep.mubr.f32.mxu0 0.0
      %2329 = vmatmul.mubr.f32.gmra.mrb[0].mxu0 %v1384
      %v2330 = vpop.f32.mrb[0].mxu0
      %v2331 = vadd.f32 0.0, %v2330
      %v2332 = vpop.f32.mrb[0].mxu0
      %2333 = vmatprep.mubr.f32.mxu0 0.0
      %2334 = vmatmul.mubr.f32.gmra.mrb[0].mxu0 %v1386
      %v2335 = vpop.f32.mrb[0].mxu0
      %v2336 = vadd.f32 0.0, %v2335
      %v2337 = vpop.f32.mrb[0].mxu0
      %2338 = vmatprep.mubr.f32.mxu0 0.0
      %2339 = vmatmul.mubr.f32.gmra.mrb[0].mxu0 %v1388
      %v2340 = vpop.f32.mrb[0].mxu0
      %v2341 = vadd.f32 0.0, %v2340
      %v2342 = vpop.f32.mrb[0].mxu0
      %2343 = vmatprep.mubr.f32.mxu0 0.0
      %2344 = vmatmul.mubr.f32.gmra.mrb[0].mxu0 %v1390
      %v2345 = vpop.f32.mrb[0].mxu0
      %v2346 = vadd.f32 0.0, %v2345
      %v2347 = vpop.f32.mrb[0].mxu0
      %2348 = vmatprep.mubr.f32.mxu0 0.0
      %2349 = vmatmul.mubr.f32.gmra.mrb[0].mxu0 %v1392
      %v2350 = vpop.f32.mrb[0].mxu0
      %v2351 = vadd.f32 0.0, %v2350
      %v2352 = vpop.f32.mrb[0].mxu0
      %2353 = vmatprep.mubr.f32.mxu0 0.0
      %2354 = vmatmul.mubr.f32.gmra.mrb[0].mxu0 %v1394
      %v2355 = vpop.f32.mrb[0].mxu0
      %v2356 = vadd.f32 0.0, %v2355
      %v2357 = vpop.f32.mrb[0].mxu0
      %2358 = vmatprep.mubr.f32.mxu0 0.0
      %2359 = vmatmul.mubr.f32.gmra.mrb[0].mxu0 %v1396
      %v2360 = vpop.f32.mrb[0].mxu0
      %v2361 = vadd.f32 0.0, %v2360
      %v2362 = vpop.f32.mrb[0].mxu0
      %2363 = vmatprep.mubr.f32.mxu0 0.0
      %2364 = vmatmul.mubr.f32.gmra.mrb[0].mxu0 %v1398
      %v2365 = vpop.f32.mrb[0].mxu0
      %v2366 = vadd.f32 0.0, %v2365
      %v2367 = vpop.f32.mrb[0].mxu0
      %2368 = vmatprep.mubr.f32.mxu0 0.0
      %2369 = vmatmul.mubr.f32.gmra.mrb[0].mxu0 %v1400
      %v2370 = vpop.f32.mrb[0].mxu0
      %v2371 = vadd.f32 0.0, %v2370
      %v2372 = vpop.f32.mrb[0].mxu0
      %2373 = vmatprep.mubr.f32.mxu0 0.0
      %2374 = vmatmul.mubr.f32.gmra.mrb[0].mxu0 %v1402
      %v2375 = vpop.f32.mrb[0].mxu0
      %v2376 = vadd.f32 0.0, %v2375
      %v2377 = vpop.f32.mrb[0].mxu0
      %2378 = vmatprep.mubr.f32.mxu0 0.0
      %2379 = vmatmul.mubr.f32.gmra.mrb[0].mxu0 %v1404
      %v2380 = vpop.f32.mrb[0].mxu0
      %v2381 = vadd.f32 0.0, %v2380
      %v2382 = vpop.f32.mrb[0].mxu0
      %2383 = vmatprep.mubr.f32.mxu0 0.0
      %2384 = vmatmul.mubr.f32.gmra.mrb[0].mxu0 %v1406
      %v2385 = vpop.f32.mrb[0].mxu0
      %v2386 = vadd.f32 0.0, %v2385
      %v2387 = vpop.f32.mrb[0].mxu0
      %2388 = vmatprep.mubr.f32.mxu0 0.0
      %2389 = vmatmul.mubr.f32.gmra.mrb[0].mxu0 %v1408
      %v2390 = vpop.f32.mrb[0].mxu0
      %v2391 = vadd.f32 0.0, %v2390
      %v2392 = vpop.f32.mrb[0].mxu0
      %2393 = vmatprep.mubr.f32.mxu0 0.0
      %2394 = vmatmul.mubr.f32.gmra.mrb[0].mxu0 %v1410
      %v2395 = vpop.f32.mrb[0].mxu0
      %v2396 = vadd.f32 0.0, %v2395
      %v2397 = vpop.f32.mrb[0].mxu0
      %2398 = vmatprep.mubr.f32.mxu0 0.0
      %2399 = vmatmul.mubr.f32.gmra.mrb[0].mxu0 %v1412
      %v2400 = vpop.f32.mrb[0].mxu0
      %v2401 = vadd.f32 0.0, %v2400
      %v2402 = vpop.f32.mrb[0].mxu0
      %2403 = vmatprep.mubr.f32.mxu0 0.0
      %2404 = vmatmul.mubr.f32.gmra.mrb[0].mxu0 %v1414
      %v2405 = vpop.f32.mrb[0].mxu0
      %v2406 = vadd.f32 0.0, %v2405
      %v2407 = vpop.f32.mrb[0].mxu0
      %2408 = vmatprep.mubr.f32.mxu0 0.0
      %2409 = vmatmul.mubr.f32.gmra.mrb[0].mxu0 %v1416
      %v2410 = vpop.f32.mrb[0].mxu0
      %v2411 = vadd.f32 0.0, %v2410
      %v2412 = vpop.f32.mrb[0].mxu0
      %2413 = vmatprep.mubr.f32.mxu0 0.0
      %2414 = vmatmul.mubr.f32.gmra.mrb[0].mxu0 %v1418
      %v2415 = vpop.f32.mrb[0].mxu0
      %v2416 = vadd.f32 0.0, %v2415
      %v2417 = vpop.f32.mrb[0].mxu0
      %2418 = vmatprep.mubr.f32.mxu0 0.0
      %2419 = vmatmul.mubr.f32.gmra.mrb[0].mxu0 %v1420
      %v2420 = vpop.f32.mrb[0].mxu0
      %v2421 = vadd.f32 0.0, %v2420
      %v2422 = vpop.f32.mrb[0].mxu0
      %2423 = vmatprep.mubr.f32.mxu0 0.0
      %2424 = vmatmul.mubr.f32.gmra.mrb[0].mxu0 %v1422
      %v2425 = vpop.f32.mrb[0].mxu0
      %v2426 = vadd.f32 0.0, %v2425
      %v2427 = vpop.f32.mrb[0].mxu0
      %2428 = vmatprep.mubr.f32.mxu0 0.0
      %2429 = vmatmul.mubr.f32.gmra.mrb[0].mxu0 %v1424
      %v2430 = vpop.f32.mrb[0].mxu0
      %v2431 = vadd.f32 0.0, %v2430
      %v2432 = vpop.f32.mrb[0].mxu0
      %2433 = vmatprep.mubr.f32.mxu0 0.0
      %2434 = vmatmul.mubr.f32.gmra.mrb[0].mxu0 %v1426
      %v2435 = vpop.f32.mrb[0].mxu0
      %v2436 = vadd.f32 0.0, %v2435
      %v2437 = vpop.f32.mrb[0].mxu0
      %2438 = vmatprep.mubr.f32.mxu0 0.0
      %2439 = vmatmul.mubr.f32.gmra.mrb[0].mxu0 %v1428
      %v2440 = vpop.f32.mrb[0].mxu0
      %v2441 = vadd.f32 0.0, %v2440
      %v2442 = vpop.f32.mrb[0].mxu0
      %2443 = vmatprep.mubr.f32.mxu0 0.0
      %2444 = vmatmul.mubr.f32.gmra.mrb[0].mxu0 %v1430
      %v2445 = vpop.f32.mrb[0].mxu0
      %v2446 = vadd.f32 0.0, %v2445
      %v2447 = vpop.f32.mrb[0].mxu0
      %2448 = vmatprep.mubr.f32.mxu0 0.0
      %2449 = vmatmul.mubr.f32.gmra.mrb[0].mxu0 %v1432
      %v2450 = vpop.f32.mrb[0].mxu0
      %v2451 = vadd.f32 0.0, %v2450
      %v2452 = vpop.f32.mrb[0].mxu0
      %2453 = vmatprep.mubr.f32.mxu0 0.0
      %2454 = vmatmul.mubr.f32.gmra.mrb[0].mxu0 %v1434
      %v2455 = vpop.f32.mrb[0].mxu0
      %v2456 = vadd.f32 0.0, %v2455
      %v2457 = vpop.f32.mrb[0].mxu0
      %2458 = vmatprep.mubr.f32.mxu0 0.0
      %2459 = vmatmul.mubr.f32.gmra.mrb[0].mxu0 %v1436
      %v2460 = vpop.f32.mrb[0].mxu0
      %v2461 = vadd.f32 0.0, %v2460
      %v2462 = vpop.f32.mrb[0].mxu0
      %2463 = vmatprep.mubr.f32.mxu0 0.0
      %2464 = vmatmul.mubr.f32.gmra.mrb[0].mxu0 %v1438
      %v2465 = vpop.f32.mrb[0].mxu0
      %v2466 = vadd.f32 0.0, %v2465
      %v2467 = vpop.f32.mrb[0].mxu0
      %2468 = vmatprep.mubr.f32.mxu0 0.0
      %2469 = vmatmul.mubr.f32.gmra.mrb[0].mxu0 %v2247
      %v2470 = vpop.f32.mrb[0].mxu0
      %v2471 = vadd.f32 0.0, %v2470
      %v2472 = vpop.f32.mrb[0].mxu0
      %2473 = vmatprep.mubr.f32.mxu0 0.0
      %2474 = vmatmul.mubr.f32.gmra.mrb[0].mxu0 %v2249
      %v2475 = vpop.f32.mrb[0].mxu0
      %v2476 = vadd.f32 0.0, %v2475
      %v2477 = vpop.f32.mrb[0].mxu0
      %2478 = vdwg.mxu0
      %v2479 = vadd.f32 %v2208, %v2321
      %v2480 = vadd.f32 %v2209, %v2326
      %v2481 = vadd.f32 %v2210, %v2331
      %v2482 = vadd.f32 %v2211, %v2336
      %v2483 = vadd.f32 %v2212, %v2341
      %v2484 = vadd.f32 %v2213, %v2346
      %v2485 = vadd.f32 %v2214, %v2351
      %v2486 = vadd.f32 %v2215, %v2356
      %v2487 = vadd.f32 %v2216, %v2361
      %v2488 = vadd.f32 %v2217, %v2366
      %v2489 = vadd.f32 %v2218, %v2371
      %v2490 = vadd.f32 %v2219, %v2376
      %v2491 = vadd.f32 %v2220, %v2381
      %v2492 = vadd.f32 %v2221, %v2386
      %v2493 = vadd.f32 %v2222, %v2391
      %v2494 = vadd.f32 %v2223, %v2396
      %v2495 = vadd.f32 %v2224, %v2401
      %v2496 = vadd.f32 %v2225, %v2406
      %v2497 = vadd.f32 %v2226, %v2411
      %v2498 = vadd.f32 %v2227, %v2416
      %v2499 = vadd.f32 %v2228, %v2421
      %v2500 = vadd.f32 %v2229, %v2426
      %v2501 = vadd.f32 %v2230, %v2431
      %v2502 = vadd.f32 %v2231, %v2436
      %v2503 = vadd.f32 %v2232, %v2441
      %v2504 = vadd.f32 %v2233, %v2446
      %v2505 = vadd.f32 %v2234, %v2451
      %v2506 = vadd.f32 %v2235, %v2456
      %v2507 = vadd.f32 %v2236, %v2461
      %v2508 = vadd.f32 %v2237, %v2466
      %v2509 = vadd.f32 %v2238, %v2471
      %v2510 = vadd.f32 %v2239, %v2476
      %s2511 = scalar_lea.vmem %s3, 24
      %v2512 = vld [vmem:[%s2511] sm:$0xf]
      %v2514 = vsel %vm707, %v572, 0
      %v2517 = vsel %vm707, %v573, 0
      %v2520 = vsel %vm772, %v2512, 0
      %2522 = vmatprep.subr.mxu0 0.0
      %2523 = vmatpush1.msra.mxu0 %v2520
      %2524 = vmatprep.subr.mxu0 0.0
      %2525 = vmatpush1.msra.mxu0 0.0
      %2526 = vmatprep.subr.mxu0 0.0
      %2527 = vmatpush1.msra.mxu0 0.0
      %2528 = vmatprep.subr.mxu0 0.0
      %2529 = vmatpush1.msra.mxu0 0.0
      %2530 = vmatprep.subr.mxu0 0.0
      %2531 = vmatpush1.msra.mxu0 0.0
      %2532 = vmatprep.subr.mxu0 0.0
      %2533 = vmatpush1.msra.mxu0 0.0
      %2534 = vmatprep.subr.mxu0 0.0
      %2535 = vmatpush1.msra.mxu0 0.0
      %2536 = vmatprep.subr.mxu0 0.0
      %2537 = vmatpush1.msra.mxu0 0.0
      %2538 = vmatprep.subr.mxu0 0.0
      %2539 = vmatpush1.msra.mxu0 0.0
      %2540 = vmatprep.subr.mxu0 0.0
      %2541 = vmatpush1.msra.mxu0 0.0
      %2542 = vmatprep.subr.mxu0 0.0
      %2543 = vmatpush1.msra.mxu0 0.0
      %2544 = vmatprep.subr.mxu0 0.0
      %2545 = vmatpush1.msra.mxu0 0.0
      %2546 = vmatprep.subr.mxu0 0.0
      %2547 = vmatpush1.msra.mxu0 0.0
      %2548 = vmatprep.subr.mxu0 0.0
      %2549 = vmatpush1.msra.mxu0 0.0
      %2550 = vmatprep.subr.mxu0 0.0
      %2551 = vmatpush1.msra.mxu0 0.0
      %2552 = vmatprep.subr.mxu0 0.0
      %2553 = vmatpush1.msra.mxu0 0.0
      %2554 = vmatprep.subr.mxu0 0.0
      %2555 = vmatpush1.msra.mxu0 0.0
      %2556 = vmatprep.subr.mxu0 0.0
      %2557 = vmatpush1.msra.mxu0 0.0
      %2558 = vmatprep.subr.mxu0 0.0
      %2559 = vmatpush1.msra.mxu0 0.0
      %2560 = vmatprep.subr.mxu0 0.0
      %2561 = vmatpush1.msra.mxu0 0.0
      %2562 = vmatprep.subr.mxu0 0.0
      %2563 = vmatpush1.msra.mxu0 0.0
      %2564 = vmatprep.subr.mxu0 0.0
      %2565 = vmatpush1.msra.mxu0 0.0
      %2566 = vmatprep.subr.mxu0 0.0
      %2567 = vmatpush1.msra.mxu0 0.0
      %2568 = vmatprep.subr.mxu0 0.0
      %2569 = vmatpush1.msra.mxu0 0.0
      %2570 = vmatprep.subr.mxu0 0.0
      %2571 = vmatpush1.msra.mxu0 0.0
      %2572 = vmatprep.subr.mxu0 0.0
      %2573 = vmatpush1.msra.mxu0 0.0
      %2574 = vmatprep.subr.mxu0 0.0
      %2575 = vmatpush1.msra.mxu0 0.0
      %2576 = vmatprep.subr.mxu0 0.0
      %2577 = vmatpush1.msra.mxu0 0.0
      %2578 = vmatprep.subr.mxu0 0.0
      %2579 = vmatpush1.msra.mxu0 0.0
      %2580 = vmatprep.subr.mxu0 0.0
      %2581 = vmatpush1.msra.mxu0 0.0
      %2582 = vmatprep.subr.mxu0 0.0
      %2583 = vmatpush1.msra.mxu0 0.0
      %2584 = vmatprep.subr.mxu0 0.0
      %2585 = vmatpush1.msra.mxu0 0.0
      %2586 = vmatprep.mubr.f32.mxu0 0.0
      %2587 = vmatmul.mubr.f32.gmra.mrb[0].mxu0 %v1009
      %v2588 = vpop.f32.mrb[0].mxu0
      %v2589 = vadd.f32 0.0, %v2588
      %v2590 = vpop.f32.mrb[0].mxu0
      %2591 = vmatprep.mubr.f32.mxu0 0.0
      %2592 = vmatmul.mubr.f32.gmra.mrb[0].mxu0 %v1011
      %v2593 = vpop.f32.mrb[0].mxu0
      %v2594 = vadd.f32 0.0, %v2593
      %v2595 = vpop.f32.mrb[0].mxu0
      %2596 = vmatprep.mubr.f32.mxu0 0.0
      %2597 = vmatmul.mubr.f32.gmra.mrb[0].mxu0 %v1013
      %v2598 = vpop.f32.mrb[0].mxu0
      %v2599 = vadd.f32 0.0, %v2598
      %v2600 = vpop.f32.mrb[0].mxu0
      %2601 = vmatprep.mubr.f32.mxu0 0.0
      %2602 = vmatmul.mubr.f32.gmra.mrb[0].mxu0 %v1015
      %v2603 = vpop.f32.mrb[0].mxu0
      %v2604 = vadd.f32 0.0, %v2603
      %v2605 = vpop.f32.mrb[0].mxu0
      %2606 = vmatprep.mubr.f32.mxu0 0.0
      %2607 = vmatmul.mubr.f32.gmra.mrb[0].mxu0 %v1017
      %v2608 = vpop.f32.mrb[0].mxu0
      %v2609 = vadd.f32 0.0, %v2608
      %v2610 = vpop.f32.mrb[0].mxu0
      %2611 = vmatprep.mubr.f32.mxu0 0.0
      %2612 = vmatmul.mubr.f32.gmra.mrb[0].mxu0 %v1019
      %v2613 = vpop.f32.mrb[0].mxu0
      %v2614 = vadd.f32 0.0, %v2613
      %v2615 = vpop.f32.mrb[0].mxu0
      %2616 = vmatprep.mubr.f32.mxu0 0.0
      %2617 = vmatmul.mubr.f32.gmra.mrb[0].mxu0 %v1021
      %v2618 = vpop.f32.mrb[0].mxu0
      %v2619 = vadd.f32 0.0, %v2618
      %v2620 = vpop.f32.mrb[0].mxu0
      %2621 = vmatprep.mubr.f32.mxu0 0.0
      %2622 = vmatmul.mubr.f32.gmra.mrb[0].mxu0 %v1023
      %v2623 = vpop.f32.mrb[0].mxu0
      %v2624 = vadd.f32 0.0, %v2623
      %v2625 = vpop.f32.mrb[0].mxu0
      %2626 = vmatprep.mubr.f32.mxu0 0.0
      %2627 = vmatmul.mubr.f32.gmra.mrb[0].mxu0 %v1025
      %v2628 = vpop.f32.mrb[0].mxu0
      %v2629 = vadd.f32 0.0, %v2628
      %v2630 = vpop.f32.mrb[0].mxu0
      %2631 = vmatprep.mubr.f32.mxu0 0.0
      %2632 = vmatmul.mubr.f32.gmra.mrb[0].mxu0 %v1027
      %v2633 = vpop.f32.mrb[0].mxu0
      %v2634 = vadd.f32 0.0, %v2633
      %v2635 = vpop.f32.mrb[0].mxu0
      %2636 = vmatprep.mubr.f32.mxu0 0.0
      %2637 = vmatmul.mubr.f32.gmra.mrb[0].mxu0 %v1029
      %v2638 = vpop.f32.mrb[0].mxu0
      %v2639 = vadd.f32 0.0, %v2638
      %v2640 = vpop.f32.mrb[0].mxu0
      %2641 = vmatprep.mubr.f32.mxu0 0.0
      %2642 = vmatmul.mubr.f32.gmra.mrb[0].mxu0 %v1031
      %v2643 = vpop.f32.mrb[0].mxu0
      %v2644 = vadd.f32 0.0, %v2643
      %v2645 = vpop.f32.mrb[0].mxu0
      %2646 = vmatprep.mubr.f32.mxu0 0.0
      %2647 = vmatmul.mubr.f32.gmra.mrb[0].mxu0 %v1033
      %v2648 = vpop.f32.mrb[0].mxu0
      %v2649 = vadd.f32 0.0, %v2648
      %v2650 = vpop.f32.mrb[0].mxu0
      %2651 = vmatprep.mubr.f32.mxu0 0.0
      %2652 = vmatmul.mubr.f32.gmra.mrb[0].mxu0 %v1035
      %v2653 = vpop.f32.mrb[0].mxu0
      %v2654 = vadd.f32 0.0, %v2653
      %v2655 = vpop.f32.mrb[0].mxu0
      %2656 = vmatprep.mubr.f32.mxu0 0.0
      %2657 = vmatmul.mubr.f32.gmra.mrb[0].mxu0 %v1037
      %v2658 = vpop.f32.mrb[0].mxu0
      %v2659 = vadd.f32 0.0, %v2658
      %v2660 = vpop.f32.mrb[0].mxu0
      %2661 = vmatprep.mubr.f32.mxu0 0.0
      %2662 = vmatmul.mubr.f32.gmra.mrb[0].mxu0 %v1039
      %v2663 = vpop.f32.mrb[0].mxu0
      %v2664 = vadd.f32 0.0, %v2663
      %v2665 = vpop.f32.mrb[0].mxu0
      %2666 = vmatprep.mubr.f32.mxu0 0.0
      %2667 = vmatmul.mubr.f32.gmra.mrb[0].mxu0 %v1041
      %v2668 = vpop.f32.mrb[0].mxu0
      %v2669 = vadd.f32 0.0, %v2668
      %v2670 = vpop.f32.mrb[0].mxu0
      %2671 = vmatprep.mubr.f32.mxu0 0.0
      %2672 = vmatmul.mubr.f32.gmra.mrb[0].mxu0 %v1043
      %v2673 = vpop.f32.mrb[0].mxu0
      %v2674 = vadd.f32 0.0, %v2673
      %v2675 = vpop.f32.mrb[0].mxu0
      %2676 = vmatprep.mubr.f32.mxu0 0.0
      %2677 = vmatmul.mubr.f32.gmra.mrb[0].mxu0 %v1045
      %v2678 = vpop.f32.mrb[0].mxu0
      %v2679 = vadd.f32 0.0, %v2678
      %v2680 = vpop.f32.mrb[0].mxu0
      %2681 = vmatprep.mubr.f32.mxu0 0.0
      %2682 = vmatmul.mubr.f32.gmra.mrb[0].mxu0 %v1047
      %v2683 = vpop.f32.mrb[0].mxu0
      %v2684 = vadd.f32 0.0, %v2683
      %v2685 = vpop.f32.mrb[0].mxu0
      %2686 = vmatprep.mubr.f32.mxu0 0.0
      %2687 = vmatmul.mubr.f32.gmra.mrb[0].mxu0 %v1049
      %v2688 = vpop.f32.mrb[0].mxu0
      %v2689 = vadd.f32 0.0, %v2688
      %v2690 = vpop.f32.mrb[0].mxu0
      %2691 = vmatprep.mubr.f32.mxu0 0.0
      %2692 = vmatmul.mubr.f32.gmra.mrb[0].mxu0 %v1051
      %v2693 = vpop.f32.mrb[0].mxu0
      %v2694 = vadd.f32 0.0, %v2693
      %v2695 = vpop.f32.mrb[0].mxu0
      %2696 = vmatprep.mubr.f32.mxu0 0.0
      %2697 = vmatmul.mubr.f32.gmra.mrb[0].mxu0 %v1053
      %v2698 = vpop.f32.mrb[0].mxu0
      %v2699 = vadd.f32 0.0, %v2698
      %v2700 = vpop.f32.mrb[0].mxu0
      %2701 = vmatprep.mubr.f32.mxu0 0.0
      %2702 = vmatmul.mubr.f32.gmra.mrb[0].mxu0 %v1055
      %v2703 = vpop.f32.mrb[0].mxu0
      %v2704 = vadd.f32 0.0, %v2703
      %v2705 = vpop.f32.mrb[0].mxu0
      %2706 = vmatprep.mubr.f32.mxu0 0.0
      %2707 = vmatmul.mubr.f32.gmra.mrb[0].mxu0 %v1057
      %v2708 = vpop.f32.mrb[0].mxu0
      %v2709 = vadd.f32 0.0, %v2708
      %v2710 = vpop.f32.mrb[0].mxu0
      %2711 = vmatprep.mubr.f32.mxu0 0.0
      %2712 = vmatmul.mubr.f32.gmra.mrb[0].mxu0 %v1059
      %v2713 = vpop.f32.mrb[0].mxu0
      %v2714 = vadd.f32 0.0, %v2713
      %v2715 = vpop.f32.mrb[0].mxu0
      %2716 = vmatprep.mubr.f32.mxu0 0.0
      %2717 = vmatmul.mubr.f32.gmra.mrb[0].mxu0 %v1061
      %v2718 = vpop.f32.mrb[0].mxu0
      %v2719 = vadd.f32 0.0, %v2718
      %v2720 = vpop.f32.mrb[0].mxu0
      %2721 = vmatprep.mubr.f32.mxu0 0.0
      %2722 = vmatmul.mubr.f32.gmra.mrb[0].mxu0 %v1063
      %v2723 = vpop.f32.mrb[0].mxu0
      %v2724 = vadd.f32 0.0, %v2723
      %v2725 = vpop.f32.mrb[0].mxu0
      %2726 = vmatprep.mubr.f32.mxu0 0.0
      %2727 = vmatmul.mubr.f32.gmra.mrb[0].mxu0 %v1703
      %v2728 = vpop.f32.mrb[0].mxu0
      %v2729 = vadd.f32 0.0, %v2728
      %v2730 = vpop.f32.mrb[0].mxu0
      %2731 = vmatprep.mubr.f32.mxu0 0.0
      %2732 = vmatmul.mubr.f32.gmra.mrb[0].mxu0 %v1706
      %v2733 = vpop.f32.mrb[0].mxu0
      %v2734 = vadd.f32 0.0, %v2733
      %v2735 = vpop.f32.mrb[0].mxu0
      %2736 = vmatprep.mubr.f32.mxu0 0.0
      %2737 = vmatmul.mubr.f32.gmra.mrb[0].mxu0 %v2514
      %v2738 = vpop.f32.mrb[0].mxu0
      %v2739 = vadd.f32 0.0, %v2738
      %v2740 = vpop.f32.mrb[0].mxu0
      %2741 = vmatprep.mubr.f32.mxu0 0.0
      %2742 = vmatmul.mubr.f32.gmra.mrb[0].mxu0 %v2517
      %v2743 = vpop.f32.mrb[0].mxu0
      %v2744 = vadd.f32 0.0, %v2743
      %v2745 = vpop.f32.mrb[0].mxu0
      %2746 = vdwg.mxu0
      %v2747 = vadd.f32 %v2479, %v2589
      %v2748 = vadd.f32 %v2480, %v2594
      %v2749 = vadd.f32 %v2481, %v2599
      %v2750 = vadd.f32 %v2482, %v2604
      %v2751 = vadd.f32 %v2483, %v2609
      %v2752 = vadd.f32 %v2484, %v2614
      %v2753 = vadd.f32 %v2485, %v2619
      %v2754 = vadd.f32 %v2486, %v2624
      %v2755 = vadd.f32 %v2487, %v2629
      %v2756 = vadd.f32 %v2488, %v2634
      %v2757 = vadd.f32 %v2489, %v2639
      %v2758 = vadd.f32 %v2490, %v2644
      %v2759 = vadd.f32 %v2491, %v2649
      %v2760 = vadd.f32 %v2492, %v2654
      %v2761 = vadd.f32 %v2493, %v2659
      %v2762 = vadd.f32 %v2494, %v2664
      %v2763 = vadd.f32 %v2495, %v2669
      %v2764 = vadd.f32 %v2496, %v2674
      %v2765 = vadd.f32 %v2497, %v2679
      %v2766 = vadd.f32 %v2498, %v2684
      %v2767 = vadd.f32 %v2499, %v2689
      %v2768 = vadd.f32 %v2500, %v2694
      %v2769 = vadd.f32 %v2501, %v2699
      %v2770 = vadd.f32 %v2502, %v2704
      %v2771 = vadd.f32 %v2503, %v2709
      %v2772 = vadd.f32 %v2504, %v2714
      %v2773 = vadd.f32 %v2505, %v2719
      %v2774 = vadd.f32 %v2506, %v2724
      %v2775 = vadd.f32 %v2507, %v2729
      %v2776 = vadd.f32 %v2508, %v2734
      %v2777 = vadd.f32 %v2509, %v2739
      %v2778 = vadd.f32 %v2510, %v2744
      %v2780 = vrot.slane %v572, 1
      %v2781 = vrot.slane %v573, 1
      %v2782 = vsel %vm624, %v2780, %v2781
      %v2783 = vrot.slane %v574, 1
      %v2784 = vsel %vm624, %v2781, %v2783
      %s2785 = scalar_lea.vmem %s3, 28
      %v2786 = vld [vmem:[%s2785] sm:$0xf]
      %v2787 = vsel %vm707, %v2782, 0
      %v2789 = vsel %vm707, %v2784, 0
      %v2792 = vsel %vm772, %v2786, 0
      %2794 = vmatprep.subr.mxu0 0.0
      %2795 = vmatpush1.msra.mxu0 %v2792
      %2796 = vmatprep.subr.mxu0 0.0
      %2797 = vmatpush1.msra.mxu0 0.0
      %2798 = vmatprep.subr.mxu0 0.0
      %2799 = vmatpush1.msra.mxu0 0.0
      %2800 = vmatprep.subr.mxu0 0.0
      %2801 = vmatpush1.msra.mxu0 0.0
      %2802 = vmatprep.subr.mxu0 0.0
      %2803 = vmatpush1.msra.mxu0 0.0
      %2804 = vmatprep.subr.mxu0 0.0
      %2805 = vmatpush1.msra.mxu0 0.0
      %2806 = vmatprep.subr.mxu0 0.0
      %2807 = vmatpush1.msra.mxu0 0.0
      %2808 = vmatprep.subr.mxu0 0.0
      %2809 = vmatpush1.msra.mxu0 0.0
      %2810 = vmatprep.subr.mxu0 0.0
      %2811 = vmatpush1.msra.mxu0 0.0
      %2812 = vmatprep.subr.mxu0 0.0
      %2813 = vmatpush1.msra.mxu0 0.0
      %2814 = vmatprep.subr.mxu0 0.0
      %2815 = vmatpush1.msra.mxu0 0.0
      %2816 = vmatprep.subr.mxu0 0.0
      %2817 = vmatpush1.msra.mxu0 0.0
      %2818 = vmatprep.subr.mxu0 0.0
      %2819 = vmatpush1.msra.mxu0 0.0
      %2820 = vmatprep.subr.mxu0 0.0
      %2821 = vmatpush1.msra.mxu0 0.0
      %2822 = vmatprep.subr.mxu0 0.0
      %2823 = vmatpush1.msra.mxu0 0.0
      %2824 = vmatprep.subr.mxu0 0.0
      %2825 = vmatpush1.msra.mxu0 0.0
      %2826 = vmatprep.subr.mxu0 0.0
      %2827 = vmatpush1.msra.mxu0 0.0
      %2828 = vmatprep.subr.mxu0 0.0
      %2829 = vmatpush1.msra.mxu0 0.0
      %2830 = vmatprep.subr.mxu0 0.0
      %2831 = vmatpush1.msra.mxu0 0.0
      %2832 = vmatprep.subr.mxu0 0.0
      %2833 = vmatpush1.msra.mxu0 0.0
      %2834 = vmatprep.subr.mxu0 0.0
      %2835 = vmatpush1.msra.mxu0 0.0
      %2836 = vmatprep.subr.mxu0 0.0
      %2837 = vmatpush1.msra.mxu0 0.0
      %2838 = vmatprep.subr.mxu0 0.0
      %2839 = vmatpush1.msra.mxu0 0.0
      %2840 = vmatprep.subr.mxu0 0.0
      %2841 = vmatpush1.msra.mxu0 0.0
      %2842 = vmatprep.subr.mxu0 0.0
      %2843 = vmatpush1.msra.mxu0 0.0
      %2844 = vmatprep.subr.mxu0 0.0
      %2845 = vmatpush1.msra.mxu0 0.0
      %2846 = vmatprep.subr.mxu0 0.0
      %2847 = vmatpush1.msra.mxu0 0.0
      %2848 = vmatprep.subr.mxu0 0.0
      %2849 = vmatpush1.msra.mxu0 0.0
      %2850 = vmatprep.subr.mxu0 0.0
      %2851 = vmatpush1.msra.mxu0 0.0
      %2852 = vmatprep.subr.mxu0 0.0
      %2853 = vmatpush1.msra.mxu0 0.0
      %2854 = vmatprep.subr.mxu0 0.0
      %2855 = vmatpush1.msra.mxu0 0.0
      %2856 = vmatprep.subr.mxu0 0.0
      %2857 = vmatpush1.msra.mxu0 0.0
      %2858 = vmatprep.mubr.f32.mxu0 0.0
      %2859 = vmatmul.mubr.f32.gmra.mrb[0].mxu0 %v716
      %v2860 = vpop.f32.mrb[0].mxu0
      %v2861 = vadd.f32 0.0, %v2860
      %v2862 = vpop.f32.mrb[0].mxu0
      %2863 = vmatprep.mubr.f32.mxu0 0.0
      %2864 = vmatmul.mubr.f32.gmra.mrb[0].mxu0 %v718
      %v2865 = vpop.f32.mrb[0].mxu0
      %v2866 = vadd.f32 0.0, %v2865
      %v2867 = vpop.f32.mrb[0].mxu0
      %2868 = vmatprep.mubr.f32.mxu0 0.0
      %2869 = vmatmul.mubr.f32.gmra.mrb[0].mxu0 %v720
      %v2870 = vpop.f32.mrb[0].mxu0
      %v2871 = vadd.f32 0.0, %v2870
      %v2872 = vpop.f32.mrb[0].mxu0
      %2873 = vmatprep.mubr.f32.mxu0 0.0
      %2874 = vmatmul.mubr.f32.gmra.mrb[0].mxu0 %v722
      %v2875 = vpop.f32.mrb[0].mxu0
      %v2876 = vadd.f32 0.0, %v2875
      %v2877 = vpop.f32.mrb[0].mxu0
      %2878 = vmatprep.mubr.f32.mxu0 0.0
      %2879 = vmatmul.mubr.f32.gmra.mrb[0].mxu0 %v724
      %v2880 = vpop.f32.mrb[0].mxu0
      %v2881 = vadd.f32 0.0, %v2880
      %v2882 = vpop.f32.mrb[0].mxu0
      %2883 = vmatprep.mubr.f32.mxu0 0.0
      %2884 = vmatmul.mubr.f32.gmra.mrb[0].mxu0 %v726
      %v2885 = vpop.f32.mrb[0].mxu0
      %v2886 = vadd.f32 0.0, %v2885
      %v2887 = vpop.f32.mrb[0].mxu0
      %2888 = vmatprep.mubr.f32.mxu0 0.0
      %2889 = vmatmul.mubr.f32.gmra.mrb[0].mxu0 %v728
      %v2890 = vpop.f32.mrb[0].mxu0
      %v2891 = vadd.f32 0.0, %v2890
      %v2892 = vpop.f32.mrb[0].mxu0
      %2893 = vmatprep.mubr.f32.mxu0 0.0
      %2894 = vmatmul.mubr.f32.gmra.mrb[0].mxu0 %v730
      %v2895 = vpop.f32.mrb[0].mxu0
      %v2896 = vadd.f32 0.0, %v2895
      %v2897 = vpop.f32.mrb[0].mxu0
      %2898 = vmatprep.mubr.f32.mxu0 0.0
      %2899 = vmatmul.mubr.f32.gmra.mrb[0].mxu0 %v732
      %v2900 = vpop.f32.mrb[0].mxu0
      %v2901 = vadd.f32 0.0, %v2900
      %v2902 = vpop.f32.mrb[0].mxu0
      %2903 = vmatprep.mubr.f32.mxu0 0.0
      %2904 = vmatmul.mubr.f32.gmra.mrb[0].mxu0 %v734
      %v2905 = vpop.f32.mrb[0].mxu0
      %v2906 = vadd.f32 0.0, %v2905
      %v2907 = vpop.f32.mrb[0].mxu0
      %2908 = vmatprep.mubr.f32.mxu0 0.0
      %2909 = vmatmul.mubr.f32.gmra.mrb[0].mxu0 %v736
      %v2910 = vpop.f32.mrb[0].mxu0
      %v2911 = vadd.f32 0.0, %v2910
      %v2912 = vpop.f32.mrb[0].mxu0
      %2913 = vmatprep.mubr.f32.mxu0 0.0
      %2914 = vmatmul.mubr.f32.gmra.mrb[0].mxu0 %v738
      %v2915 = vpop.f32.mrb[0].mxu0
      %v2916 = vadd.f32 0.0, %v2915
      %v2917 = vpop.f32.mrb[0].mxu0
      %2918 = vmatprep.mubr.f32.mxu0 0.0
      %2919 = vmatmul.mubr.f32.gmra.mrb[0].mxu0 %v740
      %v2920 = vpop.f32.mrb[0].mxu0
      %v2921 = vadd.f32 0.0, %v2920
      %v2922 = vpop.f32.mrb[0].mxu0
      %2923 = vmatprep.mubr.f32.mxu0 0.0
      %2924 = vmatmul.mubr.f32.gmra.mrb[0].mxu0 %v742
      %v2925 = vpop.f32.mrb[0].mxu0
      %v2926 = vadd.f32 0.0, %v2925
      %v2927 = vpop.f32.mrb[0].mxu0
      %2928 = vmatprep.mubr.f32.mxu0 0.0
      %2929 = vmatmul.mubr.f32.gmra.mrb[0].mxu0 %v744
      %v2930 = vpop.f32.mrb[0].mxu0
      %v2931 = vadd.f32 0.0, %v2930
      %v2932 = vpop.f32.mrb[0].mxu0
      %2933 = vmatprep.mubr.f32.mxu0 0.0
      %2934 = vmatmul.mubr.f32.gmra.mrb[0].mxu0 %v746
      %v2935 = vpop.f32.mrb[0].mxu0
      %v2936 = vadd.f32 0.0, %v2935
      %v2937 = vpop.f32.mrb[0].mxu0
      %2938 = vmatprep.mubr.f32.mxu0 0.0
      %2939 = vmatmul.mubr.f32.gmra.mrb[0].mxu0 %v748
      %v2940 = vpop.f32.mrb[0].mxu0
      %v2941 = vadd.f32 0.0, %v2940
      %v2942 = vpop.f32.mrb[0].mxu0
      %2943 = vmatprep.mubr.f32.mxu0 0.0
      %2944 = vmatmul.mubr.f32.gmra.mrb[0].mxu0 %v750
      %v2945 = vpop.f32.mrb[0].mxu0
      %v2946 = vadd.f32 0.0, %v2945
      %v2947 = vpop.f32.mrb[0].mxu0
      %2948 = vmatprep.mubr.f32.mxu0 0.0
      %2949 = vmatmul.mubr.f32.gmra.mrb[0].mxu0 %v752
      %v2950 = vpop.f32.mrb[0].mxu0
      %v2951 = vadd.f32 0.0, %v2950
      %v2952 = vpop.f32.mrb[0].mxu0
      %2953 = vmatprep.mubr.f32.mxu0 0.0
      %2954 = vmatmul.mubr.f32.gmra.mrb[0].mxu0 %v754
      %v2955 = vpop.f32.mrb[0].mxu0
      %v2956 = vadd.f32 0.0, %v2955
      %v2957 = vpop.f32.mrb[0].mxu0
      %2958 = vmatprep.mubr.f32.mxu0 0.0
      %2959 = vmatmul.mubr.f32.gmra.mrb[0].mxu0 %v756
      %v2960 = vpop.f32.mrb[0].mxu0
      %v2961 = vadd.f32 0.0, %v2960
      %v2962 = vpop.f32.mrb[0].mxu0
      %2963 = vmatprep.mubr.f32.mxu0 0.0
      %2964 = vmatmul.mubr.f32.gmra.mrb[0].mxu0 %v758
      %v2965 = vpop.f32.mrb[0].mxu0
      %v2966 = vadd.f32 0.0, %v2965
      %v2967 = vpop.f32.mrb[0].mxu0
      %2968 = vmatprep.mubr.f32.mxu0 0.0
      %2969 = vmatmul.mubr.f32.gmra.mrb[0].mxu0 %v760
      %v2970 = vpop.f32.mrb[0].mxu0
      %v2971 = vadd.f32 0.0, %v2970
      %v2972 = vpop.f32.mrb[0].mxu0
      %2973 = vmatprep.mubr.f32.mxu0 0.0
      %2974 = vmatmul.mubr.f32.gmra.mrb[0].mxu0 %v762
      %v2975 = vpop.f32.mrb[0].mxu0
      %v2976 = vadd.f32 0.0, %v2975
      %v2977 = vpop.f32.mrb[0].mxu0
      %2978 = vmatprep.mubr.f32.mxu0 0.0
      %2979 = vmatmul.mubr.f32.gmra.mrb[0].mxu0 %v764
      %v2980 = vpop.f32.mrb[0].mxu0
      %v2981 = vadd.f32 0.0, %v2980
      %v2982 = vpop.f32.mrb[0].mxu0
      %2983 = vmatprep.mubr.f32.mxu0 0.0
      %2984 = vmatmul.mubr.f32.gmra.mrb[0].mxu0 %v766
      %v2985 = vpop.f32.mrb[0].mxu0
      %v2986 = vadd.f32 0.0, %v2985
      %v2987 = vpop.f32.mrb[0].mxu0
      %2988 = vmatprep.mubr.f32.mxu0 0.0
      %2989 = vmatmul.mubr.f32.gmra.mrb[0].mxu0 %v768
      %v2990 = vpop.f32.mrb[0].mxu0
      %v2991 = vadd.f32 0.0, %v2990
      %v2992 = vpop.f32.mrb[0].mxu0
      %2993 = vmatprep.mubr.f32.mxu0 0.0
      %2994 = vmatmul.mubr.f32.gmra.mrb[0].mxu0 %v770
      %v2995 = vpop.f32.mrb[0].mxu0
      %v2996 = vadd.f32 0.0, %v2995
      %v2997 = vpop.f32.mrb[0].mxu0
      %2998 = vmatprep.mubr.f32.mxu0 0.0
      %2999 = vmatmul.mubr.f32.gmra.mrb[0].mxu0 %v1976
      %v3000 = vpop.f32.mrb[0].mxu0
      %v3001 = vadd.f32 0.0, %v3000
      %v3002 = vpop.f32.mrb[0].mxu0
      %3003 = vmatprep.mubr.f32.mxu0 0.0
      %3004 = vmatmul.mubr.f32.gmra.mrb[0].mxu0 %v1978
      %v3005 = vpop.f32.mrb[0].mxu0
      %v3006 = vadd.f32 0.0, %v3005
      %v3007 = vpop.f32.mrb[0].mxu0
      %3008 = vmatprep.mubr.f32.mxu0 0.0
      %3009 = vmatmul.mubr.f32.gmra.mrb[0].mxu0 %v2787
      %v3010 = vpop.f32.mrb[0].mxu0
      %v3011 = vadd.f32 0.0, %v3010
      %v3012 = vpop.f32.mrb[0].mxu0
      %3013 = vmatprep.mubr.f32.mxu0 0.0
      %3014 = vmatmul.mubr.f32.gmra.mrb[0].mxu0 %v2789
      %v3015 = vpop.f32.mrb[0].mxu0
      %v3016 = vadd.f32 0.0, %v3015
      %v3017 = vpop.f32.mrb[0].mxu0
      %3018 = vdwg.mxu0
      %v3019 = vadd.f32 %v2747, %v2861
      %v3020 = vadd.f32 %v2748, %v2866
      %v3021 = vadd.f32 %v2749, %v2871
      %v3022 = vadd.f32 %v2750, %v2876
      %v3023 = vadd.f32 %v2751, %v2881
      %v3024 = vadd.f32 %v2752, %v2886
      %v3025 = vadd.f32 %v2753, %v2891
      %v3026 = vadd.f32 %v2754, %v2896
      %v3027 = vadd.f32 %v2755, %v2901
      %v3028 = vadd.f32 %v2756, %v2906
      %v3029 = vadd.f32 %v2757, %v2911
      %v3030 = vadd.f32 %v2758, %v2916
      %v3031 = vadd.f32 %v2759, %v2921
      %v3032 = vadd.f32 %v2760, %v2926
      %v3033 = vadd.f32 %v2761, %v2931
      %v3034 = vadd.f32 %v2762, %v2936
      %v3035 = vadd.f32 %v2763, %v2941
      %v3036 = vadd.f32 %v2764, %v2946
      %v3037 = vadd.f32 %v2765, %v2951
      %v3038 = vadd.f32 %v2766, %v2956
      %v3039 = vadd.f32 %v2767, %v2961
      %v3040 = vadd.f32 %v2768, %v2966
      %v3041 = vadd.f32 %v2769, %v2971
      %v3042 = vadd.f32 %v2770, %v2976
      %v3043 = vadd.f32 %v2771, %v2981
      %v3044 = vadd.f32 %v2772, %v2986
      %v3045 = vadd.f32 %v2773, %v2991
      %v3046 = vadd.f32 %v2774, %v2996
      %v3047 = vadd.f32 %v2775, %v3001
      %v3048 = vadd.f32 %v2776, %v3006
      %v3049 = vadd.f32 %v2777, %v3011
      %v3050 = vadd.f32 %v2778, %v3016
      %v3051 = vrot.slane %v572, 2
      %v3052 = vrot.slane %v573, 2
      %v3053 = vsel %vm1293, %v3051, %v3052
      %v3054 = vrot.slane %v574, 2
      %v3055 = vsel %vm1293, %v3052, %v3054
      %s3056 = scalar_lea.vmem %s3, 32
      %v3057 = vld [vmem:[%s3056] sm:$0xf]
      %v3058 = vsel %vm707, %v3053, 0
      %v3060 = vsel %vm707, %v3055, 0
      %v3063 = vsel %vm772, %v3057, 0
      %3065 = vmatprep.subr.mxu0 0.0
      %3066 = vmatpush1.msra.mxu0 %v3063
      %3067 = vmatprep.subr.mxu0 0.0
      %3068 = vmatpush1.msra.mxu0 0.0
      %3069 = vmatprep.subr.mxu0 0.0
      %3070 = vmatpush1.msra.mxu0 0.0
      %3071 = vmatprep.subr.mxu0 0.0
      %3072 = vmatpush1.msra.mxu0 0.0
      %3073 = vmatprep.subr.mxu0 0.0
      %3074 = vmatpush1.msra.mxu0 0.0
      %3075 = vmatprep.subr.mxu0 0.0
      %3076 = vmatpush1.msra.mxu0 0.0
      %3077 = vmatprep.subr.mxu0 0.0
      %3078 = vmatpush1.msra.mxu0 0.0
      %3079 = vmatprep.subr.mxu0 0.0
      %3080 = vmatpush1.msra.mxu0 0.0
      %3081 = vmatprep.subr.mxu0 0.0
      %3082 = vmatpush1.msra.mxu0 0.0
      %3083 = vmatprep.subr.mxu0 0.0
      %3084 = vmatpush1.msra.mxu0 0.0
      %3085 = vmatprep.subr.mxu0 0.0
      %3086 = vmatpush1.msra.mxu0 0.0
      %3087 = vmatprep.subr.mxu0 0.0
      %3088 = vmatpush1.msra.mxu0 0.0
      %3089 = vmatprep.subr.mxu0 0.0
      %3090 = vmatpush1.msra.mxu0 0.0
      %3091 = vmatprep.subr.mxu0 0.0
      %3092 = vmatpush1.msra.mxu0 0.0
      %3093 = vmatprep.subr.mxu0 0.0
      %3094 = vmatpush1.msra.mxu0 0.0
      %3095 = vmatprep.subr.mxu0 0.0
      %3096 = vmatpush1.msra.mxu0 0.0
      %3097 = vmatprep.subr.mxu0 0.0
      %3098 = vmatpush1.msra.mxu0 0.0
      %3099 = vmatprep.subr.mxu0 0.0
      %3100 = vmatpush1.msra.mxu0 0.0
      %3101 = vmatprep.subr.mxu0 0.0
      %3102 = vmatpush1.msra.mxu0 0.0
      %3103 = vmatprep.subr.mxu0 0.0
      %3104 = vmatpush1.msra.mxu0 0.0
      %3105 = vmatprep.subr.mxu0 0.0
      %3106 = vmatpush1.msra.mxu0 0.0
      %3107 = vmatprep.subr.mxu0 0.0
      %3108 = vmatpush1.msra.mxu0 0.0
      %3109 = vmatprep.subr.mxu0 0.0
      %3110 = vmatpush1.msra.mxu0 0.0
      %3111 = vmatprep.subr.mxu0 0.0
      %3112 = vmatpush1.msra.mxu0 0.0
      %3113 = vmatprep.subr.mxu0 0.0
      %3114 = vmatpush1.msra.mxu0 0.0
      %3115 = vmatprep.subr.mxu0 0.0
      %3116 = vmatpush1.msra.mxu0 0.0
      %3117 = vmatprep.subr.mxu0 0.0
      %3118 = vmatpush1.msra.mxu0 0.0
      %3119 = vmatprep.subr.mxu0 0.0
      %3120 = vmatpush1.msra.mxu0 0.0
      %3121 = vmatprep.subr.mxu0 0.0
      %3122 = vmatpush1.msra.mxu0 0.0
      %3123 = vmatprep.subr.mxu0 0.0
      %3124 = vmatpush1.msra.mxu0 0.0
      %3125 = vmatprep.subr.mxu0 0.0
      %3126 = vmatpush1.msra.mxu0 0.0
      %3127 = vmatprep.subr.mxu0 0.0
      %3128 = vmatpush1.msra.mxu0 0.0
      %3129 = vmatprep.mubr.f32.mxu0 0.0
      %3130 = vmatmul.mubr.f32.gmra.mrb[0].mxu0 %v1384
      %v3131 = vpop.f32.mrb[0].mxu0
      %v3132 = vadd.f32 0.0, %v3131
      %v3133 = vpop.f32.mrb[0].mxu0
      %3134 = vmatprep.mubr.f32.mxu0 0.0
      %3135 = vmatmul.mubr.f32.gmra.mrb[0].mxu0 %v1386
      %v3136 = vpop.f32.mrb[0].mxu0
      %v3137 = vadd.f32 0.0, %v3136
      %v3138 = vpop.f32.mrb[0].mxu0
      %3139 = vmatprep.mubr.f32.mxu0 0.0
      %3140 = vmatmul.mubr.f32.gmra.mrb[0].mxu0 %v1388
      %v3141 = vpop.f32.mrb[0].mxu0
      %v3142 = vadd.f32 0.0, %v3141
      %v3143 = vpop.f32.mrb[0].mxu0
      %3144 = vmatprep.mubr.f32.mxu0 0.0
      %3145 = vmatmul.mubr.f32.gmra.mrb[0].mxu0 %v1390
      %v3146 = vpop.f32.mrb[0].mxu0
      %v3147 = vadd.f32 0.0, %v3146
      %v3148 = vpop.f32.mrb[0].mxu0
      %3149 = vmatprep.mubr.f32.mxu0 0.0
      %3150 = vmatmul.mubr.f32.gmra.mrb[0].mxu0 %v1392
      %v3151 = vpop.f32.mrb[0].mxu0
      %v3152 = vadd.f32 0.0, %v3151
      %v3153 = vpop.f32.mrb[0].mxu0
      %3154 = vmatprep.mubr.f32.mxu0 0.0
      %3155 = vmatmul.mubr.f32.gmra.mrb[0].mxu0 %v1394
      %v3156 = vpop.f32.mrb[0].mxu0
      %v3157 = vadd.f32 0.0, %v3156
      %v3158 = vpop.f32.mrb[0].mxu0
      %3159 = vmatprep.mubr.f32.mxu0 0.0
      %3160 = vmatmul.mubr.f32.gmra.mrb[0].mxu0 %v1396
      %v3161 = vpop.f32.mrb[0].mxu0
      %v3162 = vadd.f32 0.0, %v3161
      %v3163 = vpop.f32.mrb[0].mxu0
      %3164 = vmatprep.mubr.f32.mxu0 0.0
      %3165 = vmatmul.mubr.f32.gmra.mrb[0].mxu0 %v1398
      %v3166 = vpop.f32.mrb[0].mxu0
      %v3167 = vadd.f32 0.0, %v3166
      %v3168 = vpop.f32.mrb[0].mxu0
      %3169 = vmatprep.mubr.f32.mxu0 0.0
      %3170 = vmatmul.mubr.f32.gmra.mrb[0].mxu0 %v1400
      %v3171 = vpop.f32.mrb[0].mxu0
      %v3172 = vadd.f32 0.0, %v3171
      %v3173 = vpop.f32.mrb[0].mxu0
      %3174 = vmatprep.mubr.f32.mxu0 0.0
      %3175 = vmatmul.mubr.f32.gmra.mrb[0].mxu0 %v1402
      %v3176 = vpop.f32.mrb[0].mxu0
      %v3177 = vadd.f32 0.0, %v3176
      %v3178 = vpop.f32.mrb[0].mxu0
      %3179 = vmatprep.mubr.f32.mxu0 0.0
      %3180 = vmatmul.mubr.f32.gmra.mrb[0].mxu0 %v1404
      %v3181 = vpop.f32.mrb[0].mxu0
      %v3182 = vadd.f32 0.0, %v3181
      %v3183 = vpop.f32.mrb[0].mxu0
      %3184 = vmatprep.mubr.f32.mxu0 0.0
      %3185 = vmatmul.mubr.f32.gmra.mrb[0].mxu0 %v1406
      %v3186 = vpop.f32.mrb[0].mxu0
      %v3187 = vadd.f32 0.0, %v3186
      %v3188 = vpop.f32.mrb[0].mxu0
      %3189 = vmatprep.mubr.f32.mxu0 0.0
      %3190 = vmatmul.mubr.f32.gmra.mrb[0].mxu0 %v1408
      %v3191 = vpop.f32.mrb[0].mxu0
      %v3192 = vadd.f32 0.0, %v3191
      %v3193 = vpop.f32.mrb[0].mxu0
      %3194 = vmatprep.mubr.f32.mxu0 0.0
      %3195 = vmatmul.mubr.f32.gmra.mrb[0].mxu0 %v1410
      %v3196 = vpop.f32.mrb[0].mxu0
      %v3197 = vadd.f32 0.0, %v3196
      %v3198 = vpop.f32.mrb[0].mxu0
      %3199 = vmatprep.mubr.f32.mxu0 0.0
      %3200 = vmatmul.mubr.f32.gmra.mrb[0].mxu0 %v1412
      %v3201 = vpop.f32.mrb[0].mxu0
      %v3202 = vadd.f32 0.0, %v3201
      %v3203 = vpop.f32.mrb[0].mxu0
      %3204 = vmatprep.mubr.f32.mxu0 0.0
      %3205 = vmatmul.mubr.f32.gmra.mrb[0].mxu0 %v1414
      %v3206 = vpop.f32.mrb[0].mxu0
      %v3207 = vadd.f32 0.0, %v3206
      %v3208 = vpop.f32.mrb[0].mxu0
      %3209 = vmatprep.mubr.f32.mxu0 0.0
      %3210 = vmatmul.mubr.f32.gmra.mrb[0].mxu0 %v1416
      %v3211 = vpop.f32.mrb[0].mxu0
      %v3212 = vadd.f32 0.0, %v3211
      %v3213 = vpop.f32.mrb[0].mxu0
      %3214 = vmatprep.mubr.f32.mxu0 0.0
      %3215 = vmatmul.mubr.f32.gmra.mrb[0].mxu0 %v1418
      %v3216 = vpop.f32.mrb[0].mxu0
      %v3217 = vadd.f32 0.0, %v3216
      %v3218 = vpop.f32.mrb[0].mxu0
      %3219 = vmatprep.mubr.f32.mxu0 0.0
      %3220 = vmatmul.mubr.f32.gmra.mrb[0].mxu0 %v1420
      %v3221 = vpop.f32.mrb[0].mxu0
      %v3222 = vadd.f32 0.0, %v3221
      %v3223 = vpop.f32.mrb[0].mxu0
      %3224 = vmatprep.mubr.f32.mxu0 0.0
      %3225 = vmatmul.mubr.f32.gmra.mrb[0].mxu0 %v1422
      %v3226 = vpop.f32.mrb[0].mxu0
      %v3227 = vadd.f32 0.0, %v3226
      %v3228 = vpop.f32.mrb[0].mxu0
      %3229 = vmatprep.mubr.f32.mxu0 0.0
      %3230 = vmatmul.mubr.f32.gmra.mrb[0].mxu0 %v1424
      %v3231 = vpop.f32.mrb[0].mxu0
      %v3232 = vadd.f32 0.0, %v3231
      %v3233 = vpop.f32.mrb[0].mxu0
      %3234 = vmatprep.mubr.f32.mxu0 0.0
      %3235 = vmatmul.mubr.f32.gmra.mrb[0].mxu0 %v1426
      %v3236 = vpop.f32.mrb[0].mxu0
      %v3237 = vadd.f32 0.0, %v3236
      %v3238 = vpop.f32.mrb[0].mxu0
      %3239 = vmatprep.mubr.f32.mxu0 0.0
      %3240 = vmatmul.mubr.f32.gmra.mrb[0].mxu0 %v1428
      %v3241 = vpop.f32.mrb[0].mxu0
      %v3242 = vadd.f32 0.0, %v3241
      %v3243 = vpop.f32.mrb[0].mxu0
      %3244 = vmatprep.mubr.f32.mxu0 0.0
      %3245 = vmatmul.mubr.f32.gmra.mrb[0].mxu0 %v1430
      %v3246 = vpop.f32.mrb[0].mxu0
      %v3247 = vadd.f32 0.0, %v3246
      %v3248 = vpop.f32.mrb[0].mxu0
      %3249 = vmatprep.mubr.f32.mxu0 0.0
      %3250 = vmatmul.mubr.f32.gmra.mrb[0].mxu0 %v1432
      %v3251 = vpop.f32.mrb[0].mxu0
      %v3252 = vadd.f32 0.0, %v3251
      %v3253 = vpop.f32.mrb[0].mxu0
      %3254 = vmatprep.mubr.f32.mxu0 0.0
      %3255 = vmatmul.mubr.f32.gmra.mrb[0].mxu0 %v1434
      %v3256 = vpop.f32.mrb[0].mxu0
      %v3257 = vadd.f32 0.0, %v3256
      %v3258 = vpop.f32.mrb[0].mxu0
      %3259 = vmatprep.mubr.f32.mxu0 0.0
      %3260 = vmatmul.mubr.f32.gmra.mrb[0].mxu0 %v1436
      %v3261 = vpop.f32.mrb[0].mxu0
      %v3262 = vadd.f32 0.0, %v3261
      %v3263 = vpop.f32.mrb[0].mxu0
      %3264 = vmatprep.mubr.f32.mxu0 0.0
      %3265 = vmatmul.mubr.f32.gmra.mrb[0].mxu0 %v1438
      %v3266 = vpop.f32.mrb[0].mxu0
      %v3267 = vadd.f32 0.0, %v3266
      %v3268 = vpop.f32.mrb[0].mxu0
      %3269 = vmatprep.mubr.f32.mxu0 0.0
      %3270 = vmatmul.mubr.f32.gmra.mrb[0].mxu0 %v2247
      %v3271 = vpop.f32.mrb[0].mxu0
      %v3272 = vadd.f32 0.0, %v3271
      %v3273 = vpop.f32.mrb[0].mxu0
      %3274 = vmatprep.mubr.f32.mxu0 0.0
      %3275 = vmatmul.mubr.f32.gmra.mrb[0].mxu0 %v2249
      %v3276 = vpop.f32.mrb[0].mxu0
      %v3277 = vadd.f32 0.0, %v3276
      %v3278 = vpop.f32.mrb[0].mxu0
      %3279 = vmatprep.mubr.f32.mxu0 0.0
      %3280 = vmatmul.mubr.f32.gmra.mrb[0].mxu0 %v3058
      %v3281 = vpop.f32.mrb[0].mxu0
      %v3282 = vadd.f32 0.0, %v3281
      %v3283 = vpop.f32.mrb[0].mxu0
      %3284 = vmatprep.mubr.f32.mxu0 0.0
      %3285 = vmatmul.mubr.f32.gmra.mrb[0].mxu0 %v3060
      %v3286 = vpop.f32.mrb[0].mxu0
      %v3287 = vadd.f32 0.0, %v3286
      %v3288 = vpop.f32.mrb[0].mxu0
      %3289 = vdwg.mxu0
      %v3290 = vadd.f32 %v3019, %v3132
      %v3291 = vadd.f32 %v3020, %v3137
      %v3292 = vadd.f32 %v3021, %v3142
      %v3293 = vadd.f32 %v3022, %v3147
      %v3294 = vadd.f32 %v3023, %v3152
      %v3295 = vadd.f32 %v3024, %v3157
      %v3296 = vadd.f32 %v3025, %v3162
      %v3297 = vadd.f32 %v3026, %v3167
      %v3298 = vadd.f32 %v3027, %v3172
      %v3299 = vadd.f32 %v3028, %v3177
      %v3300 = vadd.f32 %v3029, %v3182
      %v3301 = vadd.f32 %v3030, %v3187
      %v3302 = vadd.f32 %v3031, %v3192
      %v3303 = vadd.f32 %v3032, %v3197
      %v3304 = vadd.f32 %v3033, %v3202
      %v3305 = vadd.f32 %v3034, %v3207
      %v3306 = vadd.f32 %v3035, %v3212
      %v3307 = vadd.f32 %v3036, %v3217
      %v3308 = vadd.f32 %v3037, %v3222
      %v3309 = vadd.f32 %v3038, %v3227
      %v3310 = vadd.f32 %v3039, %v3232
      %v3311 = vadd.f32 %v3040, %v3237
      %v3312 = vadd.f32 %v3041, %v3242
      %v3313 = vadd.f32 %v3042, %v3247
      %v3314 = vadd.f32 %v3043, %v3252
      %v3315 = vadd.f32 %v3044, %v3257
      %v3316 = vadd.f32 %v3045, %v3262
      %v3317 = vadd.f32 %v3046, %v3267
      %v3318 = vadd.f32 %v3047, %v3272
      %v3319 = vadd.f32 %v3048, %v3277
      %v3320 = vadd.f32 %v3049, %v3282
      %v3321 = vadd.f32 %v3050, %v3287
      %v3322 = vsel %vm707, %v3290, 0.0
      %v3323 = vsel %vm707, %v3291, 0.0
      %v3324 = vadd.f32 %v3322, %v3323
      %v3325 = vsel %vm707, %v3292, 0.0
      %v3326 = vadd.f32 %v3324, %v3325
      %v3327 = vsel %vm707, %v3293, 0.0
      %v3328 = vadd.f32 %v3326, %v3327
      %v3329 = vsel %vm707, %v3294, 0.0
      %v3330 = vadd.f32 %v3328, %v3329
      %v3331 = vsel %vm707, %v3295, 0.0
      %v3332 = vadd.f32 %v3330, %v3331
      %v3333 = vsel %vm707, %v3296, 0.0
      %v3334 = vadd.f32 %v3332, %v3333
      %v3335 = vsel %vm707, %v3297, 0.0
      %v3336 = vadd.f32 %v3334, %v3335
      %v3337 = vsel %vm707, %v3298, 0.0
      %v3338 = vadd.f32 %v3336, %v3337
      %v3339 = vsel %vm707, %v3299, 0.0
      %v3340 = vadd.f32 %v3338, %v3339
      %v3341 = vsel %vm707, %v3300, 0.0
      %v3342 = vadd.f32 %v3340, %v3341
      %v3343 = vsel %vm707, %v3301, 0.0
      %v3344 = vadd.f32 %v3342, %v3343
      %v3345 = vsel %vm707, %v3302, 0.0
      %v3346 = vadd.f32 %v3344, %v3345
      %v3347 = vsel %vm707, %v3303, 0.0
      %v3348 = vadd.f32 %v3346, %v3347
      %v3349 = vsel %vm707, %v3304, 0.0
      %v3350 = vadd.f32 %v3348, %v3349
      %v3351 = vsel %vm707, %v3305, 0.0
      %v3352 = vadd.f32 %v3350, %v3351
      %v3353 = vsel %vm707, %v3306, 0.0
      %v3354 = vadd.f32 %v3352, %v3353
      %v3355 = vsel %vm707, %v3307, 0.0
      %v3356 = vadd.f32 %v3354, %v3355
      %v3357 = vsel %vm707, %v3308, 0.0
      %v3358 = vadd.f32 %v3356, %v3357
      %v3359 = vsel %vm707, %v3309, 0.0
      %v3360 = vadd.f32 %v3358, %v3359
      %v3361 = vsel %vm707, %v3310, 0.0
      %v3362 = vadd.f32 %v3360, %v3361
      %v3363 = vsel %vm707, %v3311, 0.0
      %v3364 = vadd.f32 %v3362, %v3363
      %v3365 = vsel %vm707, %v3312, 0.0
      %v3366 = vadd.f32 %v3364, %v3365
      %v3367 = vsel %vm707, %v3313, 0.0
      %v3368 = vadd.f32 %v3366, %v3367
      %v3369 = vsel %vm707, %v3314, 0.0
      %v3370 = vadd.f32 %v3368, %v3369
      %v3371 = vsel %vm707, %v3315, 0.0
      %v3372 = vadd.f32 %v3370, %v3371
      %v3373 = vsel %vm707, %v3316, 0.0
      %v3374 = vadd.f32 %v3372, %v3373
      %v3375 = vsel %vm707, %v3317, 0.0
      %v3376 = vadd.f32 %v3374, %v3375
      %v3377 = vsel %vm707, %v3318, 0.0
      %v3378 = vadd.f32 %v3376, %v3377
      %v3379 = vsel %vm707, %v3319, 0.0
      %v3380 = vadd.f32 %v3378, %v3379
      %v3381 = vsel %vm707, %v3320, 0.0
      %v3382 = vadd.f32 %v3380, %v3381
      %v3383 = vsel %vm707, %v3321, 0.0
      %v3384 = vadd.f32 %v3382, %v3383
      %v3385 = vrot.slane %v3384, 4
      %v3386 = vadd.f32 %v3384, %v3385
      %v3387 = vrot.slane %v3386, 2
      %v3388 = vadd.f32 %v3386, %v3387
      %v3389 = vrot.slane %v3388, 1
      %v3390 = vadd.f32 %v3388, %v3389
      %vm3391 = vcmask 24576
      %3392 = vst.msk [vmem:[%s265] sm:$0x1] %vm3391, %v3390
      %v3393 = vmul.f32 %v3290, %v3290
      %v3394 = vmul.f32 %v3291, %v3291
      %v3395 = vmul.f32 %v3292, %v3292
      %v3396 = vmul.f32 %v3293, %v3293
      %v3397 = vmul.f32 %v3294, %v3294
      %v3398 = vmul.f32 %v3295, %v3295
      %v3399 = vmul.f32 %v3296, %v3296
      %v3400 = vmul.f32 %v3297, %v3297
      %v3401 = vmul.f32 %v3298, %v3298
      %v3402 = vmul.f32 %v3299, %v3299
      %v3403 = vmul.f32 %v3300, %v3300
      %v3404 = vmul.f32 %v3301, %v3301
      %v3405 = vmul.f32 %v3302, %v3302
      %v3406 = vmul.f32 %v3303, %v3303
      %v3407 = vmul.f32 %v3304, %v3304
      %v3408 = vmul.f32 %v3305, %v3305
      %v3409 = vmul.f32 %v3306, %v3306
      %v3410 = vmul.f32 %v3307, %v3307
      %v3411 = vmul.f32 %v3308, %v3308
      %v3412 = vmul.f32 %v3309, %v3309
      %v3413 = vmul.f32 %v3310, %v3310
      %v3414 = vmul.f32 %v3311, %v3311
      %v3415 = vmul.f32 %v3312, %v3312
      %v3416 = vmul.f32 %v3313, %v3313
      %v3417 = vmul.f32 %v3314, %v3314
      %v3418 = vmul.f32 %v3315, %v3315
      %v3419 = vmul.f32 %v3316, %v3316
      %v3420 = vmul.f32 %v3317, %v3317
      %v3421 = vmul.f32 %v3318, %v3318
      %v3422 = vmul.f32 %v3319, %v3319
      %v3423 = vmul.f32 %v3320, %v3320
      %v3424 = vmul.f32 %v3321, %v3321
      %v3425 = vsel %vm707, %v3393, 0.0
      %v3426 = vsel %vm707, %v3394, 0.0
      %v3427 = vadd.f32 %v3425, %v3426
      %v3428 = vsel %vm707, %v3395, 0.0
      %v3429 = vadd.f32 %v3427, %v3428
      %v3430 = vsel %vm707, %v3396, 0.0
      %v3431 = vadd.f32 %v3429, %v3430
      %v3432 = vsel %vm707, %v3397, 0.0
      %v3433 = vadd.f32 %v3431, %v3432
      %v3434 = vsel %vm707, %v3398, 0.0
      %v3435 = vadd.f32 %v3433, %v3434
      %v3436 = vsel %vm707, %v3399, 0.0
      %v3437 = vadd.f32 %v3435, %v3436
      %v3438 = vsel %vm707, %v3400, 0.0
      %v3439 = vadd.f32 %v3437, %v3438
      %v3440 = vsel %vm707, %v3401, 0.0
      %v3441 = vadd.f32 %v3439, %v3440
      %v3442 = vsel %vm707, %v3402, 0.0
      %v3443 = vadd.f32 %v3441, %v3442
      %v3444 = vsel %vm707, %v3403, 0.0
      %v3445 = vadd.f32 %v3443, %v3444
      %v3446 = vsel %vm707, %v3404, 0.0
      %v3447 = vadd.f32 %v3445, %v3446
      %v3448 = vsel %vm707, %v3405, 0.0
      %v3449 = vadd.f32 %v3447, %v3448
      %v3450 = vsel %vm707, %v3406, 0.0
      %v3451 = vadd.f32 %v3449, %v3450
      %v3452 = vsel %vm707, %v3407, 0.0
      %v3453 = vadd.f32 %v3451, %v3452
      %v3454 = vsel %vm707, %v3408, 0.0
      %v3455 = vadd.f32 %v3453, %v3454
      %v3456 = vsel %vm707, %v3409, 0.0
      %v3457 = vadd.f32 %v3455, %v3456
      %v3458 = vsel %vm707, %v3410, 0.0
      %v3459 = vadd.f32 %v3457, %v3458
      %v3460 = vsel %vm707, %v3411, 0.0
      %v3461 = vadd.f32 %v3459, %v3460
      %v3462 = vsel %vm707, %v3412, 0.0
      %v3463 = vadd.f32 %v3461, %v3462
      %v3464 = vsel %vm707, %v3413, 0.0
      %v3465 = vadd.f32 %v3463, %v3464
      %v3466 = vsel %vm707, %v3414, 0.0
      %v3467 = vadd.f32 %v3465, %v3466
      %v3468 = vsel %vm707, %v3415, 0.0
      %v3469 = vadd.f32 %v3467, %v3468
      %v3470 = vsel %vm707, %v3416, 0.0
      %v3471 = vadd.f32 %v3469, %v3470
      %v3472 = vsel %vm707, %v3417, 0.0
      %v3473 = vadd.f32 %v3471, %v3472
      %v3474 = vsel %vm707, %v3418, 0.0
      %v3475 = vadd.f32 %v3473, %v3474
      %v3476 = vsel %vm707, %v3419, 0.0
      %v3477 = vadd.f32 %v3475, %v3476
      %v3478 = vsel %vm707, %v3420, 0.0
      %v3479 = vadd.f32 %v3477, %v3478
      %v3480 = vsel %vm707, %v3421, 0.0
      %v3481 = vadd.f32 %v3479, %v3480
      %v3482 = vsel %vm707, %v3422, 0.0
      %v3483 = vadd.f32 %v3481, %v3482
      %v3484 = vsel %vm707, %v3423, 0.0
      %v3485 = vadd.f32 %v3483, %v3484
      %v3486 = vsel %vm707, %v3424, 0.0
      %v3487 = vadd.f32 %v3485, %v3486
      %v3488 = vrot.slane %v3487, 4
      %v3489 = vadd.f32 %v3487, %v3488
      %v3490 = vrot.slane %v3489, 2
      %v3491 = vadd.f32 %v3489, %v3490
      %v3492 = vrot.slane %v3491, 1
      %v3493 = vadd.f32 %v3491, %v3492
      %3494 = vst.msk [vmem:[%s268] sm:$0x1] %vm3391, %v3493
      %3495 = vst.msk [vmem:[%s262] sm:$0xff] %vm707, %v3290
      %3496 = vst.msk [vmem:[%s262 + $0x8] sm:$0xff] %vm707, %v3291
      %3497 = vst.msk [vmem:[%s262 + $0x10] sm:$0xff] %vm707, %v3292
      %3498 = vst.msk [vmem:[%s262 + $0x18] sm:$0xff] %vm707, %v3293
      %3499 = vst.msk [vmem:[%s262 + $0x20] sm:$0xff] %vm707, %v3294
      %3500 = vst.msk [vmem:[%s262 + $0x28] sm:$0xff] %vm707, %v3295
      %3501 = vst.msk [vmem:[%s262 + $0x30] sm:$0xff] %vm707, %v3296
      %3502 = vst.msk [vmem:[%s262 + $0x38] sm:$0xff] %vm707, %v3297
      %3503 = vst.msk [vmem:[%s262 + $0x40] sm:$0xff] %vm707, %v3298
      %3504 = vst.msk [vmem:[%s262 + $0x48] sm:$0xff] %vm707, %v3299
      %3505 = vst.msk [vmem:[%s262 + $0x50] sm:$0xff] %vm707, %v3300
      %3506 = vst.msk [vmem:[%s262 + $0x58] sm:$0xff] %vm707, %v3301
      %3507 = vst.msk [vmem:[%s262 + $0x60] sm:$0xff] %vm707, %v3302
      %3508 = vst.msk [vmem:[%s262 + $0x68] sm:$0xff] %vm707, %v3303
      %3509 = vst.msk [vmem:[%s262 + $0x70] sm:$0xff] %vm707, %v3304
      %3510 = vst.msk [vmem:[%s262 + $0x78] sm:$0xff] %vm707, %v3305
      %3511 = vst.msk [vmem:[%s262 + $0x80] sm:$0xff] %vm707, %v3306
      %3512 = vst.msk [vmem:[%s262 + $0x88] sm:$0xff] %vm707, %v3307
      %3513 = vst.msk [vmem:[%s262 + $0x90] sm:$0xff] %vm707, %v3308
      %3514 = vst.msk [vmem:[%s262 + $0x98] sm:$0xff] %vm707, %v3309
      %3515 = vst.msk [vmem:[%s262 + $0xa0] sm:$0xff] %vm707, %v3310
      %3516 = vst.msk [vmem:[%s262 + $0xa8] sm:$0xff] %vm707, %v3311
      %3517 = vst.msk [vmem:[%s262 + $0xb0] sm:$0xff] %vm707, %v3312
      %3518 = vst.msk [vmem:[%s262 + $0xb8] sm:$0xff] %vm707, %v3313
      %3519 = vst.msk [vmem:[%s262 + $0xc0] sm:$0xff] %vm707, %v3314
      %3520 = vst.msk [vmem:[%s262 + $0xc8] sm:$0xff] %vm707, %v3315
      %3521 = vst.msk [vmem:[%s262 + $0xd0] sm:$0xff] %vm707, %v3316
      %3522 = vst.msk [vmem:[%s262 + $0xd8] sm:$0xff] %vm707, %v3317
      %3523 = vst.msk [vmem:[%s262 + $0xe0] sm:$0xff] %vm707, %v3318
      %3524 = vst.msk [vmem:[%s262 + $0xe8] sm:$0xff] %vm707, %v3319
      %3525 = vst.msk [vmem:[%s262 + $0xf0] sm:$0xff] %vm707, %v3320
      %3526 = vst.msk [vmem:[%s262 + $0xf8] sm:$0xff] %vm707, %v3321
      %p3527 = scmp.lt.s32.totalorder %s18, 1
      %s3528 = scalar_select %p3527, %s18, 1
      %s3529 = smul.addr %s3528, 32
      %s3530 = smul.addr %s3529, 8
      %s3531 = scalar_lea.vmem %s4, %s3530
      %p3532 = scmp.lt.s32.totalorder %s18, 1
      %s3533 = scalar_select %p3532, %s18, 1
      %s3534 = scalar_lea.vmem %s5, %s3533
      %p3535 = scmp.lt.s32.totalorder %s18, 1
      %s3536 = scalar_select %p3535, %s18, 1
      %s3537 = scalar_lea.vmem %s6, %s3536
      // Predicated region
      $region37: #{up_forward.6} parent=35 // pred_check
        %p3538 = pneg %p125
      $region38: #{up_forward.6} parent=35 // pred_check_branch
        %3540 = sbr.rel (%p3538) target = $region40
      $region39: #{up_forward.6} parent=35 // pred_region
        _
      $region40: #{up_forward.6} parent=35 // pred_fallthru
        _
      // Predicated region
      $region41: #{up_forward.6} parent=35 // pred_check
        %p3541 = pneg %p151
      $region42: #{up_forward.6} parent=35 // pred_check_branch
        %3543 = sbr.rel (%p3541) target = $region44
      $region43: #{up_forward.6} parent=35 // pred_region
        _
      $region44: #{up_forward.6} parent=35 // pred_fallthru
        _
      // Predicated region
      $region45: #{up_forward.6} parent=35 // pred_check
        %p3544 = pneg %p177
      $region46: #{up_forward.6} parent=35 // pred_check_branch
        %3546 = sbr.rel (%p3544) target = $region48
      $region47: #{up_forward.6} parent=35 // pred_region
        _
      $region48: #{up_forward.6} parent=35 // pred_fallthru
        _
    $region36: #{up_forward.6} parent=5 // pred_fallthru
      _
    %p3547 = scmp.le.s32.totalorder 2, %s13
    // Predicated region
    $region49: #{up_forward.6} parent=5 // pred_check
      %p3548 = pneg %p3547
    $region50: #{up_forward.6} parent=5 // pred_check_branch
      %3550 = sbr.rel (%p3548) target = $region52
    $region51: #{up_forward.6} parent=5 // pred_region
      %s3551 = ssub.s32 %s13, 2
      // Predicated region
      $region53: #{up_forward.6} parent=51 // pred_check
        %p3552 = pneg %p131
      $region54: #{up_forward.6} parent=51 // pred_check_branch
        %3554 = sbr.rel (%p3552) target = $region56
      $region55: #{up_forward.6} parent=51 // pred_region
        %p3555 = scmp.lt.s32.totalorder %s19, 1
        %s3556 = scalar_select %p3555, %s19, 1
        %s3557 = smul.addr %s3556, 32
        %s3558 = smul.addr %s3557, 8
        %s3559 = scalar_lea.vmem %s4, %s3558
      $region56: #{up_forward.6} parent=51 // pred_fallthru
        _
      // Predicated region
      $region57: #{up_forward.6} parent=51 // pred_check
        %p3560 = pneg %p157
      $region58: #{up_forward.6} parent=51 // pred_check_branch
        %3562 = sbr.rel (%p3560) target = $region60
      $region59: #{up_forward.6} parent=51 // pred_region
        %p3563 = scmp.lt.s32.totalorder %s19, 1
        %s3564 = scalar_select %p3563, %s19, 1
        %s3565 = scalar_lea.vmem %s5, %s3564
      $region60: #{up_forward.6} parent=51 // pred_fallthru
        _
      // Predicated region
      $region61: #{up_forward.6} parent=51 // pred_check
        %p3566 = pneg %p183
      $region62: #{up_forward.6} parent=51 // pred_check_branch
        %3568 = sbr.rel (%p3566) target = $region64
      $region63: #{up_forward.6} parent=51 // pred_region
        %p3569 = scmp.lt.s32.totalorder %s19, 1
        %s3570 = scalar_select %p3569, %s19, 1
        %s3571 = scalar_lea.vmem %s6, %s3570
      $region64: #{up_forward.6} parent=51 // pred_fallthru
        _
    $region52: #{up_forward.6} parent=5 // pred_fallthru
      _
  $region6: #{up_forward.6} parent=0 // loop_footer
    %s17 = sadd.s32 1, %s13
  $region7: #{up_forward.6} parent=0 // loop_footer_branch
    %12 = sbr.rel target = $region3
  $region8: #{up_forward.6} parent=0 // loop_exit
    _

// kernel: up_forward.5
$region0: #{up_forward.5}
  #allocation0 [shape = 'u32[]', space=smem, size = 0x4, offset = 0x4, fixed_abs, tag = 'smem constant byte address 0x4 - core index']
  #allocation1 [shape = 'u32[144,128]{1,0:T(1,128)}', space=vmem, size = 0x12000, scoped, tag = 'internal scratch']
  %s0 = inlined_call_operand.vmem [shape: f32[2,18,18,8], index: 0, kind: input, shape index: {}]
  %s1 = inlined_call_operand.vmem [shape: f32[9,8,4], index: 1, kind: input, shape index: {}]
  %s2 = inlined_call_operand.vmem [shape: f32[2,18,18,4], index: 2, kind: output, shape index: {0}]
  %s3 = inlined_call_operand.vmem [shape: f32[2,1,4], index: 3, kind: output, shape index: {1}]
  %s4 = inlined_call_operand.vmem [shape: f32[2,1,4], index: 4, kind: output, shape index: {2}]
  %5 = xla_tuple %s2, %s3, %s4
  %s6 = sld [smem:[#allocation0]]
  $region57: #{up_forward.5} parent=0
    _
  %s8 = ssub.s32 1, %s6
  %s9 = scalar_select 0, %s8, %s6
  loop: start=0, step=1, limit=4
  $region2: #{up_forward.5} parent=0 // loop_pre_header
    _
  $region3: #{up_forward.5} parent=0 // loop_header
    %s11 = sphi 0, %s15
    %p12 = scmp.ge.s32.totalorder %s11, 4
    %s21 = sphi 0, %s23
    %s24 = sphi 0, %s21
    %s25 = sphi 0, %s24
    %s41 = sphi 0, %s25
    %s45 = sphi 0, %s45
    %s47 = sphi 0, %s45
    %s48 = sphi 0, %s47
    %s62 = sphi 0, %s48
    %s68 = sphi 0, %s70
    %s71 = sphi 0, %s68
    %s72 = sphi 0, %s71
    %s88 = sphi 0, %s72
    %s94 = sphi 0, %s96
    %s97 = sphi 0, %s94
    %s98 = sphi 0, %s97
    %s114 = sphi 0, %s98
    %s120 = sphi 0, %s122
    %s123 = sphi 0, %s120
    %s124 = sphi 0, %s123
    %s140 = sphi 0, %s124
  $region4: #{up_forward.5} parent=0 // loop_header_branch
    %14 = sbr.rel (%p12) target = $region8
  $region5: #{up_forward.5} parent=0 // loop_body
    %s16 = ssub.s32 %s11, 1
    %s17 = ssub.s32 %s11, 2
    %s18 = sadd.s32 %s11, 1
    %s19 = ssub.s32 %s11, %s18
    %p20 = scmp.eq.s32.totalorder %s19, 0
    %s22 = sadd.s32 %s21, 1
    %s23 = scalar_select %p20, %s21, %s22
    %p26 = pneg %p20
    %p27 = scmp.eq.s32.totalorder %s11, 1
    %p28 = por %p26, %p27
    %p29 = scmp.ne.s32.totalorder %s21, %s24
    %p30 = scmp.eq.s32.totalorder %s11, 0
    %p31 = por %p29, %p30
    %p32 = scmp.ne.s32.totalorder %s21, %s24
    %p33 = scmp.eq.s32.totalorder %s16, 1
    %p34 = por %p32, %p33
    %p35 = scmp.ne.s32.totalorder %s24, %s25
    %p36 = scmp.eq.s32.totalorder %s16, 0
    %p37 = por %p35, %p36
    %p38 = scmp.ne.s32.totalorder %s24, %s25
    %p39 = scmp.eq.s32.totalorder %s17, 1
    %p40 = por %p38, %p39
    %p42 = scmp.ne.s32.totalorder %s25, %s41
    %p43 = scmp.eq.s32.totalorder %s17, 0
    %p44 = por %p42, %p43
    %s46 = sadd.s32 %s45, 1
    %p49 = scmp.eq.s32.totalorder %s11, 1
    %p50 = scmp.ne.s32.totalorder %s45, %s47
    %p51 = scmp.eq.s32.totalorder %s11, 0
    %p52 = por %p50, %p51
    %p53 = scmp.ne.s32.totalorder %s45, %s47
    %p54 = scmp.eq.s32.totalorder %s16, 1
    %p55 = por %p53, %p54
    %p56 = scmp.ne.s32.totalorder %s47, %s48
    %p57 = scmp.eq.s32.totalorder %s16, 0
    %p58 = por %p56, %p57
    %p59 = scmp.ne.s32.totalorder %s47, %s48
    %p60 = scmp.eq.s32.totalorder %s17, 1
    %p61 = por %p59, %p60
    %p63 = scmp.ne.s32.totalorder %s48, %s62
    %p64 = scmp.eq.s32.totalorder %s17, 0
    %p65 = por %p63, %p64
    %s66 = ssub.s32 %s11, %s18
    %p67 = scmp.eq.s32.totalorder %s66, 0
    %s69 = sadd.s32 %s68, 1
    %s70 = scalar_select %p67, %s68, %s69
    %p73 = pneg %p67
    %p74 = scmp.eq.s32.totalorder %s11, 1
    %p75 = por %p73, %p74
    %p76 = scmp.ne.s32.totalorder %s68, %s71
    %p77 = scmp.eq.s32.totalorder %s11, 0
    %p78 = por %p76, %p77
    %p79 = scmp.ne.s32.totalorder %s68, %s71
    %p80 = scmp.eq.s32.totalorder %s16, 1
    %p81 = por %p79, %p80
    %p82 = scmp.ne.s32.totalorder %s71, %s72
    %p83 = scmp.eq.s32.totalorder %s16, 0
    %p84 = por %p82, %p83
    %p85 = scmp.ne.s32.totalorder %s71, %s72
    %p86 = scmp.eq.s32.totalorder %s17, 1
    %p87 = por %p85, %p86
    %p89 = scmp.ne.s32.totalorder %s72, %s88
    %p90 = scmp.eq.s32.totalorder %s17, 0
    %p91 = por %p89, %p90
    %s92 = ssub.s32 %s11, %s18
    %p93 = scmp.eq.s32.totalorder %s92, 0
    %s95 = sadd.s32 %s94, 1
    %s96 = scalar_select %p93, %s94, %s95
    %p99 = pneg %p93
    %p100 = scmp.eq.s32.totalorder %s11, 1
    %p101 = por %p99, %p100
    %p102 = scmp.ne.s32.totalorder %s94, %s97
    %p103 = scmp.eq.s32.totalorder %s11, 0
    %p104 = por %p102, %p103
    %p105 = scmp.ne.s32.totalorder %s94, %s97
    %p106 = scmp.eq.s32.totalorder %s16, 1
    %p107 = por %p105, %p106
    %p108 = scmp.ne.s32.totalorder %s97, %s98
    %p109 = scmp.eq.s32.totalorder %s16, 0
    %p110 = por %p108, %p109
    %p111 = scmp.ne.s32.totalorder %s97, %s98
    %p112 = scmp.eq.s32.totalorder %s17, 1
    %p113 = por %p111, %p112
    %p115 = scmp.ne.s32.totalorder %s98, %s114
    %p116 = scmp.eq.s32.totalorder %s17, 0
    %p117 = por %p115, %p116
    %s118 = ssub.s32 %s11, %s18
    %p119 = scmp.eq.s32.totalorder %s118, 0
    %s121 = sadd.s32 %s120, 1
    %s122 = scalar_select %p119, %s120, %s121
    %p125 = pneg %p119
    %p126 = scmp.eq.s32.totalorder %s11, 1
    %p127 = por %p125, %p126
    %p128 = scmp.ne.s32.totalorder %s120, %s123
    %p129 = scmp.eq.s32.totalorder %s11, 0
    %p130 = por %p128, %p129
    %p131 = scmp.ne.s32.totalorder %s120, %s123
    %p132 = scmp.eq.s32.totalorder %s16, 1
    %p133 = por %p131, %p132
    %p134 = scmp.ne.s32.totalorder %s123, %s124
    %p135 = scmp.eq.s32.totalorder %s16, 0
    %p136 = por %p134, %p135
    %p137 = scmp.ne.s32.totalorder %s123, %s124
    %p138 = scmp.eq.s32.totalorder %s17, 1
    %p139 = por %p137, %p138
    %p141 = scmp.ne.s32.totalorder %s124, %s140
    %p142 = scmp.eq.s32.totalorder %s17, 0
    %p143 = por %p141, %p142
    %p144 = scmp.le.s32.totalorder 1, %s11
    %p145 = scmp.lt.s32.totalorder %s11, 3
    %p146 = pnand %p144, %p145
    %p147 = pneg %p146
    // Predicated region
    $region9: #{up_forward.5} parent=5 // pred_check
      _
    $region10: #{up_forward.5} parent=5 // pred_check_branch
      %149 = sbr.rel (%p146) target = $region12
    $region11: #{up_forward.5} parent=5 // pred_region
      %s150 = ssub.s32 %s11, 1
      // Predicated region
      $region13: #{up_forward.5} parent=11 // pred_check
        %p151 = pneg %p58
      $region14: #{up_forward.5} parent=11 // pred_check_branch
        %153 = sbr.rel (%p151) target = $region16
      $region15: #{up_forward.5} parent=11 // pred_region
        _
      $region16: #{up_forward.5} parent=11 // pred_fallthru
        _
    $region12: #{up_forward.5} parent=5 // pred_fallthru
      _
    %p154 = scmp.lt.s32.totalorder %s11, 2
    // Predicated region
    $region17: #{up_forward.5} parent=5 // pred_check
      %p155 = pneg %p154
    $region18: #{up_forward.5} parent=5 // pred_check_branch
      %157 = sbr.rel (%p155) target = $region20
    $region19: #{up_forward.5} parent=5 // pred_region
      // Predicated region
      $region21: #{up_forward.5} parent=19 // pred_check
        %p158 = pneg %p31
      $region22: #{up_forward.5} parent=19 // pred_check_branch
        %160 = sbr.rel (%p158) target = $region24
      $region23: #{up_forward.5} parent=19 // pred_region
        %p161 = scmp.lt.s32.totalorder %s11, 1
        %s162 = scalar_select %p161, %s11, 1
        %s163 = smul.addr %s162, 54
        %s164 = smul.addr %s163, 8
        %s165 = scalar_lea.vmem %s0, %s164
      $region24: #{up_forward.5} parent=19 // pred_fallthru
        _
    $region20: #{up_forward.5} parent=5 // pred_fallthru
      _
    %p166 = scmp.le.s32.totalorder 1, %s11
    %p167 = scmp.lt.s32.totalorder %s11, 3
    %p168 = pnand %p166, %p167
    %p169 = pneg %p168
    // Predicated region
    $region25: #{up_forward.5} parent=5 // pred_check
      _
    $region26: #{up_forward.5} parent=5 // pred_check_branch
      %171 = sbr.rel (%p168) target = $region28
    $region27: #{up_forward.5} parent=5 // pred_region
      %s172 = ssub.s32 %s11, 1
      %p173 = scmp.lt.s32.totalorder %s16, 1
      %s174 = scalar_select %p173, %s16, 1
      %s175 = smul.addr %s174, 54
      %s176 = smul.addr %s175, 8
      %s177 = scalar_lea.vmem %s0, %s176
      %p178 = pneg %p37
      %p179 = pneg %p34
      %p180 = pneg %p58
      %p181 = pneg %p55
      %p182 = pneg %p84
      %p183 = pneg %p81
      %p184 = scmp.lt.s32.totalorder %s16, 1
      %s185 = scalar_select %p184, %s16, 1
      %s186 = smul.addr %s185, 54
      %s187 = smul.addr %s186, 8
      %s188 = scalar_lea.vmem %s2, %s187
      %p189 = pneg %p110
      %p190 = pneg %p107
      %p191 = scmp.lt.s32.totalorder %s16, 1
      %s192 = scalar_select %p191, %s16, 1
      %s193 = scalar_lea.vmem %s3, %s192
      %p194 = pneg %p136
      %p195 = pneg %p133
      %p196 = scmp.lt.s32.totalorder %s16, 1
      %s197 = scalar_select %p196, %s16, 1
      %s198 = scalar_lea.vmem %s4, %s197
      %p199 = scmp.lt.s32.totalorder %s16, 1
      %s200 = scalar_select %p199, %s16, 1
      %s201 = smul.addr %s200, 54
      %s202 = smul.addr %s201, 8
      %s203 = scalar_lea.vmem %s0, %s202
      %p204 = scmp.lt.s32.totalorder %s16, 1
      %s205 = scalar_select %p204, %s16, 1
      %s206 = smul.addr %s205, 54
      %s207 = smul.addr %s206, 8
      %s208 = scalar_lea.vmem %s2, %s207
      %p209 = scmp.lt.s32.totalorder %s16, 1
      %s210 = scalar_select %p209, %s16, 1
      %s211 = scalar_lea.vmem %s3, %s210
      %p212 = scmp.lt.s32.totalorder %s16, 1
      %s213 = scalar_select %p212, %s16, 1
      %s214 = scalar_lea.vmem %s4, %s213
      %v215 = vld [vmem:[%s203] sm:$0xff]
      %v216 = vld [vmem:[%s203 + $0x8] sm:$0xff]
      %v217 = vld [vmem:[%s203 + $0x10] sm:$0x3]
      %v218 = vld [vmem:[%s203 + $0x18] sm:$0xff]
      %v219 = vld [vmem:[%s203 + $0x20] sm:$0xff]
      %v220 = vld [vmem:[%s203 + $0x28] sm:$0x3]
      %v221 = vld [vmem:[%s203 + $0x30] sm:$0xff]
      %v222 = vld [vmem:[%s203 + $0x38] sm:$0xff]
      %v223 = vld [vmem:[%s203 + $0x40] sm:$0x3]
      %v224 = vld [vmem:[%s203 + $0x48] sm:$0xff]
      %v225 = vld [vmem:[%s203 + $0x50] sm:$0xff]
      %v226 = vld [vmem:[%s203 + $0x58] sm:$0x3]
      %v227 = vld [vmem:[%s203 + $0x60] sm:$0xff]
      %v228 = vld [vmem:[%s203 + $0x68] sm:$0xff]
      %v229 = vld [vmem:[%s203 + $0x70] sm:$0x3]
      %v230 = vld [vmem:[%s203 + $0x78] sm:$0xff]
      %v231 = vld [vmem:[%s203 + $0x80] sm:$0xff]
      %v232 = vld [vmem:[%s203 + $0x88] sm:$0x3]
      %v233 = vld [vmem:[%s203 + $0x90] sm:$0xff]
      %v234 = vld [vmem:[%s203 + $0x98] sm:$0xff]
      %v235 = vld [vmem:[%s203 + $0xa0] sm:$0x3]
      %v236 = vld [vmem:[%s203 + $0xa8] sm:$0xff]
      %v237 = vld [vmem:[%s203 + $0xb0] sm:$0xff]
      %v238 = vld [vmem:[%s203 + $0xb8] sm:$0x3]
      %v239 = vld [vmem:[%s203 + $0xc0] sm:$0xff]
      %v240 = vld [vmem:[%s203 + $0xc8] sm:$0xff]
      %v241 = vld [vmem:[%s203 + $0xd0] sm:$0x3]
      %v242 = vld [vmem:[%s203 + $0xd8] sm:$0xff]
      %v243 = vld [vmem:[%s203 + $0xe0] sm:$0xff]
      %v244 = vld [vmem:[%s203 + $0xe8] sm:$0x3]
      %v245 = vld [vmem:[%s203 + $0xf0] sm:$0xff]
      %v246 = vld [vmem:[%s203 + $0xf8] sm:$0xff]
      %v247 = vld [vmem:[%s203 + $0x100] sm:$0x3]
      %v248 = vld [vmem:[%s203 + $0x108] sm:$0xff]
      %v249 = vld [vmem:[%s203 + $0x110] sm:$0xff]
      %v250 = vld [vmem:[%s203 + $0x118] sm:$0x3]
      %v251 = vld [vmem:[%s203 + $0x120] sm:$0xff]
      %v252 = vld [vmem:[%s203 + $0x128] sm:$0xff]
      %v253 = vld [vmem:[%s203 + $0x130] sm:$0x3]
      %v254 = vld [vmem:[%s203 + $0x138] sm:$0xff]
      %v255 = vld [vmem:[%s203 + $0x140] sm:$0xff]
      %v256 = vld [vmem:[%s203 + $0x148] sm:$0x3]
      %v257 = vld [vmem:[%s203 + $0x150] sm:$0xff]
      %v258 = vld [vmem:[%s203 + $0x158] sm:$0xff]
      %v259 = vld [vmem:[%s203 + $0x160] sm:$0x3]
      %v260 = vld [vmem:[%s203 + $0x168] sm:$0xff]
      %v261 = vld [vmem:[%s203 + $0x170] sm:$0xff]
      %v262 = vld [vmem:[%s203 + $0x178] sm:$0x3]
      %v263 = vld [vmem:[%s203 + $0x180] sm:$0xff]
      %v264 = vld [vmem:[%s203 + $0x188] sm:$0xff]
      %v265 = vld [vmem:[%s203 + $0x190] sm:$0x3]
      %v266 = vld [vmem:[%s203 + $0x198] sm:$0xff]
      %v267 = vld [vmem:[%s203 + $0x1a0] sm:$0xff]
      %v268 = vld [vmem:[%s203 + $0x1a8] sm:$0x3]
      %v269 = vld [vmem:[%s1] sm:$0xff]
      %vm318 = vcmask 1046528
      %v319 = vrot.slane %v215, 1
      %v320 = vrot.slane %v216, 1
      %v321 = vsel %vm318, %v319, %v320
      %v322 = vrot.slane %v217, 1
      %v323 = vsel %vm318, %v320, %v322
      %v324 = vrot.slane %v218, 1
      %v325 = vrot.slane %v219, 1
      %v326 = vsel %vm318, %v324, %v325
      %v327 = vrot.slane %v220, 1
      %v328 = vsel %vm318, %v325, %v327
      %v329 = vrot.slane %v221, 1
      %v330 = vrot.slane %v222, 1
      %v331 = vsel %vm318, %v329, %v330
      %v332 = vrot.slane %v223, 1
      %v333 = vsel %vm318, %v330, %v332
      %v334 = vrot.slane %v224, 1
      %v335 = vrot.slane %v225, 1
      %v336 = vsel %vm318, %v334, %v335
      %v337 = vrot.slane %v226, 1
      %v338 = vsel %vm318, %v335, %v337
      %v339 = vrot.slane %v227, 1
      %v340 = vrot.slane %v228, 1
      %v341 = vsel %vm318, %v339, %v340
      %v342 = vrot.slane %v229, 1
      %v343 = vsel %vm318, %v340, %v342
      %v344 = vrot.slane %v230, 1
      %v345 = vrot.slane %v231, 1
      %v346 = vsel %vm318, %v344, %v345
      %v347 = vrot.slane %v232, 1
      %v348 = vsel %vm318, %v345, %v347
      %v349 = vrot.slane %v233, 1
      %v350 = vrot.slane %v234, 1
      %v351 = vsel %vm318, %v349, %v350
      %v352 = vrot.slane %v235, 1
      %v353 = vsel %vm318, %v350, %v352
      %v354 = vrot.slane %v236, 1
      %v355 = vrot.slane %v237, 1
      %v356 = vsel %vm318, %v354, %v355
      %v357 = vrot.slane %v238, 1
      %v358 = vsel %vm318, %v355, %v357
      %v359 = vrot.slane %v239, 1
      %v360 = vrot.slane %v240, 1
      %v361 = vsel %vm318, %v359, %v360
      %v362 = vrot.slane %v241, 1
      %v363 = vsel %vm318, %v360, %v362
      %v364 = vrot.slane %v242, 1
      %v365 = vrot.slane %v243, 1
      %v366 = vsel %vm318, %v364, %v365
      %v367 = vrot.slane %v244, 1
      %v368 = vsel %vm318, %v365, %v367
      %v369 = vrot.slane %v245, 1
      %v370 = vrot.slane %v246, 1
      %v371 = vsel %vm318, %v369, %v370
      %v372 = vrot.slane %v247, 1
      %v373 = vsel %vm318, %v370, %v372
      %v374 = vrot.slane %v248, 1
      %v375 = vrot.slane %v249, 1
      %v376 = vsel %vm318, %v374, %v375
      %v377 = vrot.slane %v250, 1
      %v378 = vsel %vm318, %v375, %v377
      %v379 = vrot.slane %v251, 1
      %v380 = vrot.slane %v252, 1
      %v381 = vsel %vm318, %v379, %v380
      %v382 = vrot.slane %v253, 1
      %v383 = vsel %vm318, %v380, %v382
      %v384 = vrot.slane %v254, 1
      %v385 = vrot.slane %v255, 1
      %v386 = vsel %vm318, %v384, %v385
      %v387 = vrot.slane %v256, 1
      %v388 = vsel %vm318, %v385, %v387
      %v389 = vrot.slane %v257, 1
      %v390 = vrot.slane %v258, 1
      %v391 = vsel %vm318, %v389, %v390
      %v392 = vrot.slane %v259, 1
      %v393 = vsel %vm318, %v390, %v392
      %v394 = vrot.slane %v260, 1
      %v395 = vrot.slane %v261, 1
      %v396 = vsel %vm318, %v394, %v395
      %v397 = vrot.slane %v262, 1
      %v398 = vsel %vm318, %v395, %v397
      %s399 = scalar_lea.vmem %s1, 8
      %v400 = vld [vmem:[%s399] sm:$0xff]
      %vm401 = vcmask 64512
      %v402 = vsel %vm401, %v321, 0
      %v404 = vsel %vm401, %v323, 0
      %v406 = vsel %vm401, %v326, 0
      %v408 = vsel %vm401, %v328, 0
      %v410 = vsel %vm401, %v331, 0
      %v412 = vsel %vm401, %v333, 0
      %v414 = vsel %vm401, %v336, 0
      %v416 = vsel %vm401, %v338, 0
      %v418 = vsel %vm401, %v341, 0
      %v420 = vsel %vm401, %v343, 0
      %v422 = vsel %vm401, %v346, 0
      %v424 = vsel %vm401, %v348, 0
      %v426 = vsel %vm401, %v351, 0
      %v428 = vsel %vm401, %v353, 0
      %v430 = vsel %vm401, %v356, 0
      %v432 = vsel %vm401, %v358, 0
      %v434 = vsel %vm401, %v361, 0
      %v436 = vsel %vm401, %v363, 0
      %v438 = vsel %vm401, %v366, 0
      %v440 = vsel %vm401, %v368, 0
      %v442 = vsel %vm401, %v371, 0
      %v444 = vsel %vm401, %v373, 0
      %v446 = vsel %vm401, %v376, 0
      %v448 = vsel %vm401, %v378, 0
      %v450 = vsel %vm401, %v381, 0
      %v452 = vsel %vm401, %v383, 0
      %v454 = vsel %vm401, %v386, 0
      %v456 = vsel %vm401, %v388, 0
      %v458 = vsel %vm401, %v391, 0
      %v460 = vsel %vm401, %v393, 0
      %v462 = vsel %vm401, %v396, 0
      %v464 = vsel %vm401, %v398, 0
      %466 = vmatprep.subr.mxu0 0.0
      %467 = vmatpush1.msra.mxu0 %v400
      %468 = vmatprep.subr.mxu0 0.0
      %469 = vmatpush1.msra.mxu0 0.0
      %470 = vmatprep.subr.mxu0 0.0
      %471 = vmatpush1.msra.mxu0 0.0
      %472 = vmatprep.subr.mxu0 0.0
      %473 = vmatpush1.msra.mxu0 0.0
      %474 = vmatprep.subr.mxu0 0.0
      %475 = vmatpush1.msra.mxu0 0.0
      %476 = vmatprep.subr.mxu0 0.0
      %477 = vmatpush1.msra.mxu0 0.0
      %478 = vmatprep.subr.mxu0 0.0
      %479 = vmatpush1.msra.mxu0 0.0
      %480 = vmatprep.subr.mxu0 0.0
      %481 = vmatpush1.msra.mxu0 0.0
      %482 = vmatprep.subr.mxu0 0.0
      %483 = vmatpush1.msra.mxu0 0.0
      %484 = vmatprep.subr.mxu0 0.0
      %485 = vmatpush1.msra.mxu0 0.0
      %486 = vmatprep.subr.mxu0 0.0
      %487 = vmatpush1.msra.mxu0 0.0
      %488 = vmatprep.subr.mxu0 0.0
      %489 = vmatpush1.msra.mxu0 0.0
      %490 = vmatprep.subr.mxu0 0.0
      %491 = vmatpush1.msra.mxu0 0.0
      %492 = vmatprep.subr.mxu0 0.0
      %493 = vmatpush1.msra.mxu0 0.0
      %494 = vmatprep.subr.mxu0 0.0
      %495 = vmatpush1.msra.mxu0 0.0
      %496 = vmatprep.subr.mxu0 0.0
      %497 = vmatpush1.msra.mxu0 0.0
      %498 = vmatprep.subr.mxu0 0.0
      %499 = vmatpush1.msra.mxu0 0.0
      %500 = vmatprep.subr.mxu0 0.0
      %501 = vmatpush1.msra.mxu0 0.0
      %502 = vmatprep.subr.mxu0 0.0
      %503 = vmatpush1.msra.mxu0 0.0
      %504 = vmatprep.subr.mxu0 0.0
      %505 = vmatpush1.msra.mxu0 0.0
      %506 = vmatprep.subr.mxu0 0.0
      %507 = vmatpush1.msra.mxu0 0.0
      %508 = vmatprep.subr.mxu0 0.0
      %509 = vmatpush1.msra.mxu0 0.0
      %510 = vmatprep.subr.mxu0 0.0
      %511 = vmatpush1.msra.mxu0 0.0
      %512 = vmatprep.subr.mxu0 0.0
      %513 = vmatpush1.msra.mxu0 0.0
      %514 = vmatprep.subr.mxu0 0.0
      %515 = vmatpush1.msra.mxu0 0.0
      %516 = vmatprep.subr.mxu0 0.0
      %517 = vmatpush1.msra.mxu0 0.0
      %518 = vmatprep.subr.mxu0 0.0
      %519 = vmatpush1.msra.mxu0 0.0
      %520 = vmatprep.subr.mxu0 0.0
      %521 = vmatpush1.msra.mxu0 0.0
      %522 = vmatprep.subr.mxu0 0.0
      %523 = vmatpush1.msra.mxu0 0.0
      %524 = vmatprep.subr.mxu0 0.0
      %525 = vmatpush1.msra.mxu0 0.0
      %526 = vmatprep.subr.mxu0 0.0
      %527 = vmatpush1.msra.mxu0 0.0
      %528 = vmatprep.subr.mxu0 0.0
      %529 = vmatpush1.msra.mxu0 0.0
      %530 = vmatprep.mubr.f32.mxu0 0.0
      %531 = vmatmul.mubr.f32.gmra.mrb[0].mxu0 %v402
      %v532 = vpop.f32.mrb[0].mxu0
      %v533 = vadd.f32 0.0, %v532
      %v534 = vpop.f32.mrb[0].mxu0
      %535 = vmatprep.mubr.f32.mxu0 0.0
      %536 = vmatmul.mubr.f32.gmra.mrb[0].mxu0 %v404
      %v537 = vpop.f32.mrb[0].mxu0
      %v538 = vadd.f32 0.0, %v537
      %v539 = vpop.f32.mrb[0].mxu0
      %540 = vmatprep.mubr.f32.mxu0 0.0
      %541 = vmatmul.mubr.f32.gmra.mrb[0].mxu0 %v406
      %v542 = vpop.f32.mrb[0].mxu0
      %v543 = vadd.f32 0.0, %v542
      %v544 = vpop.f32.mrb[0].mxu0
      %545 = vmatprep.mubr.f32.mxu0 0.0
      %546 = vmatmul.mubr.f32.gmra.mrb[0].mxu0 %v408
      %v547 = vpop.f32.mrb[0].mxu0
      %v548 = vadd.f32 0.0, %v547
      %v549 = vpop.f32.mrb[0].mxu0
      %550 = vmatprep.mubr.f32.mxu0 0.0
      %551 = vmatmul.mubr.f32.gmra.mrb[0].mxu0 %v410
      %v552 = vpop.f32.mrb[0].mxu0
      %v553 = vadd.f32 0.0, %v552
      %v554 = vpop.f32.mrb[0].mxu0
      %555 = vmatprep.mubr.f32.mxu0 0.0
      %556 = vmatmul.mubr.f32.gmra.mrb[0].mxu0 %v412
      %v557 = vpop.f32.mrb[0].mxu0
      %v558 = vadd.f32 0.0, %v557
      %v559 = vpop.f32.mrb[0].mxu0
      %560 = vmatprep.mubr.f32.mxu0 0.0
      %561 = vmatmul.mubr.f32.gmra.mrb[0].mxu0 %v414
      %v562 = vpop.f32.mrb[0].mxu0
      %v563 = vadd.f32 0.0, %v562
      %v564 = vpop.f32.mrb[0].mxu0
      %565 = vmatprep.mubr.f32.mxu0 0.0
      %566 = vmatmul.mubr.f32.gmra.mrb[0].mxu0 %v416
      %v567 = vpop.f32.mrb[0].mxu0
      %v568 = vadd.f32 0.0, %v567
      %v569 = vpop.f32.mrb[0].mxu0
      %570 = vmatprep.mubr.f32.mxu0 0.0
      %571 = vmatmul.mubr.f32.gmra.mrb[0].mxu0 %v418
      %v572 = vpop.f32.mrb[0].mxu0
      %v573 = vadd.f32 0.0, %v572
      %v574 = vpop.f32.mrb[0].mxu0
      %575 = vmatprep.mubr.f32.mxu0 0.0
      %576 = vmatmul.mubr.f32.gmra.mrb[0].mxu0 %v420
      %v577 = vpop.f32.mrb[0].mxu0
      %v578 = vadd.f32 0.0, %v577
      %v579 = vpop.f32.mrb[0].mxu0
      %580 = vmatprep.mubr.f32.mxu0 0.0
      %581 = vmatmul.mubr.f32.gmra.mrb[0].mxu0 %v422
      %v582 = vpop.f32.mrb[0].mxu0
      %v583 = vadd.f32 0.0, %v582
      %v584 = vpop.f32.mrb[0].mxu0
      %585 = vmatprep.mubr.f32.mxu0 0.0
      %586 = vmatmul.mubr.f32.gmra.mrb[0].mxu0 %v424
      %v587 = vpop.f32.mrb[0].mxu0
      %v588 = vadd.f32 0.0, %v587
      %v589 = vpop.f32.mrb[0].mxu0
      %590 = vmatprep.mubr.f32.mxu0 0.0
      %591 = vmatmul.mubr.f32.gmra.mrb[0].mxu0 %v426
      %v592 = vpop.f32.mrb[0].mxu0
      %v593 = vadd.f32 0.0, %v592
      %v594 = vpop.f32.mrb[0].mxu0
      %595 = vmatprep.mubr.f32.mxu0 0.0
      %596 = vmatmul.mubr.f32.gmra.mrb[0].mxu0 %v428
      %v597 = vpop.f32.mrb[0].mxu0
      %v598 = vadd.f32 0.0, %v597
      %v599 = vpop.f32.mrb[0].mxu0
      %600 = vmatprep.mubr.f32.mxu0 0.0
      %601 = vmatmul.mubr.f32.gmra.mrb[0].mxu0 %v430
      %v602 = vpop.f32.mrb[0].mxu0
      %v603 = vadd.f32 0.0, %v602
      %v604 = vpop.f32.mrb[0].mxu0
      %605 = vmatprep.mubr.f32.mxu0 0.0
      %606 = vmatmul.mubr.f32.gmra.mrb[0].mxu0 %v432
      %v607 = vpop.f32.mrb[0].mxu0
      %v608 = vadd.f32 0.0, %v607
      %v609 = vpop.f32.mrb[0].mxu0
      %610 = vmatprep.mubr.f32.mxu0 0.0
      %611 = vmatmul.mubr.f32.gmra.mrb[0].mxu0 %v434
      %v612 = vpop.f32.mrb[0].mxu0
      %v613 = vadd.f32 0.0, %v612
      %v614 = vpop.f32.mrb[0].mxu0
      %615 = vmatprep.mubr.f32.mxu0 0.0
      %616 = vmatmul.mubr.f32.gmra.mrb[0].mxu0 %v436
      %v617 = vpop.f32.mrb[0].mxu0
      %v618 = vadd.f32 0.0, %v617
      %v619 = vpop.f32.mrb[0].mxu0
      %620 = vmatprep.mubr.f32.mxu0 0.0
      %621 = vmatmul.mubr.f32.gmra.mrb[0].mxu0 %v438
      %v622 = vpop.f32.mrb[0].mxu0
      %v623 = vadd.f32 0.0, %v622
      %v624 = vpop.f32.mrb[0].mxu0
      %625 = vmatprep.mubr.f32.mxu0 0.0
      %626 = vmatmul.mubr.f32.gmra.mrb[0].mxu0 %v440
      %v627 = vpop.f32.mrb[0].mxu0
      %v628 = vadd.f32 0.0, %v627
      %v629 = vpop.f32.mrb[0].mxu0
      %630 = vmatprep.mubr.f32.mxu0 0.0
      %631 = vmatmul.mubr.f32.gmra.mrb[0].mxu0 %v442
      %v632 = vpop.f32.mrb[0].mxu0
      %v633 = vadd.f32 0.0, %v632
      %v634 = vpop.f32.mrb[0].mxu0
      %635 = vmatprep.mubr.f32.mxu0 0.0
      %636 = vmatmul.mubr.f32.gmra.mrb[0].mxu0 %v444
      %v637 = vpop.f32.mrb[0].mxu0
      %v638 = vadd.f32 0.0, %v637
      %v639 = vpop.f32.mrb[0].mxu0
      %640 = vmatprep.mubr.f32.mxu0 0.0
      %641 = vmatmul.mubr.f32.gmra.mrb[0].mxu0 %v446
      %v642 = vpop.f32.mrb[0].mxu0
      %v643 = vadd.f32 0.0, %v642
      %v644 = vpop.f32.mrb[0].mxu0
      %645 = vmatprep.mubr.f32.mxu0 0.0
      %646 = vmatmul.mubr.f32.gmra.mrb[0].mxu0 %v448
      %v647 = vpop.f32.mrb[0].mxu0
      %v648 = vadd.f32 0.0, %v647
      %v649 = vpop.f32.mrb[0].mxu0
      %650 = vmatprep.mubr.f32.mxu0 0.0
      %651 = vmatmul.mubr.f32.gmra.mrb[0].mxu0 %v450
      %v652 = vpop.f32.mrb[0].mxu0
      %v653 = vadd.f32 0.0, %v652
      %v654 = vpop.f32.mrb[0].mxu0
      %655 = vmatprep.mubr.f32.mxu0 0.0
      %656 = vmatmul.mubr.f32.gmra.mrb[0].mxu0 %v452
      %v657 = vpop.f32.mrb[0].mxu0
      %v658 = vadd.f32 0.0, %v657
      %v659 = vpop.f32.mrb[0].mxu0
      %660 = vmatprep.mubr.f32.mxu0 0.0
      %661 = vmatmul.mubr.f32.gmra.mrb[0].mxu0 %v454
      %v662 = vpop.f32.mrb[0].mxu0
      %v663 = vadd.f32 0.0, %v662
      %v664 = vpop.f32.mrb[0].mxu0
      %665 = vmatprep.mubr.f32.mxu0 0.0
      %666 = vmatmul.mubr.f32.gmra.mrb[0].mxu0 %v456
      %v667 = vpop.f32.mrb[0].mxu0
      %v668 = vadd.f32 0.0, %v667
      %v669 = vpop.f32.mrb[0].mxu0
      %670 = vmatprep.mubr.f32.mxu0 0.0
      %671 = vmatmul.mubr.f32.gmra.mrb[0].mxu0 %v458
      %v672 = vpop.f32.mrb[0].mxu0
      %v673 = vadd.f32 0.0, %v672
      %v674 = vpop.f32.mrb[0].mxu0
      %675 = vmatprep.mubr.f32.mxu0 0.0
      %676 = vmatmul.mubr.f32.gmra.mrb[0].mxu0 %v460
      %v677 = vpop.f32.mrb[0].mxu0
      %v678 = vadd.f32 0.0, %v677
      %v679 = vpop.f32.mrb[0].mxu0
      %680 = vmatprep.mubr.f32.mxu0 0.0
      %681 = vmatmul.mubr.f32.gmra.mrb[0].mxu0 %v462
      %v682 = vpop.f32.mrb[0].mxu0
      %v683 = vadd.f32 0.0, %v682
      %v684 = vpop.f32.mrb[0].mxu0
      %685 = vmatprep.mubr.f32.mxu0 0.0
      %686 = vmatmul.mubr.f32.gmra.mrb[0].mxu0 %v464
      %v687 = vpop.f32.mrb[0].mxu0
      %v688 = vadd.f32 0.0, %v687
      %v689 = vpop.f32.mrb[0].mxu0
      %690 = vdwg.mxu0
      %v691 = vsel %vm401, %v215, 0
      %v693 = vsel %vm401, %v216, 0
      %v695 = vsel %vm401, %v218, 0
      %v697 = vsel %vm401, %v219, 0
      %v699 = vsel %vm401, %v221, 0
      %v701 = vsel %vm401, %v222, 0
      %v703 = vsel %vm401, %v224, 0
      %v705 = vsel %vm401, %v225, 0
      %v707 = vsel %vm401, %v227, 0
      %v709 = vsel %vm401, %v228, 0
      %v711 = vsel %vm401, %v230, 0
      %v713 = vsel %vm401, %v231, 0
      %v715 = vsel %vm401, %v233, 0
      %v717 = vsel %vm401, %v234, 0
      %v719 = vsel %vm401, %v236, 0
      %v721 = vsel %vm401, %v237, 0
      %v723 = vsel %vm401, %v239, 0
      %v725 = vsel %vm401, %v240, 0
      %v727 = vsel %vm401, %v242, 0
      %v729 = vsel %vm401, %v243, 0
      %v731 = vsel %vm401, %v245, 0
      %v733 = vsel %vm401, %v246, 0
      %v735 = vsel %vm401, %v248, 0
      %v737 = vsel %vm401, %v249, 0
      %v739 = vsel %vm401, %v251, 0
      %v741 = vsel %vm401, %v252, 0
      %v743 = vsel %vm401, %v254, 0
      %v745 = vsel %vm401, %v255, 0
      %v747 = vsel %vm401, %v257, 0
      %v749 = vsel %vm401, %v258, 0
      %v751 = vsel %vm401, %v260, 0
      %v753 = vsel %vm401, %v261, 0
      %755 = vmatprep.subr.mxu0 0.0
      %756 = vmatpush1.msra.mxu0 %v269
      %757 = vmatprep.subr.mxu0 0.0
      %758 = vmatpush1.msra.mxu0 0.0
      %759 = vmatprep.subr.mxu0 0.0
      %760 = vmatpush1.msra.mxu0 0.0
      %761 = vmatprep.subr.mxu0 0.0
      %762 = vmatpush1.msra.mxu0 0.0
      %763 = vmatprep.subr.mxu0 0.0
      %764 = vmatpush1.msra.mxu0 0.0
      %765 = vmatprep.subr.mxu0 0.0
      %766 = vmatpush1.msra.mxu0 0.0
      %767 = vmatprep.subr.mxu0 0.0
      %768 = vmatpush1.msra.mxu0 0.0
      %769 = vmatprep.subr.mxu0 0.0
      %770 = vmatpush1.msra.mxu0 0.0
      %771 = vmatprep.subr.mxu0 0.0
      %772 = vmatpush1.msra.mxu0 0.0
      %773 = vmatprep.subr.mxu0 0.0
      %774 = vmatpush1.msra.mxu0 0.0
      %775 = vmatprep.subr.mxu0 0.0
      %776 = vmatpush1.msra.mxu0 0.0
      %777 = vmatprep.subr.mxu0 0.0
      %778 = vmatpush1.msra.mxu0 0.0
      %779 = vmatprep.subr.mxu0 0.0
      %780 = vmatpush1.msra.mxu0 0.0
      %781 = vmatprep.subr.mxu0 0.0
      %782 = vmatpush1.msra.mxu0 0.0
      %783 = vmatprep.subr.mxu0 0.0
      %784 = vmatpush1.msra.mxu0 0.0
      %785 = vmatprep.subr.mxu0 0.0
      %786 = vmatpush1.msra.mxu0 0.0
      %787 = vmatprep.subr.mxu0 0.0
      %788 = vmatpush1.msra.mxu0 0.0
      %789 = vmatprep.subr.mxu0 0.0
      %790 = vmatpush1.msra.mxu0 0.0
      %791 = vmatprep.subr.mxu0 0.0
      %792 = vmatpush1.msra.mxu0 0.0
      %793 = vmatprep.subr.mxu0 0.0
      %794 = vmatpush1.msra.mxu0 0.0
      %795 = vmatprep.subr.mxu0 0.0
      %796 = vmatpush1.msra.mxu0 0.0
      %797 = vmatprep.subr.mxu0 0.0
      %798 = vmatpush1.msra.mxu0 0.0
      %799 = vmatprep.subr.mxu0 0.0
      %800 = vmatpush1.msra.mxu0 0.0
      %801 = vmatprep.subr.mxu0 0.0
      %802 = vmatpush1.msra.mxu0 0.0
      %803 = vmatprep.subr.mxu0 0.0
      %804 = vmatpush1.msra.mxu0 0.0
      %805 = vmatprep.subr.mxu0 0.0
      %806 = vmatpush1.msra.mxu0 0.0
      %807 = vmatprep.subr.mxu0 0.0
      %808 = vmatpush1.msra.mxu0 0.0
      %809 = vmatprep.subr.mxu0 0.0
      %810 = vmatpush1.msra.mxu0 0.0
      %811 = vmatprep.subr.mxu0 0.0
      %812 = vmatpush1.msra.mxu0 0.0
      %813 = vmatprep.subr.mxu0 0.0
      %814 = vmatpush1.msra.mxu0 0.0
      %815 = vmatprep.subr.mxu0 0.0
      %816 = vmatpush1.msra.mxu0 0.0
      %817 = vmatprep.subr.mxu0 0.0
      %818 = vmatpush1.msra.mxu0 0.0
      %819 = vmatprep.mubr.f32.mxu0 0.0
      %820 = vmatmul.mubr.f32.gmra.mrb[0].mxu0 %v691
      %v821 = vpop.f32.mrb[0].mxu0
      %v822 = vadd.f32 %v533, %v821
      %v823 = vpop.f32.mrb[0].mxu0
      %824 = vmatprep.mubr.f32.mxu0 0.0
      %825 = vmatmul.mubr.f32.gmra.mrb[0].mxu0 %v693
      %v826 = vpop.f32.mrb[0].mxu0
      %v827 = vadd.f32 %v538, %v826
      %v828 = vpop.f32.mrb[0].mxu0
      %829 = vmatprep.mubr.f32.mxu0 0.0
      %830 = vmatmul.mubr.f32.gmra.mrb[0].mxu0 %v695
      %v831 = vpop.f32.mrb[0].mxu0
      %v832 = vadd.f32 %v543, %v831
      %v833 = vpop.f32.mrb[0].mxu0
      %834 = vmatprep.mubr.f32.mxu0 0.0
      %835 = vmatmul.mubr.f32.gmra.mrb[0].mxu0 %v697
      %v836 = vpop.f32.mrb[0].mxu0
      %v837 = vadd.f32 %v548, %v836
      %v838 = vpop.f32.mrb[0].mxu0
      %839 = vmatprep.mubr.f32.mxu0 0.0
      %840 = vmatmul.mubr.f32.gmra.mrb[0].mxu0 %v699
      %v841 = vpop.f32.mrb[0].mxu0
      %v842 = vadd.f32 %v553, %v841
      %v843 = vpop.f32.mrb[0].mxu0
      %844 = vmatprep.mubr.f32.mxu0 0.0
      %845 = vmatmul.mubr.f32.gmra.mrb[0].mxu0 %v701
      %v846 = vpop.f32.mrb[0].mxu0
      %v847 = vadd.f32 %v558, %v846
      %v848 = vpop.f32.mrb[0].mxu0
      %849 = vmatprep.mubr.f32.mxu0 0.0
      %850 = vmatmul.mubr.f32.gmra.mrb[0].mxu0 %v703
      %v851 = vpop.f32.mrb[0].mxu0
      %v852 = vadd.f32 %v563, %v851
      %v853 = vpop.f32.mrb[0].mxu0
      %854 = vmatprep.mubr.f32.mxu0 0.0
      %855 = vmatmul.mubr.f32.gmra.mrb[0].mxu0 %v705
      %v856 = vpop.f32.mrb[0].mxu0
      %v857 = vadd.f32 %v568, %v856
      %v858 = vpop.f32.mrb[0].mxu0
      %859 = vmatprep.mubr.f32.mxu0 0.0
      %860 = vmatmul.mubr.f32.gmra.mrb[0].mxu0 %v707
      %v861 = vpop.f32.mrb[0].mxu0
      %v862 = vadd.f32 %v573, %v861
      %v863 = vpop.f32.mrb[0].mxu0
      %864 = vmatprep.mubr.f32.mxu0 0.0
      %865 = vmatmul.mubr.f32.gmra.mrb[0].mxu0 %v709
      %v866 = vpop.f32.mrb[0].mxu0
      %v867 = vadd.f32 %v578, %v866
      %v868 = vpop.f32.mrb[0].mxu0
      %869 = vmatprep.mubr.f32.mxu0 0.0
      %870 = vmatmul.mubr.f32.gmra.mrb[0].mxu0 %v711
      %v871 = vpop.f32.mrb[0].mxu0
      %v872 = vadd.f32 %v583, %v871
      %v873 = vpop.f32.mrb[0].mxu0
      %874 = vmatprep.mubr.f32.mxu0 0.0
      %875 = vmatmul.mubr.f32.gmra.mrb[0].mxu0 %v713
      %v876 = vpop.f32.mrb[0].mxu0
      %v877 = vadd.f32 %v588, %v876
      %v878 = vpop.f32.mrb[0].mxu0
      %879 = vmatprep.mubr.f32.mxu0 0.0
      %880 = vmatmul.mubr.f32.gmra.mrb[0].mxu0 %v715
      %v881 = vpop.f32.mrb[0].mxu0
      %v882 = vadd.f32 %v593, %v881
      %v883 = vpop.f32.mrb[0].mxu0
      %884 = vmatprep.mubr.f32.mxu0 0.0
      %885 = vmatmul.mubr.f32.gmra.mrb[0].mxu0 %v717
      %v886 = vpop.f32.mrb[0].mxu0
      %v887 = vadd.f32 %v598, %v886
      %v888 = vpop.f32.mrb[0].mxu0
      %889 = vmatprep.mubr.f32.mxu0 0.0
      %890 = vmatmul.mubr.f32.gmra.mrb[0].mxu0 %v719
      %v891 = vpop.f32.mrb[0].mxu0
      %v892 = vadd.f32 %v603, %v891
      %v893 = vpop.f32.mrb[0].mxu0
      %894 = vmatprep.mubr.f32.mxu0 0.0
      %895 = vmatmul.mubr.f32.gmra.mrb[0].mxu0 %v721
      %v896 = vpop.f32.mrb[0].mxu0
      %v897 = vadd.f32 %v608, %v896
      %v898 = vpop.f32.mrb[0].mxu0
      %899 = vmatprep.mubr.f32.mxu0 0.0
      %900 = vmatmul.mubr.f32.gmra.mrb[0].mxu0 %v723
      %v901 = vpop.f32.mrb[0].mxu0
      %v902 = vadd.f32 %v613, %v901
      %v903 = vpop.f32.mrb[0].mxu0
      %904 = vmatprep.mubr.f32.mxu0 0.0
      %905 = vmatmul.mubr.f32.gmra.mrb[0].mxu0 %v725
      %v906 = vpop.f32.mrb[0].mxu0
      %v907 = vadd.f32 %v618, %v906
      %v908 = vpop.f32.mrb[0].mxu0
      %909 = vmatprep.mubr.f32.mxu0 0.0
      %910 = vmatmul.mubr.f32.gmra.mrb[0].mxu0 %v727
      %v911 = vpop.f32.mrb[0].mxu0
      %v912 = vadd.f32 %v623, %v911
      %v913 = vpop.f32.mrb[0].mxu0
      %914 = vmatprep.mubr.f32.mxu0 0.0
      %915 = vmatmul.mubr.f32.gmra.mrb[0].mxu0 %v729
      %v916 = vpop.f32.mrb[0].mxu0
      %v917 = vadd.f32 %v628, %v916
      %v918 = vpop.f32.mrb[0].mxu0
      %919 = vmatprep.mubr.f32.mxu0 0.0
      %920 = vmatmul.mubr.f32.gmra.mrb[0].mxu0 %v731
      %v921 = vpop.f32.mrb[0].mxu0
      %v922 = vadd.f32 %v633, %v921
      %v923 = vpop.f32.mrb[0].mxu0
      %924 = vmatprep.mubr.f32.mxu0 0.0
      %925 = vmatmul.mubr.f32.gmra.mrb[0].mxu0 %v733
      %v926 = vpop.f32.mrb[0].mxu0
      %v927 = vadd.f32 %v638, %v926
      %v928 = vpop.f32.mrb[0].mxu0
      %929 = vmatprep.mubr.f32.mxu0 0.0
      %930 = vmatmul.mubr.f32.gmra.mrb[0].mxu0 %v735
      %v931 = vpop.f32.mrb[0].mxu0
      %v932 = vadd.f32 %v643, %v931
      %v933 = vpop.f32.mrb[0].mxu0
      %934 = vmatprep.mubr.f32.mxu0 0.0
      %935 = vmatmul.mubr.f32.gmra.mrb[0].mxu0 %v737
      %v936 = vpop.f32.mrb[0].mxu0
      %v937 = vadd.f32 %v648, %v936
      %v938 = vpop.f32.mrb[0].mxu0
      %939 = vmatprep.mubr.f32.mxu0 0.0
      %940 = vmatmul.mubr.f32.gmra.mrb[0].mxu0 %v739
      %v941 = vpop.f32.mrb[0].mxu0
      %v942 = vadd.f32 %v653, %v941
      %v943 = vpop.f32.mrb[0].mxu0
      %944 = vmatprep.mubr.f32.mxu0 0.0
      %945 = vmatmul.mubr.f32.gmra.mrb[0].mxu0 %v741
      %v946 = vpop.f32.mrb[0].mxu0
      %v947 = vadd.f32 %v658, %v946
      %v948 = vpop.f32.mrb[0].mxu0
      %949 = vmatprep.mubr.f32.mxu0 0.0
      %950 = vmatmul.mubr.f32.gmra.mrb[0].mxu0 %v743
      %v951 = vpop.f32.mrb[0].mxu0
      %v952 = vadd.f32 %v663, %v951
      %v953 = vpop.f32.mrb[0].mxu0
      %954 = vmatprep.mubr.f32.mxu0 0.0
      %955 = vmatmul.mubr.f32.gmra.mrb[0].mxu0 %v745
      %v956 = vpop.f32.mrb[0].mxu0
      %v957 = vadd.f32 %v668, %v956
      %v958 = vpop.f32.mrb[0].mxu0
      %959 = vmatprep.mubr.f32.mxu0 0.0
      %960 = vmatmul.mubr.f32.gmra.mrb[0].mxu0 %v747
      %v961 = vpop.f32.mrb[0].mxu0
      %v962 = vadd.f32 %v673, %v961
      %v963 = vpop.f32.mrb[0].mxu0
      %964 = vmatprep.mubr.f32.mxu0 0.0
      %965 = vmatmul.mubr.f32.gmra.mrb[0].mxu0 %v749
      %v966 = vpop.f32.mrb[0].mxu0
      %v967 = vadd.f32 %v678, %v966
      %v968 = vpop.f32.mrb[0].mxu0
      %969 = vmatprep.mubr.f32.mxu0 0.0
      %970 = vmatmul.mubr.f32.gmra.mrb[0].mxu0 %v751
      %v971 = vpop.f32.mrb[0].mxu0
      %v972 = vadd.f32 %v683, %v971
      %v973 = vpop.f32.mrb[0].mxu0
      %974 = vmatprep.mubr.f32.mxu0 0.0
      %975 = vmatmul.mubr.f32.gmra.mrb[0].mxu0 %v753
      %v976 = vpop.f32.mrb[0].mxu0
      %v977 = vadd.f32 %v688, %v976
      %v978 = vpop.f32.mrb[0].mxu0
      %979 = vdwg.mxu0
      %vm980 = vcmask 1045504
      %v981 = vrot.slane %v215, 2
      %v982 = vrot.slane %v216, 2
      %v983 = vsel %vm980, %v981, %v982
      %v984 = vrot.slane %v217, 2
      %v985 = vsel %vm980, %v982, %v984
      %v986 = vrot.slane %v218, 2
      %v987 = vrot.slane %v219, 2
      %v988 = vsel %vm980, %v986, %v987
      %v989 = vrot.slane %v220, 2
      %v990 = vsel %vm980, %v987, %v989
      %v991 = vrot.slane %v221, 2
      %v992 = vrot.slane %v222, 2
      %v993 = vsel %vm980, %v991, %v992
      %v994 = vrot.slane %v223, 2
      %v995 = vsel %vm980, %v992, %v994
      %v996 = vrot.slane %v224, 2
      %v997 = vrot.slane %v225, 2
      %v998 = vsel %vm980, %v996, %v997
      %v999 = vrot.slane %v226, 2
      %v1000 = vsel %vm980, %v997, %v999
      %v1001 = vrot.slane %v227, 2
      %v1002 = vrot.slane %v228, 2
      %v1003 = vsel %vm980, %v1001, %v1002
      %v1004 = vrot.slane %v229, 2
      %v1005 = vsel %vm980, %v1002, %v1004
      %v1006 = vrot.slane %v230, 2
      %v1007 = vrot.slane %v231, 2
      %v1008 = vsel %vm980, %v1006, %v1007
      %v1009 = vrot.slane %v232, 2
      %v1010 = vsel %vm980, %v1007, %v1009
      %v1011 = vrot.slane %v233, 2
      %v1012 = vrot.slane %v234, 2
      %v1013 = vsel %vm980, %v1011, %v1012
      %v1014 = vrot.slane %v235, 2
      %v1015 = vsel %vm980, %v1012, %v1014
      %v1016 = vrot.slane %v236, 2
      %v1017 = vrot.slane %v237, 2
      %v1018 = vsel %vm980, %v1016, %v1017
      %v1019 = vrot.slane %v238, 2
      %v1020 = vsel %vm980, %v1017, %v1019
      %v1021 = vrot.slane %v239, 2
      %v1022 = vrot.slane %v240, 2
      %v1023 = vsel %vm980, %v1021, %v1022
      %v1024 = vrot.slane %v241, 2
      %v1025 = vsel %vm980, %v1022, %v1024
      %v1026 = vrot.slane %v242, 2
      %v1027 = vrot.slane %v243, 2
      %v1028 = vsel %vm980, %v1026, %v1027
      %v1029 = vrot.slane %v244, 2
      %v1030 = vsel %vm980, %v1027, %v1029
      %v1031 = vrot.slane %v245, 2
      %v1032 = vrot.slane %v246, 2
      %v1033 = vsel %vm980, %v1031, %v1032
      %v1034 = vrot.slane %v247, 2
      %v1035 = vsel %vm980, %v1032, %v1034
      %v1036 = vrot.slane %v248, 2
      %v1037 = vrot.slane %v249, 2
      %v1038 = vsel %vm980, %v1036, %v1037
      %v1039 = vrot.slane %v250, 2
      %v1040 = vsel %vm980, %v1037, %v1039
      %v1041 = vrot.slane %v251, 2
      %v1042 = vrot.slane %v252, 2
      %v1043 = vsel %vm980, %v1041, %v1042
      %v1044 = vrot.slane %v253, 2
      %v1045 = vsel %vm980, %v1042, %v1044
      %v1046 = vrot.slane %v254, 2
      %v1047 = vrot.slane %v255, 2
      %v1048 = vsel %vm980, %v1046, %v1047
      %v1049 = vrot.slane %v256, 2
      %v1050 = vsel %vm980, %v1047, %v1049
      %v1051 = vrot.slane %v257, 2
      %v1052 = vrot.slane %v258, 2
      %v1053 = vsel %vm980, %v1051, %v1052
      %v1054 = vrot.slane %v259, 2
      %v1055 = vsel %vm980, %v1052, %v1054
      %v1056 = vrot.slane %v260, 2
      %v1057 = vrot.slane %v261, 2
      %v1058 = vsel %vm980, %v1056, %v1057
      %v1059 = vrot.slane %v262, 2
      %v1060 = vsel %vm980, %v1057, %v1059
      %s1061 = scalar_lea.vmem %s1, 16
      %v1062 = vld [vmem:[%s1061] sm:$0xff]
      %v1063 = vsel %vm401, %v983, 0
      %v1065 = vsel %vm401, %v985, 0
      %v1067 = vsel %vm401, %v988, 0
      %v1069 = vsel %vm401, %v990, 0
      %v1071 = vsel %vm401, %v993, 0
      %v1073 = vsel %vm401, %v995, 0
      %v1075 = vsel %vm401, %v998, 0
      %v1077 = vsel %vm401, %v1000, 0
      %v1079 = vsel %vm401, %v1003, 0
      %v1081 = vsel %vm401, %v1005, 0
      %v1083 = vsel %vm401, %v1008, 0
      %v1085 = vsel %vm401, %v1010, 0
      %v1087 = vsel %vm401, %v1013, 0
      %v1089 = vsel %vm401, %v1015, 0
      %v1091 = vsel %vm401, %v1018, 0
      %v1093 = vsel %vm401, %v1020, 0
      %v1095 = vsel %vm401, %v1023, 0
      %v1097 = vsel %vm401, %v1025, 0
      %v1099 = vsel %vm401, %v1028, 0
      %v1101 = vsel %vm401, %v1030, 0
      %v1103 = vsel %vm401, %v1033, 0
      %v1105 = vsel %vm401, %v1035, 0
      %v1107 = vsel %vm401, %v1038, 0
      %v1109 = vsel %vm401, %v1040, 0
      %v1111 = vsel %vm401, %v1043, 0
      %v1113 = vsel %vm401, %v1045, 0
      %v1115 = vsel %vm401, %v1048, 0
      %v1117 = vsel %vm401, %v1050, 0
      %v1119 = vsel %vm401, %v1053, 0
      %v1121 = vsel %vm401, %v1055, 0
      %v1123 = vsel %vm401, %v1058, 0
      %v1125 = vsel %vm401, %v1060, 0
      %1127 = vmatprep.subr.mxu0 0.0
      %1128 = vmatpush1.msra.mxu0 %v1062
      %1129 = vmatprep.subr.mxu0 0.0
      %1130 = vmatpush1.msra.mxu0 0.0
      %1131 = vmatprep.subr.mxu0 0.0
      %1132 = vmatpush1.msra.mxu0 0.0
      %1133 = vmatprep.subr.mxu0 0.0
      %1134 = vmatpush1.msra.mxu0 0.0
      %1135 = vmatprep.subr.mxu0 0.0
      %1136 = vmatpush1.msra.mxu0 0.0
      %1137 = vmatprep.subr.mxu0 0.0
      %1138 = vmatpush1.msra.mxu0 0.0
      %1139 = vmatprep.subr.mxu0 0.0
      %1140 = vmatpush1.msra.mxu0 0.0
      %1141 = vmatprep.subr.mxu0 0.0
      %1142 = vmatpush1.msra.mxu0 0.0
      %1143 = vmatprep.subr.mxu0 0.0
      %1144 = vmatpush1.msra.mxu0 0.0
      %1145 = vmatprep.subr.mxu0 0.0
      %1146 = vmatpush1.msra.mxu0 0.0
      %1147 = vmatprep.subr.mxu0 0.0
      %1148 = vmatpush1.msra.mxu0 0.0
      %1149 = vmatprep.subr.mxu0 0.0
      %1150 = vmatpush1.msra.mxu0 0.0
      %1151 = vmatprep.subr.mxu0 0.0
      %1152 = vmatpush1.msra.mxu0 0.0
      %1153 = vmatprep.subr.mxu0 0.0
      %1154 = vmatpush1.msra.mxu0 0.0
      %1155 = vmatprep.subr.mxu0 0.0
      %1156 = vmatpush1.msra.mxu0 0.0
      %1157 = vmatprep.subr.mxu0 0.0
      %1158 = vmatpush1.msra.mxu0 0.0
      %1159 = vmatprep.subr.mxu0 0.0
      %1160 = vmatpush1.msra.mxu0 0.0
      %1161 = vmatprep.subr.mxu0 0.0
      %1162 = vmatpush1.msra.mxu0 0.0
      %1163 = vmatprep.subr.mxu0 0.0
      %1164 = vmatpush1.msra.mxu0 0.0
      %1165 = vmatprep.subr.mxu0 0.0
      %1166 = vmatpush1.msra.mxu0 0.0
      %1167 = vmatprep.subr.mxu0 0.0
      %1168 = vmatpush1.msra.mxu0 0.0
      %1169 = vmatprep.subr.mxu0 0.0
      %1170 = vmatpush1.msra.mxu0 0.0
      %1171 = vmatprep.subr.mxu0 0.0
      %1172 = vmatpush1.msra.mxu0 0.0
      %1173 = vmatprep.subr.mxu0 0.0
      %1174 = vmatpush1.msra.mxu0 0.0
      %1175 = vmatprep.subr.mxu0 0.0
      %1176 = vmatpush1.msra.mxu0 0.0
      %1177 = vmatprep.subr.mxu0 0.0
      %1178 = vmatpush1.msra.mxu0 0.0
      %1179 = vmatprep.subr.mxu0 0.0
      %1180 = vmatpush1.msra.mxu0 0.0
      %1181 = vmatprep.subr.mxu0 0.0
      %1182 = vmatpush1.msra.mxu0 0.0
      %1183 = vmatprep.subr.mxu0 0.0
      %1184 = vmatpush1.msra.mxu0 0.0
      %1185 = vmatprep.subr.mxu0 0.0
      %1186 = vmatpush1.msra.mxu0 0.0
      %1187 = vmatprep.subr.mxu0 0.0
      %1188 = vmatpush1.msra.mxu0 0.0
      %1189 = vmatprep.subr.mxu0 0.0
      %1190 = vmatpush1.msra.mxu0 0.0
      %1191 = vmatprep.mubr.f32.mxu0 0.0
      %1192 = vmatmul.mubr.f32.gmra.mrb[0].mxu0 %v1063
      %v1193 = vpop.f32.mrb[0].mxu0
      %v1194 = vadd.f32 0.0, %v1193
      %v1195 = vpop.f32.mrb[0].mxu0
      %1196 = vmatprep.mubr.f32.mxu0 0.0
      %1197 = vmatmul.mubr.f32.gmra.mrb[0].mxu0 %v1065
      %v1198 = vpop.f32.mrb[0].mxu0
      %v1199 = vadd.f32 0.0, %v1198
      %v1200 = vpop.f32.mrb[0].mxu0
      %1201 = vmatprep.mubr.f32.mxu0 0.0
      %1202 = vmatmul.mubr.f32.gmra.mrb[0].mxu0 %v1067
      %v1203 = vpop.f32.mrb[0].mxu0
      %v1204 = vadd.f32 0.0, %v1203
      %v1205 = vpop.f32.mrb[0].mxu0
      %1206 = vmatprep.mubr.f32.mxu0 0.0
      %1207 = vmatmul.mubr.f32.gmra.mrb[0].mxu0 %v1069
      %v1208 = vpop.f32.mrb[0].mxu0
      %v1209 = vadd.f32 0.0, %v1208
      %v1210 = vpop.f32.mrb[0].mxu0
      %1211 = vmatprep.mubr.f32.mxu0 0.0
      %1212 = vmatmul.mubr.f32.gmra.mrb[0].mxu0 %v1071
      %v1213 = vpop.f32.mrb[0].mxu0
      %v1214 = vadd.f32 0.0, %v1213
      %v1215 = vpop.f32.mrb[0].mxu0
      %1216 = vmatprep.mubr.f32.mxu0 0.0
      %1217 = vmatmul.mubr.f32.gmra.mrb[0].mxu0 %v1073
      %v1218 = vpop.f32.mrb[0].mxu0
      %v1219 = vadd.f32 0.0, %v1218
      %v1220 = vpop.f32.mrb[0].mxu0
      %1221 = vmatprep.mubr.f32.mxu0 0.0
      %1222 = vmatmul.mubr.f32.gmra.mrb[0].mxu0 %v1075
      %v1223 = vpop.f32.mrb[0].mxu0
      %v1224 = vadd.f32 0.0, %v1223
      %v1225 = vpop.f32.mrb[0].mxu0
      %1226 = vmatprep.mubr.f32.mxu0 0.0
      %1227 = vmatmul.mubr.f32.gmra.mrb[0].mxu0 %v1077
      %v1228 = vpop.f32.mrb[0].mxu0
      %v1229 = vadd.f32 0.0, %v1228
      %v1230 = vpop.f32.mrb[0].mxu0
      %1231 = vmatprep.mubr.f32.mxu0 0.0
      %1232 = vmatmul.mubr.f32.gmra.mrb[0].mxu0 %v1079
      %v1233 = vpop.f32.mrb[0].mxu0
      %v1234 = vadd.f32 0.0, %v1233
      %v1235 = vpop.f32.mrb[0].mxu0
      %1236 = vmatprep.mubr.f32.mxu0 0.0
      %1237 = vmatmul.mubr.f32.gmra.mrb[0].mxu0 %v1081
      %v1238 = vpop.f32.mrb[0].mxu0
      %v1239 = vadd.f32 0.0, %v1238
      %v1240 = vpop.f32.mrb[0].mxu0
      %1241 = vmatprep.mubr.f32.mxu0 0.0
      %1242 = vmatmul.mubr.f32.gmra.mrb[0].mxu0 %v1083
      %v1243 = vpop.f32.mrb[0].mxu0
      %v1244 = vadd.f32 0.0, %v1243
      %v1245 = vpop.f32.mrb[0].mxu0
      %1246 = vmatprep.mubr.f32.mxu0 0.0
      %1247 = vmatmul.mubr.f32.gmra.mrb[0].mxu0 %v1085
      %v1248 = vpop.f32.mrb[0].mxu0
      %v1249 = vadd.f32 0.0, %v1248
      %v1250 = vpop.f32.mrb[0].mxu0
      %1251 = vmatprep.mubr.f32.mxu0 0.0
      %1252 = vmatmul.mubr.f32.gmra.mrb[0].mxu0 %v1087
      %v1253 = vpop.f32.mrb[0].mxu0
      %v1254 = vadd.f32 0.0, %v1253
      %v1255 = vpop.f32.mrb[0].mxu0
      %1256 = vmatprep.mubr.f32.mxu0 0.0
      %1257 = vmatmul.mubr.f32.gmra.mrb[0].mxu0 %v1089
      %v1258 = vpop.f32.mrb[0].mxu0
      %v1259 = vadd.f32 0.0, %v1258
      %v1260 = vpop.f32.mrb[0].mxu0
      %1261 = vmatprep.mubr.f32.mxu0 0.0
      %1262 = vmatmul.mubr.f32.gmra.mrb[0].mxu0 %v1091
      %v1263 = vpop.f32.mrb[0].mxu0
      %v1264 = vadd.f32 0.0, %v1263
      %v1265 = vpop.f32.mrb[0].mxu0
      %1266 = vmatprep.mubr.f32.mxu0 0.0
      %1267 = vmatmul.mubr.f32.gmra.mrb[0].mxu0 %v1093
      %v1268 = vpop.f32.mrb[0].mxu0
      %v1269 = vadd.f32 0.0, %v1268
      %v1270 = vpop.f32.mrb[0].mxu0
      %1271 = vmatprep.mubr.f32.mxu0 0.0
      %1272 = vmatmul.mubr.f32.gmra.mrb[0].mxu0 %v1095
      %v1273 = vpop.f32.mrb[0].mxu0
      %v1274 = vadd.f32 0.0, %v1273
      %v1275 = vpop.f32.mrb[0].mxu0
      %1276 = vmatprep.mubr.f32.mxu0 0.0
      %1277 = vmatmul.mubr.f32.gmra.mrb[0].mxu0 %v1097
      %v1278 = vpop.f32.mrb[0].mxu0
      %v1279 = vadd.f32 0.0, %v1278
      %v1280 = vpop.f32.mrb[0].mxu0
      %1281 = vmatprep.mubr.f32.mxu0 0.0
      %1282 = vmatmul.mubr.f32.gmra.mrb[0].mxu0 %v1099
      %v1283 = vpop.f32.mrb[0].mxu0
      %v1284 = vadd.f32 0.0, %v1283
      %v1285 = vpop.f32.mrb[0].mxu0
      %1286 = vmatprep.mubr.f32.mxu0 0.0
      %1287 = vmatmul.mubr.f32.gmra.mrb[0].mxu0 %v1101
      %v1288 = vpop.f32.mrb[0].mxu0
      %v1289 = vadd.f32 0.0, %v1288
      %v1290 = vpop.f32.mrb[0].mxu0
      %1291 = vmatprep.mubr.f32.mxu0 0.0
      %1292 = vmatmul.mubr.f32.gmra.mrb[0].mxu0 %v1103
      %v1293 = vpop.f32.mrb[0].mxu0
      %v1294 = vadd.f32 0.0, %v1293
      %v1295 = vpop.f32.mrb[0].mxu0
      %1296 = vmatprep.mubr.f32.mxu0 0.0
      %1297 = vmatmul.mubr.f32.gmra.mrb[0].mxu0 %v1105
      %v1298 = vpop.f32.mrb[0].mxu0
      %v1299 = vadd.f32 0.0, %v1298
      %v1300 = vpop.f32.mrb[0].mxu0
      %1301 = vmatprep.mubr.f32.mxu0 0.0
      %1302 = vmatmul.mubr.f32.gmra.mrb[0].mxu0 %v1107
      %v1303 = vpop.f32.mrb[0].mxu0
      %v1304 = vadd.f32 0.0, %v1303
      %v1305 = vpop.f32.mrb[0].mxu0
      %1306 = vmatprep.mubr.f32.mxu0 0.0
      %1307 = vmatmul.mubr.f32.gmra.mrb[0].mxu0 %v1109
      %v1308 = vpop.f32.mrb[0].mxu0
      %v1309 = vadd.f32 0.0, %v1308
      %v1310 = vpop.f32.mrb[0].mxu0
      %1311 = vmatprep.mubr.f32.mxu0 0.0
      %1312 = vmatmul.mubr.f32.gmra.mrb[0].mxu0 %v1111
      %v1313 = vpop.f32.mrb[0].mxu0
      %v1314 = vadd.f32 0.0, %v1313
      %v1315 = vpop.f32.mrb[0].mxu0
      %1316 = vmatprep.mubr.f32.mxu0 0.0
      %1317 = vmatmul.mubr.f32.gmra.mrb[0].mxu0 %v1113
      %v1318 = vpop.f32.mrb[0].mxu0
      %v1319 = vadd.f32 0.0, %v1318
      %v1320 = vpop.f32.mrb[0].mxu0
      %1321 = vmatprep.mubr.f32.mxu0 0.0
      %1322 = vmatmul.mubr.f32.gmra.mrb[0].mxu0 %v1115
      %v1323 = vpop.f32.mrb[0].mxu0
      %v1324 = vadd.f32 0.0, %v1323
      %v1325 = vpop.f32.mrb[0].mxu0
      %1326 = vmatprep.mubr.f32.mxu0 0.0
      %1327 = vmatmul.mubr.f32.gmra.mrb[0].mxu0 %v1117
      %v1328 = vpop.f32.mrb[0].mxu0
      %v1329 = vadd.f32 0.0, %v1328
      %v1330 = vpop.f32.mrb[0].mxu0
      %1331 = vmatprep.mubr.f32.mxu0 0.0
      %1332 = vmatmul.mubr.f32.gmra.mrb[0].mxu0 %v1119
      %v1333 = vpop.f32.mrb[0].mxu0
      %v1334 = vadd.f32 0.0, %v1333
      %v1335 = vpop.f32.mrb[0].mxu0
      %1336 = vmatprep.mubr.f32.mxu0 0.0
      %1337 = vmatmul.mubr.f32.gmra.mrb[0].mxu0 %v1121
      %v1338 = vpop.f32.mrb[0].mxu0
      %v1339 = vadd.f32 0.0, %v1338
      %v1340 = vpop.f32.mrb[0].mxu0
      %1341 = vmatprep.mubr.f32.mxu0 0.0
      %1342 = vmatmul.mubr.f32.gmra.mrb[0].mxu0 %v1123
      %v1343 = vpop.f32.mrb[0].mxu0
      %v1344 = vadd.f32 0.0, %v1343
      %v1345 = vpop.f32.mrb[0].mxu0
      %1346 = vmatprep.mubr.f32.mxu0 0.0
      %1347 = vmatmul.mubr.f32.gmra.mrb[0].mxu0 %v1125
      %v1348 = vpop.f32.mrb[0].mxu0
      %v1349 = vadd.f32 0.0, %v1348
      %v1350 = vpop.f32.mrb[0].mxu0
      %1351 = vdwg.mxu0
      %v1352 = vadd.f32 %v822, %v1194
      %v1353 = vadd.f32 %v827, %v1199
      %v1354 = vadd.f32 %v832, %v1204
      %v1355 = vadd.f32 %v837, %v1209
      %v1356 = vadd.f32 %v842, %v1214
      %v1357 = vadd.f32 %v847, %v1219
      %v1358 = vadd.f32 %v852, %v1224
      %v1359 = vadd.f32 %v857, %v1229
      %v1360 = vadd.f32 %v862, %v1234
      %v1361 = vadd.f32 %v867, %v1239
      %v1362 = vadd.f32 %v872, %v1244
      %v1363 = vadd.f32 %v877, %v1249
      %v1364 = vadd.f32 %v882, %v1254
      %v1365 = vadd.f32 %v887, %v1259
      %v1366 = vadd.f32 %v892, %v1264
      %v1367 = vadd.f32 %v897, %v1269
      %v1368 = vadd.f32 %v902, %v1274
      %v1369 = vadd.f32 %v907, %v1279
      %v1370 = vadd.f32 %v912, %v1284
      %v1371 = vadd.f32 %v917, %v1289
      %v1372 = vadd.f32 %v922, %v1294
      %v1373 = vadd.f32 %v927, %v1299
      %v1374 = vadd.f32 %v932, %v1304
      %v1375 = vadd.f32 %v937, %v1309
      %v1376 = vadd.f32 %v942, %v1314
      %v1377 = vadd.f32 %v947, %v1319
      %v1378 = vadd.f32 %v952, %v1324
      %v1379 = vadd.f32 %v957, %v1329
      %v1380 = vadd.f32 %v962, %v1334
      %v1381 = vadd.f32 %v967, %v1339
      %v1382 = vadd.f32 %v972, %v1344
      %v1383 = vadd.f32 %v977, %v1349
      %s1384 = scalar_lea.vmem %s1, 24
      %v1385 = vld [vmem:[%s1384] sm:$0xff]
      %v1387 = vsel %vm401, %v263, 0
      %v1390 = vsel %vm401, %v264, 0
      %1392 = vmatprep.subr.mxu0 0.0
      %1393 = vmatpush1.msra.mxu0 %v1385
      %1394 = vmatprep.subr.mxu0 0.0
      %1395 = vmatpush1.msra.mxu0 0.0
      %1396 = vmatprep.subr.mxu0 0.0
      %1397 = vmatpush1.msra.mxu0 0.0
      %1398 = vmatprep.subr.mxu0 0.0
      %1399 = vmatpush1.msra.mxu0 0.0
      %1400 = vmatprep.subr.mxu0 0.0
      %1401 = vmatpush1.msra.mxu0 0.0
      %1402 = vmatprep.subr.mxu0 0.0
      %1403 = vmatpush1.msra.mxu0 0.0
      %1404 = vmatprep.subr.mxu0 0.0
      %1405 = vmatpush1.msra.mxu0 0.0
      %1406 = vmatprep.subr.mxu0 0.0
      %1407 = vmatpush1.msra.mxu0 0.0
      %1408 = vmatprep.subr.mxu0 0.0
      %1409 = vmatpush1.msra.mxu0 0.0
      %1410 = vmatprep.subr.mxu0 0.0
      %1411 = vmatpush1.msra.mxu0 0.0
      %1412 = vmatprep.subr.mxu0 0.0
      %1413 = vmatpush1.msra.mxu0 0.0
      %1414 = vmatprep.subr.mxu0 0.0
      %1415 = vmatpush1.msra.mxu0 0.0
      %1416 = vmatprep.subr.mxu0 0.0
      %1417 = vmatpush1.msra.mxu0 0.0
      %1418 = vmatprep.subr.mxu0 0.0
      %1419 = vmatpush1.msra.mxu0 0.0
      %1420 = vmatprep.subr.mxu0 0.0
      %1421 = vmatpush1.msra.mxu0 0.0
      %1422 = vmatprep.subr.mxu0 0.0
      %1423 = vmatpush1.msra.mxu0 0.0
      %1424 = vmatprep.subr.mxu0 0.0
      %1425 = vmatpush1.msra.mxu0 0.0
      %1426 = vmatprep.subr.mxu0 0.0
      %1427 = vmatpush1.msra.mxu0 0.0
      %1428 = vmatprep.subr.mxu0 0.0
      %1429 = vmatpush1.msra.mxu0 0.0
      %1430 = vmatprep.subr.mxu0 0.0
      %1431 = vmatpush1.msra.mxu0 0.0
      %1432 = vmatprep.subr.mxu0 0.0
      %1433 = vmatpush1.msra.mxu0 0.0
      %1434 = vmatprep.subr.mxu0 0.0
      %1435 = vmatpush1.msra.mxu0 0.0
      %1436 = vmatprep.subr.mxu0 0.0
      %1437 = vmatpush1.msra.mxu0 0.0
      %1438 = vmatprep.subr.mxu0 0.0
      %1439 = vmatpush1.msra.mxu0 0.0
      %1440 = vmatprep.subr.mxu0 0.0
      %1441 = vmatpush1.msra.mxu0 0.0
      %1442 = vmatprep.subr.mxu0 0.0
      %1443 = vmatpush1.msra.mxu0 0.0
      %1444 = vmatprep.subr.mxu0 0.0
      %1445 = vmatpush1.msra.mxu0 0.0
      %1446 = vmatprep.subr.mxu0 0.0
      %1447 = vmatpush1.msra.mxu0 0.0
      %1448 = vmatprep.subr.mxu0 0.0
      %1449 = vmatpush1.msra.mxu0 0.0
      %1450 = vmatprep.subr.mxu0 0.0
      %1451 = vmatpush1.msra.mxu0 0.0
      %1452 = vmatprep.subr.mxu0 0.0
      %1453 = vmatpush1.msra.mxu0 0.0
      %1454 = vmatprep.subr.mxu0 0.0
      %1455 = vmatpush1.msra.mxu0 0.0
      %1456 = vmatprep.mubr.f32.mxu0 0.0
      %1457 = vmatmul.mubr.f32.gmra.mrb[0].mxu0 %v695
      %v1458 = vpop.f32.mrb[0].mxu0
      %v1459 = vadd.f32 0.0, %v1458
      %v1460 = vpop.f32.mrb[0].mxu0
      %1461 = vmatprep.mubr.f32.mxu0 0.0
      %1462 = vmatmul.mubr.f32.gmra.mrb[0].mxu0 %v697
      %v1463 = vpop.f32.mrb[0].mxu0
      %v1464 = vadd.f32 0.0, %v1463
      %v1465 = vpop.f32.mrb[0].mxu0
      %1466 = vmatprep.mubr.f32.mxu0 0.0
      %1467 = vmatmul.mubr.f32.gmra.mrb[0].mxu0 %v699
      %v1468 = vpop.f32.mrb[0].mxu0
      %v1469 = vadd.f32 0.0, %v1468
      %v1470 = vpop.f32.mrb[0].mxu0
      %1471 = vmatprep.mubr.f32.mxu0 0.0
      %1472 = vmatmul.mubr.f32.gmra.mrb[0].mxu0 %v701
      %v1473 = vpop.f32.mrb[0].mxu0
      %v1474 = vadd.f32 0.0, %v1473
      %v1475 = vpop.f32.mrb[0].mxu0
      %1476 = vmatprep.mubr.f32.mxu0 0.0
      %1477 = vmatmul.mubr.f32.gmra.mrb[0].mxu0 %v703
      %v1478 = vpop.f32.mrb[0].mxu0
      %v1479 = vadd.f32 0.0, %v1478
      %v1480 = vpop.f32.mrb[0].mxu0
      %1481 = vmatprep.mubr.f32.mxu0 0.0
      %1482 = vmatmul.mubr.f32.gmra.mrb[0].mxu0 %v705
      %v1483 = vpop.f32.mrb[0].mxu0
      %v1484 = vadd.f32 0.0, %v1483
      %v1485 = vpop.f32.mrb[0].mxu0
      %1486 = vmatprep.mubr.f32.mxu0 0.0
      %1487 = vmatmul.mubr.f32.gmra.mrb[0].mxu0 %v707
      %v1488 = vpop.f32.mrb[0].mxu0
      %v1489 = vadd.f32 0.0, %v1488
      %v1490 = vpop.f32.mrb[0].mxu0
      %1491 = vmatprep.mubr.f32.mxu0 0.0
      %1492 = vmatmul.mubr.f32.gmra.mrb[0].mxu0 %v709
      %v1493 = vpop.f32.mrb[0].mxu0
      %v1494 = vadd.f32 0.0, %v1493
      %v1495 = vpop.f32.mrb[0].mxu0
      %1496 = vmatprep.mubr.f32.mxu0 0.0
      %1497 = vmatmul.mubr.f32.gmra.mrb[0].mxu0 %v711
      %v1498 = vpop.f32.mrb[0].mxu0
      %v1499 = vadd.f32 0.0, %v1498
      %v1500 = vpop.f32.mrb[0].mxu0
      %1501 = vmatprep.mubr.f32.mxu0 0.0
      %1502 = vmatmul.mubr.f32.gmra.mrb[0].mxu0 %v713
      %v1503 = vpop.f32.mrb[0].mxu0
      %v1504 = vadd.f32 0.0, %v1503
      %v1505 = vpop.f32.mrb[0].mxu0
      %1506 = vmatprep.mubr.f32.mxu0 0.0
      %1507 = vmatmul.mubr.f32.gmra.mrb[0].mxu0 %v715
      %v1508 = vpop.f32.mrb[0].mxu0
      %v1509 = vadd.f32 0.0, %v1508
      %v1510 = vpop.f32.mrb[0].mxu0
      %1511 = vmatprep.mubr.f32.mxu0 0.0
      %1512 = vmatmul.mubr.f32.gmra.mrb[0].mxu0 %v717
      %v1513 = vpop.f32.mrb[0].mxu0
      %v1514 = vadd.f32 0.0, %v1513
      %v1515 = vpop.f32.mrb[0].mxu0
      %1516 = vmatprep.mubr.f32.mxu0 0.0
      %1517 = vmatmul.mubr.f32.gmra.mrb[0].mxu0 %v719
      %v1518 = vpop.f32.mrb[0].mxu0
      %v1519 = vadd.f32 0.0, %v1518
      %v1520 = vpop.f32.mrb[0].mxu0
      %1521 = vmatprep.mubr.f32.mxu0 0.0
      %1522 = vmatmul.mubr.f32.gmra.mrb[0].mxu0 %v721
      %v1523 = vpop.f32.mrb[0].mxu0
      %v1524 = vadd.f32 0.0, %v1523
      %v1525 = vpop.f32.mrb[0].mxu0
      %1526 = vmatprep.mubr.f32.mxu0 0.0
      %1527 = vmatmul.mubr.f32.gmra.mrb[0].mxu0 %v723
      %v1528 = vpop.f32.mrb[0].mxu0
      %v1529 = vadd.f32 0.0, %v1528
      %v1530 = vpop.f32.mrb[0].mxu0
      %1531 = vmatprep.mubr.f32.mxu0 0.0
      %1532 = vmatmul.mubr.f32.gmra.mrb[0].mxu0 %v725
      %v1533 = vpop.f32.mrb[0].mxu0
      %v1534 = vadd.f32 0.0, %v1533
      %v1535 = vpop.f32.mrb[0].mxu0
      %1536 = vmatprep.mubr.f32.mxu0 0.0
      %1537 = vmatmul.mubr.f32.gmra.mrb[0].mxu0 %v727
      %v1538 = vpop.f32.mrb[0].mxu0
      %v1539 = vadd.f32 0.0, %v1538
      %v1540 = vpop.f32.mrb[0].mxu0
      %1541 = vmatprep.mubr.f32.mxu0 0.0
      %1542 = vmatmul.mubr.f32.gmra.mrb[0].mxu0 %v729
      %v1543 = vpop.f32.mrb[0].mxu0
      %v1544 = vadd.f32 0.0, %v1543
      %v1545 = vpop.f32.mrb[0].mxu0
      %1546 = vmatprep.mubr.f32.mxu0 0.0
      %1547 = vmatmul.mubr.f32.gmra.mrb[0].mxu0 %v731
      %v1548 = vpop.f32.mrb[0].mxu0
      %v1549 = vadd.f32 0.0, %v1548
      %v1550 = vpop.f32.mrb[0].mxu0
      %1551 = vmatprep.mubr.f32.mxu0 0.0
      %1552 = vmatmul.mubr.f32.gmra.mrb[0].mxu0 %v733
      %v1553 = vpop.f32.mrb[0].mxu0
      %v1554 = vadd.f32 0.0, %v1553
      %v1555 = vpop.f32.mrb[0].mxu0
      %1556 = vmatprep.mubr.f32.mxu0 0.0
      %1557 = vmatmul.mubr.f32.gmra.mrb[0].mxu0 %v735
      %v1558 = vpop.f32.mrb[0].mxu0
      %v1559 = vadd.f32 0.0, %v1558
      %v1560 = vpop.f32.mrb[0].mxu0
      %1561 = vmatprep.mubr.f32.mxu0 0.0
      %1562 = vmatmul.mubr.f32.gmra.mrb[0].mxu0 %v737
      %v1563 = vpop.f32.mrb[0].mxu0
      %v1564 = vadd.f32 0.0, %v1563
      %v1565 = vpop.f32.mrb[0].mxu0
      %1566 = vmatprep.mubr.f32.mxu0 0.0
      %1567 = vmatmul.mubr.f32.gmra.mrb[0].mxu0 %v739
      %v1568 = vpop.f32.mrb[0].mxu0
      %v1569 = vadd.f32 0.0, %v1568
      %v1570 = vpop.f32.mrb[0].mxu0
      %1571 = vmatprep.mubr.f32.mxu0 0.0
      %1572 = vmatmul.mubr.f32.gmra.mrb[0].mxu0 %v741
      %v1573 = vpop.f32.mrb[0].mxu0
      %v1574 = vadd.f32 0.0, %v1573
      %v1575 = vpop.f32.mrb[0].mxu0
      %1576 = vmatprep.mubr.f32.mxu0 0.0
      %1577 = vmatmul.mubr.f32.gmra.mrb[0].mxu0 %v743
      %v1578 = vpop.f32.mrb[0].mxu0
      %v1579 = vadd.f32 0.0, %v1578
      %v1580 = vpop.f32.mrb[0].mxu0
      %1581 = vmatprep.mubr.f32.mxu0 0.0
      %1582 = vmatmul.mubr.f32.gmra.mrb[0].mxu0 %v745
      %v1583 = vpop.f32.mrb[0].mxu0
      %v1584 = vadd.f32 0.0, %v1583
      %v1585 = vpop.f32.mrb[0].mxu0
      %1586 = vmatprep.mubr.f32.mxu0 0.0
      %1587 = vmatmul.mubr.f32.gmra.mrb[0].mxu0 %v747
      %v1588 = vpop.f32.mrb[0].mxu0
      %v1589 = vadd.f32 0.0, %v1588
      %v1590 = vpop.f32.mrb[0].mxu0
      %1591 = vmatprep.mubr.f32.mxu0 0.0
      %1592 = vmatmul.mubr.f32.gmra.mrb[0].mxu0 %v749
      %v1593 = vpop.f32.mrb[0].mxu0
      %v1594 = vadd.f32 0.0, %v1593
      %v1595 = vpop.f32.mrb[0].mxu0
      %1596 = vmatprep.mubr.f32.mxu0 0.0
      %1597 = vmatmul.mubr.f32.gmra.mrb[0].mxu0 %v751
      %v1598 = vpop.f32.mrb[0].mxu0
      %v1599 = vadd.f32 0.0, %v1598
      %v1600 = vpop.f32.mrb[0].mxu0
      %1601 = vmatprep.mubr.f32.mxu0 0.0
      %1602 = vmatmul.mubr.f32.gmra.mrb[0].mxu0 %v753
      %v1603 = vpop.f32.mrb[0].mxu0
      %v1604 = vadd.f32 0.0, %v1603
      %v1605 = vpop.f32.mrb[0].mxu0
      %1606 = vmatprep.mubr.f32.mxu0 0.0
      %1607 = vmatmul.mubr.f32.gmra.mrb[0].mxu0 %v1387
      %v1608 = vpop.f32.mrb[0].mxu0
      %v1609 = vadd.f32 0.0, %v1608
      %v1610 = vpop.f32.mrb[0].mxu0
      %1611 = vmatprep.mubr.f32.mxu0 0.0
      %1612 = vmatmul.mubr.f32.gmra.mrb[0].mxu0 %v1390
      %v1613 = vpop.f32.mrb[0].mxu0
      %v1614 = vadd.f32 0.0, %v1613
      %v1615 = vpop.f32.mrb[0].mxu0
      %1616 = vdwg.mxu0
      %v1617 = vadd.f32 %v1352, %v1459
      %v1618 = vadd.f32 %v1353, %v1464
      %v1619 = vadd.f32 %v1354, %v1469
      %v1620 = vadd.f32 %v1355, %v1474
      %v1621 = vadd.f32 %v1356, %v1479
      %v1622 = vadd.f32 %v1357, %v1484
      %v1623 = vadd.f32 %v1358, %v1489
      %v1624 = vadd.f32 %v1359, %v1494
      %v1625 = vadd.f32 %v1360, %v1499
      %v1626 = vadd.f32 %v1361, %v1504
      %v1627 = vadd.f32 %v1362, %v1509
      %v1628 = vadd.f32 %v1363, %v1514
      %v1629 = vadd.f32 %v1364, %v1519
      %v1630 = vadd.f32 %v1365, %v1524
      %v1631 = vadd.f32 %v1366, %v1529
      %v1632 = vadd.f32 %v1367, %v1534
      %v1633 = vadd.f32 %v1368, %v1539
      %v1634 = vadd.f32 %v1369, %v1544
      %v1635 = vadd.f32 %v1370, %v1549
      %v1636 = vadd.f32 %v1371, %v1554
      %v1637 = vadd.f32 %v1372, %v1559
      %v1638 = vadd.f32 %v1373, %v1564
      %v1639 = vadd.f32 %v1374, %v1569
      %v1640 = vadd.f32 %v1375, %v1574
      %v1641 = vadd.f32 %v1376, %v1579
      %v1642 = vadd.f32 %v1377, %v1584
      %v1643 = vadd.f32 %v1378, %v1589
      %v1644 = vadd.f32 %v1379, %v1594
      %v1645 = vadd.f32 %v1380, %v1599
      %v1646 = vadd.f32 %v1381, %v1604
      %v1647 = vadd.f32 %v1382, %v1609
      %v1648 = vadd.f32 %v1383, %v1614
      %v1650 = vrot.slane %v263, 1
      %v1651 = vrot.slane %v264, 1
      %v1652 = vsel %vm318, %v1650, %v1651
      %v1653 = vrot.slane %v265, 1
      %v1654 = vsel %vm318, %v1651, %v1653
      %s1655 = scalar_lea.vmem %s1, 32
      %v1656 = vld [vmem:[%s1655] sm:$0xff]
      %v1657 = vsel %vm401, %v1652, 0
      %v1659 = vsel %vm401, %v1654, 0
      %1661 = vmatprep.subr.mxu0 0.0
      %1662 = vmatpush1.msra.mxu0 %v1656
      %1663 = vmatprep.subr.mxu0 0.0
      %1664 = vmatpush1.msra.mxu0 0.0
      %1665 = vmatprep.subr.mxu0 0.0
      %1666 = vmatpush1.msra.mxu0 0.0
      %1667 = vmatprep.subr.mxu0 0.0
      %1668 = vmatpush1.msra.mxu0 0.0
      %1669 = vmatprep.subr.mxu0 0.0
      %1670 = vmatpush1.msra.mxu0 0.0
      %1671 = vmatprep.subr.mxu0 0.0
      %1672 = vmatpush1.msra.mxu0 0.0
      %1673 = vmatprep.subr.mxu0 0.0
      %1674 = vmatpush1.msra.mxu0 0.0
      %1675 = vmatprep.subr.mxu0 0.0
      %1676 = vmatpush1.msra.mxu0 0.0
      %1677 = vmatprep.subr.mxu0 0.0
      %1678 = vmatpush1.msra.mxu0 0.0
      %1679 = vmatprep.subr.mxu0 0.0
      %1680 = vmatpush1.msra.mxu0 0.0
      %1681 = vmatprep.subr.mxu0 0.0
      %1682 = vmatpush1.msra.mxu0 0.0
      %1683 = vmatprep.subr.mxu0 0.0
      %1684 = vmatpush1.msra.mxu0 0.0
      %1685 = vmatprep.subr.mxu0 0.0
      %1686 = vmatpush1.msra.mxu0 0.0
      %1687 = vmatprep.subr.mxu0 0.0
      %1688 = vmatpush1.msra.mxu0 0.0
      %1689 = vmatprep.subr.mxu0 0.0
      %1690 = vmatpush1.msra.mxu0 0.0
      %1691 = vmatprep.subr.mxu0 0.0
      %1692 = vmatpush1.msra.mxu0 0.0
      %1693 = vmatprep.subr.mxu0 0.0
      %1694 = vmatpush1.msra.mxu0 0.0
      %1695 = vmatprep.subr.mxu0 0.0
      %1696 = vmatpush1.msra.mxu0 0.0
      %1697 = vmatprep.subr.mxu0 0.0
      %1698 = vmatpush1.msra.mxu0 0.0
      %1699 = vmatprep.subr.mxu0 0.0
      %1700 = vmatpush1.msra.mxu0 0.0
      %1701 = vmatprep.subr.mxu0 0.0
      %1702 = vmatpush1.msra.mxu0 0.0
      %1703 = vmatprep.subr.mxu0 0.0
      %1704 = vmatpush1.msra.mxu0 0.0
      %1705 = vmatprep.subr.mxu0 0.0
      %1706 = vmatpush1.msra.mxu0 0.0
      %1707 = vmatprep.subr.mxu0 0.0
      %1708 = vmatpush1.msra.mxu0 0.0
      %1709 = vmatprep.subr.mxu0 0.0
      %1710 = vmatpush1.msra.mxu0 0.0
      %1711 = vmatprep.subr.mxu0 0.0
      %1712 = vmatpush1.msra.mxu0 0.0
      %1713 = vmatprep.subr.mxu0 0.0
      %1714 = vmatpush1.msra.mxu0 0.0
      %1715 = vmatprep.subr.mxu0 0.0
      %1716 = vmatpush1.msra.mxu0 0.0
      %1717 = vmatprep.subr.mxu0 0.0
      %1718 = vmatpush1.msra.mxu0 0.0
      %1719 = vmatprep.subr.mxu0 0.0
      %1720 = vmatpush1.msra.mxu0 0.0
      %1721 = vmatprep.subr.mxu0 0.0
      %1722 = vmatpush1.msra.mxu0 0.0
      %1723 = vmatprep.subr.mxu0 0.0
      %1724 = vmatpush1.msra.mxu0 0.0
      %1725 = vmatprep.mubr.f32.mxu0 0.0
      %1726 = vmatmul.mubr.f32.gmra.mrb[0].mxu0 %v406
      %v1727 = vpop.f32.mrb[0].mxu0
      %v1728 = vadd.f32 0.0, %v1727
      %v1729 = vpop.f32.mrb[0].mxu0
      %1730 = vmatprep.mubr.f32.mxu0 0.0
      %1731 = vmatmul.mubr.f32.gmra.mrb[0].mxu0 %v408
      %v1732 = vpop.f32.mrb[0].mxu0
      %v1733 = vadd.f32 0.0, %v1732
      %v1734 = vpop.f32.mrb[0].mxu0
      %1735 = vmatprep.mubr.f32.mxu0 0.0
      %1736 = vmatmul.mubr.f32.gmra.mrb[0].mxu0 %v410
      %v1737 = vpop.f32.mrb[0].mxu0
      %v1738 = vadd.f32 0.0, %v1737
      %v1739 = vpop.f32.mrb[0].mxu0
      %1740 = vmatprep.mubr.f32.mxu0 0.0
      %1741 = vmatmul.mubr.f32.gmra.mrb[0].mxu0 %v412
      %v1742 = vpop.f32.mrb[0].mxu0
      %v1743 = vadd.f32 0.0, %v1742
      %v1744 = vpop.f32.mrb[0].mxu0
      %1745 = vmatprep.mubr.f32.mxu0 0.0
      %1746 = vmatmul.mubr.f32.gmra.mrb[0].mxu0 %v414
      %v1747 = vpop.f32.mrb[0].mxu0
      %v1748 = vadd.f32 0.0, %v1747
      %v1749 = vpop.f32.mrb[0].mxu0
      %1750 = vmatprep.mubr.f32.mxu0 0.0
      %1751 = vmatmul.mubr.f32.gmra.mrb[0].mxu0 %v416
      %v1752 = vpop.f32.mrb[0].mxu0
      %v1753 = vadd.f32 0.0, %v1752
      %v1754 = vpop.f32.mrb[0].mxu0
      %1755 = vmatprep.mubr.f32.mxu0 0.0
      %1756 = vmatmul.mubr.f32.gmra.mrb[0].mxu0 %v418
      %v1757 = vpop.f32.mrb[0].mxu0
      %v1758 = vadd.f32 0.0, %v1757
      %v1759 = vpop.f32.mrb[0].mxu0
      %1760 = vmatprep.mubr.f32.mxu0 0.0
      %1761 = vmatmul.mubr.f32.gmra.mrb[0].mxu0 %v420
      %v1762 = vpop.f32.mrb[0].mxu0
      %v1763 = vadd.f32 0.0, %v1762
      %v1764 = vpop.f32.mrb[0].mxu0
      %1765 = vmatprep.mubr.f32.mxu0 0.0
      %1766 = vmatmul.mubr.f32.gmra.mrb[0].mxu0 %v422
      %v1767 = vpop.f32.mrb[0].mxu0
      %v1768 = vadd.f32 0.0, %v1767
      %v1769 = vpop.f32.mrb[0].mxu0
      %1770 = vmatprep.mubr.f32.mxu0 0.0
      %1771 = vmatmul.mubr.f32.gmra.mrb[0].mxu0 %v424
      %v1772 = vpop.f32.mrb[0].mxu0
      %v1773 = vadd.f32 0.0, %v1772
      %v1774 = vpop.f32.mrb[0].mxu0
      %1775 = vmatprep.mubr.f32.mxu0 0.0
      %1776 = vmatmul.mubr.f32.gmra.mrb[0].mxu0 %v426
      %v1777 = vpop.f32.mrb[0].mxu0
      %v1778 = vadd.f32 0.0, %v1777
      %v1779 = vpop.f32.mrb[0].mxu0
      %1780 = vmatprep.mubr.f32.mxu0 0.0
      %1781 = vmatmul.mubr.f32.gmra.mrb[0].mxu0 %v428
      %v1782 = vpop.f32.mrb[0].mxu0
      %v1783 = vadd.f32 0.0, %v1782
      %v1784 = vpop.f32.mrb[0].mxu0
      %1785 = vmatprep.mubr.f32.mxu0 0.0
      %1786 = vmatmul.mubr.f32.gmra.mrb[0].mxu0 %v430
      %v1787 = vpop.f32.mrb[0].mxu0
      %v1788 = vadd.f32 0.0, %v1787
      %v1789 = vpop.f32.mrb[0].mxu0
      %1790 = vmatprep.mubr.f32.mxu0 0.0
      %1791 = vmatmul.mubr.f32.gmra.mrb[0].mxu0 %v432
      %v1792 = vpop.f32.mrb[0].mxu0
      %v1793 = vadd.f32 0.0, %v1792
      %v1794 = vpop.f32.mrb[0].mxu0
      %1795 = vmatprep.mubr.f32.mxu0 0.0
      %1796 = vmatmul.mubr.f32.gmra.mrb[0].mxu0 %v434
      %v1797 = vpop.f32.mrb[0].mxu0
      %v1798 = vadd.f32 0.0, %v1797
      %v1799 = vpop.f32.mrb[0].mxu0
      %1800 = vmatprep.mubr.f32.mxu0 0.0
      %1801 = vmatmul.mubr.f32.gmra.mrb[0].mxu0 %v436
      %v1802 = vpop.f32.mrb[0].mxu0
      %v1803 = vadd.f32 0.0, %v1802
      %v1804 = vpop.f32.mrb[0].mxu0
      %1805 = vmatprep.mubr.f32.mxu0 0.0
      %1806 = vmatmul.mubr.f32.gmra.mrb[0].mxu0 %v438
      %v1807 = vpop.f32.mrb[0].mxu0
      %v1808 = vadd.f32 0.0, %v1807
      %v1809 = vpop.f32.mrb[0].mxu0
      %1810 = vmatprep.mubr.f32.mxu0 0.0
      %1811 = vmatmul.mubr.f32.gmra.mrb[0].mxu0 %v440
      %v1812 = vpop.f32.mrb[0].mxu0
      %v1813 = vadd.f32 0.0, %v1812
      %v1814 = vpop.f32.mrb[0].mxu0
      %1815 = vmatprep.mubr.f32.mxu0 0.0
      %1816 = vmatmul.mubr.f32.gmra.mrb[0].mxu0 %v442
      %v1817 = vpop.f32.mrb[0].mxu0
      %v1818 = vadd.f32 0.0, %v1817
      %v1819 = vpop.f32.mrb[0].mxu0
      %1820 = vmatprep.mubr.f32.mxu0 0.0
      %1821 = vmatmul.mubr.f32.gmra.mrb[0].mxu0 %v444
      %v1822 = vpop.f32.mrb[0].mxu0
      %v1823 = vadd.f32 0.0, %v1822
      %v1824 = vpop.f32.mrb[0].mxu0
      %1825 = vmatprep.mubr.f32.mxu0 0.0
      %1826 = vmatmul.mubr.f32.gmra.mrb[0].mxu0 %v446
      %v1827 = vpop.f32.mrb[0].mxu0
      %v1828 = vadd.f32 0.0, %v1827
      %v1829 = vpop.f32.mrb[0].mxu0
      %1830 = vmatprep.mubr.f32.mxu0 0.0
      %1831 = vmatmul.mubr.f32.gmra.mrb[0].mxu0 %v448
      %v1832 = vpop.f32.mrb[0].mxu0
      %v1833 = vadd.f32 0.0, %v1832
      %v1834 = vpop.f32.mrb[0].mxu0
      %1835 = vmatprep.mubr.f32.mxu0 0.0
      %1836 = vmatmul.mubr.f32.gmra.mrb[0].mxu0 %v450
      %v1837 = vpop.f32.mrb[0].mxu0
      %v1838 = vadd.f32 0.0, %v1837
      %v1839 = vpop.f32.mrb[0].mxu0
      %1840 = vmatprep.mubr.f32.mxu0 0.0
      %1841 = vmatmul.mubr.f32.gmra.mrb[0].mxu0 %v452
      %v1842 = vpop.f32.mrb[0].mxu0
      %v1843 = vadd.f32 0.0, %v1842
      %v1844 = vpop.f32.mrb[0].mxu0
      %1845 = vmatprep.mubr.f32.mxu0 0.0
      %1846 = vmatmul.mubr.f32.gmra.mrb[0].mxu0 %v454
      %v1847 = vpop.f32.mrb[0].mxu0
      %v1848 = vadd.f32 0.0, %v1847
      %v1849 = vpop.f32.mrb[0].mxu0
      %1850 = vmatprep.mubr.f32.mxu0 0.0
      %1851 = vmatmul.mubr.f32.gmra.mrb[0].mxu0 %v456
      %v1852 = vpop.f32.mrb[0].mxu0
      %v1853 = vadd.f32 0.0, %v1852
      %v1854 = vpop.f32.mrb[0].mxu0
      %1855 = vmatprep.mubr.f32.mxu0 0.0
      %1856 = vmatmul.mubr.f32.gmra.mrb[0].mxu0 %v458
      %v1857 = vpop.f32.mrb[0].mxu0
      %v1858 = vadd.f32 0.0, %v1857
      %v1859 = vpop.f32.mrb[0].mxu0
      %1860 = vmatprep.mubr.f32.mxu0 0.0
      %1861 = vmatmul.mubr.f32.gmra.mrb[0].mxu0 %v460
      %v1862 = vpop.f32.mrb[0].mxu0
      %v1863 = vadd.f32 0.0, %v1862
      %v1864 = vpop.f32.mrb[0].mxu0
      %1865 = vmatprep.mubr.f32.mxu0 0.0
      %1866 = vmatmul.mubr.f32.gmra.mrb[0].mxu0 %v462
      %v1867 = vpop.f32.mrb[0].mxu0
      %v1868 = vadd.f32 0.0, %v1867
      %v1869 = vpop.f32.mrb[0].mxu0
      %1870 = vmatprep.mubr.f32.mxu0 0.0
      %1871 = vmatmul.mubr.f32.gmra.mrb[0].mxu0 %v464
      %v1872 = vpop.f32.mrb[0].mxu0
      %v1873 = vadd.f32 0.0, %v1872
      %v1874 = vpop.f32.mrb[0].mxu0
      %1875 = vmatprep.mubr.f32.mxu0 0.0
      %1876 = vmatmul.mubr.f32.gmra.mrb[0].mxu0 %v1657
      %v1877 = vpop.f32.mrb[0].mxu0
      %v1878 = vadd.f32 0.0, %v1877
      %v1879 = vpop.f32.mrb[0].mxu0
      %1880 = vmatprep.mubr.f32.mxu0 0.0
      %1881 = vmatmul.mubr.f32.gmra.mrb[0].mxu0 %v1659
      %v1882 = vpop.f32.mrb[0].mxu0
      %v1883 = vadd.f32 0.0, %v1882
      %v1884 = vpop.f32.mrb[0].mxu0
      %1885 = vdwg.mxu0
      %v1886 = vadd.f32 %v1617, %v1728
      %v1887 = vadd.f32 %v1618, %v1733
      %v1888 = vadd.f32 %v1619, %v1738
      %v1889 = vadd.f32 %v1620, %v1743
      %v1890 = vadd.f32 %v1621, %v1748
      %v1891 = vadd.f32 %v1622, %v1753
      %v1892 = vadd.f32 %v1623, %v1758
      %v1893 = vadd.f32 %v1624, %v1763
      %v1894 = vadd.f32 %v1625, %v1768
      %v1895 = vadd.f32 %v1626, %v1773
      %v1896 = vadd.f32 %v1627, %v1778
      %v1897 = vadd.f32 %v1628, %v1783
      %v1898 = vadd.f32 %v1629, %v1788
      %v1899 = vadd.f32 %v1630, %v1793
      %v1900 = vadd.f32 %v1631, %v1798
      %v1901 = vadd.f32 %v1632, %v1803
      %v1902 = vadd.f32 %v1633, %v1808
      %v1903 = vadd.f32 %v1634, %v1813
      %v1904 = vadd.f32 %v1635, %v1818
      %v1905 = vadd.f32 %v1636, %v1823
      %v1906 = vadd.f32 %v1637, %v1828
      %v1907 = vadd.f32 %v1638, %v1833
      %v1908 = vadd.f32 %v1639, %v1838
      %v1909 = vadd.f32 %v1640, %v1843
      %v1910 = vadd.f32 %v1641, %v1848
      %v1911 = vadd.f32 %v1642, %v1853
      %v1912 = vadd.f32 %v1643, %v1858
      %v1913 = vadd.f32 %v1644, %v1863
      %v1914 = vadd.f32 %v1645, %v1868
      %v1915 = vadd.f32 %v1646, %v1873
      %v1916 = vadd.f32 %v1647, %v1878
      %v1917 = vadd.f32 %v1648, %v1883
      %v1918 = vrot.slane %v263, 2
      %v1919 = vrot.slane %v264, 2
      %v1920 = vsel %vm980, %v1918, %v1919
      %v1921 = vrot.slane %v265, 2
      %v1922 = vsel %vm980, %v1919, %v1921
      %s1923 = scalar_lea.vmem %s1, 40
      %v1924 = vld [vmem:[%s1923] sm:$0xff]
      %v1925 = vsel %vm401, %v1920, 0
      %v1927 = vsel %vm401, %v1922, 0
      %1929 = vmatprep.subr.mxu0 0.0
      %1930 = vmatpush1.msra.mxu0 %v1924
      %1931 = vmatprep.subr.mxu0 0.0
      %1932 = vmatpush1.msra.mxu0 0.0
      %1933 = vmatprep.subr.mxu0 0.0
      %1934 = vmatpush1.msra.mxu0 0.0
      %1935 = vmatprep.subr.mxu0 0.0
      %1936 = vmatpush1.msra.mxu0 0.0
      %1937 = vmatprep.subr.mxu0 0.0
      %1938 = vmatpush1.msra.mxu0 0.0
      %1939 = vmatprep.subr.mxu0 0.0
      %1940 = vmatpush1.msra.mxu0 0.0
      %1941 = vmatprep.subr.mxu0 0.0
      %1942 = vmatpush1.msra.mxu0 0.0
      %1943 = vmatprep.subr.mxu0 0.0
      %1944 = vmatpush1.msra.mxu0 0.0
      %1945 = vmatprep.subr.mxu0 0.0
      %1946 = vmatpush1.msra.mxu0 0.0
      %1947 = vmatprep.subr.mxu0 0.0
      %1948 = vmatpush1.msra.mxu0 0.0
      %1949 = vmatprep.subr.mxu0 0.0
      %1950 = vmatpush1.msra.mxu0 0.0
      %1951 = vmatprep.subr.mxu0 0.0
      %1952 = vmatpush1.msra.mxu0 0.0
      %1953 = vmatprep.subr.mxu0 0.0
      %1954 = vmatpush1.msra.mxu0 0.0
      %1955 = vmatprep.subr.mxu0 0.0
      %1956 = vmatpush1.msra.mxu0 0.0
      %1957 = vmatprep.subr.mxu0 0.0
      %1958 = vmatpush1.msra.mxu0 0.0
      %1959 = vmatprep.subr.mxu0 0.0
      %1960 = vmatpush1.msra.mxu0 0.0
      %1961 = vmatprep.subr.mxu0 0.0
      %1962 = vmatpush1.msra.mxu0 0.0
      %1963 = vmatprep.subr.mxu0 0.0
      %1964 = vmatpush1.msra.mxu0 0.0
      %1965 = vmatprep.subr.mxu0 0.0
      %1966 = vmatpush1.msra.mxu0 0.0
      %1967 = vmatprep.subr.mxu0 0.0
      %1968 = vmatpush1.msra.mxu0 0.0
      %1969 = vmatprep.subr.mxu0 0.0
      %1970 = vmatpush1.msra.mxu0 0.0
      %1971 = vmatprep.subr.mxu0 0.0
      %1972 = vmatpush1.msra.mxu0 0.0
      %1973 = vmatprep.subr.mxu0 0.0
      %1974 = vmatpush1.msra.mxu0 0.0
      %1975 = vmatprep.subr.mxu0 0.0
      %1976 = vmatpush1.msra.mxu0 0.0
      %1977 = vmatprep.subr.mxu0 0.0
      %1978 = vmatpush1.msra.mxu0 0.0
      %1979 = vmatprep.subr.mxu0 0.0
      %1980 = vmatpush1.msra.mxu0 0.0
      %1981 = vmatprep.subr.mxu0 0.0
      %1982 = vmatpush1.msra.mxu0 0.0
      %1983 = vmatprep.subr.mxu0 0.0
      %1984 = vmatpush1.msra.mxu0 0.0
      %1985 = vmatprep.subr.mxu0 0.0
      %1986 = vmatpush1.msra.mxu0 0.0
      %1987 = vmatprep.subr.mxu0 0.0
      %1988 = vmatpush1.msra.mxu0 0.0
      %1989 = vmatprep.subr.mxu0 0.0
      %1990 = vmatpush1.msra.mxu0 0.0
      %1991 = vmatprep.subr.mxu0 0.0
      %1992 = vmatpush1.msra.mxu0 0.0
      %1993 = vmatprep.mubr.f32.mxu0 0.0
      %1994 = vmatmul.mubr.f32.gmra.mrb[0].mxu0 %v1067
      %v1995 = vpop.f32.mrb[0].mxu0
      %v1996 = vadd.f32 0.0, %v1995
      %v1997 = vpop.f32.mrb[0].mxu0
      %1998 = vmatprep.mubr.f32.mxu0 0.0
      %1999 = vmatmul.mubr.f32.gmra.mrb[0].mxu0 %v1069
      %v2000 = vpop.f32.mrb[0].mxu0
      %v2001 = vadd.f32 0.0, %v2000
      %v2002 = vpop.f32.mrb[0].mxu0
      %2003 = vmatprep.mubr.f32.mxu0 0.0
      %2004 = vmatmul.mubr.f32.gmra.mrb[0].mxu0 %v1071
      %v2005 = vpop.f32.mrb[0].mxu0
      %v2006 = vadd.f32 0.0, %v2005
      %v2007 = vpop.f32.mrb[0].mxu0
      %2008 = vmatprep.mubr.f32.mxu0 0.0
      %2009 = vmatmul.mubr.f32.gmra.mrb[0].mxu0 %v1073
      %v2010 = vpop.f32.mrb[0].mxu0
      %v2011 = vadd.f32 0.0, %v2010
      %v2012 = vpop.f32.mrb[0].mxu0
      %2013 = vmatprep.mubr.f32.mxu0 0.0
      %2014 = vmatmul.mubr.f32.gmra.mrb[0].mxu0 %v1075
      %v2015 = vpop.f32.mrb[0].mxu0
      %v2016 = vadd.f32 0.0, %v2015
      %v2017 = vpop.f32.mrb[0].mxu0
      %2018 = vmatprep.mubr.f32.mxu0 0.0
      %2019 = vmatmul.mubr.f32.gmra.mrb[0].mxu0 %v1077
      %v2020 = vpop.f32.mrb[0].mxu0
      %v2021 = vadd.f32 0.0, %v2020
      %v2022 = vpop.f32.mrb[0].mxu0
      %2023 = vmatprep.mubr.f32.mxu0 0.0
      %2024 = vmatmul.mubr.f32.gmra.mrb[0].mxu0 %v1079
      %v2025 = vpop.f32.mrb[0].mxu0
      %v2026 = vadd.f32 0.0, %v2025
      %v2027 = vpop.f32.mrb[0].mxu0
      %2028 = vmatprep.mubr.f32.mxu0 0.0
      %2029 = vmatmul.mubr.f32.gmra.mrb[0].mxu0 %v1081
      %v2030 = vpop.f32.mrb[0].mxu0
      %v2031 = vadd.f32 0.0, %v2030
      %v2032 = vpop.f32.mrb[0].mxu0
      %2033 = vmatprep.mubr.f32.mxu0 0.0
      %2034 = vmatmul.mubr.f32.gmra.mrb[0].mxu0 %v1083
      %v2035 = vpop.f32.mrb[0].mxu0
      %v2036 = vadd.f32 0.0, %v2035
      %v2037 = vpop.f32.mrb[0].mxu0
      %2038 = vmatprep.mubr.f32.mxu0 0.0
      %2039 = vmatmul.mubr.f32.gmra.mrb[0].mxu0 %v1085
      %v2040 = vpop.f32.mrb[0].mxu0
      %v2041 = vadd.f32 0.0, %v2040
      %v2042 = vpop.f32.mrb[0].mxu0
      %2043 = vmatprep.mubr.f32.mxu0 0.0
      %2044 = vmatmul.mubr.f32.gmra.mrb[0].mxu0 %v1087
      %v2045 = vpop.f32.mrb[0].mxu0
      %v2046 = vadd.f32 0.0, %v2045
      %v2047 = vpop.f32.mrb[0].mxu0
      %2048 = vmatprep.mubr.f32.mxu0 0.0
      %2049 = vmatmul.mubr.f32.gmra.mrb[0].mxu0 %v1089
      %v2050 = vpop.f32.mrb[0].mxu0
      %v2051 = vadd.f32 0.0, %v2050
      %v2052 = vpop.f32.mrb[0].mxu0
      %2053 = vmatprep.mubr.f32.mxu0 0.0
      %2054 = vmatmul.mubr.f32.gmra.mrb[0].mxu0 %v1091
      %v2055 = vpop.f32.mrb[0].mxu0
      %v2056 = vadd.f32 0.0, %v2055
      %v2057 = vpop.f32.mrb[0].mxu0
      %2058 = vmatprep.mubr.f32.mxu0 0.0
      %2059 = vmatmul.mubr.f32.gmra.mrb[0].mxu0 %v1093
      %v2060 = vpop.f32.mrb[0].mxu0
      %v2061 = vadd.f32 0.0, %v2060
      %v2062 = vpop.f32.mrb[0].mxu0
      %2063 = vmatprep.mubr.f32.mxu0 0.0
      %2064 = vmatmul.mubr.f32.gmra.mrb[0].mxu0 %v1095
      %v2065 = vpop.f32.mrb[0].mxu0
      %v2066 = vadd.f32 0.0, %v2065
      %v2067 = vpop.f32.mrb[0].mxu0
      %2068 = vmatprep.mubr.f32.mxu0 0.0
      %2069 = vmatmul.mubr.f32.gmra.mrb[0].mxu0 %v1097
      %v2070 = vpop.f32.mrb[0].mxu0
      %v2071 = vadd.f32 0.0, %v2070
      %v2072 = vpop.f32.mrb[0].mxu0
      %2073 = vmatprep.mubr.f32.mxu0 0.0
      %2074 = vmatmul.mubr.f32.gmra.mrb[0].mxu0 %v1099
      %v2075 = vpop.f32.mrb[0].mxu0
      %v2076 = vadd.f32 0.0, %v2075
      %v2077 = vpop.f32.mrb[0].mxu0
      %2078 = vmatprep.mubr.f32.mxu0 0.0
      %2079 = vmatmul.mubr.f32.gmra.mrb[0].mxu0 %v1101
      %v2080 = vpop.f32.mrb[0].mxu0
      %v2081 = vadd.f32 0.0, %v2080
      %v2082 = vpop.f32.mrb[0].mxu0
      %2083 = vmatprep.mubr.f32.mxu0 0.0
      %2084 = vmatmul.mubr.f32.gmra.mrb[0].mxu0 %v1103
      %v2085 = vpop.f32.mrb[0].mxu0
      %v2086 = vadd.f32 0.0, %v2085
      %v2087 = vpop.f32.mrb[0].mxu0
      %2088 = vmatprep.mubr.f32.mxu0 0.0
      %2089 = vmatmul.mubr.f32.gmra.mrb[0].mxu0 %v1105
      %v2090 = vpop.f32.mrb[0].mxu0
      %v2091 = vadd.f32 0.0, %v2090
      %v2092 = vpop.f32.mrb[0].mxu0
      %2093 = vmatprep.mubr.f32.mxu0 0.0
      %2094 = vmatmul.mubr.f32.gmra.mrb[0].mxu0 %v1107
      %v2095 = vpop.f32.mrb[0].mxu0
      %v2096 = vadd.f32 0.0, %v2095
      %v2097 = vpop.f32.mrb[0].mxu0
      %2098 = vmatprep.mubr.f32.mxu0 0.0
      %2099 = vmatmul.mubr.f32.gmra.mrb[0].mxu0 %v1109
      %v2100 = vpop.f32.mrb[0].mxu0
      %v2101 = vadd.f32 0.0, %v2100
      %v2102 = vpop.f32.mrb[0].mxu0
      %2103 = vmatprep.mubr.f32.mxu0 0.0
      %2104 = vmatmul.mubr.f32.gmra.mrb[0].mxu0 %v1111
      %v2105 = vpop.f32.mrb[0].mxu0
      %v2106 = vadd.f32 0.0, %v2105
      %v2107 = vpop.f32.mrb[0].mxu0
      %2108 = vmatprep.mubr.f32.mxu0 0.0
      %2109 = vmatmul.mubr.f32.gmra.mrb[0].mxu0 %v1113
      %v2110 = vpop.f32.mrb[0].mxu0
      %v2111 = vadd.f32 0.0, %v2110
      %v2112 = vpop.f32.mrb[0].mxu0
      %2113 = vmatprep.mubr.f32.mxu0 0.0
      %2114 = vmatmul.mubr.f32.gmra.mrb[0].mxu0 %v1115
      %v2115 = vpop.f32.mrb[0].mxu0
      %v2116 = vadd.f32 0.0, %v2115
      %v2117 = vpop.f32.mrb[0].mxu0
      %2118 = vmatprep.mubr.f32.mxu0 0.0
      %2119 = vmatmul.mubr.f32.gmra.mrb[0].mxu0 %v1117
      %v2120 = vpop.f32.mrb[0].mxu0
      %v2121 = vadd.f32 0.0, %v2120
      %v2122 = vpop.f32.mrb[0].mxu0
      %2123 = vmatprep.mubr.f32.mxu0 0.0
      %2124 = vmatmul.mubr.f32.gmra.mrb[0].mxu0 %v1119
      %v2125 = vpop.f32.mrb[0].mxu0
      %v2126 = vadd.f32 0.0, %v2125
      %v2127 = vpop.f32.mrb[0].mxu0
      %2128 = vmatprep.mubr.f32.mxu0 0.0
      %2129 = vmatmul.mubr.f32.gmra.mrb[0].mxu0 %v1121
      %v2130 = vpop.f32.mrb[0].mxu0
      %v2131 = vadd.f32 0.0, %v2130
      %v2132 = vpop.f32.mrb[0].mxu0
      %2133 = vmatprep.mubr.f32.mxu0 0.0
      %2134 = vmatmul.mubr.f32.gmra.mrb[0].mxu0 %v1123
      %v2135 = vpop.f32.mrb[0].mxu0
      %v2136 = vadd.f32 0.0, %v2135
      %v2137 = vpop.f32.mrb[0].mxu0
      %2138 = vmatprep.mubr.f32.mxu0 0.0
      %2139 = vmatmul.mubr.f32.gmra.mrb[0].mxu0 %v1125
      %v2140 = vpop.f32.mrb[0].mxu0
      %v2141 = vadd.f32 0.0, %v2140
      %v2142 = vpop.f32.mrb[0].mxu0
      %2143 = vmatprep.mubr.f32.mxu0 0.0
      %2144 = vmatmul.mubr.f32.gmra.mrb[0].mxu0 %v1925
      %v2145 = vpop.f32.mrb[0].mxu0
      %v2146 = vadd.f32 0.0, %v2145
      %v2147 = vpop.f32.mrb[0].mxu0
      %2148 = vmatprep.mubr.f32.mxu0 0.0
      %2149 = vmatmul.mubr.f32.gmra.mrb[0].mxu0 %v1927
      %v2150 = vpop.f32.mrb[0].mxu0
      %v2151 = vadd.f32 0.0, %v2150
      %v2152 = vpop.f32.mrb[0].mxu0
      %2153 = vdwg.mxu0
      %v2154 = vadd.f32 %v1886, %v1996
      %v2155 = vadd.f32 %v1887, %v2001
      %v2156 = vadd.f32 %v1888, %v2006
      %v2157 = vadd.f32 %v1889, %v2011
      %v2158 = vadd.f32 %v1890, %v2016
      %v2159 = vadd.f32 %v1891, %v2021
      %v2160 = vadd.f32 %v1892, %v2026
      %v2161 = vadd.f32 %v1893, %v2031
      %v2162 = vadd.f32 %v1894, %v2036
      %v2163 = vadd.f32 %v1895, %v2041
      %v2164 = vadd.f32 %v1896, %v2046
      %v2165 = vadd.f32 %v1897, %v2051
      %v2166 = vadd.f32 %v1898, %v2056
      %v2167 = vadd.f32 %v1899, %v2061
      %v2168 = vadd.f32 %v1900, %v2066
      %v2169 = vadd.f32 %v1901, %v2071
      %v2170 = vadd.f32 %v1902, %v2076
      %v2171 = vadd.f32 %v1903, %v2081
      %v2172 = vadd.f32 %v1904, %v2086
      %v2173 = vadd.f32 %v1905, %v2091
      %v2174 = vadd.f32 %v1906, %v2096
      %v2175 = vadd.f32 %v1907, %v2101
      %v2176 = vadd.f32 %v1908, %v2106
      %v2177 = vadd.f32 %v1909, %v2111
      %v2178 = vadd.f32 %v1910, %v2116
      %v2179 = vadd.f32 %v1911, %v2121
      %v2180 = vadd.f32 %v1912, %v2126
      %v2181 = vadd.f32 %v1913, %v2131
      %v2182 = vadd.f32 %v1914, %v2136
      %v2183 = vadd.f32 %v1915, %v2141
      %v2184 = vadd.f32 %v1916, %v2146
      %v2185 = vadd.f32 %v1917, %v2151
      %s2186 = scalar_lea.vmem %s1, 48
      %v2187 = vld [vmem:[%s2186] sm:$0xff]
      %v2189 = vsel %vm401, %v266, 0
      %v2192 = vsel %vm401, %v267, 0
      %2194 = vmatprep.subr.mxu0 0.0
      %2195 = vmatpush1.msra.mxu0 %v2187
      %2196 = vmatprep.subr.mxu0 0.0
      %2197 = vmatpush1.msra.mxu0 0.0
      %2198 = vmatprep.subr.mxu0 0.0
      %2199 = vmatpush1.msra.mxu0 0.0
      %2200 = vmatprep.subr.mxu0 0.0
      %2201 = vmatpush1.msra.mxu0 0.0
      %2202 = vmatprep.subr.mxu0 0.0
      %2203 = vmatpush1.msra.mxu0 0.0
      %2204 = vmatprep.subr.mxu0 0.0
      %2205 = vmatpush1.msra.mxu0 0.0
      %2206 = vmatprep.subr.mxu0 0.0
      %2207 = vmatpush1.msra.mxu0 0.0
      %2208 = vmatprep.subr.mxu0 0.0
      %2209 = vmatpush1.msra.mxu0 0.0
      %2210 = vmatprep.subr.mxu0 0.0
      %2211 = vmatpush1.msra.mxu0 0.0
      %2212 = vmatprep.subr.mxu0 0.0
      %2213 = vmatpush1.msra.mxu0 0.0
      %2214 = vmatprep.subr.mxu0 0.0
      %2215 = vmatpush1.msra.mxu0 0.0
      %2216 = vmatprep.subr.mxu0 0.0
      %2217 = vmatpush1.msra.mxu0 0.0
      %2218 = vmatprep.subr.mxu0 0.0
      %2219 = vmatpush1.msra.mxu0 0.0
      %2220 = vmatprep.subr.mxu0 0.0
      %2221 = vmatpush1.msra.mxu0 0.0
      %2222 = vmatprep.subr.mxu0 0.0
      %2223 = vmatpush1.msra.mxu0 0.0
      %2224 = vmatprep.subr.mxu0 0.0
      %2225 = vmatpush1.msra.mxu0 0.0
      %2226 = vmatprep.subr.mxu0 0.0
      %2227 = vmatpush1.msra.mxu0 0.0
      %2228 = vmatprep.subr.mxu0 0.0
      %2229 = vmatpush1.msra.mxu0 0.0
      %2230 = vmatprep.subr.mxu0 0.0
      %2231 = vmatpush1.msra.mxu0 0.0
      %2232 = vmatprep.subr.mxu0 0.0
      %2233 = vmatpush1.msra.mxu0 0.0
      %2234 = vmatprep.subr.mxu0 0.0
      %2235 = vmatpush1.msra.mxu0 0.0
      %2236 = vmatprep.subr.mxu0 0.0
      %2237 = vmatpush1.msra.mxu0 0.0
      %2238 = vmatprep.subr.mxu0 0.0
      %2239 = vmatpush1.msra.mxu0 0.0
      %2240 = vmatprep.subr.mxu0 0.0
      %2241 = vmatpush1.msra.mxu0 0.0
      %2242 = vmatprep.subr.mxu0 0.0
      %2243 = vmatpush1.msra.mxu0 0.0
      %2244 = vmatprep.subr.mxu0 0.0
      %2245 = vmatpush1.msra.mxu0 0.0
      %2246 = vmatprep.subr.mxu0 0.0
      %2247 = vmatpush1.msra.mxu0 0.0
      %2248 = vmatprep.subr.mxu0 0.0
      %2249 = vmatpush1.msra.mxu0 0.0
      %2250 = vmatprep.subr.mxu0 0.0
      %2251 = vmatpush1.msra.mxu0 0.0
      %2252 = vmatprep.subr.mxu0 0.0
      %2253 = vmatpush1.msra.mxu0 0.0
      %2254 = vmatprep.subr.mxu0 0.0
      %2255 = vmatpush1.msra.mxu0 0.0
      %2256 = vmatprep.subr.mxu0 0.0
      %2257 = vmatpush1.msra.mxu0 0.0
      %2258 = vmatprep.mubr.f32.mxu0 0.0
      %2259 = vmatmul.mubr.f32.gmra.mrb[0].mxu0 %v699
      %v2260 = vpop.f32.mrb[0].mxu0
      %v2261 = vadd.f32 0.0, %v2260
      %v2262 = vpop.f32.mrb[0].mxu0
      %2263 = vmatprep.mubr.f32.mxu0 0.0
      %2264 = vmatmul.mubr.f32.gmra.mrb[0].mxu0 %v701
      %v2265 = vpop.f32.mrb[0].mxu0
      %v2266 = vadd.f32 0.0, %v2265
      %v2267 = vpop.f32.mrb[0].mxu0
      %2268 = vmatprep.mubr.f32.mxu0 0.0
      %2269 = vmatmul.mubr.f32.gmra.mrb[0].mxu0 %v703
      %v2270 = vpop.f32.mrb[0].mxu0
      %v2271 = vadd.f32 0.0, %v2270
      %v2272 = vpop.f32.mrb[0].mxu0
      %2273 = vmatprep.mubr.f32.mxu0 0.0
      %2274 = vmatmul.mubr.f32.gmra.mrb[0].mxu0 %v705
      %v2275 = vpop.f32.mrb[0].mxu0
      %v2276 = vadd.f32 0.0, %v2275
      %v2277 = vpop.f32.mrb[0].mxu0
      %2278 = vmatprep.mubr.f32.mxu0 0.0
      %2279 = vmatmul.mubr.f32.gmra.mrb[0].mxu0 %v707
      %v2280 = vpop.f32.mrb[0].mxu0
      %v2281 = vadd.f32 0.0, %v2280
      %v2282 = vpop.f32.mrb[0].mxu0
      %2283 = vmatprep.mubr.f32.mxu0 0.0
      %2284 = vmatmul.mubr.f32.gmra.mrb[0].mxu0 %v709
      %v2285 = vpop.f32.mrb[0].mxu0
      %v2286 = vadd.f32 0.0, %v2285
      %v2287 = vpop.f32.mrb[0].mxu0
      %2288 = vmatprep.mubr.f32.mxu0 0.0
      %2289 = vmatmul.mubr.f32.gmra.mrb[0].mxu0 %v711
      %v2290 = vpop.f32.mrb[0].mxu0
      %v2291 = vadd.f32 0.0, %v2290
      %v2292 = vpop.f32.mrb[0].mxu0
      %2293 = vmatprep.mubr.f32.mxu0 0.0
      %2294 = vmatmul.mubr.f32.gmra.mrb[0].mxu0 %v713
      %v2295 = vpop.f32.mrb[0].mxu0
      %v2296 = vadd.f32 0.0, %v2295
      %v2297 = vpop.f32.mrb[0].mxu0
      %2298 = vmatprep.mubr.f32.mxu0 0.0
      %2299 = vmatmul.mubr.f32.gmra.mrb[0].mxu0 %v715
      %v2300 = vpop.f32.mrb[0].mxu0
      %v2301 = vadd.f32 0.0, %v2300
      %v2302 = vpop.f32.mrb[0].mxu0
      %2303 = vmatprep.mubr.f32.mxu0 0.0
      %2304 = vmatmul.mubr.f32.gmra.mrb[0].mxu0 %v717
      %v2305 = vpop.f32.mrb[0].mxu0
      %v2306 = vadd.f32 0.0, %v2305
      %v2307 = vpop.f32.mrb[0].mxu0
      %2308 = vmatprep.mubr.f32.mxu0 0.0
      %2309 = vmatmul.mubr.f32.gmra.mrb[0].mxu0 %v719
      %v2310 = vpop.f32.mrb[0].mxu0
      %v2311 = vadd.f32 0.0, %v2310
      %v2312 = vpop.f32.mrb[0].mxu0
      %2313 = vmatprep.mubr.f32.mxu0 0.0
      %2314 = vmatmul.mubr.f32.gmra.mrb[0].mxu0 %v721
      %v2315 = vpop.f32.mrb[0].mxu0
      %v2316 = vadd.f32 0.0, %v2315
      %v2317 = vpop.f32.mrb[0].mxu0
      %2318 = vmatprep.mubr.f32.mxu0 0.0
      %2319 = vmatmul.mubr.f32.gmra.mrb[0].mxu0 %v723
      %v2320 = vpop.f32.mrb[0].mxu0
      %v2321 = vadd.f32 0.0, %v2320
      %v2322 = vpop.f32.mrb[0].mxu0
      %2323 = vmatprep.mubr.f32.mxu0 0.0
      %2324 = vmatmul.mubr.f32.gmra.mrb[0].mxu0 %v725
      %v2325 = vpop.f32.mrb[0].mxu0
      %v2326 = vadd.f32 0.0, %v2325
      %v2327 = vpop.f32.mrb[0].mxu0
      %2328 = vmatprep.mubr.f32.mxu0 0.0
      %2329 = vmatmul.mubr.f32.gmra.mrb[0].mxu0 %v727
      %v2330 = vpop.f32.mrb[0].mxu0
      %v2331 = vadd.f32 0.0, %v2330
      %v2332 = vpop.f32.mrb[0].mxu0
      %2333 = vmatprep.mubr.f32.mxu0 0.0
      %2334 = vmatmul.mubr.f32.gmra.mrb[0].mxu0 %v729
      %v2335 = vpop.f32.mrb[0].mxu0
      %v2336 = vadd.f32 0.0, %v2335
      %v2337 = vpop.f32.mrb[0].mxu0
      %2338 = vmatprep.mubr.f32.mxu0 0.0
      %2339 = vmatmul.mubr.f32.gmra.mrb[0].mxu0 %v731
      %v2340 = vpop.f32.mrb[0].mxu0
      %v2341 = vadd.f32 0.0, %v2340
      %v2342 = vpop.f32.mrb[0].mxu0
      %2343 = vmatprep.mubr.f32.mxu0 0.0
      %2344 = vmatmul.mubr.f32.gmra.mrb[0].mxu0 %v733
      %v2345 = vpop.f32.mrb[0].mxu0
      %v2346 = vadd.f32 0.0, %v2345
      %v2347 = vpop.f32.mrb[0].mxu0
      %2348 = vmatprep.mubr.f32.mxu0 0.0
      %2349 = vmatmul.mubr.f32.gmra.mrb[0].mxu0 %v735
      %v2350 = vpop.f32.mrb[0].mxu0
      %v2351 = vadd.f32 0.0, %v2350
      %v2352 = vpop.f32.mrb[0].mxu0
      %2353 = vmatprep.mubr.f32.mxu0 0.0
      %2354 = vmatmul.mubr.f32.gmra.mrb[0].mxu0 %v737
      %v2355 = vpop.f32.mrb[0].mxu0
      %v2356 = vadd.f32 0.0, %v2355
      %v2357 = vpop.f32.mrb[0].mxu0
      %2358 = vmatprep.mubr.f32.mxu0 0.0
      %2359 = vmatmul.mubr.f32.gmra.mrb[0].mxu0 %v739
      %v2360 = vpop.f32.mrb[0].mxu0
      %v2361 = vadd.f32 0.0, %v2360
      %v2362 = vpop.f32.mrb[0].mxu0
      %2363 = vmatprep.mubr.f32.mxu0 0.0
      %2364 = vmatmul.mubr.f32.gmra.mrb[0].mxu0 %v741
      %v2365 = vpop.f32.mrb[0].mxu0
      %v2366 = vadd.f32 0.0, %v2365
      %v2367 = vpop.f32.mrb[0].mxu0
      %2368 = vmatprep.mubr.f32.mxu0 0.0
      %2369 = vmatmul.mubr.f32.gmra.mrb[0].mxu0 %v743
      %v2370 = vpop.f32.mrb[0].mxu0
      %v2371 = vadd.f32 0.0, %v2370
      %v2372 = vpop.f32.mrb[0].mxu0
      %2373 = vmatprep.mubr.f32.mxu0 0.0
      %2374 = vmatmul.mubr.f32.gmra.mrb[0].mxu0 %v745
      %v2375 = vpop.f32.mrb[0].mxu0
      %v2376 = vadd.f32 0.0, %v2375
      %v2377 = vpop.f32.mrb[0].mxu0
      %2378 = vmatprep.mubr.f32.mxu0 0.0
      %2379 = vmatmul.mubr.f32.gmra.mrb[0].mxu0 %v747
      %v2380 = vpop.f32.mrb[0].mxu0
      %v2381 = vadd.f32 0.0, %v2380
      %v2382 = vpop.f32.mrb[0].mxu0
      %2383 = vmatprep.mubr.f32.mxu0 0.0
      %2384 = vmatmul.mubr.f32.gmra.mrb[0].mxu0 %v749
      %v2385 = vpop.f32.mrb[0].mxu0
      %v2386 = vadd.f32 0.0, %v2385
      %v2387 = vpop.f32.mrb[0].mxu0
      %2388 = vmatprep.mubr.f32.mxu0 0.0
      %2389 = vmatmul.mubr.f32.gmra.mrb[0].mxu0 %v751
      %v2390 = vpop.f32.mrb[0].mxu0
      %v2391 = vadd.f32 0.0, %v2390
      %v2392 = vpop.f32.mrb[0].mxu0
      %2393 = vmatprep.mubr.f32.mxu0 0.0
      %2394 = vmatmul.mubr.f32.gmra.mrb[0].mxu0 %v753
      %v2395 = vpop.f32.mrb[0].mxu0
      %v2396 = vadd.f32 0.0, %v2395
      %v2397 = vpop.f32.mrb[0].mxu0
      %2398 = vmatprep.mubr.f32.mxu0 0.0
      %2399 = vmatmul.mubr.f32.gmra.mrb[0].mxu0 %v1387
      %v2400 = vpop.f32.mrb[0].mxu0
      %v2401 = vadd.f32 0.0, %v2400
      %v2402 = vpop.f32.mrb[0].mxu0
      %2403 = vmatprep.mubr.f32.mxu0 0.0
      %2404 = vmatmul.mubr.f32.gmra.mrb[0].mxu0 %v1390
      %v2405 = vpop.f32.mrb[0].mxu0
      %v2406 = vadd.f32 0.0, %v2405
      %v2407 = vpop.f32.mrb[0].mxu0
      %2408 = vmatprep.mubr.f32.mxu0 0.0
      %2409 = vmatmul.mubr.f32.gmra.mrb[0].mxu0 %v2189
      %v2410 = vpop.f32.mrb[0].mxu0
      %v2411 = vadd.f32 0.0, %v2410
      %v2412 = vpop.f32.mrb[0].mxu0
      %2413 = vmatprep.mubr.f32.mxu0 0.0
      %2414 = vmatmul.mubr.f32.gmra.mrb[0].mxu0 %v2192
      %v2415 = vpop.f32.mrb[0].mxu0
      %v2416 = vadd.f32 0.0, %v2415
      %v2417 = vpop.f32.mrb[0].mxu0
      %2418 = vdwg.mxu0
      %v2419 = vadd.f32 %v2154, %v2261
      %v2420 = vadd.f32 %v2155, %v2266
      %v2421 = vadd.f32 %v2156, %v2271
      %v2422 = vadd.f32 %v2157, %v2276
      %v2423 = vadd.f32 %v2158, %v2281
      %v2424 = vadd.f32 %v2159, %v2286
      %v2425 = vadd.f32 %v2160, %v2291
      %v2426 = vadd.f32 %v2161, %v2296
      %v2427 = vadd.f32 %v2162, %v2301
      %v2428 = vadd.f32 %v2163, %v2306
      %v2429 = vadd.f32 %v2164, %v2311
      %v2430 = vadd.f32 %v2165, %v2316
      %v2431 = vadd.f32 %v2166, %v2321
      %v2432 = vadd.f32 %v2167, %v2326
      %v2433 = vadd.f32 %v2168, %v2331
      %v2434 = vadd.f32 %v2169, %v2336
      %v2435 = vadd.f32 %v2170, %v2341
      %v2436 = vadd.f32 %v2171, %v2346
      %v2437 = vadd.f32 %v2172, %v2351
      %v2438 = vadd.f32 %v2173, %v2356
      %v2439 = vadd.f32 %v2174, %v2361
      %v2440 = vadd.f32 %v2175, %v2366
      %v2441 = vadd.f32 %v2176, %v2371
      %v2442 = vadd.f32 %v2177, %v2376
      %v2443 = vadd.f32 %v2178, %v2381
      %v2444 = vadd.f32 %v2179, %v2386
      %v2445 = vadd.f32 %v2180, %v2391
      %v2446 = vadd.f32 %v2181, %v2396
      %v2447 = vadd.f32 %v2182, %v2401
      %v2448 = vadd.f32 %v2183, %v2406
      %v2449 = vadd.f32 %v2184, %v2411
      %v2450 = vadd.f32 %v2185, %v2416
      %v2452 = vrot.slane %v266, 1
      %v2453 = vrot.slane %v267, 1
      %v2454 = vsel %vm318, %v2452, %v2453
      %v2455 = vrot.slane %v268, 1
      %v2456 = vsel %vm318, %v2453, %v2455
      %s2457 = scalar_lea.vmem %s1, 56
      %v2458 = vld [vmem:[%s2457] sm:$0xff]
      %v2459 = vsel %vm401, %v2454, 0
      %v2461 = vsel %vm401, %v2456, 0
      %2463 = vmatprep.subr.mxu0 0.0
      %2464 = vmatpush1.msra.mxu0 %v2458
      %2465 = vmatprep.subr.mxu0 0.0
      %2466 = vmatpush1.msra.mxu0 0.0
      %2467 = vmatprep.subr.mxu0 0.0
      %2468 = vmatpush1.msra.mxu0 0.0
      %2469 = vmatprep.subr.mxu0 0.0
      %2470 = vmatpush1.msra.mxu0 0.0
      %2471 = vmatprep.subr.mxu0 0.0
      %2472 = vmatpush1.msra.mxu0 0.0
      %2473 = vmatprep.subr.mxu0 0.0
      %2474 = vmatpush1.msra.mxu0 0.0
      %2475 = vmatprep.subr.mxu0 0.0
      %2476 = vmatpush1.msra.mxu0 0.0
      %2477 = vmatprep.subr.mxu0 0.0
      %2478 = vmatpush1.msra.mxu0 0.0
      %2479 = vmatprep.subr.mxu0 0.0
      %2480 = vmatpush1.msra.mxu0 0.0
      %2481 = vmatprep.subr.mxu0 0.0
      %2482 = vmatpush1.msra.mxu0 0.0
      %2483 = vmatprep.subr.mxu0 0.0
      %2484 = vmatpush1.msra.mxu0 0.0
      %2485 = vmatprep.subr.mxu0 0.0
      %2486 = vmatpush1.msra.mxu0 0.0
      %2487 = vmatprep.subr.mxu0 0.0
      %2488 = vmatpush1.msra.mxu0 0.0
      %2489 = vmatprep.subr.mxu0 0.0
      %2490 = vmatpush1.msra.mxu0 0.0
      %2491 = vmatprep.subr.mxu0 0.0
      %2492 = vmatpush1.msra.mxu0 0.0
      %2493 = vmatprep.subr.mxu0 0.0
      %2494 = vmatpush1.msra.mxu0 0.0
      %2495 = vmatprep.subr.mxu0 0.0
      %2496 = vmatpush1.msra.mxu0 0.0
      %2497 = vmatprep.subr.mxu0 0.0
      %2498 = vmatpush1.msra.mxu0 0.0
      %2499 = vmatprep.subr.mxu0 0.0
      %2500 = vmatpush1.msra.mxu0 0.0
      %2501 = vmatprep.subr.mxu0 0.0
      %2502 = vmatpush1.msra.mxu0 0.0
      %2503 = vmatprep.subr.mxu0 0.0
      %2504 = vmatpush1.msra.mxu0 0.0
      %2505 = vmatprep.subr.mxu0 0.0
      %2506 = vmatpush1.msra.mxu0 0.0
      %2507 = vmatprep.subr.mxu0 0.0
      %2508 = vmatpush1.msra.mxu0 0.0
      %2509 = vmatprep.subr.mxu0 0.0
      %2510 = vmatpush1.msra.mxu0 0.0
      %2511 = vmatprep.subr.mxu0 0.0
      %2512 = vmatpush1.msra.mxu0 0.0
      %2513 = vmatprep.subr.mxu0 0.0
      %2514 = vmatpush1.msra.mxu0 0.0
      %2515 = vmatprep.subr.mxu0 0.0
      %2516 = vmatpush1.msra.mxu0 0.0
      %2517 = vmatprep.subr.mxu0 0.0
      %2518 = vmatpush1.msra.mxu0 0.0
      %2519 = vmatprep.subr.mxu0 0.0
      %2520 = vmatpush1.msra.mxu0 0.0
      %2521 = vmatprep.subr.mxu0 0.0
      %2522 = vmatpush1.msra.mxu0 0.0
      %2523 = vmatprep.subr.mxu0 0.0
      %2524 = vmatpush1.msra.mxu0 0.0
      %2525 = vmatprep.subr.mxu0 0.0
      %2526 = vmatpush1.msra.mxu0 0.0
      %2527 = vmatprep.mubr.f32.mxu0 0.0
      %2528 = vmatmul.mubr.f32.gmra.mrb[0].mxu0 %v410
      %v2529 = vpop.f32.mrb[0].mxu0
      %v2530 = vadd.f32 0.0, %v2529
      %v2531 = vpop.f32.mrb[0].mxu0
      %2532 = vmatprep.mubr.f32.mxu0 0.0
      %2533 = vmatmul.mubr.f32.gmra.mrb[0].mxu0 %v412
      %v2534 = vpop.f32.mrb[0].mxu0
      %v2535 = vadd.f32 0.0, %v2534
      %v2536 = vpop.f32.mrb[0].mxu0
      %2537 = vmatprep.mubr.f32.mxu0 0.0
      %2538 = vmatmul.mubr.f32.gmra.mrb[0].mxu0 %v414
      %v2539 = vpop.f32.mrb[0].mxu0
      %v2540 = vadd.f32 0.0, %v2539
      %v2541 = vpop.f32.mrb[0].mxu0
      %2542 = vmatprep.mubr.f32.mxu0 0.0
      %2543 = vmatmul.mubr.f32.gmra.mrb[0].mxu0 %v416
      %v2544 = vpop.f32.mrb[0].mxu0
      %v2545 = vadd.f32 0.0, %v2544
      %v2546 = vpop.f32.mrb[0].mxu0
      %2547 = vmatprep.mubr.f32.mxu0 0.0
      %2548 = vmatmul.mubr.f32.gmra.mrb[0].mxu0 %v418
      %v2549 = vpop.f32.mrb[0].mxu0
      %v2550 = vadd.f32 0.0, %v2549
      %v2551 = vpop.f32.mrb[0].mxu0
      %2552 = vmatprep.mubr.f32.mxu0 0.0
      %2553 = vmatmul.mubr.f32.gmra.mrb[0].mxu0 %v420
      %v2554 = vpop.f32.mrb[0].mxu0
      %v2555 = vadd.f32 0.0, %v2554
      %v2556 = vpop.f32.mrb[0].mxu0
      %2557 = vmatprep.mubr.f32.mxu0 0.0
      %2558 = vmatmul.mubr.f32.gmra.mrb[0].mxu0 %v422
      %v2559 = vpop.f32.mrb[0].mxu0
      %v2560 = vadd.f32 0.0, %v2559
      %v2561 = vpop.f32.mrb[0].mxu0
      %2562 = vmatprep.mubr.f32.mxu0 0.0
      %2563 = vmatmul.mubr.f32.gmra.mrb[0].mxu0 %v424
      %v2564 = vpop.f32.mrb[0].mxu0
      %v2565 = vadd.f32 0.0, %v2564
      %v2566 = vpop.f32.mrb[0].mxu0
      %2567 = vmatprep.mubr.f32.mxu0 0.0
      %2568 = vmatmul.mubr.f32.gmra.mrb[0].mxu0 %v426
      %v2569 = vpop.f32.mrb[0].mxu0
      %v2570 = vadd.f32 0.0, %v2569
      %v2571 = vpop.f32.mrb[0].mxu0
      %2572 = vmatprep.mubr.f32.mxu0 0.0
      %2573 = vmatmul.mubr.f32.gmra.mrb[0].mxu0 %v428
      %v2574 = vpop.f32.mrb[0].mxu0
      %v2575 = vadd.f32 0.0, %v2574
      %v2576 = vpop.f32.mrb[0].mxu0
      %2577 = vmatprep.mubr.f32.mxu0 0.0
      %2578 = vmatmul.mubr.f32.gmra.mrb[0].mxu0 %v430
      %v2579 = vpop.f32.mrb[0].mxu0
      %v2580 = vadd.f32 0.0, %v2579
      %v2581 = vpop.f32.mrb[0].mxu0
      %2582 = vmatprep.mubr.f32.mxu0 0.0
      %2583 = vmatmul.mubr.f32.gmra.mrb[0].mxu0 %v432
      %v2584 = vpop.f32.mrb[0].mxu0
      %v2585 = vadd.f32 0.0, %v2584
      %v2586 = vpop.f32.mrb[0].mxu0
      %2587 = vmatprep.mubr.f32.mxu0 0.0
      %2588 = vmatmul.mubr.f32.gmra.mrb[0].mxu0 %v434
      %v2589 = vpop.f32.mrb[0].mxu0
      %v2590 = vadd.f32 0.0, %v2589
      %v2591 = vpop.f32.mrb[0].mxu0
      %2592 = vmatprep.mubr.f32.mxu0 0.0
      %2593 = vmatmul.mubr.f32.gmra.mrb[0].mxu0 %v436
      %v2594 = vpop.f32.mrb[0].mxu0
      %v2595 = vadd.f32 0.0, %v2594
      %v2596 = vpop.f32.mrb[0].mxu0
      %2597 = vmatprep.mubr.f32.mxu0 0.0
      %2598 = vmatmul.mubr.f32.gmra.mrb[0].mxu0 %v438
      %v2599 = vpop.f32.mrb[0].mxu0
      %v2600 = vadd.f32 0.0, %v2599
      %v2601 = vpop.f32.mrb[0].mxu0
      %2602 = vmatprep.mubr.f32.mxu0 0.0
      %2603 = vmatmul.mubr.f32.gmra.mrb[0].mxu0 %v440
      %v2604 = vpop.f32.mrb[0].mxu0
      %v2605 = vadd.f32 0.0, %v2604
      %v2606 = vpop.f32.mrb[0].mxu0
      %2607 = vmatprep.mubr.f32.mxu0 0.0
      %2608 = vmatmul.mubr.f32.gmra.mrb[0].mxu0 %v442
      %v2609 = vpop.f32.mrb[0].mxu0
      %v2610 = vadd.f32 0.0, %v2609
      %v2611 = vpop.f32.mrb[0].mxu0
      %2612 = vmatprep.mubr.f32.mxu0 0.0
      %2613 = vmatmul.mubr.f32.gmra.mrb[0].mxu0 %v444
      %v2614 = vpop.f32.mrb[0].mxu0
      %v2615 = vadd.f32 0.0, %v2614
      %v2616 = vpop.f32.mrb[0].mxu0
      %2617 = vmatprep.mubr.f32.mxu0 0.0
      %2618 = vmatmul.mubr.f32.gmra.mrb[0].mxu0 %v446
      %v2619 = vpop.f32.mrb[0].mxu0
      %v2620 = vadd.f32 0.0, %v2619
      %v2621 = vpop.f32.mrb[0].mxu0
      %2622 = vmatprep.mubr.f32.mxu0 0.0
      %2623 = vmatmul.mubr.f32.gmra.mrb[0].mxu0 %v448
      %v2624 = vpop.f32.mrb[0].mxu0
      %v2625 = vadd.f32 0.0, %v2624
      %v2626 = vpop.f32.mrb[0].mxu0
      %2627 = vmatprep.mubr.f32.mxu0 0.0
      %2628 = vmatmul.mubr.f32.gmra.mrb[0].mxu0 %v450
      %v2629 = vpop.f32.mrb[0].mxu0
      %v2630 = vadd.f32 0.0, %v2629
      %v2631 = vpop.f32.mrb[0].mxu0
      %2632 = vmatprep.mubr.f32.mxu0 0.0
      %2633 = vmatmul.mubr.f32.gmra.mrb[0].mxu0 %v452
      %v2634 = vpop.f32.mrb[0].mxu0
      %v2635 = vadd.f32 0.0, %v2634
      %v2636 = vpop.f32.mrb[0].mxu0
      %2637 = vmatprep.mubr.f32.mxu0 0.0
      %2638 = vmatmul.mubr.f32.gmra.mrb[0].mxu0 %v454
      %v2639 = vpop.f32.mrb[0].mxu0
      %v2640 = vadd.f32 0.0, %v2639
      %v2641 = vpop.f32.mrb[0].mxu0
      %2642 = vmatprep.mubr.f32.mxu0 0.0
      %2643 = vmatmul.mubr.f32.gmra.mrb[0].mxu0 %v456
      %v2644 = vpop.f32.mrb[0].mxu0
      %v2645 = vadd.f32 0.0, %v2644
      %v2646 = vpop.f32.mrb[0].mxu0
      %2647 = vmatprep.mubr.f32.mxu0 0.0
      %2648 = vmatmul.mubr.f32.gmra.mrb[0].mxu0 %v458
      %v2649 = vpop.f32.mrb[0].mxu0
      %v2650 = vadd.f32 0.0, %v2649
      %v2651 = vpop.f32.mrb[0].mxu0
      %2652 = vmatprep.mubr.f32.mxu0 0.0
      %2653 = vmatmul.mubr.f32.gmra.mrb[0].mxu0 %v460
      %v2654 = vpop.f32.mrb[0].mxu0
      %v2655 = vadd.f32 0.0, %v2654
      %v2656 = vpop.f32.mrb[0].mxu0
      %2657 = vmatprep.mubr.f32.mxu0 0.0
      %2658 = vmatmul.mubr.f32.gmra.mrb[0].mxu0 %v462
      %v2659 = vpop.f32.mrb[0].mxu0
      %v2660 = vadd.f32 0.0, %v2659
      %v2661 = vpop.f32.mrb[0].mxu0
      %2662 = vmatprep.mubr.f32.mxu0 0.0
      %2663 = vmatmul.mubr.f32.gmra.mrb[0].mxu0 %v464
      %v2664 = vpop.f32.mrb[0].mxu0
      %v2665 = vadd.f32 0.0, %v2664
      %v2666 = vpop.f32.mrb[0].mxu0
      %2667 = vmatprep.mubr.f32.mxu0 0.0
      %2668 = vmatmul.mubr.f32.gmra.mrb[0].mxu0 %v1657
      %v2669 = vpop.f32.mrb[0].mxu0
      %v2670 = vadd.f32 0.0, %v2669
      %v2671 = vpop.f32.mrb[0].mxu0
      %2672 = vmatprep.mubr.f32.mxu0 0.0
      %2673 = vmatmul.mubr.f32.gmra.mrb[0].mxu0 %v1659
      %v2674 = vpop.f32.mrb[0].mxu0
      %v2675 = vadd.f32 0.0, %v2674
      %v2676 = vpop.f32.mrb[0].mxu0
      %2677 = vmatprep.mubr.f32.mxu0 0.0
      %2678 = vmatmul.mubr.f32.gmra.mrb[0].mxu0 %v2459
      %v2679 = vpop.f32.mrb[0].mxu0
      %v2680 = vadd.f32 0.0, %v2679
      %v2681 = vpop.f32.mrb[0].mxu0
      %2682 = vmatprep.mubr.f32.mxu0 0.0
      %2683 = vmatmul.mubr.f32.gmra.mrb[0].mxu0 %v2461
      %v2684 = vpop.f32.mrb[0].mxu0
      %v2685 = vadd.f32 0.0, %v2684
      %v2686 = vpop.f32.mrb[0].mxu0
      %2687 = vdwg.mxu0
      %v2688 = vadd.f32 %v2419, %v2530
      %v2689 = vadd.f32 %v2420, %v2535
      %v2690 = vadd.f32 %v2421, %v2540
      %v2691 = vadd.f32 %v2422, %v2545
      %v2692 = vadd.f32 %v2423, %v2550
      %v2693 = vadd.f32 %v2424, %v2555
      %v2694 = vadd.f32 %v2425, %v2560
      %v2695 = vadd.f32 %v2426, %v2565
      %v2696 = vadd.f32 %v2427, %v2570
      %v2697 = vadd.f32 %v2428, %v2575
      %v2698 = vadd.f32 %v2429, %v2580
      %v2699 = vadd.f32 %v2430, %v2585
      %v2700 = vadd.f32 %v2431, %v2590
      %v2701 = vadd.f32 %v2432, %v2595
      %v2702 = vadd.f32 %v2433, %v2600
      %v2703 = vadd.f32 %v2434, %v2605
      %v2704 = vadd.f32 %v2435, %v2610
      %v2705 = vadd.f32 %v2436, %v2615
      %v2706 = vadd.f32 %v2437, %v2620
      %v2707 = vadd.f32 %v2438, %v2625
      %v2708 = vadd.f32 %v2439, %v2630
      %v2709 = vadd.f32 %v2440, %v2635
      %v2710 = vadd.f32 %v2441, %v2640
      %v2711 = vadd.f32 %v2442, %v2645
      %v2712 = vadd.f32 %v2443, %v2650
      %v2713 = vadd.f32 %v2444, %v2655
      %v2714 = vadd.f32 %v2445, %v2660
      %v2715 = vadd.f32 %v2446, %v2665
      %v2716 = vadd.f32 %v2447, %v2670
      %v2717 = vadd.f32 %v2448, %v2675
      %v2718 = vadd.f32 %v2449, %v2680
      %v2719 = vadd.f32 %v2450, %v2685
      %v2720 = vrot.slane %v266, 2
      %v2721 = vrot.slane %v267, 2
      %v2722 = vsel %vm980, %v2720, %v2721
      %v2723 = vrot.slane %v268, 2
      %v2724 = vsel %vm980, %v2721, %v2723
      %s2725 = scalar_lea.vmem %s1, 64
      %v2726 = vld [vmem:[%s2725] sm:$0xff]
      %v2727 = vsel %vm401, %v2722, 0
      %v2729 = vsel %vm401, %v2724, 0
      %2731 = vmatprep.subr.mxu0 0.0
      %2732 = vmatpush1.msra.mxu0 %v2726
      %2733 = vmatprep.subr.mxu0 0.0
      %2734 = vmatpush1.msra.mxu0 0.0
      %2735 = vmatprep.subr.mxu0 0.0
      %2736 = vmatpush1.msra.mxu0 0.0
      %2737 = vmatprep.subr.mxu0 0.0
      %2738 = vmatpush1.msra.mxu0 0.0
      %2739 = vmatprep.subr.mxu0 0.0
      %2740 = vmatpush1.msra.mxu0 0.0
      %2741 = vmatprep.subr.mxu0 0.0
      %2742 = vmatpush1.msra.mxu0 0.0
      %2743 = vmatprep.subr.mxu0 0.0
      %2744 = vmatpush1.msra.mxu0 0.0
      %2745 = vmatprep.subr.mxu0 0.0
      %2746 = vmatpush1.msra.mxu0 0.0
      %2747 = vmatprep.subr.mxu0 0.0
      %2748 = vmatpush1.msra.mxu0 0.0
      %2749 = vmatprep.subr.mxu0 0.0
      %2750 = vmatpush1.msra.mxu0 0.0
      %2751 = vmatprep.subr.mxu0 0.0
      %2752 = vmatpush1.msra.mxu0 0.0
      %2753 = vmatprep.subr.mxu0 0.0
      %2754 = vmatpush1.msra.mxu0 0.0
      %2755 = vmatprep.subr.mxu0 0.0
      %2756 = vmatpush1.msra.mxu0 0.0
      %2757 = vmatprep.subr.mxu0 0.0
      %2758 = vmatpush1.msra.mxu0 0.0
      %2759 = vmatprep.subr.mxu0 0.0
      %2760 = vmatpush1.msra.mxu0 0.0
      %2761 = vmatprep.subr.mxu0 0.0
      %2762 = vmatpush1.msra.mxu0 0.0
      %2763 = vmatprep.subr.mxu0 0.0
      %2764 = vmatpush1.msra.mxu0 0.0
      %2765 = vmatprep.subr.mxu0 0.0
      %2766 = vmatpush1.msra.mxu0 0.0
      %2767 = vmatprep.subr.mxu0 0.0
      %2768 = vmatpush1.msra.mxu0 0.0
      %2769 = vmatprep.subr.mxu0 0.0
      %2770 = vmatpush1.msra.mxu0 0.0
      %2771 = vmatprep.subr.mxu0 0.0
      %2772 = vmatpush1.msra.mxu0 0.0
      %2773 = vmatprep.subr.mxu0 0.0
      %2774 = vmatpush1.msra.mxu0 0.0
      %2775 = vmatprep.subr.mxu0 0.0
      %2776 = vmatpush1.msra.mxu0 0.0
      %2777 = vmatprep.subr.mxu0 0.0
      %2778 = vmatpush1.msra.mxu0 0.0
      %2779 = vmatprep.subr.mxu0 0.0
      %2780 = vmatpush1.msra.mxu0 0.0
      %2781 = vmatprep.subr.mxu0 0.0
      %2782 = vmatpush1.msra.mxu0 0.0
      %2783 = vmatprep.subr.mxu0 0.0
      %2784 = vmatpush1.msra.mxu0 0.0
      %2785 = vmatprep.subr.mxu0 0.0
      %2786 = vmatpush1.msra.mxu0 0.0
      %2787 = vmatprep.subr.mxu0 0.0
      %2788 = vmatpush1.msra.mxu0 0.0
      %2789 = vmatprep.subr.mxu0 0.0
      %2790 = vmatpush1.msra.mxu0 0.0
      %2791 = vmatprep.subr.mxu0 0.0
      %2792 = vmatpush1.msra.mxu0 0.0
      %2793 = vmatprep.subr.mxu0 0.0
      %2794 = vmatpush1.msra.mxu0 0.0
      %2795 = vmatprep.mubr.f32.mxu0 0.0
      %2796 = vmatmul.mubr.f32.gmra.mrb[0].mxu0 %v1071
      %v2797 = vpop.f32.mrb[0].mxu0
      %v2798 = vadd.f32 0.0, %v2797
      %v2799 = vpop.f32.mrb[0].mxu0
      %2800 = vmatprep.mubr.f32.mxu0 0.0
      %2801 = vmatmul.mubr.f32.gmra.mrb[0].mxu0 %v1073
      %v2802 = vpop.f32.mrb[0].mxu0
      %v2803 = vadd.f32 0.0, %v2802
      %v2804 = vpop.f32.mrb[0].mxu0
      %2805 = vmatprep.mubr.f32.mxu0 0.0
      %2806 = vmatmul.mubr.f32.gmra.mrb[0].mxu0 %v1075
      %v2807 = vpop.f32.mrb[0].mxu0
      %v2808 = vadd.f32 0.0, %v2807
      %v2809 = vpop.f32.mrb[0].mxu0
      %2810 = vmatprep.mubr.f32.mxu0 0.0
      %2811 = vmatmul.mubr.f32.gmra.mrb[0].mxu0 %v1077
      %v2812 = vpop.f32.mrb[0].mxu0
      %v2813 = vadd.f32 0.0, %v2812
      %v2814 = vpop.f32.mrb[0].mxu0
      %2815 = vmatprep.mubr.f32.mxu0 0.0
      %2816 = vmatmul.mubr.f32.gmra.mrb[0].mxu0 %v1079
      %v2817 = vpop.f32.mrb[0].mxu0
      %v2818 = vadd.f32 0.0, %v2817
      %v2819 = vpop.f32.mrb[0].mxu0
      %2820 = vmatprep.mubr.f32.mxu0 0.0
      %2821 = vmatmul.mubr.f32.gmra.mrb[0].mxu0 %v1081
      %v2822 = vpop.f32.mrb[0].mxu0
      %v2823 = vadd.f32 0.0, %v2822
      %v2824 = vpop.f32.mrb[0].mxu0
      %2825 = vmatprep.mubr.f32.mxu0 0.0
      %2826 = vmatmul.mubr.f32.gmra.mrb[0].mxu0 %v1083
      %v2827 = vpop.f32.mrb[0].mxu0
      %v2828 = vadd.f32 0.0, %v2827
      %v2829 = vpop.f32.mrb[0].mxu0
      %2830 = vmatprep.mubr.f32.mxu0 0.0
      %2831 = vmatmul.mubr.f32.gmra.mrb[0].mxu0 %v1085
      %v2832 = vpop.f32.mrb[0].mxu0
      %v2833 = vadd.f32 0.0, %v2832
      %v2834 = vpop.f32.mrb[0].mxu0
      %2835 = vmatprep.mubr.f32.mxu0 0.0
      %2836 = vmatmul.mubr.f32.gmra.mrb[0].mxu0 %v1087
      %v2837 = vpop.f32.mrb[0].mxu0
      %v2838 = vadd.f32 0.0, %v2837
      %v2839 = vpop.f32.mrb[0].mxu0
      %2840 = vmatprep.mubr.f32.mxu0 0.0
      %2841 = vmatmul.mubr.f32.gmra.mrb[0].mxu0 %v1089
      %v2842 = vpop.f32.mrb[0].mxu0
      %v2843 = vadd.f32 0.0, %v2842
      %v2844 = vpop.f32.mrb[0].mxu0
      %2845 = vmatprep.mubr.f32.mxu0 0.0
      %2846 = vmatmul.mubr.f32.gmra.mrb[0].mxu0 %v1091
      %v2847 = vpop.f32.mrb[0].mxu0
      %v2848 = vadd.f32 0.0, %v2847
      %v2849 = vpop.f32.mrb[0].mxu0
      %2850 = vmatprep.mubr.f32.mxu0 0.0
      %2851 = vmatmul.mubr.f32.gmra.mrb[0].mxu0 %v1093
      %v2852 = vpop.f32.mrb[0].mxu0
      %v2853 = vadd.f32 0.0, %v2852
      %v2854 = vpop.f32.mrb[0].mxu0
      %2855 = vmatprep.mubr.f32.mxu0 0.0
      %2856 = vmatmul.mubr.f32.gmra.mrb[0].mxu0 %v1095
      %v2857 = vpop.f32.mrb[0].mxu0
      %v2858 = vadd.f32 0.0, %v2857
      %v2859 = vpop.f32.mrb[0].mxu0
      %2860 = vmatprep.mubr.f32.mxu0 0.0
      %2861 = vmatmul.mubr.f32.gmra.mrb[0].mxu0 %v1097
      %v2862 = vpop.f32.mrb[0].mxu0
      %v2863 = vadd.f32 0.0, %v2862
      %v2864 = vpop.f32.mrb[0].mxu0
      %2865 = vmatprep.mubr.f32.mxu0 0.0
      %2866 = vmatmul.mubr.f32.gmra.mrb[0].mxu0 %v1099
      %v2867 = vpop.f32.mrb[0].mxu0
      %v2868 = vadd.f32 0.0, %v2867
      %v2869 = vpop.f32.mrb[0].mxu0
      %2870 = vmatprep.mubr.f32.mxu0 0.0
      %2871 = vmatmul.mubr.f32.gmra.mrb[0].mxu0 %v1101
      %v2872 = vpop.f32.mrb[0].mxu0
      %v2873 = vadd.f32 0.0, %v2872
      %v2874 = vpop.f32.mrb[0].mxu0
      %2875 = vmatprep.mubr.f32.mxu0 0.0
      %2876 = vmatmul.mubr.f32.gmra.mrb[0].mxu0 %v1103
      %v2877 = vpop.f32.mrb[0].mxu0
      %v2878 = vadd.f32 0.0, %v2877
      %v2879 = vpop.f32.mrb[0].mxu0
      %2880 = vmatprep.mubr.f32.mxu0 0.0
      %2881 = vmatmul.mubr.f32.gmra.mrb[0].mxu0 %v1105
      %v2882 = vpop.f32.mrb[0].mxu0
      %v2883 = vadd.f32 0.0, %v2882
      %v2884 = vpop.f32.mrb[0].mxu0
      %2885 = vmatprep.mubr.f32.mxu0 0.0
      %2886 = vmatmul.mubr.f32.gmra.mrb[0].mxu0 %v1107
      %v2887 = vpop.f32.mrb[0].mxu0
      %v2888 = vadd.f32 0.0, %v2887
      %v2889 = vpop.f32.mrb[0].mxu0
      %2890 = vmatprep.mubr.f32.mxu0 0.0
      %2891 = vmatmul.mubr.f32.gmra.mrb[0].mxu0 %v1109
      %v2892 = vpop.f32.mrb[0].mxu0
      %v2893 = vadd.f32 0.0, %v2892
      %v2894 = vpop.f32.mrb[0].mxu0
      %2895 = vmatprep.mubr.f32.mxu0 0.0
      %2896 = vmatmul.mubr.f32.gmra.mrb[0].mxu0 %v1111
      %v2897 = vpop.f32.mrb[0].mxu0
      %v2898 = vadd.f32 0.0, %v2897
      %v2899 = vpop.f32.mrb[0].mxu0
      %2900 = vmatprep.mubr.f32.mxu0 0.0
      %2901 = vmatmul.mubr.f32.gmra.mrb[0].mxu0 %v1113
      %v2902 = vpop.f32.mrb[0].mxu0
      %v2903 = vadd.f32 0.0, %v2902
      %v2904 = vpop.f32.mrb[0].mxu0
      %2905 = vmatprep.mubr.f32.mxu0 0.0
      %2906 = vmatmul.mubr.f32.gmra.mrb[0].mxu0 %v1115
      %v2907 = vpop.f32.mrb[0].mxu0
      %v2908 = vadd.f32 0.0, %v2907
      %v2909 = vpop.f32.mrb[0].mxu0
      %2910 = vmatprep.mubr.f32.mxu0 0.0
      %2911 = vmatmul.mubr.f32.gmra.mrb[0].mxu0 %v1117
      %v2912 = vpop.f32.mrb[0].mxu0
      %v2913 = vadd.f32 0.0, %v2912
      %v2914 = vpop.f32.mrb[0].mxu0
      %2915 = vmatprep.mubr.f32.mxu0 0.0
      %2916 = vmatmul.mubr.f32.gmra.mrb[0].mxu0 %v1119
      %v2917 = vpop.f32.mrb[0].mxu0
      %v2918 = vadd.f32 0.0, %v2917
      %v2919 = vpop.f32.mrb[0].mxu0
      %2920 = vmatprep.mubr.f32.mxu0 0.0
      %2921 = vmatmul.mubr.f32.gmra.mrb[0].mxu0 %v1121
      %v2922 = vpop.f32.mrb[0].mxu0
      %v2923 = vadd.f32 0.0, %v2922
      %v2924 = vpop.f32.mrb[0].mxu0
      %2925 = vmatprep.mubr.f32.mxu0 0.0
      %2926 = vmatmul.mubr.f32.gmra.mrb[0].mxu0 %v1123
      %v2927 = vpop.f32.mrb[0].mxu0
      %v2928 = vadd.f32 0.0, %v2927
      %v2929 = vpop.f32.mrb[0].mxu0
      %2930 = vmatprep.mubr.f32.mxu0 0.0
      %2931 = vmatmul.mubr.f32.gmra.mrb[0].mxu0 %v1125
      %v2932 = vpop.f32.mrb[0].mxu0
      %v2933 = vadd.f32 0.0, %v2932
      %v2934 = vpop.f32.mrb[0].mxu0
      %2935 = vmatprep.mubr.f32.mxu0 0.0
      %2936 = vmatmul.mubr.f32.gmra.mrb[0].mxu0 %v1925
      %v2937 = vpop.f32.mrb[0].mxu0
      %v2938 = vadd.f32 0.0, %v2937
      %v2939 = vpop.f32.mrb[0].mxu0
      %2940 = vmatprep.mubr.f32.mxu0 0.0
      %2941 = vmatmul.mubr.f32.gmra.mrb[0].mxu0 %v1927
      %v2942 = vpop.f32.mrb[0].mxu0
      %v2943 = vadd.f32 0.0, %v2942
      %v2944 = vpop.f32.mrb[0].mxu0
      %2945 = vmatprep.mubr.f32.mxu0 0.0
      %2946 = vmatmul.mubr.f32.gmra.mrb[0].mxu0 %v2727
      %v2947 = vpop.f32.mrb[0].mxu0
      %v2948 = vadd.f32 0.0, %v2947
      %v2949 = vpop.f32.mrb[0].mxu0
      %2950 = vmatprep.mubr.f32.mxu0 0.0
      %2951 = vmatmul.mubr.f32.gmra.mrb[0].mxu0 %v2729
      %v2952 = vpop.f32.mrb[0].mxu0
      %v2953 = vadd.f32 0.0, %v2952
      %v2954 = vpop.f32.mrb[0].mxu0
      %2955 = vdwg.mxu0
      %v2956 = vadd.f32 %v2688, %v2798
      %v2957 = vadd.f32 %v2689, %v2803
      %v2958 = vadd.f32 %v2690, %v2808
      %v2959 = vadd.f32 %v2691, %v2813
      %v2960 = vadd.f32 %v2692, %v2818
      %v2961 = vadd.f32 %v2693, %v2823
      %v2962 = vadd.f32 %v2694, %v2828
      %v2963 = vadd.f32 %v2695, %v2833
      %v2964 = vadd.f32 %v2696, %v2838
      %v2965 = vadd.f32 %v2697, %v2843
      %v2966 = vadd.f32 %v2698, %v2848
      %v2967 = vadd.f32 %v2699, %v2853
      %v2968 = vadd.f32 %v2700, %v2858
      %v2969 = vadd.f32 %v2701, %v2863
      %v2970 = vadd.f32 %v2702, %v2868
      %v2971 = vadd.f32 %v2703, %v2873
      %v2972 = vadd.f32 %v2704, %v2878
      %v2973 = vadd.f32 %v2705, %v2883
      %v2974 = vadd.f32 %v2706, %v2888
      %v2975 = vadd.f32 %v2707, %v2893
      %v2976 = vadd.f32 %v2708, %v2898
      %v2977 = vadd.f32 %v2709, %v2903
      %v2978 = vadd.f32 %v2710, %v2908
      %v2979 = vadd.f32 %v2711, %v2913
      %v2980 = vadd.f32 %v2712, %v2918
      %v2981 = vadd.f32 %v2713, %v2923
      %v2982 = vadd.f32 %v2714, %v2928
      %v2983 = vadd.f32 %v2715, %v2933
      %v2984 = vadd.f32 %v2716, %v2938
      %v2985 = vadd.f32 %v2717, %v2943
      %v2986 = vadd.f32 %v2718, %v2948
      %v2987 = vadd.f32 %v2719, %v2953
      %vm2988 = vcmask 31744
      %v2989 = vsel %vm2988, %v2956, 0.0
      %v2990 = vsel %vm2988, %v2957, 0.0
      %v2991 = vadd.f32 %v2989, %v2990
      %v2992 = vsel %vm2988, %v2958, 0.0
      %v2993 = vadd.f32 %v2991, %v2992
      %v2994 = vsel %vm2988, %v2959, 0.0
      %v2995 = vadd.f32 %v2993, %v2994
      %v2996 = vsel %vm2988, %v2960, 0.0
      %v2997 = vadd.f32 %v2995, %v2996
      %v2998 = vsel %vm2988, %v2961, 0.0
      %v2999 = vadd.f32 %v2997, %v2998
      %v3000 = vsel %vm2988, %v2962, 0.0
      %v3001 = vadd.f32 %v2999, %v3000
      %v3002 = vsel %vm2988, %v2963, 0.0
      %v3003 = vadd.f32 %v3001, %v3002
      %v3004 = vsel %vm2988, %v2964, 0.0
      %v3005 = vadd.f32 %v3003, %v3004
      %v3006 = vsel %vm2988, %v2965, 0.0
      %v3007 = vadd.f32 %v3005, %v3006
      %v3008 = vsel %vm2988, %v2966, 0.0
      %v3009 = vadd.f32 %v3007, %v3008
      %v3010 = vsel %vm2988, %v2967, 0.0
      %v3011 = vadd.f32 %v3009, %v3010
      %v3012 = vsel %vm2988, %v2968, 0.0
      %v3013 = vadd.f32 %v3011, %v3012
      %v3014 = vsel %vm2988, %v2969, 0.0
      %v3015 = vadd.f32 %v3013, %v3014
      %v3016 = vsel %vm2988, %v2970, 0.0
      %v3017 = vadd.f32 %v3015, %v3016
      %v3018 = vsel %vm2988, %v2971, 0.0
      %v3019 = vadd.f32 %v3017, %v3018
      %v3020 = vsel %vm2988, %v2972, 0.0
      %v3021 = vadd.f32 %v3019, %v3020
      %v3022 = vsel %vm2988, %v2973, 0.0
      %v3023 = vadd.f32 %v3021, %v3022
      %v3024 = vsel %vm2988, %v2974, 0.0
      %v3025 = vadd.f32 %v3023, %v3024
      %v3026 = vsel %vm2988, %v2975, 0.0
      %v3027 = vadd.f32 %v3025, %v3026
      %v3028 = vsel %vm2988, %v2976, 0.0
      %v3029 = vadd.f32 %v3027, %v3028
      %v3030 = vsel %vm2988, %v2977, 0.0
      %v3031 = vadd.f32 %v3029, %v3030
      %v3032 = vsel %vm2988, %v2978, 0.0
      %v3033 = vadd.f32 %v3031, %v3032
      %v3034 = vsel %vm2988, %v2979, 0.0
      %v3035 = vadd.f32 %v3033, %v3034
      %v3036 = vsel %vm2988, %v2980, 0.0
      %v3037 = vadd.f32 %v3035, %v3036
      %v3038 = vsel %vm2988, %v2981, 0.0
      %v3039 = vadd.f32 %v3037, %v3038
      %v3040 = vsel %vm2988, %v2982, 0.0
      %v3041 = vadd.f32 %v3039, %v3040
      %v3042 = vsel %vm2988, %v2983, 0.0
      %v3043 = vadd.f32 %v3041, %v3042
      %v3044 = vsel %vm2988, %v2984, 0.0
      %v3045 = vadd.f32 %v3043, %v3044
      %v3046 = vsel %vm2988, %v2985, 0.0
      %v3047 = vadd.f32 %v3045, %v3046
      %v3048 = vsel %vm2988, %v2986, 0.0
      %v3049 = vadd.f32 %v3047, %v3048
      %v3050 = vsel %vm2988, %v2987, 0.0
      %v3051 = vadd.f32 %v3049, %v3050
      %v3052 = vrot.slane %v3051, 4
      %v3053 = vadd.f32 %v3051, %v3052
      %v3054 = vrot.slane %v3053, 2
      %v3055 = vadd.f32 %v3053, %v3054
      %v3056 = vrot.slane %v3055, 1
      %v3057 = vadd.f32 %v3055, %v3056
      %vm3058 = vcmask 24576
      %3059 = vst.msk [vmem:[%s211] sm:$0x1] %vm3058, %v3057
      %v3060 = vmul.f32 %v2956, %v2956
      %v3061 = vmul.f32 %v2957, %v2957
      %v3062 = vmul.f32 %v2958, %v2958
      %v3063 = vmul.f32 %v2959, %v2959
      %v3064 = vmul.f32 %v2960, %v2960
      %v3065 = vmul.f32 %v2961, %v2961
      %v3066 = vmul.f32 %v2962, %v2962
      %v3067 = vmul.f32 %v2963, %v2963
      %v3068 = vmul.f32 %v2964, %v2964
      %v3069 = vmul.f32 %v2965, %v2965
      %v3070 = vmul.f32 %v2966, %v2966
      %v3071 = vmul.f32 %v2967, %v2967
      %v3072 = vmul.f32 %v2968, %v2968
      %v3073 = vmul.f32 %v2969, %v2969
      %v3074 = vmul.f32 %v2970, %v2970
      %v3075 = vmul.f32 %v2971, %v2971
      %v3076 = vmul.f32 %v2972, %v2972
      %v3077 = vmul.f32 %v2973, %v2973
      %v3078 = vmul.f32 %v2974, %v2974
      %v3079 = vmul.f32 %v2975, %v2975
      %v3080 = vmul.f32 %v2976, %v2976
      %v3081 = vmul.f32 %v2977, %v2977
      %v3082 = vmul.f32 %v2978, %v2978
      %v3083 = vmul.f32 %v2979, %v2979
      %v3084 = vmul.f32 %v2980, %v2980
      %v3085 = vmul.f32 %v2981, %v2981
      %v3086 = vmul.f32 %v2982, %v2982
      %v3087 = vmul.f32 %v2983, %v2983
      %v3088 = vmul.f32 %v2984, %v2984
      %v3089 = vmul.f32 %v2985, %v2985
      %v3090 = vmul.f32 %v2986, %v2986
      %v3091 = vmul.f32 %v2987, %v2987
      %v3092 = vsel %vm2988, %v3060, 0.0
      %v3093 = vsel %vm2988, %v3061, 0.0
      %v3094 = vadd.f32 %v3092, %v3093
      %v3095 = vsel %vm2988, %v3062, 0.0
      %v3096 = vadd.f32 %v3094, %v3095
      %v3097 = vsel %vm2988, %v3063, 0.0
      %v3098 = vadd.f32 %v3096, %v3097
      %v3099 = vsel %vm2988, %v3064, 0.0
      %v3100 = vadd.f32 %v3098, %v3099
      %v3101 = vsel %vm2988, %v3065, 0.0
      %v3102 = vadd.f32 %v3100, %v3101
      %v3103 = vsel %vm2988, %v3066, 0.0
      %v3104 = vadd.f32 %v3102, %v3103
      %v3105 = vsel %vm2988, %v3067, 0.0
      %v3106 = vadd.f32 %v3104, %v3105
      %v3107 = vsel %vm2988, %v3068, 0.0
      %v3108 = vadd.f32 %v3106, %v3107
      %v3109 = vsel %vm2988, %v3069, 0.0
      %v3110 = vadd.f32 %v3108, %v3109
      %v3111 = vsel %vm2988, %v3070, 0.0
      %v3112 = vadd.f32 %v3110, %v3111
      %v3113 = vsel %vm2988, %v3071, 0.0
      %v3114 = vadd.f32 %v3112, %v3113
      %v3115 = vsel %vm2988, %v3072, 0.0
      %v3116 = vadd.f32 %v3114, %v3115
      %v3117 = vsel %vm2988, %v3073, 0.0
      %v3118 = vadd.f32 %v3116, %v3117
      %v3119 = vsel %vm2988, %v3074, 0.0
      %v3120 = vadd.f32 %v3118, %v3119
      %v3121 = vsel %vm2988, %v3075, 0.0
      %v3122 = vadd.f32 %v3120, %v3121
      %v3123 = vsel %vm2988, %v3076, 0.0
      %v3124 = vadd.f32 %v3122, %v3123
      %v3125 = vsel %vm2988, %v3077, 0.0
      %v3126 = vadd.f32 %v3124, %v3125
      %v3127 = vsel %vm2988, %v3078, 0.0
      %v3128 = vadd.f32 %v3126, %v3127
      %v3129 = vsel %vm2988, %v3079, 0.0
      %v3130 = vadd.f32 %v3128, %v3129
      %v3131 = vsel %vm2988, %v3080, 0.0
      %v3132 = vadd.f32 %v3130, %v3131
      %v3133 = vsel %vm2988, %v3081, 0.0
      %v3134 = vadd.f32 %v3132, %v3133
      %v3135 = vsel %vm2988, %v3082, 0.0
      %v3136 = vadd.f32 %v3134, %v3135
      %v3137 = vsel %vm2988, %v3083, 0.0
      %v3138 = vadd.f32 %v3136, %v3137
      %v3139 = vsel %vm2988, %v3084, 0.0
      %v3140 = vadd.f32 %v3138, %v3139
      %v3141 = vsel %vm2988, %v3085, 0.0
      %v3142 = vadd.f32 %v3140, %v3141
      %v3143 = vsel %vm2988, %v3086, 0.0
      %v3144 = vadd.f32 %v3142, %v3143
      %v3145 = vsel %vm2988, %v3087, 0.0
      %v3146 = vadd.f32 %v3144, %v3145
      %v3147 = vsel %vm2988, %v3088, 0.0
      %v3148 = vadd.f32 %v3146, %v3147
      %v3149 = vsel %vm2988, %v3089, 0.0
      %v3150 = vadd.f32 %v3148, %v3149
      %v3151 = vsel %vm2988, %v3090, 0.0
      %v3152 = vadd.f32 %v3150, %v3151
      %v3153 = vsel %vm2988, %v3091, 0.0
      %v3154 = vadd.f32 %v3152, %v3153
      %v3155 = vrot.slane %v3154, 4
      %v3156 = vadd.f32 %v3154, %v3155
      %v3157 = vrot.slane %v3156, 2
      %v3158 = vadd.f32 %v3156, %v3157
      %v3159 = vrot.slane %v3158, 1
      %v3160 = vadd.f32 %v3158, %v3159
      %3161 = vst.msk [vmem:[%s214] sm:$0x1] %vm3058, %v3160
      %3162 = vst.msk [vmem:[%s208] sm:$0xff] %vm2988, 0.0
      %3163 = vst.msk [vmem:[%s208 + $0x8] sm:$0xff] %vm2988, 0.0
      %vm3164 = vcmask 25600
      %3165 = vst.msk [vmem:[%s208 + $0x10] sm:$0x3] %vm3164, 0.0
      %3166 = vst.msk [vmem:[%s208 + $0x18] sm:$0xff] %vm2988, 0.0
      %3167 = vst.msk [vmem:[%s208 + $0x20] sm:$0xff] %vm2988, 0.0
      %3168 = vst.msk [vmem:[%s208 + $0x28] sm:$0x3] %vm3164, 0.0
      %3169 = vst.msk [vmem:[%s208 + $0x30] sm:$0xff] %vm2988, 0.0
      %3170 = vst.msk [vmem:[%s208 + $0x38] sm:$0xff] %vm2988, 0.0
      %3171 = vst.msk [vmem:[%s208 + $0x40] sm:$0x3] %vm3164, 0.0
      %3172 = vst.msk [vmem:[%s208 + $0x48] sm:$0xff] %vm2988, 0.0
      %3173 = vst.msk [vmem:[%s208 + $0x50] sm:$0xff] %vm2988, 0.0
      %3174 = vst.msk [vmem:[%s208 + $0x58] sm:$0x3] %vm3164, 0.0
      %3175 = vst.msk [vmem:[%s208 + $0x60] sm:$0xff] %vm2988, 0.0
      %3176 = vst.msk [vmem:[%s208 + $0x68] sm:$0xff] %vm2988, 0.0
      %3177 = vst.msk [vmem:[%s208 + $0x70] sm:$0x3] %vm3164, 0.0
      %3178 = vst.msk [vmem:[%s208 + $0x78] sm:$0xff] %vm2988, 0.0
      %3179 = vst.msk [vmem:[%s208 + $0x80] sm:$0xff] %vm2988, 0.0
      %3180 = vst.msk [vmem:[%s208 + $0x88] sm:$0x3] %vm3164, 0.0
      %3181 = vst.msk [vmem:[%s208 + $0x90] sm:$0xff] %vm2988, 0.0
      %3182 = vst.msk [vmem:[%s208 + $0x98] sm:$0xff] %vm2988, 0.0
      %3183 = vst.msk [vmem:[%s208 + $0xa0] sm:$0x3] %vm3164, 0.0
      %3184 = vst.msk [vmem:[%s208 + $0xa8] sm:$0xff] %vm2988, 0.0
      %3185 = vst.msk [vmem:[%s208 + $0xb0] sm:$0xff] %vm2988, 0.0
      %3186 = vst.msk [vmem:[%s208 + $0xb8] sm:$0x3] %vm3164, 0.0
      %3187 = vst.msk [vmem:[%s208 + $0xc0] sm:$0xff] %vm2988, 0.0
      %3188 = vst.msk [vmem:[%s208 + $0xc8] sm:$0xff] %vm2988, 0.0
      %3189 = vst.msk [vmem:[%s208 + $0xd0] sm:$0x3] %vm3164, 0.0
      %3190 = vst.msk [vmem:[%s208 + $0xd8] sm:$0xff] %vm2988, 0.0
      %3191 = vst.msk [vmem:[%s208 + $0xe0] sm:$0xff] %vm2988, 0.0
      %3192 = vst.msk [vmem:[%s208 + $0xe8] sm:$0x3] %vm3164, 0.0
      %3193 = vst.msk [vmem:[%s208 + $0xf0] sm:$0xff] %vm2988, 0.0
      %3194 = vst.msk [vmem:[%s208 + $0xf8] sm:$0xff] %vm2988, 0.0
      %3195 = vst.msk [vmem:[%s208 + $0x100] sm:$0x3] %vm3164, 0.0
      %3196 = vst.msk [vmem:[%s208 + $0x108] sm:$0xff] %vm2988, 0.0
      %3197 = vst.msk [vmem:[%s208 + $0x110] sm:$0xff] %vm2988, 0.0
      %3198 = vst.msk [vmem:[%s208 + $0x118] sm:$0x3] %vm3164, 0.0
      %3199 = vst.msk [vmem:[%s208 + $0x120] sm:$0xff] %vm2988, 0.0
      %3200 = vst.msk [vmem:[%s208 + $0x128] sm:$0xff] %vm2988, 0.0
      %3201 = vst.msk [vmem:[%s208 + $0x130] sm:$0x3] %vm3164, 0.0
      %3202 = vst.msk [vmem:[%s208 + $0x138] sm:$0xff] %vm2988, 0.0
      %3203 = vst.msk [vmem:[%s208 + $0x140] sm:$0xff] %vm2988, 0.0
      %3204 = vst.msk [vmem:[%s208 + $0x148] sm:$0x3] %vm3164, 0.0
      %3205 = vst.msk [vmem:[%s208 + $0x150] sm:$0xff] %vm2988, 0.0
      %3206 = vst.msk [vmem:[%s208 + $0x158] sm:$0xff] %vm2988, 0.0
      %3207 = vst.msk [vmem:[%s208 + $0x160] sm:$0x3] %vm3164, 0.0
      %3208 = vst.msk [vmem:[%s208 + $0x168] sm:$0xff] %vm2988, 0.0
      %3209 = vst.msk [vmem:[%s208 + $0x170] sm:$0xff] %vm2988, 0.0
      %3210 = vst.msk [vmem:[%s208 + $0x178] sm:$0x3] %vm3164, 0.0
      %3211 = vst.msk [vmem:[%s208 + $0x180] sm:$0xff] %vm2988, 0.0
      %3212 = vst.msk [vmem:[%s208 + $0x188] sm:$0xff] %vm2988, 0.0
      %3213 = vst.msk [vmem:[%s208 + $0x190] sm:$0x3] %vm3164, 0.0
      %3214 = vst.msk [vmem:[%s208 + $0x198] sm:$0xff] %vm2988, 0.0
      %3215 = vst.msk [vmem:[%s208 + $0x1a0] sm:$0xff] %vm2988, 0.0
      %3216 = vst.msk [vmem:[%s208 + $0x1a8] sm:$0x3] %vm3164, 0.0
      %s3217 = scalar_lea.vmem %s208, 24
      %3218 = vst.msk [vmem:[%s3217 + $0x1] sm:$0xff] %vm2988, %v2956
      %3219 = vst.msk [vmem:[%s3217 + $0x9] sm:$0xff] %vm2988, %v2957
      %3220 = vst.msk [vmem:[%s3217 + $0x19] sm:$0xff] %vm2988, %v2958
      %3221 = vst.msk [vmem:[%s3217 + $0x21] sm:$0xff] %vm2988, %v2959
      %3222 = vst.msk [vmem:[%s3217 + $0x31] sm:$0xff] %vm2988, %v2960
      %3223 = vst.msk [vmem:[%s3217 + $0x39] sm:$0xff] %vm2988, %v2961
      %3224 = vst.msk [vmem:[%s3217 + $0x49] sm:$0xff] %vm2988, %v2962
      %3225 = vst.msk [vmem:[%s3217 + $0x51] sm:$0xff] %vm2988, %v2963
      %3226 = vst.msk [vmem:[%s3217 + $0x61] sm:$0xff] %vm2988, %v2964
      %3227 = vst.msk [vmem:[%s3217 + $0x69] sm:$0xff] %vm2988, %v2965
      %3228 = vst.msk [vmem:[%s3217 + $0x79] sm:$0xff] %vm2988, %v2966
      %3229 = vst.msk [vmem:[%s3217 + $0x81] sm:$0xff] %vm2988, %v2967
      %3230 = vst.msk [vmem:[%s3217 + $0x91] sm:$0xff] %vm2988, %v2968
      %3231 = vst.msk [vmem:[%s3217 + $0x99] sm:$0xff] %vm2988, %v2969
      %3232 = vst.msk [vmem:[%s3217 + $0xa9] sm:$0xff] %vm2988, %v2970
      %3233 = vst.msk [vmem:[%s3217 + $0xb1] sm:$0xff] %vm2988, %v2971
      %3234 = vst.msk [vmem:[%s3217 + $0xc1] sm:$0xff] %vm2988, %v2972
      %3235 = vst.msk [vmem:[%s3217 + $0xc9] sm:$0xff] %vm2988, %v2973
      %3236 = vst.msk [vmem:[%s3217 + $0xd9] sm:$0xff] %vm2988, %v2974
      %3237 = vst.msk [vmem:[%s3217 + $0xe1] sm:$0xff] %vm2988, %v2975
      %3238 = vst.msk [vmem:[%s3217 + $0xf1] sm:$0xff] %vm2988, %v2976
      %3239 = vst.msk [vmem:[%s3217 + $0xf9] sm:$0xff] %vm2988, %v2977
      %3240 = vst.msk [vmem:[%s3217 + $0x109] sm:$0xff] %vm2988, %v2978
      %3241 = vst.msk [vmem:[%s3217 + $0x111] sm:$0xff] %vm2988, %v2979
      %3242 = vst.msk [vmem:[%s3217 + $0x121] sm:$0xff] %vm2988, %v2980
      %3243 = vst.msk [vmem:[%s3217 + $0x129] sm:$0xff] %vm2988, %v2981
      %3244 = vst.msk [vmem:[%s3217 + $0x139] sm:$0xff] %vm2988, %v2982
      %3245 = vst.msk [vmem:[%s3217 + $0x141] sm:$0xff] %vm2988, %v2983
      %3246 = vst.msk [vmem:[%s3217 + $0x151] sm:$0xff] %vm2988, %v2984
      %3247 = vst.msk [vmem:[%s3217 + $0x159] sm:$0xff] %vm2988, %v2985
      %3248 = vst.msk [vmem:[%s3217 + $0x169] sm:$0xff] %vm2988, %v2986
      %3249 = vst.msk [vmem:[%s3217 + $0x171] sm:$0xff] %vm2988, %v2987
      %p3250 = scmp.lt.s32.totalorder %s16, 1
      %s3251 = scalar_select %p3250, %s16, 1
      %s3252 = smul.addr %s3251, 54
      %s3253 = smul.addr %s3252, 8
      %s3254 = scalar_lea.vmem %s2, %s3253
      %p3255 = scmp.lt.s32.totalorder %s16, 1
      %s3256 = scalar_select %p3255, %s16, 1
      %s3257 = scalar_lea.vmem %s3, %s3256
      %p3258 = scmp.lt.s32.totalorder %s16, 1
      %s3259 = scalar_select %p3258, %s16, 1
      %s3260 = scalar_lea.vmem %s4, %s3259
      // Predicated region
      $region29: #{up_forward.5} parent=27 // pred_check
        %p3261 = pneg %p81
      $region30: #{up_forward.5} parent=27 // pred_check_branch
        %3263 = sbr.rel (%p3261) target = $region32
      $region31: #{up_forward.5} parent=27 // pred_region
        _
      $region32: #{up_forward.5} parent=27 // pred_fallthru
        _
      // Predicated region
      $region33: #{up_forward.5} parent=27 // pred_check
        %p3264 = pneg %p107
      $region34: #{up_forward.5} parent=27 // pred_check_branch
        %3266 = sbr.rel (%p3264) target = $region36
      $region35: #{up_forward.5} parent=27 // pred_region
        _
      $region36: #{up_forward.5} parent=27 // pred_fallthru
        _
      // Predicated region
      $region37: #{up_forward.5} parent=27 // pred_check
        %p3267 = pneg %p133
      $region38: #{up_forward.5} parent=27 // pred_check_branch
        %3269 = sbr.rel (%p3267) target = $region40
      $region39: #{up_forward.5} parent=27 // pred_region
        _
      $region40: #{up_forward.5} parent=27 // pred_fallthru
        _
    $region28: #{up_forward.5} parent=5 // pred_fallthru
      _
    %p3270 = scmp.le.s32.totalorder 2, %s11
    // Predicated region
    $region41: #{up_forward.5} parent=5 // pred_check
      %p3271 = pneg %p3270
    $region42: #{up_forward.5} parent=5 // pred_check_branch
      %3273 = sbr.rel (%p3271) target = $region44
    $region43: #{up_forward.5} parent=5 // pred_region
      %s3274 = ssub.s32 %s11, 2
      // Predicated region
      $region45: #{up_forward.5} parent=43 // pred_check
        %p3275 = pneg %p87
      $region46: #{up_forward.5} parent=43 // pred_check_branch
        %3277 = sbr.rel (%p3275) target = $region48
      $region47: #{up_forward.5} parent=43 // pred_region
        %p3278 = scmp.lt.s32.totalorder %s17, 1
        %s3279 = scalar_select %p3278, %s17, 1
        %s3280 = smul.addr %s3279, 54
        %s3281 = smul.addr %s3280, 8
        %s3282 = scalar_lea.vmem %s2, %s3281
      $region48: #{up_forward.5} parent=43 // pred_fallthru
        _
      // Predicated region
      $region49: #{up_forward.5} parent=43 // pred_check
        %p3283 = pneg %p113
      $region50: #{up_forward.5} parent=43 // pred_check_branch
        %3285 = sbr.rel (%p3283) target = $region52
      $region51: #{up_forward.5} parent=43 // pred_region
        %p3286 = scmp.lt.s32.totalorder %s17, 1
        %s3287 = scalar_select %p3286, %s17, 1
        %s3288 = scalar_lea.vmem %s3, %s3287
      $region52: #{up_forward.5} parent=43 // pred_fallthru
        _
      // Predicated region
      $region53: #{up_forward.5} parent=43 // pred_check
        %p3289 = pneg %p139
      $region54: #{up_forward.5} parent=43 // pred_check_branch
        %3291 = sbr.rel (%p3289) target = $region56
      $region55: #{up_forward.5} parent=43 // pred_region
        %p3292 = scmp.lt.s32.totalorder %s17, 1
        %s3293 = scalar_select %p3292, %s17, 1
        %s3294 = scalar_lea.vmem %s4, %s3293
      $region56: #{up_forward.5} parent=43 // pred_fallthru
        _
    $region44: #{up_forward.5} parent=5 // pred_fallthru
      _
  $region6: #{up_forward.5} parent=0 // loop_footer
    %s15 = sadd.s32 1, %s11
  $region7: #{up_forward.5} parent=0 // loop_footer_branch
    %10 = sbr.rel target = $region3
  $region8: #{up_forward.5} parent=0 // loop_exit
    _

</llo_original>
